<compile_context>
chip_gen: v6e
topology: v6e:2x2x1
jax: 0.10.0
libtpu: 0.0.40
codegen_flags: <defaults>
</compile_context>

<pallas_src>
import functools

import jax
import jax.numpy as jnp
from jax.experimental import pallas as pl
from jax.experimental.pallas import tpu as pltpu

EPS = 1e-5


def _round_up(x, m):
    return ((x + m - 1) // m) * m


def _pair(v):
    return (v, v) if isinstance(v, int) else (int(v[0]), int(v[1]))


# ------------------------------ kernel bodies --------------------------------
def _conv_taps(x_ref, w_ref, *, kh, kw, oh, ow, nb, cin):
    """Conv as shifted matmuls: sum_t window_t @ W_t -> (nb*oh*ow, Cout) f32.

    x_ref: (nb, Hp, Wp, cin) bf16 padded input block (Hp = oh + kh - 1, ...).
    w_ref: (kh*kw, cin, Cout) bf16 per-tap weights (resident across the grid).
    The (nb, oh, ow, cin) -> (nb*oh*ow, cin) collapse keeps the lane dim fixed;
    it is a tile-aligned (free) relayout when ow is a multiple of the sublane
    packing (8 f32 / 16 bf16), as in the demo (ow = 16).
    """
    rows = nb * oh * ow
    acc = None
    for i in range(kh):
        for j in range(kw):
            win = x_ref[:, i:i + oh, j:j + ow, :]           # (nb, oh, ow, cin)
            flat = win.reshape(rows, cin)
            part = jnp.dot(flat, w_ref[i * kw + j],
                           preferred_element_type=jnp.float32)
            acc = part if acc is None else acc + part
    return acc                                               # (rows, Cout) f32


def _stats_kernel(x_ref, w_ref, st_ref, *, kh, kw, oh, ow, nb, cin):
    # st_ref: (1, 2, Cout) f32 -- per-tile [sum; sum-of-squares] over rows.
    g = _conv_taps(x_ref, w_ref, kh=kh, kw=kw, oh=oh, ow=ow, nb=nb, cin=cin)
    st_ref[0, 0:1, :] = jnp.sum(g, axis=0, keepdims=True)
    st_ref[0, 1:2, :] = jnp.sum(g * g, axis=0, keepdims=True)


def _apply_kernel(x_ref, w_ref, scale_ref, shift_ref, o_ref,
                  *, kh, kw, oh, ow, nb, cin):
    # Recompute the conv for this tile and apply the folded BN affine.
    g = _conv_taps(x_ref, w_ref, kh=kh, kw=kw, oh=oh, ow=ow, nb=nb, cin=cin)
    o_ref[0] = g * scale_ref[...] + shift_ref[...]


# ------------------------------- JAX wrapper ----------------------------------
@functools.partial(
    jax.jit,
    static_argnames=("kernel_size", "padding", "stride", "tile_rows",
                     "compute_dtype", "out_layout"))
def convgate_forward(x, hidden, wx, bx, wh, bh, gamma, beta, *,
                     kernel_size=3, padding=1, stride=1,
                     tile_rows=2048, compute_dtype=jnp.bfloat16,
                     out_layout="NCHW"):
    """ConvGate forward: BatchNorm2d(conv_x(x) + conv_h(hidden)), training mode."""
    kh, kw = _pair(kernel_size)
    ph, pw = _pair(padding)
    sh, sw = _pair(stride)
    if (sh, sw) != (1, 1):
        # TODO(synk): stride > 1 needs strided window slices in _conv_taps.
        raise NotImplementedError("convgate_forward supports stride=1 only")
    del bx, bh  # Conv biases cancel exactly under training-mode BatchNorm.

    N, cin_x, H, W = x.shape
    chid = hidden.shape[1]
    cout = 4 * chid
    cin = cin_x + chid
    OH = H + 2 * ph - kh + 1
    OW = W + 2 * pw - kw + 1
    Hp = H + 2 * ph
    Wp = W + 2 * pw
    rows_per_img = OH * OW
    M = N * rows_per_img

    # --- batch-chunk tiling --------------------------------------------------
    # Big tiles amortize the ~0.35us/step overhead, but keep >= 2 grid steps
    # when N allows (v7x: two TensorCores share the "parallel" axis), and cap
    # the chunk by a VMEM estimate (v7x has half the VMEM of v5e/v6e).
    def vmem_estimate(nb_):
        lane = 128
        in_b = 2 * nb_ * Hp * _round_up(Wp, 16) * lane * 2          # bf16, 2 bufs
        w_b = kh * kw * _round_up(cin, 16) * lane * 2
        out_b = 2 * _round_up(nb_ * rows_per_img, 8) * lane * 4     # f32, 2 bufs
        tmp_b = 4 * nb_ * rows_per_img * lane * 4                   # kernel temps
        return in_b + w_b + out_b + tmp_b

    nb = max(1, min(max(1, tile_rows // rows_per_img), max(1, N // 2), N))
    while nb > 1 and vmem_estimate(nb) > (12 << 20):
        nb -= 1
    Npad = _round_up(N, nb)
    num_tiles = Npad // nb
    rows = nb * rows_per_img

    # --- XLA-side prep: NCHW->NHWC, channel concat, zero pad, bf16 cast ------
    x_nhwc = jnp.transpose(x, (0, 2, 3, 1))
    h_nhwc = jnp.transpose(hidden, (0, 2, 3, 1))
    inp = jnp.concatenate([x_nhwc, h_nhwc], axis=-1).astype(compute_dtype)
    inp = jnp.pad(inp, ((0, Npad - N), (ph, ph), (pw, pw), (0, 0)))

    # Stacked per-tap weights (kh*kw, cin_x+chid, cout), matching channel concat.
    wx_t = jnp.transpose(wx, (2, 3, 1, 0)).reshape(kh * kw, cin_x, cout)
    wh_t = jnp.transpose(wh, (2, 3, 1, 0)).reshape(kh * kw, chid, cout)
    w_all = jnp.concatenate([wx_t, wh_t], axis=1).astype(compute_dtype)

    conv_flops = 2 * Npad * rows_per_img * (kh * kw * cin) * cout
    in_bytes = inp.size * inp.dtype.itemsize + w_all.size * w_all.dtype.itemsize

    # --- Pass 1: per-tile streaming BN stats (gated never written to HBM) ----
    stats = pl.pallas_call(
        functools.partial(_stats_kernel, kh=kh, kw=kw, oh=OH, ow=OW,
                          nb=nb, cin=cin),
        out_shape=jax.ShapeDtypeStruct((num_tiles, 2, cout), jnp.float32),
        grid=(num_tiles,),
        in_specs=[
            pl.BlockSpec((nb, Hp, Wp, cin), lambda i: (i, 0, 0, 0)),
            pl.BlockSpec((kh * kw, cin, cout), lambda i: (0, 0, 0)),  # resident
        ],
        out_specs=pl.BlockSpec((1, 2, cout), lambda i: (i, 0, 0)),
        compiler_params=pltpu.CompilerParams(
            dimension_semantics=("parallel",)),
        cost_estimate=pl.CostEstimate(
            flops=conv_flops, transcendentals=0,
            bytes_accessed=in_bytes + num_tiles * 2 * cout * 4),
    )(inp, w_all)

    # --- Tiny stats reduction + BN scale/shift fold (plain JAX glue) ---------
    # NOTE: E[g^2]-E[g]^2 in f32; switch to a Welford/Chan combine of the
    # per-tile stats if |mean| >> std or M grows very large.
    s = jnp.sum(stats[:, 0, :], axis=0)
    ss = jnp.sum(stats[:, 1, :], axis=0)
    mean = s / M
    var = jnp.maximum(ss / M - mean * mean, 0.0)            # biased variance
    inv_std = jax.lax.rsqrt(var + EPS)
    gamma32 = gamma.astype(jnp.float32)
    scale = (gamma32 * inv_std).reshape(1, cout)
    shift = (beta.astype(jnp.float32) - mean * gamma32 * inv_std).reshape(1, cout)

    # --- Pass 2: recompute conv, apply scale/shift, narrow Cout stores -------
    out_tiles = pl.pallas_call(
        functools.partial(_apply_kernel, kh=kh, kw=kw, oh=OH, ow=OW,
                          nb=nb, cin=cin),
        out_shape=jax.ShapeDtypeStruct((num_tiles, rows, cout), jnp.float32),
        grid=(num_tiles,),
        in_specs=[
            pl.BlockSpec((nb, Hp, Wp, cin), lambda i: (i, 0, 0, 0)),
            pl.BlockSpec((kh * kw, cin, cout), lambda i: (0, 0, 0)),  # resident
            pl.BlockSpec((1, cout), lambda i: (0, 0)),
            pl.BlockSpec((1, cout), lambda i: (0, 0)),
        ],
        out_specs=pl.BlockSpec((1, rows, cout), lambda i: (i, 0, 0)),
        compiler_params=pltpu.CompilerParams(
            dimension_semantics=("parallel",)),
        cost_estimate=pl.CostEstimate(
            flops=conv_flops, transcendentals=0,
            bytes_accessed=in_bytes + Npad * rows_per_img * cout * 4),
    )(inp, w_all, scale, shift)

    out = out_tiles.reshape(Npad * rows_per_img, cout)[:M]
    out = out.reshape(N, OH, OW, cout)                 # free row-major reshape
    if out_layout == "NHWC":
        return out                                     # skips the final transpose
    return jnp.transpose(out, (0, 3, 1, 2))            # NCHW to match the module


# Pure-JAX reference (lax conv + batch-norm) for correctness checking.
def convgate_reference(x, h, wx, bx, wh, bh, gamma, beta, padding=1, stride=1,
                       conv_dtype=jnp.float32):
    dn = ("NCHW", "OIHW", "NCHW")

    def conv(a, w):
        return jax.lax.conv_general_dilated(
            a.astype(conv_dtype), w.astype(conv_dtype), (stride, stride),
            ((padding, padding), (padding, padding)), dimension_numbers=dn,
            preferred_element_type=jnp.float32)

    g = conv(x, wx) + conv(h, wh) + (bx + bh)[None, :, None, None]
    mean = g.mean(axis=(0, 2, 3), keepdims=True)
    var = ((g - mean) ** 2).mean(axis=(0, 2, 3), keepdims=True)
    return (gamma[None, :, None, None] * (g - mean) /
            jnp.sqrt(var + EPS) + beta[None, :, None, None])


if __name__ == "__main__":
    # Small shapes consistent with the module: batch=2, in_channels=4,
    # hidden_channels=8 (-> Cout=32), 16x16 spatial, 3x3 conv, pad 1, stride 1.
    N, Cin, H, W = 2, 4, 16, 16
    Chid = 8
    Cout = 4 * Chid
    k, pad, stride = 3, 1, 1

    key = jax.random.PRNGKey(0)
    kx, khid, kwx, kbx, kwh, kbh = jax.random.split(key, 6)

    x = jax.random.normal(kx, (N, Cin, H, W), dtype=jnp.float32)
    hidden = jax.random.normal(khid, (N, Chid, H, W), dtype=jnp.float32)

    # Deterministic parameters (shapes from ConvGate.__init__, bias=True).
    wx = 0.1 * jax.random.normal(kwx, (Cout, Cin, k, k), dtype=jnp.float32)
    bx = 0.1 * jax.random.normal(kbx, (Cout,), dtype=jnp.float32)
    wh = 0.1 * jax.random.normal(kwh, (Cout, Chid, k, k), dtype=jnp.float32)
    bh = 0.1 * jax.random.normal(kbh, (Cout,), dtype=jnp.float32)
    gamma = jnp.ones((Cout,), dtype=jnp.float32)       # BatchNorm2d default init
    beta = jnp.zeros((Cout,), dtype=jnp.float32)

    # tile_rows=512 with the >=2-tile rule -> 2 grid steps of 256 rows each.
    out = convgate_forward(x, hidden, wx, bx, wh, bh, gamma, beta,
                           kernel_size=k, padding=pad, stride=stride,
                           tile_rows=512)
    out = jax.block_until_ready(out)
    assert out.shape == (N, Cout, H, W), out.shape

    # Tight check vs a precision-matched reference (bf16 conv inputs, f32 accum).
    ref_bf16 = convgate_reference(x, hidden, wx, bx, wh, bh, gamma, beta,
                                  padding=pad, stride=stride,
                                  conv_dtype=jnp.bfloat16)
    err_bf16 = float(jnp.max(jnp.abs(out - ref_bf16)))
    assert err_bf16 < 5e-4, ("bf16-matched reference mismatch", err_bf16)

    # Loose sanity check vs the full-f32 PyTorch-equivalent reference.
    ref_f32 = convgate_reference(x, hidden, wx, bx, wh, bh, gamma, beta,
                                 padding=pad, stride=stride,
                                 conv_dtype=jnp.float32)
    err_f32 = float(jnp.max(jnp.abs(out - ref_f32)))
    assert err_f32 < 5e-2, ("f32 reference mismatch", err_f32)

    print("KERNEL_OK")
</pallas_src>

<mosaic_0001>
module attributes {stable_mosaic.version = 11 : i64} {
  func.func @_stats_kernel(%arg0: i32, %arg1: memref<1x18x18x12xbf16, #tpu.memory_space<vmem>>, %arg2: memref<9x12x32xbf16, #tpu.memory_space<vmem>>, %arg3: memref<1x2x32xf32, #tpu.memory_space<vmem>>) attributes {dimension_semantics = [#tpu.dimension_semantics<parallel>], iteration_bounds = array<i64: 2>, scalar_prefetch = 0 : i64, scratch_operands = 0 : i64, tpu.core_type = #tpu.core_type<tc>, window_params = [{transform_indices = @transform_0, window_bounds = array<i64: 1, 18, 18, 12>}, {pipeline_mode = #tpu.pipeline_mode<synchronous>, transform_indices = @transform_1, window_bounds = array<i64: 9, 12, 32>}, {transform_indices = @transform_2, window_bounds = array<i64: 1, 2, 32>}]} {
    %c0 = arith.constant 0 : index
    %c0_0 = arith.constant 0 : index
    %c0_1 = arith.constant 0 : index
    %c0_2 = arith.constant 0 : index
    %0 = vector.load %arg1[%c0, %c0_0, %c0_1, %c0_2] : memref<1x18x18x12xbf16, #tpu.memory_space<vmem>>, vector<1x16x16x12xbf16>
    %1 = vector.shape_cast %0 : vector<1x16x16x12xbf16> to vector<256x12xbf16>
    %c0_3 = arith.constant 0 : index
    %c0_4 = arith.constant 0 : index
    %c0_5 = arith.constant 0 : index
    %2 = vector.load %arg2[%c0_3, %c0_4, %c0_5] : memref<9x12x32xbf16, #tpu.memory_space<vmem>>, vector<1x12x32xbf16>
    %3 = vector.shape_cast %2 : vector<1x12x32xbf16> to vector<12x32xbf16>
    %cst = arith.constant dense<0.000000e+00> : vector<256x32xf32>
    %4 = tpu.matmul %1, %3, %cst {dimension_numbers = #tpu.dot_dimension_numbers<[1], [0], [0], [1], [0, 0, 1, 1], [], []>} : vector<256x12xbf16>, vector<12x32xbf16>, vector<256x32xf32> -> vector<256x32xf32>
    %c0_6 = arith.constant 0 : index
    %c0_7 = arith.constant 0 : index
    %c1 = arith.constant 1 : index
    %c0_8 = arith.constant 0 : index
    %5 = vector.load %arg1[%c0_6, %c0_7, %c1, %c0_8] : memref<1x18x18x12xbf16, #tpu.memory_space<vmem>>, vector<1x16x16x12xbf16>
    %6 = vector.shape_cast %5 : vector<1x16x16x12xbf16> to vector<256x12xbf16>
    %c1_9 = arith.constant 1 : index
    %c0_10 = arith.constant 0 : index
    %c0_11 = arith.constant 0 : index
    %7 = vector.load %arg2[%c1_9, %c0_10, %c0_11] : memref<9x12x32xbf16, #tpu.memory_space<vmem>>, vector<1x12x32xbf16>
    %8 = vector.shape_cast %7 : vector<1x12x32xbf16> to vector<12x32xbf16>
    %cst_12 = arith.constant dense<0.000000e+00> : vector<256x32xf32>
    %9 = tpu.matmul %6, %8, %cst_12 {dimension_numbers = #tpu.dot_dimension_numbers<[1], [0], [0], [1], [0, 0, 1, 1], [], []>} : vector<256x12xbf16>, vector<12x32xbf16>, vector<256x32xf32> -> vector<256x32xf32>
    %10 = arith.addf %4, %9 : vector<256x32xf32>
    %c0_13 = arith.constant 0 : index
    %c0_14 = arith.constant 0 : index
    %c2 = arith.constant 2 : index
    %c0_15 = arith.constant 0 : index
    %11 = vector.load %arg1[%c0_13, %c0_14, %c2, %c0_15] : memref<1x18x18x12xbf16, #tpu.memory_space<vmem>>, vector<1x16x16x12xbf16>
    %12 = vector.shape_cast %11 : vector<1x16x16x12xbf16> to vector<256x12xbf16>
    %c2_16 = arith.constant 2 : index
    %c0_17 = arith.constant 0 : index
    %c0_18 = arith.constant 0 : index
    %13 = vector.load %arg2[%c2_16, %c0_17, %c0_18] : memref<9x12x32xbf16, #tpu.memory_space<vmem>>, vector<1x12x32xbf16>
    %14 = vector.shape_cast %13 : vector<1x12x32xbf16> to vector<12x32xbf16>
    %cst_19 = arith.constant dense<0.000000e+00> : vector<256x32xf32>
    %15 = tpu.matmul %12, %14, %cst_19 {dimension_numbers = #tpu.dot_dimension_numbers<[1], [0], [0], [1], [0, 0, 1, 1], [], []>} : vector<256x12xbf16>, vector<12x32xbf16>, vector<256x32xf32> -> vector<256x32xf32>
    %16 = arith.addf %10, %15 : vector<256x32xf32>
    %c0_20 = arith.constant 0 : index
    %c1_21 = arith.constant 1 : index
    %c0_22 = arith.constant 0 : index
    %c0_23 = arith.constant 0 : index
    %17 = vector.load %arg1[%c0_20, %c1_21, %c0_22, %c0_23] : memref<1x18x18x12xbf16, #tpu.memory_space<vmem>>, vector<1x16x16x12xbf16>
    %18 = vector.shape_cast %17 : vector<1x16x16x12xbf16> to vector<256x12xbf16>
    %c3 = arith.constant 3 : index
    %c0_24 = arith.constant 0 : index
    %c0_25 = arith.constant 0 : index
    %19 = vector.load %arg2[%c3, %c0_24, %c0_25] : memref<9x12x32xbf16, #tpu.memory_space<vmem>>, vector<1x12x32xbf16>
    %20 = vector.shape_cast %19 : vector<1x12x32xbf16> to vector<12x32xbf16>
    %cst_26 = arith.constant dense<0.000000e+00> : vector<256x32xf32>
    %21 = tpu.matmul %18, %20, %cst_26 {dimension_numbers = #tpu.dot_dimension_numbers<[1], [0], [0], [1], [0, 0, 1, 1], [], []>} : vector<256x12xbf16>, vector<12x32xbf16>, vector<256x32xf32> -> vector<256x32xf32>
    %22 = arith.addf %16, %21 : vector<256x32xf32>
    %c0_27 = arith.constant 0 : index
    %c1_28 = arith.constant 1 : index
    %c1_29 = arith.constant 1 : index
    %c0_30 = arith.constant 0 : index
    %23 = vector.load %arg1[%c0_27, %c1_28, %c1_29, %c0_30] : memref<1x18x18x12xbf16, #tpu.memory_space<vmem>>, vector<1x16x16x12xbf16>
    %24 = vector.shape_cast %23 : vector<1x16x16x12xbf16> to vector<256x12xbf16>
    %c4 = arith.constant 4 : index
    %c0_31 = arith.constant 0 : index
    %c0_32 = arith.constant 0 : index
    %25 = vector.load %arg2[%c4, %c0_31, %c0_32] : memref<9x12x32xbf16, #tpu.memory_space<vmem>>, vector<1x12x32xbf16>
    %26 = vector.shape_cast %25 : vector<1x12x32xbf16> to vector<12x32xbf16>
    %cst_33 = arith.constant dense<0.000000e+00> : vector<256x32xf32>
    %27 = tpu.matmul %24, %26, %cst_33 {dimension_numbers = #tpu.dot_dimension_numbers<[1], [0], [0], [1], [0, 0, 1, 1], [], []>} : vector<256x12xbf16>, vector<12x32xbf16>, vector<256x32xf32> -> vector<256x32xf32>
    %28 = arith.addf %22, %27 : vector<256x32xf32>
    %c0_34 = arith.constant 0 : index
    %c1_35 = arith.constant 1 : index
    %c2_36 = arith.constant 2 : index
    %c0_37 = arith.constant 0 : index
    %29 = vector.load %arg1[%c0_34, %c1_35, %c2_36, %c0_37] : memref<1x18x18x12xbf16, #tpu.memory_space<vmem>>, vector<1x16x16x12xbf16>
    %30 = vector.shape_cast %29 : vector<1x16x16x12xbf16> to vector<256x12xbf16>
    %c5 = arith.constant 5 : index
    %c0_38 = arith.constant 0 : index
    %c0_39 = arith.constant 0 : index
    %31 = vector.load %arg2[%c5, %c0_38, %c0_39] : memref<9x12x32xbf16, #tpu.memory_space<vmem>>, vector<1x12x32xbf16>
    %32 = vector.shape_cast %31 : vector<1x12x32xbf16> to vector<12x32xbf16>
    %cst_40 = arith.constant dense<0.000000e+00> : vector<256x32xf32>
    %33 = tpu.matmul %30, %32, %cst_40 {dimension_numbers = #tpu.dot_dimension_numbers<[1], [0], [0], [1], [0, 0, 1, 1], [], []>} : vector<256x12xbf16>, vector<12x32xbf16>, vector<256x32xf32> -> vector<256x32xf32>
    %34 = arith.addf %28, %33 : vector<256x32xf32>
    %c0_41 = arith.constant 0 : index
    %c2_42 = arith.constant 2 : index
    %c0_43 = arith.constant 0 : index
    %c0_44 = arith.constant 0 : index
    %35 = vector.load %arg1[%c0_41, %c2_42, %c0_43, %c0_44] : memref<1x18x18x12xbf16, #tpu.memory_space<vmem>>, vector<1x16x16x12xbf16>
    %36 = vector.shape_cast %35 : vector<1x16x16x12xbf16> to vector<256x12xbf16>
    %c6 = arith.constant 6 : index
    %c0_45 = arith.constant 0 : index
    %c0_46 = arith.constant 0 : index
    %37 = vector.load %arg2[%c6, %c0_45, %c0_46] : memref<9x12x32xbf16, #tpu.memory_space<vmem>>, vector<1x12x32xbf16>
    %38 = vector.shape_cast %37 : vector<1x12x32xbf16> to vector<12x32xbf16>
    %cst_47 = arith.constant dense<0.000000e+00> : vector<256x32xf32>
    %39 = tpu.matmul %36, %38, %cst_47 {dimension_numbers = #tpu.dot_dimension_numbers<[1], [0], [0], [1], [0, 0, 1, 1], [], []>} : vector<256x12xbf16>, vector<12x32xbf16>, vector<256x32xf32> -> vector<256x32xf32>
    %40 = arith.addf %34, %39 : vector<256x32xf32>
    %c0_48 = arith.constant 0 : index
    %c2_49 = arith.constant 2 : index
    %c1_50 = arith.constant 1 : index
    %c0_51 = arith.constant 0 : index
    %41 = vector.load %arg1[%c0_48, %c2_49, %c1_50, %c0_51] : memref<1x18x18x12xbf16, #tpu.memory_space<vmem>>, vector<1x16x16x12xbf16>
    %42 = vector.shape_cast %41 : vector<1x16x16x12xbf16> to vector<256x12xbf16>
    %c7 = arith.constant 7 : index
    %c0_52 = arith.constant 0 : index
    %c0_53 = arith.constant 0 : index
    %43 = vector.load %arg2[%c7, %c0_52, %c0_53] : memref<9x12x32xbf16, #tpu.memory_space<vmem>>, vector<1x12x32xbf16>
    %44 = vector.shape_cast %43 : vector<1x12x32xbf16> to vector<12x32xbf16>
    %cst_54 = arith.constant dense<0.000000e+00> : vector<256x32xf32>
    %45 = tpu.matmul %42, %44, %cst_54 {dimension_numbers = #tpu.dot_dimension_numbers<[1], [0], [0], [1], [0, 0, 1, 1], [], []>} : vector<256x12xbf16>, vector<12x32xbf16>, vector<256x32xf32> -> vector<256x32xf32>
    %46 = arith.addf %40, %45 : vector<256x32xf32>
    %c0_55 = arith.constant 0 : index
    %c2_56 = arith.constant 2 : index
    %c2_57 = arith.constant 2 : index
    %c0_58 = arith.constant 0 : index
    %47 = vector.load %arg1[%c0_55, %c2_56, %c2_57, %c0_58] : memref<1x18x18x12xbf16, #tpu.memory_space<vmem>>, vector<1x16x16x12xbf16>
    %48 = vector.shape_cast %47 : vector<1x16x16x12xbf16> to vector<256x12xbf16>
    %c8 = arith.constant 8 : index
    %c0_59 = arith.constant 0 : index
    %c0_60 = arith.constant 0 : index
    %49 = vector.load %arg2[%c8, %c0_59, %c0_60] : memref<9x12x32xbf16, #tpu.memory_space<vmem>>, vector<1x12x32xbf16>
    %50 = vector.shape_cast %49 : vector<1x12x32xbf16> to vector<12x32xbf16>
    %cst_61 = arith.constant dense<0.000000e+00> : vector<256x32xf32>
    %51 = tpu.matmul %48, %50, %cst_61 {dimension_numbers = #tpu.dot_dimension_numbers<[1], [0], [0], [1], [0, 0, 1, 1], [], []>} : vector<256x12xbf16>, vector<12x32xbf16>, vector<256x32xf32> -> vector<256x32xf32>
    %52 = arith.addf %46, %51 : vector<256x32xf32>
    %cst_62 = arith.constant dense<0.000000e+00> : vector<32xf32>
    %53 = vector.multi_reduction <add>, %52, %cst_62 [0] : vector<256x32xf32> to vector<32xf32>
    %54 = vector.shape_cast %53 : vector<32xf32> to vector<1x32xf32>
    %c0_63 = arith.constant 0 : index
    %c0_64 = arith.constant 0 : index
    %c0_65 = arith.constant 0 : index
    %55 = vector.load %arg3[%c0_63, %c0_64, %c0_65] : memref<1x2x32xf32, #tpu.memory_space<vmem>>, vector<1x1x32xf32>
    %56 = vector.shape_cast %55 : vector<1x1x32xf32> to vector<1x32xf32>
    %57 = vector.shape_cast %54 : vector<1x32xf32> to vector<1x1x32xf32>
    tpu.vector_store %arg3[%c0_63, %c0_64, %c0_65], %57 {strides = array<i32>} : memref<1x2x32xf32, #tpu.memory_space<vmem>>, vector<1x1x32xf32>,
    %58 = arith.mulf %52, %52 : vector<256x32xf32>
    %cst_66 = arith.constant dense<0.000000e+00> : vector<32xf32>
    %59 = vector.multi_reduction <add>, %58, %cst_66 [0] : vector<256x32xf32> to vector<32xf32>
    %60 = vector.shape_cast %59 : vector<32xf32> to vector<1x32xf32>
    %c0_67 = arith.constant 0 : index
    %c1_68 = arith.constant 1 : index
    %c0_69 = arith.constant 0 : index
    %61 = vector.load %arg3[%c0_67, %c1_68, %c0_69] : memref<1x2x32xf32, #tpu.memory_space<vmem>>, vector<1x1x32xf32>
    %62 = vector.shape_cast %61 : vector<1x1x32xf32> to vector<1x32xf32>
    %63 = vector.shape_cast %60 : vector<1x32xf32> to vector<1x1x32xf32>
    tpu.vector_store %arg3[%c0_67, %c1_68, %c0_69], %63 {strides = array<i32>} : memref<1x2x32xf32, #tpu.memory_space<vmem>>, vector<1x1x32xf32>,
    return
  }
  func.func @transform_0(%arg0: i32) -> (i32, i32, i32, i32) {
    %c0_i32 = arith.constant 0 : i32
    %c0_i32_0 = arith.constant 0 : i32
    %c0_i32_1 = arith.constant 0 : i32
    %c0_i32_2 = arith.constant 0 : i32
    return %arg0, %c0_i32, %c0_i32_0, %c0_i32_1 : i32, i32, i32, i32
  }
  func.func @transform_1(%arg0: i32) -> (i32, i32, i32) {
    %c0_i32 = arith.constant 0 : i32
    %c0_i32_0 = arith.constant 0 : i32
    %c0_i32_1 = arith.constant 0 : i32
    %c0_i32_2 = arith.constant 0 : i32
    return %c0_i32, %c0_i32_0, %c0_i32_1 : i32, i32, i32
  }
  func.func @transform_2(%arg0: i32) -> (i32, i32, i32) {
    %c0_i32 = arith.constant 0 : i32
    %c0_i32_0 = arith.constant 0 : i32
    %c0_i32_1 = arith.constant 0 : i32
    return %arg0, %c0_i32, %c0_i32_0 : i32, i32, i32
  }
}

module attributes {stable_mosaic.version = 11 : i64} {
  func.func @_apply_kernel(%arg0: i32, %arg1: memref<1x18x18x12xbf16, #tpu.memory_space<vmem>>, %arg2: memref<9x12x32xbf16, #tpu.memory_space<vmem>>, %arg3: memref<1x32xf32, #tpu.memory_space<vmem>>, %arg4: memref<1x32xf32, #tpu.memory_space<vmem>>, %arg5: memref<1x256x32xf32, #tpu.memory_space<vmem>>) attributes {dimension_semantics = [#tpu.dimension_semantics<parallel>], iteration_bounds = array<i64: 2>, scalar_prefetch = 0 : i64, scratch_operands = 0 : i64, tpu.core_type = #tpu.core_type<tc>, window_params = [{transform_indices = @transform_0, window_bounds = array<i64: 1, 18, 18, 12>}, {pipeline_mode = #tpu.pipeline_mode<synchronous>, transform_indices = @transform_1, window_bounds = array<i64: 9, 12, 32>}, {pipeline_mode = #tpu.pipeline_mode<synchronous>, transform_indices = @transform_2, window_bounds = array<i64: 1, 32>}, {pipeline_mode = #tpu.pipeline_mode<synchronous>, transform_indices = @transform_3, window_bounds = array<i64: 1, 32>}, {transform_indices = @transform_4, window_bounds = array<i64: 1, 256, 32>}]} {
    %c0 = arith.constant 0 : index
    %c0_0 = arith.constant 0 : index
    %c0_1 = arith.constant 0 : index
    %c0_2 = arith.constant 0 : index
    %0 = vector.load %arg1[%c0, %c0_0, %c0_1, %c0_2] : memref<1x18x18x12xbf16, #tpu.memory_space<vmem>>, vector<1x16x16x12xbf16>
    %1 = vector.shape_cast %0 : vector<1x16x16x12xbf16> to vector<256x12xbf16>
    %c0_3 = arith.constant 0 : index
    %c0_4 = arith.constant 0 : index
    %c0_5 = arith.constant 0 : index
    %2 = vector.load %arg2[%c0_3, %c0_4, %c0_5] : memref<9x12x32xbf16, #tpu.memory_space<vmem>>, vector<1x12x32xbf16>
    %3 = vector.shape_cast %2 : vector<1x12x32xbf16> to vector<12x32xbf16>
    %cst = arith.constant dense<0.000000e+00> : vector<256x32xf32>
    %4 = tpu.matmul %1, %3, %cst {dimension_numbers = #tpu.dot_dimension_numbers<[1], [0], [0], [1], [0, 0, 1, 1], [], []>} : vector<256x12xbf16>, vector<12x32xbf16>, vector<256x32xf32> -> vector<256x32xf32>
    %c0_6 = arith.constant 0 : index
    %c0_7 = arith.constant 0 : index
    %c1 = arith.constant 1 : index
    %c0_8 = arith.constant 0 : index
    %5 = vector.load %arg1[%c0_6, %c0_7, %c1, %c0_8] : memref<1x18x18x12xbf16, #tpu.memory_space<vmem>>, vector<1x16x16x12xbf16>
    %6 = vector.shape_cast %5 : vector<1x16x16x12xbf16> to vector<256x12xbf16>
    %c1_9 = arith.constant 1 : index
    %c0_10 = arith.constant 0 : index
    %c0_11 = arith.constant 0 : index
    %7 = vector.load %arg2[%c1_9, %c0_10, %c0_11] : memref<9x12x32xbf16, #tpu.memory_space<vmem>>, vector<1x12x32xbf16>
    %8 = vector.shape_cast %7 : vector<1x12x32xbf16> to vector<12x32xbf16>
    %cst_12 = arith.constant dense<0.000000e+00> : vector<256x32xf32>
    %9 = tpu.matmul %6, %8, %cst_12 {dimension_numbers = #tpu.dot_dimension_numbers<[1], [0], [0], [1], [0, 0, 1, 1], [], []>} : vector<256x12xbf16>, vector<12x32xbf16>, vector<256x32xf32> -> vector<256x32xf32>
    %10 = arith.addf %4, %9 : vector<256x32xf32>
    %c0_13 = arith.constant 0 : index
    %c0_14 = arith.constant 0 : index
    %c2 = arith.constant 2 : index
    %c0_15 = arith.constant 0 : index
    %11 = vector.load %arg1[%c0_13, %c0_14, %c2, %c0_15] : memref<1x18x18x12xbf16, #tpu.memory_space<vmem>>, vector<1x16x16x12xbf16>
    %12 = vector.shape_cast %11 : vector<1x16x16x12xbf16> to vector<256x12xbf16>
    %c2_16 = arith.constant 2 : index
    %c0_17 = arith.constant 0 : index
    %c0_18 = arith.constant 0 : index
    %13 = vector.load %arg2[%c2_16, %c0_17, %c0_18] : memref<9x12x32xbf16, #tpu.memory_space<vmem>>, vector<1x12x32xbf16>
    %14 = vector.shape_cast %13 : vector<1x12x32xbf16> to vector<12x32xbf16>
    %cst_19 = arith.constant dense<0.000000e+00> : vector<256x32xf32>
    %15 = tpu.matmul %12, %14, %cst_19 {dimension_numbers = #tpu.dot_dimension_numbers<[1], [0], [0], [1], [0, 0, 1, 1], [], []>} : vector<256x12xbf16>, vector<12x32xbf16>, vector<256x32xf32> -> vector<256x32xf32>
    %16 = arith.addf %10, %15 : vector<256x32xf32>
    %c0_20 = arith.constant 0 : index
    %c1_21 = arith.constant 1 : index
    %c0_22 = arith.constant 0 : index
    %c0_23 = arith.constant 0 : index
    %17 = vector.load %arg1[%c0_20, %c1_21, %c0_22, %c0_23] : memref<1x18x18x12xbf16, #tpu.memory_space<vmem>>, vector<1x16x16x12xbf16>
    %18 = vector.shape_cast %17 : vector<1x16x16x12xbf16> to vector<256x12xbf16>
    %c3 = arith.constant 3 : index
    %c0_24 = arith.constant 0 : index
    %c0_25 = arith.constant 0 : index
    %19 = vector.load %arg2[%c3, %c0_24, %c0_25] : memref<9x12x32xbf16, #tpu.memory_space<vmem>>, vector<1x12x32xbf16>
    %20 = vector.shape_cast %19 : vector<1x12x32xbf16> to vector<12x32xbf16>
    %cst_26 = arith.constant dense<0.000000e+00> : vector<256x32xf32>
    %21 = tpu.matmul %18, %20, %cst_26 {dimension_numbers = #tpu.dot_dimension_numbers<[1], [0], [0], [1], [0, 0, 1, 1], [], []>} : vector<256x12xbf16>, vector<12x32xbf16>, vector<256x32xf32> -> vector<256x32xf32>
    %22 = arith.addf %16, %21 : vector<256x32xf32>
    %c0_27 = arith.constant 0 : index
    %c1_28 = arith.constant 1 : index
    %c1_29 = arith.constant 1 : index
    %c0_30 = arith.constant 0 : index
    %23 = vector.load %arg1[%c0_27, %c1_28, %c1_29, %c0_30] : memref<1x18x18x12xbf16, #tpu.memory_space<vmem>>, vector<1x16x16x12xbf16>
    %24 = vector.shape_cast %23 : vector<1x16x16x12xbf16> to vector<256x12xbf16>
    %c4 = arith.constant 4 : index
    %c0_31 = arith.constant 0 : index
    %c0_32 = arith.constant 0 : index
    %25 = vector.load %arg2[%c4, %c0_31, %c0_32] : memref<9x12x32xbf16, #tpu.memory_space<vmem>>, vector<1x12x32xbf16>
    %26 = vector.shape_cast %25 : vector<1x12x32xbf16> to vector<12x32xbf16>
    %cst_33 = arith.constant dense<0.000000e+00> : vector<256x32xf32>
    %27 = tpu.matmul %24, %26, %cst_33 {dimension_numbers = #tpu.dot_dimension_numbers<[1], [0], [0], [1], [0, 0, 1, 1], [], []>} : vector<256x12xbf16>, vector<12x32xbf16>, vector<256x32xf32> -> vector<256x32xf32>
    %28 = arith.addf %22, %27 : vector<256x32xf32>
    %c0_34 = arith.constant 0 : index
    %c1_35 = arith.constant 1 : index
    %c2_36 = arith.constant 2 : index
    %c0_37 = arith.constant 0 : index
    %29 = vector.load %arg1[%c0_34, %c1_35, %c2_36, %c0_37] : memref<1x18x18x12xbf16, #tpu.memory_space<vmem>>, vector<1x16x16x12xbf16>
    %30 = vector.shape_cast %29 : vector<1x16x16x12xbf16> to vector<256x12xbf16>
    %c5 = arith.constant 5 : index
    %c0_38 = arith.constant 0 : index
    %c0_39 = arith.constant 0 : index
    %31 = vector.load %arg2[%c5, %c0_38, %c0_39] : memref<9x12x32xbf16, #tpu.memory_space<vmem>>, vector<1x12x32xbf16>
    %32 = vector.shape_cast %31 : vector<1x12x32xbf16> to vector<12x32xbf16>
    %cst_40 = arith.constant dense<0.000000e+00> : vector<256x32xf32>
    %33 = tpu.matmul %30, %32, %cst_40 {dimension_numbers = #tpu.dot_dimension_numbers<[1], [0], [0], [1], [0, 0, 1, 1], [], []>} : vector<256x12xbf16>, vector<12x32xbf16>, vector<256x32xf32> -> vector<256x32xf32>
    %34 = arith.addf %28, %33 : vector<256x32xf32>
    %c0_41 = arith.constant 0 : index
    %c2_42 = arith.constant 2 : index
    %c0_43 = arith.constant 0 : index
    %c0_44 = arith.constant 0 : index
    %35 = vector.load %arg1[%c0_41, %c2_42, %c0_43, %c0_44] : memref<1x18x18x12xbf16, #tpu.memory_space<vmem>>, vector<1x16x16x12xbf16>
    %36 = vector.shape_cast %35 : vector<1x16x16x12xbf16> to vector<256x12xbf16>
    %c6 = arith.constant 6 : index
    %c0_45 = arith.constant 0 : index
    %c0_46 = arith.constant 0 : index
    %37 = vector.load %arg2[%c6, %c0_45, %c0_46] : memref<9x12x32xbf16, #tpu.memory_space<vmem>>, vector<1x12x32xbf16>
    %38 = vector.shape_cast %37 : vector<1x12x32xbf16> to vector<12x32xbf16>
    %cst_47 = arith.constant dense<0.000000e+00> : vector<256x32xf32>
    %39 = tpu.matmul %36, %38, %cst_47 {dimension_numbers = #tpu.dot_dimension_numbers<[1], [0], [0], [1], [0, 0, 1, 1], [], []>} : vector<256x12xbf16>, vector<12x32xbf16>, vector<256x32xf32> -> vector<256x32xf32>
    %40 = arith.addf %34, %39 : vector<256x32xf32>
    %c0_48 = arith.constant 0 : index
    %c2_49 = arith.constant 2 : index
    %c1_50 = arith.constant 1 : index
    %c0_51 = arith.constant 0 : index
    %41 = vector.load %arg1[%c0_48, %c2_49, %c1_50, %c0_51] : memref<1x18x18x12xbf16, #tpu.memory_space<vmem>>, vector<1x16x16x12xbf16>
    %42 = vector.shape_cast %41 : vector<1x16x16x12xbf16> to vector<256x12xbf16>
    %c7 = arith.constant 7 : index
    %c0_52 = arith.constant 0 : index
    %c0_53 = arith.constant 0 : index
    %43 = vector.load %arg2[%c7, %c0_52, %c0_53] : memref<9x12x32xbf16, #tpu.memory_space<vmem>>, vector<1x12x32xbf16>
    %44 = vector.shape_cast %43 : vector<1x12x32xbf16> to vector<12x32xbf16>
    %cst_54 = arith.constant dense<0.000000e+00> : vector<256x32xf32>
    %45 = tpu.matmul %42, %44, %cst_54 {dimension_numbers = #tpu.dot_dimension_numbers<[1], [0], [0], [1], [0, 0, 1, 1], [], []>} : vector<256x12xbf16>, vector<12x32xbf16>, vector<256x32xf32> -> vector<256x32xf32>
    %46 = arith.addf %40, %45 : vector<256x32xf32>
    %c0_55 = arith.constant 0 : index
    %c2_56 = arith.constant 2 : index
    %c2_57 = arith.constant 2 : index
    %c0_58 = arith.constant 0 : index
    %47 = vector.load %arg1[%c0_55, %c2_56, %c2_57, %c0_58] : memref<1x18x18x12xbf16, #tpu.memory_space<vmem>>, vector<1x16x16x12xbf16>
    %48 = vector.shape_cast %47 : vector<1x16x16x12xbf16> to vector<256x12xbf16>
    %c8 = arith.constant 8 : index
    %c0_59 = arith.constant 0 : index
    %c0_60 = arith.constant 0 : index
    %49 = vector.load %arg2[%c8, %c0_59, %c0_60] : memref<9x12x32xbf16, #tpu.memory_space<vmem>>, vector<1x12x32xbf16>
    %50 = vector.shape_cast %49 : vector<1x12x32xbf16> to vector<12x32xbf16>
    %cst_61 = arith.constant dense<0.000000e+00> : vector<256x32xf32>
    %51 = tpu.matmul %48, %50, %cst_61 {dimension_numbers = #tpu.dot_dimension_numbers<[1], [0], [0], [1], [0, 0, 1, 1], [], []>} : vector<256x12xbf16>, vector<12x32xbf16>, vector<256x32xf32> -> vector<256x32xf32>
    %52 = arith.addf %46, %51 : vector<256x32xf32>
    %c0_62 = arith.constant 0 : index
    %c0_63 = arith.constant 0 : index
    %53 = vector.load %arg3[%c0_62, %c0_63] : memref<1x32xf32, #tpu.memory_space<vmem>>, vector<1x32xf32>
    %54 = vector.broadcast %53 : vector<1x32xf32> to vector<256x32xf32>
    %55 = arith.mulf %52, %54 : vector<256x32xf32>
    %c0_64 = arith.constant 0 : index
    %c0_65 = arith.constant 0 : index
    %56 = vector.load %arg4[%c0_64, %c0_65] : memref<1x32xf32, #tpu.memory_space<vmem>>, vector<1x32xf32>
    %57 = vector.broadcast %56 : vector<1x32xf32> to vector<256x32xf32>
    %58 = arith.addf %55, %57 : vector<256x32xf32>
    %c0_66 = arith.constant 0 : index
    %c0_67 = arith.constant 0 : index
    %c0_68 = arith.constant 0 : index
    %59 = vector.load %arg5[%c0_66, %c0_67, %c0_68] : memref<1x256x32xf32, #tpu.memory_space<vmem>>, vector<1x256x32xf32>
    %60 = vector.shape_cast %59 : vector<1x256x32xf32> to vector<256x32xf32>
    %61 = vector.shape_cast %58 : vector<256x32xf32> to vector<1x256x32xf32>
    tpu.vector_store %arg5[%c0_66, %c0_67, %c0_68], %61 {strides = array<i32>} : memref<1x256x32xf32, #tpu.memory_space<vmem>>, vector<1x256x32xf32>,
    return
  }
  func.func @transform_0(%arg0: i32) -> (i32, i32, i32, i32) {
    %c0_i32 = arith.constant 0 : i32
    %c0_i32_0 = arith.constant 0 : i32
    %c0_i32_1 = arith.constant 0 : i32
    %c0_i32_2 = arith.constant 0 : i32
    return %arg0, %c0_i32, %c0_i32_0, %c0_i32_1 : i32, i32, i32, i32
  }
  func.func @transform_1(%arg0: i32) -> (i32, i32, i32) {
    %c0_i32 = arith.constant 0 : i32
    %c0_i32_0 = arith.constant 0 : i32
    %c0_i32_1 = arith.constant 0 : i32
    %c0_i32_2 = arith.constant 0 : i32
    return %c0_i32, %c0_i32_0, %c0_i32_1 : i32, i32, i32
  }
  func.func @transform_2(%arg0: i32) -> (i32, i32) {
    %c0_i32 = arith.constant 0 : i32
    %c0_i32_0 = arith.constant 0 : i32
    %c0_i32_1 = arith.constant 0 : i32
    return %c0_i32, %c0_i32_0 : i32, i32
  }
  func.func @transform_3(%arg0: i32) -> (i32, i32) {
    %c0_i32 = arith.constant 0 : i32
    %c0_i32_0 = arith.constant 0 : i32
    %c0_i32_1 = arith.constant 0 : i32
    return %c0_i32, %c0_i32_0 : i32, i32
  }
  func.func @transform_4(%arg0: i32) -> (i32, i32, i32) {
    %c0_i32 = arith.constant 0 : i32
    %c0_i32_0 = arith.constant 0 : i32
    %c0_i32_1 = arith.constant 0 : i32
    return %arg0, %c0_i32, %c0_i32_0 : i32, i32, i32
  }
}

</mosaic_0001>

<llo_original>
// kernel: convgate_forward.2
$region0: #{convgate_forward.2}
  #allocation0 [shape = 'u32[]', space=smem, size = 0x4, offset = 0x4, fixed_abs, tag = 'smem constant byte address 0x4 - core index']
  #allocation1 [shape = 'u32[144,128]{1,0:T(1,128)}', space=vmem, size = 0x12000, scoped, tag = 'internal scratch']
  %s0 = inlined_call_operand.vmem [shape: bf16[2,18,18,12], index: 0, kind: input, shape index: {}]
  %s1 = inlined_call_operand.vmem [shape: bf16[9,12,32], index: 1, kind: input, shape index: {}]
  %s2 = inlined_call_operand.vmem [shape: f32[2,2,32], index: 2, kind: output, shape index: {}]
  %s3 = sld [smem:[#allocation0]]
  $region41: #{convgate_forward.2} parent=0
    _
  %s5 = ssub.s32 1, %s3
  %s6 = scalar_select 0, %s5, %s3
  loop: start=0, step=1, limit=4
  $region2: #{convgate_forward.2} parent=0 // loop_pre_header
    _
  $region3: #{convgate_forward.2} parent=0 // loop_header
    %s8 = sphi 0, %s12
    %p9 = scmp.ge.s32.totalorder %s8, 4
    %s18 = sphi 0, %s20
    %s21 = sphi 0, %s18
    %s22 = sphi 0, %s21
    %s38 = sphi 0, %s22
    %s42 = sphi 0, %s42
    %s44 = sphi 0, %s42
    %s45 = sphi 0, %s44
    %s59 = sphi 0, %s45
    %s65 = sphi 0, %s67
    %s68 = sphi 0, %s65
    %s69 = sphi 0, %s68
    %s85 = sphi 0, %s69
  $region4: #{convgate_forward.2} parent=0 // loop_header_branch
    %11 = sbr.rel (%p9) target = $region8
  $region5: #{convgate_forward.2} parent=0 // loop_body
    %s13 = ssub.s32 %s8, 1
    %s14 = ssub.s32 %s8, 2
    %s15 = sadd.s32 %s8, 1
    %s16 = ssub.s32 %s8, %s15
    %p17 = scmp.eq.s32.totalorder %s16, 0
    %s19 = sadd.s32 %s18, 1
    %s20 = scalar_select %p17, %s18, %s19
    %p23 = pneg %p17
    %p24 = scmp.eq.s32.totalorder %s8, 1
    %p25 = por %p23, %p24
    %p26 = scmp.ne.s32.totalorder %s18, %s21
    %p27 = scmp.eq.s32.totalorder %s8, 0
    %p28 = por %p26, %p27
    %p29 = scmp.ne.s32.totalorder %s18, %s21
    %p30 = scmp.eq.s32.totalorder %s13, 1
    %p31 = por %p29, %p30
    %p32 = scmp.ne.s32.totalorder %s21, %s22
    %p33 = scmp.eq.s32.totalorder %s13, 0
    %p34 = por %p32, %p33
    %p35 = scmp.ne.s32.totalorder %s21, %s22
    %p36 = scmp.eq.s32.totalorder %s14, 1
    %p37 = por %p35, %p36
    %p39 = scmp.ne.s32.totalorder %s22, %s38
    %p40 = scmp.eq.s32.totalorder %s14, 0
    %p41 = por %p39, %p40
    %s43 = sadd.s32 %s42, 1
    %p46 = scmp.eq.s32.totalorder %s8, 1
    %p47 = scmp.ne.s32.totalorder %s42, %s44
    %p48 = scmp.eq.s32.totalorder %s8, 0
    %p49 = por %p47, %p48
    %p50 = scmp.ne.s32.totalorder %s42, %s44
    %p51 = scmp.eq.s32.totalorder %s13, 1
    %p52 = por %p50, %p51
    %p53 = scmp.ne.s32.totalorder %s44, %s45
    %p54 = scmp.eq.s32.totalorder %s13, 0
    %p55 = por %p53, %p54
    %p56 = scmp.ne.s32.totalorder %s44, %s45
    %p57 = scmp.eq.s32.totalorder %s14, 1
    %p58 = por %p56, %p57
    %p60 = scmp.ne.s32.totalorder %s45, %s59
    %p61 = scmp.eq.s32.totalorder %s14, 0
    %p62 = por %p60, %p61
    %s63 = ssub.s32 %s8, %s15
    %p64 = scmp.eq.s32.totalorder %s63, 0
    %s66 = sadd.s32 %s65, 1
    %s67 = scalar_select %p64, %s65, %s66
    %p70 = pneg %p64
    %p71 = scmp.eq.s32.totalorder %s8, 1
    %p72 = por %p70, %p71
    %p73 = scmp.ne.s32.totalorder %s65, %s68
    %p74 = scmp.eq.s32.totalorder %s8, 0
    %p75 = por %p73, %p74
    %p76 = scmp.ne.s32.totalorder %s65, %s68
    %p77 = scmp.eq.s32.totalorder %s13, 1
    %p78 = por %p76, %p77
    %p79 = scmp.ne.s32.totalorder %s68, %s69
    %p80 = scmp.eq.s32.totalorder %s13, 0
    %p81 = por %p79, %p80
    %p82 = scmp.ne.s32.totalorder %s68, %s69
    %p83 = scmp.eq.s32.totalorder %s14, 1
    %p84 = por %p82, %p83
    %p86 = scmp.ne.s32.totalorder %s69, %s85
    %p87 = scmp.eq.s32.totalorder %s14, 0
    %p88 = por %p86, %p87
    %p89 = scmp.le.s32.totalorder 1, %s8
    %p90 = scmp.lt.s32.totalorder %s8, 3
    %p91 = pnand %p89, %p90
    %p92 = pneg %p91
    // Predicated region
    $region9: #{convgate_forward.2} parent=5 // pred_check
      _
    $region10: #{convgate_forward.2} parent=5 // pred_check_branch
      %94 = sbr.rel (%p91) target = $region12
    $region11: #{convgate_forward.2} parent=5 // pred_region
      %s95 = ssub.s32 %s8, 1
      // Predicated region
      $region13: #{convgate_forward.2} parent=11 // pred_check
        %p96 = pneg %p55
      $region14: #{convgate_forward.2} parent=11 // pred_check_branch
        %98 = sbr.rel (%p96) target = $region16
      $region15: #{convgate_forward.2} parent=11 // pred_region
        _
      $region16: #{convgate_forward.2} parent=11 // pred_fallthru
        _
    $region12: #{convgate_forward.2} parent=5 // pred_fallthru
      _
    %p99 = scmp.lt.s32.totalorder %s8, 2
    // Predicated region
    $region17: #{convgate_forward.2} parent=5 // pred_check
      %p100 = pneg %p99
    $region18: #{convgate_forward.2} parent=5 // pred_check_branch
      %102 = sbr.rel (%p100) target = $region20
    $region19: #{convgate_forward.2} parent=5 // pred_region
      // Predicated region
      $region21: #{convgate_forward.2} parent=19 // pred_check
        %p103 = pneg %p28
      $region22: #{convgate_forward.2} parent=19 // pred_check_branch
        %105 = sbr.rel (%p103) target = $region24
      $region23: #{convgate_forward.2} parent=19 // pred_region
        %p106 = scmp.lt.s32.totalorder %s8, 1
        %s107 = scalar_select %p106, %s8, 1
        %s108 = smul.addr %s107, 54
        %s109 = smul.addr %s108, 4
        %s110 = scalar_lea.vmem %s0, %s109
      $region24: #{convgate_forward.2} parent=19 // pred_fallthru
        _
    $region20: #{convgate_forward.2} parent=5 // pred_fallthru
      _
    %p111 = scmp.le.s32.totalorder 1, %s8
    %p112 = scmp.lt.s32.totalorder %s8, 3
    %p113 = pnand %p111, %p112
    %p114 = pneg %p113
    // Predicated region
    $region25: #{convgate_forward.2} parent=5 // pred_check
      _
    $region26: #{convgate_forward.2} parent=5 // pred_check_branch
      %116 = sbr.rel (%p113) target = $region28
    $region27: #{convgate_forward.2} parent=5 // pred_region
      %s117 = ssub.s32 %s8, 1
      %p118 = scmp.lt.s32.totalorder %s13, 1
      %s119 = scalar_select %p118, %s13, 1
      %s120 = smul.addr %s119, 54
      %s121 = smul.addr %s120, 4
      %s122 = scalar_lea.vmem %s0, %s121
      %p123 = pneg %p34
      %p124 = pneg %p31
      %p125 = pneg %p55
      %p126 = pneg %p52
      %p127 = pneg %p81
      %p128 = pneg %p78
      %p129 = scmp.lt.s32.totalorder %s13, 1
      %s130 = scalar_select %p129, %s13, 1
      %s131 = smul.addr %s130, 2
      %s132 = scalar_lea.vmem %s2, %s131
      %p133 = scmp.lt.s32.totalorder %s13, 1
      %s134 = scalar_select %p133, %s13, 1
      %s135 = smul.addr %s134, 54
      %s136 = smul.addr %s135, 4
      %s137 = scalar_lea.vmem %s0, %s136
      %p138 = scmp.lt.s32.totalorder %s13, 1
      %s139 = scalar_select %p138, %s13, 1
      %s140 = smul.addr %s139, 2
      %s141 = scalar_lea.vmem %s2, %s140
      %v143 = vld [vmem:[%s137] sm:$0xf]
      %v144 = vld [vmem:[%s137 + $0x4] sm:$0xf]
      %v145 = vld [vmem:[%s137 + $0xc] sm:$0xf]
      %v146 = vld [vmem:[%s137 + $0x10] sm:$0xf]
      %v147 = vld [vmem:[%s137 + $0x18] sm:$0xf]
      %v148 = vld [vmem:[%s137 + $0x1c] sm:$0xf]
      %v149 = vld [vmem:[%s137 + $0x24] sm:$0xf]
      %v150 = vld [vmem:[%s137 + $0x28] sm:$0xf]
      %v151 = vld [vmem:[%s137 + $0x30] sm:$0xf]
      %v152 = vld [vmem:[%s137 + $0x34] sm:$0xf]
      %v153 = vld [vmem:[%s137 + $0x3c] sm:$0xf]
      %v154 = vld [vmem:[%s137 + $0x40] sm:$0xf]
      %v155 = vld [vmem:[%s137 + $0x48] sm:$0xf]
      %v156 = vld [vmem:[%s137 + $0x4c] sm:$0xf]
      %v157 = vld [vmem:[%s137 + $0x54] sm:$0xf]
      %v158 = vld [vmem:[%s137 + $0x58] sm:$0xf]
      %v159 = vld [vmem:[%s137 + $0x60] sm:$0xf]
      %v160 = vld [vmem:[%s137 + $0x64] sm:$0xf]
      %v161 = vld [vmem:[%s137 + $0x6c] sm:$0xf]
      %v162 = vld [vmem:[%s137 + $0x70] sm:$0xf]
      %v163 = vld [vmem:[%s137 + $0x78] sm:$0xf]
      %v164 = vld [vmem:[%s137 + $0x7c] sm:$0xf]
      %v165 = vld [vmem:[%s137 + $0x84] sm:$0xf]
      %v166 = vld [vmem:[%s137 + $0x88] sm:$0xf]
      %v167 = vld [vmem:[%s137 + $0x90] sm:$0xf]
      %v168 = vld [vmem:[%s137 + $0x94] sm:$0xf]
      %v169 = vld [vmem:[%s137 + $0x9c] sm:$0xf]
      %v170 = vld [vmem:[%s137 + $0xa0] sm:$0xf]
      %v171 = vld [vmem:[%s137 + $0xa8] sm:$0xf]
      %v172 = vld [vmem:[%s137 + $0xac] sm:$0xf]
      %v173 = vld [vmem:[%s137 + $0xb4] sm:$0xf]
      %v174 = vld [vmem:[%s137 + $0xb8] sm:$0xf]
      %v175 = vld [vmem:[%s1] sm:$0xf]
      %v176 = vld [vmem:[%s1 + $0x4] sm:$0x3]
      %v177 = vld [vmem:[%s137 + $0x8] sm:$0x1]
      %v178 = vld [vmem:[%s137 + $0x14] sm:$0x1]
      %v179 = vld [vmem:[%s137 + $0x20] sm:$0x1]
      %v180 = vld [vmem:[%s137 + $0x2c] sm:$0x1]
      %v181 = vld [vmem:[%s137 + $0x38] sm:$0x1]
      %v182 = vld [vmem:[%s137 + $0x44] sm:$0x1]
      %v183 = vld [vmem:[%s137 + $0x50] sm:$0x1]
      %v184 = vld [vmem:[%s137 + $0x5c] sm:$0x1]
      %v185 = vld [vmem:[%s137 + $0x68] sm:$0x1]
      %v186 = vld [vmem:[%s137 + $0x74] sm:$0x1]
      %v187 = vld [vmem:[%s137 + $0x80] sm:$0x1]
      %v188 = vld [vmem:[%s137 + $0x8c] sm:$0x1]
      %v189 = vld [vmem:[%s137 + $0x98] sm:$0x1]
      %v190 = vld [vmem:[%s137 + $0xa4] sm:$0x1]
      %v191 = vld [vmem:[%s137 + $0xb0] sm:$0x1]
      %v192 = vld [vmem:[%s137 + $0xbc] sm:$0x1]
      %vm193 = vsmask.f32 3328
      %vm194 = vsmask.f32 7440
      %vm195 = vmor %vm193, %vm194
      %v197 = vshrl.u32 %v143, 16
      %v199 = vrot.slane %v197, 4
      %v200 = vshll.u32 %v143, 16
      %v202 = vrot.slane %v200, 5
      %v203 = vor.u32 %v199, %v202
      %v204 = vrot.slane %v203, 4
      %v206 = vshll.u32 %v144, 16
      %v208 = vrot.slane %v206, 5
      %v209 = vsel %vm195, %v204, %v208
      %v210 = vshrl.u32 %v144, 16
      %v212 = vrot.slane %v210, 4
      %v213 = vor.u32 %v212, %v208
      %v214 = vrot.slane %v213, 4
      %v216 = vshll.u32 %v177, 16
      %v218 = vrot.slane %v216, 5
      %v219 = vsel %vm195, %v214, %v218
      %v221 = vshrl.u32 %v145, 16
      %v223 = vrot.slane %v221, 4
      %v224 = vshll.u32 %v145, 16
      %v226 = vrot.slane %v224, 5
      %v227 = vor.u32 %v223, %v226
      %v228 = vrot.slane %v227, 4
      %v230 = vshll.u32 %v146, 16
      %v232 = vrot.slane %v230, 5
      %v233 = vsel %vm195, %v228, %v232
      %v234 = vshrl.u32 %v146, 16
      %v236 = vrot.slane %v234, 4
      %v237 = vor.u32 %v236, %v232
      %v238 = vrot.slane %v237, 4
      %v240 = vshll.u32 %v178, 16
      %v242 = vrot.slane %v240, 5
      %v243 = vsel %vm195, %v238, %v242
      %v245 = vshrl.u32 %v147, 16
      %v247 = vrot.slane %v245, 4
      %v248 = vshll.u32 %v147, 16
      %v250 = vrot.slane %v248, 5
      %v251 = vor.u32 %v247, %v250
      %v252 = vrot.slane %v251, 4
      %v254 = vshll.u32 %v148, 16
      %v256 = vrot.slane %v254, 5
      %v257 = vsel %vm195, %v252, %v256
      %v258 = vshrl.u32 %v148, 16
      %v260 = vrot.slane %v258, 4
      %v261 = vor.u32 %v260, %v256
      %v262 = vrot.slane %v261, 4
      %v264 = vshll.u32 %v179, 16
      %v266 = vrot.slane %v264, 5
      %v267 = vsel %vm195, %v262, %v266
      %v269 = vshrl.u32 %v149, 16
      %v271 = vrot.slane %v269, 4
      %v272 = vshll.u32 %v149, 16
      %v274 = vrot.slane %v272, 5
      %v275 = vor.u32 %v271, %v274
      %v276 = vrot.slane %v275, 4
      %v278 = vshll.u32 %v150, 16
      %v280 = vrot.slane %v278, 5
      %v281 = vsel %vm195, %v276, %v280
      %v282 = vshrl.u32 %v150, 16
      %v284 = vrot.slane %v282, 4
      %v285 = vor.u32 %v284, %v280
      %v286 = vrot.slane %v285, 4
      %v288 = vshll.u32 %v180, 16
      %v290 = vrot.slane %v288, 5
      %v291 = vsel %vm195, %v286, %v290
      %v293 = vshrl.u32 %v151, 16
      %v295 = vrot.slane %v293, 4
      %v296 = vshll.u32 %v151, 16
      %v298 = vrot.slane %v296, 5
      %v299 = vor.u32 %v295, %v298
      %v300 = vrot.slane %v299, 4
      %v302 = vshll.u32 %v152, 16
      %v304 = vrot.slane %v302, 5
      %v305 = vsel %vm195, %v300, %v304
      %v306 = vshrl.u32 %v152, 16
      %v308 = vrot.slane %v306, 4
      %v309 = vor.u32 %v308, %v304
      %v310 = vrot.slane %v309, 4
      %v312 = vshll.u32 %v181, 16
      %v314 = vrot.slane %v312, 5
      %v315 = vsel %vm195, %v310, %v314
      %v317 = vshrl.u32 %v153, 16
      %v319 = vrot.slane %v317, 4
      %v320 = vshll.u32 %v153, 16
      %v322 = vrot.slane %v320, 5
      %v323 = vor.u32 %v319, %v322
      %v324 = vrot.slane %v323, 4
      %v326 = vshll.u32 %v154, 16
      %v328 = vrot.slane %v326, 5
      %v329 = vsel %vm195, %v324, %v328
      %v330 = vshrl.u32 %v154, 16
      %v332 = vrot.slane %v330, 4
      %v333 = vor.u32 %v332, %v328
      %v334 = vrot.slane %v333, 4
      %v336 = vshll.u32 %v182, 16
      %v338 = vrot.slane %v336, 5
      %v339 = vsel %vm195, %v334, %v338
      %v341 = vshrl.u32 %v155, 16
      %v343 = vrot.slane %v341, 4
      %v344 = vshll.u32 %v155, 16
      %v346 = vrot.slane %v344, 5
      %v347 = vor.u32 %v343, %v346
      %v348 = vrot.slane %v347, 4
      %v350 = vshll.u32 %v156, 16
      %v352 = vrot.slane %v350, 5
      %v353 = vsel %vm195, %v348, %v352
      %v354 = vshrl.u32 %v156, 16
      %v356 = vrot.slane %v354, 4
      %v357 = vor.u32 %v356, %v352
      %v358 = vrot.slane %v357, 4
      %v360 = vshll.u32 %v183, 16
      %v362 = vrot.slane %v360, 5
      %v363 = vsel %vm195, %v358, %v362
      %v365 = vshrl.u32 %v157, 16
      %v367 = vrot.slane %v365, 4
      %v368 = vshll.u32 %v157, 16
      %v370 = vrot.slane %v368, 5
      %v371 = vor.u32 %v367, %v370
      %v372 = vrot.slane %v371, 4
      %v374 = vshll.u32 %v158, 16
      %v376 = vrot.slane %v374, 5
      %v377 = vsel %vm195, %v372, %v376
      %v378 = vshrl.u32 %v158, 16
      %v380 = vrot.slane %v378, 4
      %v381 = vor.u32 %v380, %v376
      %v382 = vrot.slane %v381, 4
      %v384 = vshll.u32 %v184, 16
      %v386 = vrot.slane %v384, 5
      %v387 = vsel %vm195, %v382, %v386
      %v389 = vshrl.u32 %v159, 16
      %v391 = vrot.slane %v389, 4
      %v392 = vshll.u32 %v159, 16
      %v394 = vrot.slane %v392, 5
      %v395 = vor.u32 %v391, %v394
      %v396 = vrot.slane %v395, 4
      %v398 = vshll.u32 %v160, 16
      %v400 = vrot.slane %v398, 5
      %v401 = vsel %vm195, %v396, %v400
      %v402 = vshrl.u32 %v160, 16
      %v404 = vrot.slane %v402, 4
      %v405 = vor.u32 %v404, %v400
      %v406 = vrot.slane %v405, 4
      %v408 = vshll.u32 %v185, 16
      %v410 = vrot.slane %v408, 5
      %v411 = vsel %vm195, %v406, %v410
      %v413 = vshrl.u32 %v161, 16
      %v415 = vrot.slane %v413, 4
      %v416 = vshll.u32 %v161, 16
      %v418 = vrot.slane %v416, 5
      %v419 = vor.u32 %v415, %v418
      %v420 = vrot.slane %v419, 4
      %v422 = vshll.u32 %v162, 16
      %v424 = vrot.slane %v422, 5
      %v425 = vsel %vm195, %v420, %v424
      %v426 = vshrl.u32 %v162, 16
      %v428 = vrot.slane %v426, 4
      %v429 = vor.u32 %v428, %v424
      %v430 = vrot.slane %v429, 4
      %v432 = vshll.u32 %v186, 16
      %v434 = vrot.slane %v432, 5
      %v435 = vsel %vm195, %v430, %v434
      %v437 = vshrl.u32 %v163, 16
      %v439 = vrot.slane %v437, 4
      %v440 = vshll.u32 %v163, 16
      %v442 = vrot.slane %v440, 5
      %v443 = vor.u32 %v439, %v442
      %v444 = vrot.slane %v443, 4
      %v446 = vshll.u32 %v164, 16
      %v448 = vrot.slane %v446, 5
      %v449 = vsel %vm195, %v444, %v448
      %v450 = vshrl.u32 %v164, 16
      %v452 = vrot.slane %v450, 4
      %v453 = vor.u32 %v452, %v448
      %v454 = vrot.slane %v453, 4
      %v456 = vshll.u32 %v187, 16
      %v458 = vrot.slane %v456, 5
      %v459 = vsel %vm195, %v454, %v458
      %v461 = vshrl.u32 %v165, 16
      %v463 = vrot.slane %v461, 4
      %v464 = vshll.u32 %v165, 16
      %v466 = vrot.slane %v464, 5
      %v467 = vor.u32 %v463, %v466
      %v468 = vrot.slane %v467, 4
      %v470 = vshll.u32 %v166, 16
      %v472 = vrot.slane %v470, 5
      %v473 = vsel %vm195, %v468, %v472
      %v474 = vshrl.u32 %v166, 16
      %v476 = vrot.slane %v474, 4
      %v477 = vor.u32 %v476, %v472
      %v478 = vrot.slane %v477, 4
      %v480 = vshll.u32 %v188, 16
      %v482 = vrot.slane %v480, 5
      %v483 = vsel %vm195, %v478, %v482
      %v485 = vshrl.u32 %v167, 16
      %v487 = vrot.slane %v485, 4
      %v488 = vshll.u32 %v167, 16
      %v490 = vrot.slane %v488, 5
      %v491 = vor.u32 %v487, %v490
      %v492 = vrot.slane %v491, 4
      %v494 = vshll.u32 %v168, 16
      %v496 = vrot.slane %v494, 5
      %v497 = vsel %vm195, %v492, %v496
      %v498 = vshrl.u32 %v168, 16
      %v500 = vrot.slane %v498, 4
      %v501 = vor.u32 %v500, %v496
      %v502 = vrot.slane %v501, 4
      %v504 = vshll.u32 %v189, 16
      %v506 = vrot.slane %v504, 5
      %v507 = vsel %vm195, %v502, %v506
      %v509 = vshrl.u32 %v169, 16
      %v511 = vrot.slane %v509, 4
      %v512 = vshll.u32 %v169, 16
      %v514 = vrot.slane %v512, 5
      %v515 = vor.u32 %v511, %v514
      %v516 = vrot.slane %v515, 4
      %v518 = vshll.u32 %v170, 16
      %v520 = vrot.slane %v518, 5
      %v521 = vsel %vm195, %v516, %v520
      %v522 = vshrl.u32 %v170, 16
      %v524 = vrot.slane %v522, 4
      %v525 = vor.u32 %v524, %v520
      %v526 = vrot.slane %v525, 4
      %v528 = vshll.u32 %v190, 16
      %v530 = vrot.slane %v528, 5
      %v531 = vsel %vm195, %v526, %v530
      %v533 = vshrl.u32 %v171, 16
      %v535 = vrot.slane %v533, 4
      %v536 = vshll.u32 %v171, 16
      %v538 = vrot.slane %v536, 5
      %v539 = vor.u32 %v535, %v538
      %v540 = vrot.slane %v539, 4
      %v542 = vshll.u32 %v172, 16
      %v544 = vrot.slane %v542, 5
      %v545 = vsel %vm195, %v540, %v544
      %v546 = vshrl.u32 %v172, 16
      %v548 = vrot.slane %v546, 4
      %v549 = vor.u32 %v548, %v544
      %v550 = vrot.slane %v549, 4
      %v552 = vshll.u32 %v191, 16
      %v554 = vrot.slane %v552, 5
      %v555 = vsel %vm195, %v550, %v554
      %v557 = vshrl.u32 %v173, 16
      %v559 = vrot.slane %v557, 4
      %v560 = vshll.u32 %v173, 16
      %v562 = vrot.slane %v560, 5
      %v563 = vor.u32 %v559, %v562
      %v564 = vrot.slane %v563, 4
      %v566 = vshll.u32 %v174, 16
      %v568 = vrot.slane %v566, 5
      %v569 = vsel %vm195, %v564, %v568
      %v570 = vshrl.u32 %v174, 16
      %v572 = vrot.slane %v570, 4
      %v573 = vor.u32 %v572, %v568
      %v574 = vrot.slane %v573, 4
      %v576 = vshll.u32 %v192, 16
      %v578 = vrot.slane %v576, 5
      %v579 = vsel %vm195, %v574, %v578
      %s580 = scalar_lea.vmem %s1, 8
      %v581 = vld [vmem:[%s580] sm:$0xf]
      %v582 = vld [vmem:[%s580 + $0x4] sm:$0x3]
      %v583 = vunpack.c.l.b16 %v209
      %v584 = vunpack.c.l.b16 %v219
      %v585 = vunpack.c.l.b16 %v233
      %v586 = vunpack.c.l.b16 %v243
      %v587 = vunpack.c.l.b16 %v257
      %v588 = vunpack.c.l.b16 %v267
      %v589 = vunpack.c.l.b16 %v281
      %v590 = vunpack.c.l.b16 %v291
      %v591 = vunpack.c.l.b16 %v305
      %v592 = vunpack.c.l.b16 %v315
      %v593 = vunpack.c.l.b16 %v329
      %v594 = vunpack.c.l.b16 %v339
      %v595 = vunpack.c.l.b16 %v353
      %v596 = vunpack.c.l.b16 %v363
      %v597 = vunpack.c.l.b16 %v377
      %v598 = vunpack.c.l.b16 %v387
      %v599 = vunpack.c.l.b16 %v401
      %v600 = vunpack.c.l.b16 %v411
      %v601 = vunpack.c.l.b16 %v425
      %v602 = vunpack.c.l.b16 %v435
      %v603 = vunpack.c.l.b16 %v449
      %v604 = vunpack.c.l.b16 %v459
      %v605 = vunpack.c.l.b16 %v473
      %v606 = vunpack.c.l.b16 %v483
      %v607 = vunpack.c.l.b16 %v497
      %v608 = vunpack.c.l.b16 %v507
      %v609 = vunpack.c.l.b16 %v521
      %v610 = vunpack.c.l.b16 %v531
      %v611 = vunpack.c.l.b16 %v545
      %v612 = vunpack.c.l.b16 %v555
      %v613 = vunpack.c.l.b16 %v569
      %v614 = vunpack.c.l.b16 %v579
      %v615 = vpack.c.b16 %v584, %v583
      %v616 = vpack.c.b16 %v586, %v585
      %v617 = vpack.c.b16 %v588, %v587
      %v618 = vpack.c.b16 %v590, %v589
      %v619 = vpack.c.b16 %v592, %v591
      %v620 = vpack.c.b16 %v594, %v593
      %v621 = vpack.c.b16 %v596, %v595
      %v622 = vpack.c.b16 %v598, %v597
      %v623 = vpack.c.b16 %v600, %v599
      %v624 = vpack.c.b16 %v602, %v601
      %v625 = vpack.c.b16 %v604, %v603
      %v626 = vpack.c.b16 %v606, %v605
      %v627 = vpack.c.b16 %v608, %v607
      %v628 = vpack.c.b16 %v610, %v609
      %v629 = vpack.c.b16 %v612, %v611
      %v630 = vpack.c.b16 %v614, %v613
      %v633 = vunpack.c.l.b16 %v581
      %v634 = vunpack.c.l.b16 %v582
      %v635 = vpack.c.b16 %v634, %v633
      %vm636 = vcmask 97280
      %v638 = vsel %vm636, %v615, 0
      %v641 = vsel %vm636, %v616, 0
      %v644 = vsel %vm636, %v617, 0
      %v647 = vsel %vm636, %v618, 0
      %v650 = vsel %vm636, %v619, 0
      %v653 = vsel %vm636, %v620, 0
      %v656 = vsel %vm636, %v621, 0
      %v659 = vsel %vm636, %v622, 0
      %v662 = vsel %vm636, %v623, 0
      %v665 = vsel %vm636, %v624, 0
      %v668 = vsel %vm636, %v625, 0
      %v671 = vsel %vm636, %v626, 0
      %v674 = vsel %vm636, %v627, 0
      %v677 = vsel %vm636, %v628, 0
      %v680 = vsel %vm636, %v629, 0
      %v683 = vsel %vm636, %v630, 0
      %vm685 = vcmask 1045504
      %v687 = vsel %vm685, %v635, 0
      %689 = vmatprep.subr.bf16.mxu0 0
      %690 = vmatpush1.bf16.msra.mxu0 0
      %691 = vmatprep.subr.bf16.mxu0 0
      %692 = vmatpush1.bf16.msra.mxu0 0
      %693 = vmatprep.subr.bf16.mxu0 0
      %694 = vmatpush1.bf16.msra.mxu0 0
      %695 = vmatprep.subr.bf16.mxu0 0
      %696 = vmatpush1.bf16.msra.mxu0 0
      %697 = vmatprep.subr.bf16.mxu0 0
      %698 = vmatpush1.bf16.msra.mxu0 0
      %699 = vmatprep.subr.bf16.mxu0 0
      %700 = vmatpush1.bf16.msra.mxu0 0
      %701 = vmatprep.subr.bf16.mxu0 0
      %702 = vmatpush1.bf16.msra.mxu0 0
      %703 = vmatprep.subr.bf16.mxu0 0
      %704 = vmatpush1.bf16.msra.mxu0 %v687
      %705 = vmatprep.subr.bf16.mxu0 0
      %706 = vmatpush2.bf16.msra.mxu0 0
      %707 = vmatprep.subr.bf16.mxu0 0
      %708 = vmatpush2.bf16.msra.mxu0 0
      %709 = vmatprep.subr.bf16.mxu0 0
      %710 = vmatpush2.bf16.msra.mxu0 0
      %711 = vmatprep.subr.bf16.mxu0 0
      %712 = vmatpush2.bf16.msra.mxu0 0
      %713 = vmatprep.subr.bf16.mxu0 0
      %714 = vmatpush2.bf16.msra.mxu0 0
      %715 = vmatprep.subr.bf16.mxu0 0
      %716 = vmatpush2.bf16.msra.mxu0 0
      %717 = vmatprep.subr.bf16.mxu0 0
      %718 = vmatpush2.bf16.msra.mxu0 0
      %719 = vmatprep.subr.bf16.mxu0 0
      %720 = vmatpush2.bf16.msra.mxu0 0
      %721 = vmatprep.mubr.bf16.mxu0 0
      %722 = vmatmul.mubr.bf16.gmra.mxu0 %v638
      %v723 = vpop.f32.mrf.mxu0
      %v724 = vadd.f32 0.0, %v723
      %v725 = vpop.f32.mrf.mxu0
      %v726 = vpop.f32.mrf.mxu0
      %v727 = vadd.f32 0.0, %v726
      %v728 = vpop.f32.mrf.mxu0
      %729 = vmatprep.mubr.bf16.mxu0 0
      %730 = vmatmul.mubr.bf16.gmra.mxu0 %v641
      %v731 = vpop.f32.mrf.mxu0
      %v732 = vadd.f32 0.0, %v731
      %v733 = vpop.f32.mrf.mxu0
      %v734 = vpop.f32.mrf.mxu0
      %v735 = vadd.f32 0.0, %v734
      %v736 = vpop.f32.mrf.mxu0
      %737 = vmatprep.mubr.bf16.mxu0 0
      %738 = vmatmul.mubr.bf16.gmra.mxu0 %v644
      %v739 = vpop.f32.mrf.mxu0
      %v740 = vadd.f32 0.0, %v739
      %v741 = vpop.f32.mrf.mxu0
      %v742 = vpop.f32.mrf.mxu0
      %v743 = vadd.f32 0.0, %v742
      %v744 = vpop.f32.mrf.mxu0
      %745 = vmatprep.mubr.bf16.mxu0 0
      %746 = vmatmul.mubr.bf16.gmra.mxu0 %v647
      %v747 = vpop.f32.mrf.mxu0
      %v748 = vadd.f32 0.0, %v747
      %v749 = vpop.f32.mrf.mxu0
      %v750 = vpop.f32.mrf.mxu0
      %v751 = vadd.f32 0.0, %v750
      %v752 = vpop.f32.mrf.mxu0
      %753 = vmatprep.mubr.bf16.mxu0 0
      %754 = vmatmul.mubr.bf16.gmra.mxu0 %v650
      %v755 = vpop.f32.mrf.mxu0
      %v756 = vadd.f32 0.0, %v755
      %v757 = vpop.f32.mrf.mxu0
      %v758 = vpop.f32.mrf.mxu0
      %v759 = vadd.f32 0.0, %v758
      %v760 = vpop.f32.mrf.mxu0
      %761 = vmatprep.mubr.bf16.mxu0 0
      %762 = vmatmul.mubr.bf16.gmra.mxu0 %v653
      %v763 = vpop.f32.mrf.mxu0
      %v764 = vadd.f32 0.0, %v763
      %v765 = vpop.f32.mrf.mxu0
      %v766 = vpop.f32.mrf.mxu0
      %v767 = vadd.f32 0.0, %v766
      %v768 = vpop.f32.mrf.mxu0
      %769 = vmatprep.mubr.bf16.mxu0 0
      %770 = vmatmul.mubr.bf16.gmra.mxu0 %v656
      %v771 = vpop.f32.mrf.mxu0
      %v772 = vadd.f32 0.0, %v771
      %v773 = vpop.f32.mrf.mxu0
      %v774 = vpop.f32.mrf.mxu0
      %v775 = vadd.f32 0.0, %v774
      %v776 = vpop.f32.mrf.mxu0
      %777 = vmatprep.mubr.bf16.mxu0 0
      %778 = vmatmul.mubr.bf16.gmra.mxu0 %v659
      %v779 = vpop.f32.mrf.mxu0
      %v780 = vadd.f32 0.0, %v779
      %v781 = vpop.f32.mrf.mxu0
      %v782 = vpop.f32.mrf.mxu0
      %v783 = vadd.f32 0.0, %v782
      %v784 = vpop.f32.mrf.mxu0
      %785 = vmatprep.mubr.bf16.mxu0 0
      %786 = vmatmul.mubr.bf16.gmra.mxu0 %v662
      %v787 = vpop.f32.mrf.mxu0
      %v788 = vadd.f32 0.0, %v787
      %v789 = vpop.f32.mrf.mxu0
      %v790 = vpop.f32.mrf.mxu0
      %v791 = vadd.f32 0.0, %v790
      %v792 = vpop.f32.mrf.mxu0
      %793 = vmatprep.mubr.bf16.mxu0 0
      %794 = vmatmul.mubr.bf16.gmra.mxu0 %v665
      %v795 = vpop.f32.mrf.mxu0
      %v796 = vadd.f32 0.0, %v795
      %v797 = vpop.f32.mrf.mxu0
      %v798 = vpop.f32.mrf.mxu0
      %v799 = vadd.f32 0.0, %v798
      %v800 = vpop.f32.mrf.mxu0
      %801 = vmatprep.mubr.bf16.mxu0 0
      %802 = vmatmul.mubr.bf16.gmra.mxu0 %v668
      %v803 = vpop.f32.mrf.mxu0
      %v804 = vadd.f32 0.0, %v803
      %v805 = vpop.f32.mrf.mxu0
      %v806 = vpop.f32.mrf.mxu0
      %v807 = vadd.f32 0.0, %v806
      %v808 = vpop.f32.mrf.mxu0
      %809 = vmatprep.mubr.bf16.mxu0 0
      %810 = vmatmul.mubr.bf16.gmra.mxu0 %v671
      %v811 = vpop.f32.mrf.mxu0
      %v812 = vadd.f32 0.0, %v811
      %v813 = vpop.f32.mrf.mxu0
      %v814 = vpop.f32.mrf.mxu0
      %v815 = vadd.f32 0.0, %v814
      %v816 = vpop.f32.mrf.mxu0
      %817 = vmatprep.mubr.bf16.mxu0 0
      %818 = vmatmul.mubr.bf16.gmra.mxu0 %v674
      %v819 = vpop.f32.mrf.mxu0
      %v820 = vadd.f32 0.0, %v819
      %v821 = vpop.f32.mrf.mxu0
      %v822 = vpop.f32.mrf.mxu0
      %v823 = vadd.f32 0.0, %v822
      %v824 = vpop.f32.mrf.mxu0
      %825 = vmatprep.mubr.bf16.mxu0 0
      %826 = vmatmul.mubr.bf16.gmra.mxu0 %v677
      %v827 = vpop.f32.mrf.mxu0
      %v828 = vadd.f32 0.0, %v827
      %v829 = vpop.f32.mrf.mxu0
      %v830 = vpop.f32.mrf.mxu0
      %v831 = vadd.f32 0.0, %v830
      %v832 = vpop.f32.mrf.mxu0
      %833 = vmatprep.mubr.bf16.mxu0 0
      %834 = vmatmul.mubr.bf16.gmra.mxu0 %v680
      %v835 = vpop.f32.mrf.mxu0
      %v836 = vadd.f32 0.0, %v835
      %v837 = vpop.f32.mrf.mxu0
      %v838 = vpop.f32.mrf.mxu0
      %v839 = vadd.f32 0.0, %v838
      %v840 = vpop.f32.mrf.mxu0
      %841 = vmatprep.mubr.bf16.mxu0 0
      %842 = vmatmul.mubr.bf16.gmra.mxu0 %v683
      %v843 = vpop.f32.mrf.mxu0
      %v844 = vadd.f32 0.0, %v843
      %v845 = vpop.f32.mrf.mxu0
      %v846 = vpop.f32.mrf.mxu0
      %v847 = vadd.f32 0.0, %v846
      %v848 = vpop.f32.mrf.mxu0
      %849 = vdwg.mxu0
      %v882 = vunpack.c.l.b16 %v143
      %v883 = vunpack.c.l.b16 %v144
      %v884 = vunpack.c.l.b16 %v145
      %v885 = vunpack.c.l.b16 %v146
      %v886 = vunpack.c.l.b16 %v147
      %v887 = vunpack.c.l.b16 %v148
      %v888 = vunpack.c.l.b16 %v149
      %v889 = vunpack.c.l.b16 %v150
      %v890 = vunpack.c.l.b16 %v151
      %v891 = vunpack.c.l.b16 %v152
      %v892 = vunpack.c.l.b16 %v153
      %v893 = vunpack.c.l.b16 %v154
      %v894 = vunpack.c.l.b16 %v155
      %v895 = vunpack.c.l.b16 %v156
      %v896 = vunpack.c.l.b16 %v157
      %v897 = vunpack.c.l.b16 %v158
      %v898 = vunpack.c.l.b16 %v159
      %v899 = vunpack.c.l.b16 %v160
      %v900 = vunpack.c.l.b16 %v161
      %v901 = vunpack.c.l.b16 %v162
      %v902 = vunpack.c.l.b16 %v163
      %v903 = vunpack.c.l.b16 %v164
      %v904 = vunpack.c.l.b16 %v165
      %v905 = vunpack.c.l.b16 %v166
      %v906 = vunpack.c.l.b16 %v167
      %v907 = vunpack.c.l.b16 %v168
      %v908 = vunpack.c.l.b16 %v169
      %v909 = vunpack.c.l.b16 %v170
      %v910 = vunpack.c.l.b16 %v171
      %v911 = vunpack.c.l.b16 %v172
      %v912 = vunpack.c.l.b16 %v173
      %v913 = vunpack.c.l.b16 %v174
      %v914 = vpack.c.b16 %v883, %v882
      %v915 = vpack.c.b16 %v885, %v884
      %v916 = vpack.c.b16 %v887, %v886
      %v917 = vpack.c.b16 %v889, %v888
      %v918 = vpack.c.b16 %v891, %v890
      %v919 = vpack.c.b16 %v893, %v892
      %v920 = vpack.c.b16 %v895, %v894
      %v921 = vpack.c.b16 %v897, %v896
      %v922 = vpack.c.b16 %v899, %v898
      %v923 = vpack.c.b16 %v901, %v900
      %v924 = vpack.c.b16 %v903, %v902
      %v925 = vpack.c.b16 %v905, %v904
      %v926 = vpack.c.b16 %v907, %v906
      %v927 = vpack.c.b16 %v909, %v908
      %v928 = vpack.c.b16 %v911, %v910
      %v929 = vpack.c.b16 %v913, %v912
      %v932 = vunpack.c.l.b16 %v175
      %v933 = vunpack.c.l.b16 %v176
      %v934 = vpack.c.b16 %v933, %v932
      %v936 = vsel %vm636, %v914, 0
      %v939 = vsel %vm636, %v915, 0
      %v942 = vsel %vm636, %v916, 0
      %v945 = vsel %vm636, %v917, 0
      %v948 = vsel %vm636, %v918, 0
      %v951 = vsel %vm636, %v919, 0
      %v954 = vsel %vm636, %v920, 0
      %v957 = vsel %vm636, %v921, 0
      %v960 = vsel %vm636, %v922, 0
      %v963 = vsel %vm636, %v923, 0
      %v966 = vsel %vm636, %v924, 0
      %v969 = vsel %vm636, %v925, 0
      %v972 = vsel %vm636, %v926, 0
      %v975 = vsel %vm636, %v927, 0
      %v978 = vsel %vm636, %v928, 0
      %v981 = vsel %vm636, %v929, 0
      %v984 = vsel %vm685, %v934, 0
      %986 = vmatprep.subr.bf16.mxu0 0
      %987 = vmatpush1.bf16.msra.mxu0 0
      %988 = vmatprep.subr.bf16.mxu0 0
      %989 = vmatpush1.bf16.msra.mxu0 0
      %990 = vmatprep.subr.bf16.mxu0 0
      %991 = vmatpush1.bf16.msra.mxu0 0
      %992 = vmatprep.subr.bf16.mxu0 0
      %993 = vmatpush1.bf16.msra.mxu0 0
      %994 = vmatprep.subr.bf16.mxu0 0
      %995 = vmatpush1.bf16.msra.mxu0 0
      %996 = vmatprep.subr.bf16.mxu0 0
      %997 = vmatpush1.bf16.msra.mxu0 0
      %998 = vmatprep.subr.bf16.mxu0 0
      %999 = vmatpush1.bf16.msra.mxu0 0
      %1000 = vmatprep.subr.bf16.mxu0 0
      %1001 = vmatpush1.bf16.msra.mxu0 %v984
      %1002 = vmatprep.subr.bf16.mxu0 0
      %1003 = vmatpush2.bf16.msra.mxu0 0
      %1004 = vmatprep.subr.bf16.mxu0 0
      %1005 = vmatpush2.bf16.msra.mxu0 0
      %1006 = vmatprep.subr.bf16.mxu0 0
      %1007 = vmatpush2.bf16.msra.mxu0 0
      %1008 = vmatprep.subr.bf16.mxu0 0
      %1009 = vmatpush2.bf16.msra.mxu0 0
      %1010 = vmatprep.subr.bf16.mxu0 0
      %1011 = vmatpush2.bf16.msra.mxu0 0
      %1012 = vmatprep.subr.bf16.mxu0 0
      %1013 = vmatpush2.bf16.msra.mxu0 0
      %1014 = vmatprep.subr.bf16.mxu0 0
      %1015 = vmatpush2.bf16.msra.mxu0 0
      %1016 = vmatprep.subr.bf16.mxu0 0
      %1017 = vmatpush2.bf16.msra.mxu0 0
      %1018 = vmatprep.mubr.bf16.mxu0 0
      %1019 = vmatmul.mubr.bf16.gmra.mxu0 %v936
      %v1020 = vpop.f32.mrf.mxu0
      %v1021 = vadd.f32 %v724, %v1020
      %v1022 = vpop.f32.mrf.mxu0
      %v1023 = vpop.f32.mrf.mxu0
      %v1024 = vadd.f32 %v727, %v1023
      %v1025 = vpop.f32.mrf.mxu0
      %1026 = vmatprep.mubr.bf16.mxu0 0
      %1027 = vmatmul.mubr.bf16.gmra.mxu0 %v939
      %v1028 = vpop.f32.mrf.mxu0
      %v1029 = vadd.f32 %v732, %v1028
      %v1030 = vpop.f32.mrf.mxu0
      %v1031 = vpop.f32.mrf.mxu0
      %v1032 = vadd.f32 %v735, %v1031
      %v1033 = vpop.f32.mrf.mxu0
      %1034 = vmatprep.mubr.bf16.mxu0 0
      %1035 = vmatmul.mubr.bf16.gmra.mxu0 %v942
      %v1036 = vpop.f32.mrf.mxu0
      %v1037 = vadd.f32 %v740, %v1036
      %v1038 = vpop.f32.mrf.mxu0
      %v1039 = vpop.f32.mrf.mxu0
      %v1040 = vadd.f32 %v743, %v1039
      %v1041 = vpop.f32.mrf.mxu0
      %1042 = vmatprep.mubr.bf16.mxu0 0
      %1043 = vmatmul.mubr.bf16.gmra.mxu0 %v945
      %v1044 = vpop.f32.mrf.mxu0
      %v1045 = vadd.f32 %v748, %v1044
      %v1046 = vpop.f32.mrf.mxu0
      %v1047 = vpop.f32.mrf.mxu0
      %v1048 = vadd.f32 %v751, %v1047
      %v1049 = vpop.f32.mrf.mxu0
      %1050 = vmatprep.mubr.bf16.mxu0 0
      %1051 = vmatmul.mubr.bf16.gmra.mxu0 %v948
      %v1052 = vpop.f32.mrf.mxu0
      %v1053 = vadd.f32 %v756, %v1052
      %v1054 = vpop.f32.mrf.mxu0
      %v1055 = vpop.f32.mrf.mxu0
      %v1056 = vadd.f32 %v759, %v1055
      %v1057 = vpop.f32.mrf.mxu0
      %1058 = vmatprep.mubr.bf16.mxu0 0
      %1059 = vmatmul.mubr.bf16.gmra.mxu0 %v951
      %v1060 = vpop.f32.mrf.mxu0
      %v1061 = vadd.f32 %v764, %v1060
      %v1062 = vpop.f32.mrf.mxu0
      %v1063 = vpop.f32.mrf.mxu0
      %v1064 = vadd.f32 %v767, %v1063
      %v1065 = vpop.f32.mrf.mxu0
      %1066 = vmatprep.mubr.bf16.mxu0 0
      %1067 = vmatmul.mubr.bf16.gmra.mxu0 %v954
      %v1068 = vpop.f32.mrf.mxu0
      %v1069 = vadd.f32 %v772, %v1068
      %v1070 = vpop.f32.mrf.mxu0
      %v1071 = vpop.f32.mrf.mxu0
      %v1072 = vadd.f32 %v775, %v1071
      %v1073 = vpop.f32.mrf.mxu0
      %1074 = vmatprep.mubr.bf16.mxu0 0
      %1075 = vmatmul.mubr.bf16.gmra.mxu0 %v957
      %v1076 = vpop.f32.mrf.mxu0
      %v1077 = vadd.f32 %v780, %v1076
      %v1078 = vpop.f32.mrf.mxu0
      %v1079 = vpop.f32.mrf.mxu0
      %v1080 = vadd.f32 %v783, %v1079
      %v1081 = vpop.f32.mrf.mxu0
      %1082 = vmatprep.mubr.bf16.mxu0 0
      %1083 = vmatmul.mubr.bf16.gmra.mxu0 %v960
      %v1084 = vpop.f32.mrf.mxu0
      %v1085 = vadd.f32 %v788, %v1084
      %v1086 = vpop.f32.mrf.mxu0
      %v1087 = vpop.f32.mrf.mxu0
      %v1088 = vadd.f32 %v791, %v1087
      %v1089 = vpop.f32.mrf.mxu0
      %1090 = vmatprep.mubr.bf16.mxu0 0
      %1091 = vmatmul.mubr.bf16.gmra.mxu0 %v963
      %v1092 = vpop.f32.mrf.mxu0
      %v1093 = vadd.f32 %v796, %v1092
      %v1094 = vpop.f32.mrf.mxu0
      %v1095 = vpop.f32.mrf.mxu0
      %v1096 = vadd.f32 %v799, %v1095
      %v1097 = vpop.f32.mrf.mxu0
      %1098 = vmatprep.mubr.bf16.mxu0 0
      %1099 = vmatmul.mubr.bf16.gmra.mxu0 %v966
      %v1100 = vpop.f32.mrf.mxu0
      %v1101 = vadd.f32 %v804, %v1100
      %v1102 = vpop.f32.mrf.mxu0
      %v1103 = vpop.f32.mrf.mxu0
      %v1104 = vadd.f32 %v807, %v1103
      %v1105 = vpop.f32.mrf.mxu0
      %1106 = vmatprep.mubr.bf16.mxu0 0
      %1107 = vmatmul.mubr.bf16.gmra.mxu0 %v969
      %v1108 = vpop.f32.mrf.mxu0
      %v1109 = vadd.f32 %v812, %v1108
      %v1110 = vpop.f32.mrf.mxu0
      %v1111 = vpop.f32.mrf.mxu0
      %v1112 = vadd.f32 %v815, %v1111
      %v1113 = vpop.f32.mrf.mxu0
      %1114 = vmatprep.mubr.bf16.mxu0 0
      %1115 = vmatmul.mubr.bf16.gmra.mxu0 %v972
      %v1116 = vpop.f32.mrf.mxu0
      %v1117 = vadd.f32 %v820, %v1116
      %v1118 = vpop.f32.mrf.mxu0
      %v1119 = vpop.f32.mrf.mxu0
      %v1120 = vadd.f32 %v823, %v1119
      %v1121 = vpop.f32.mrf.mxu0
      %1122 = vmatprep.mubr.bf16.mxu0 0
      %1123 = vmatmul.mubr.bf16.gmra.mxu0 %v975
      %v1124 = vpop.f32.mrf.mxu0
      %v1125 = vadd.f32 %v828, %v1124
      %v1126 = vpop.f32.mrf.mxu0
      %v1127 = vpop.f32.mrf.mxu0
      %v1128 = vadd.f32 %v831, %v1127
      %v1129 = vpop.f32.mrf.mxu0
      %1130 = vmatprep.mubr.bf16.mxu0 0
      %1131 = vmatmul.mubr.bf16.gmra.mxu0 %v978
      %v1132 = vpop.f32.mrf.mxu0
      %v1133 = vadd.f32 %v836, %v1132
      %v1134 = vpop.f32.mrf.mxu0
      %v1135 = vpop.f32.mrf.mxu0
      %v1136 = vadd.f32 %v839, %v1135
      %v1137 = vpop.f32.mrf.mxu0
      %1138 = vmatprep.mubr.bf16.mxu0 0
      %1139 = vmatmul.mubr.bf16.gmra.mxu0 %v981
      %v1140 = vpop.f32.mrf.mxu0
      %v1141 = vadd.f32 %v844, %v1140
      %v1142 = vpop.f32.mrf.mxu0
      %v1143 = vpop.f32.mrf.mxu0
      %v1144 = vadd.f32 %v847, %v1143
      %v1145 = vpop.f32.mrf.mxu0
      %1146 = vdwg.mxu0
      %v1147 = vld [vmem:[%s137] sm:$0xe]
      %v1148 = vld [vmem:[%s137 + $0xc] sm:$0xe]
      %v1149 = vld [vmem:[%s137 + $0x18] sm:$0xe]
      %v1150 = vld [vmem:[%s137 + $0x24] sm:$0xe]
      %v1151 = vld [vmem:[%s137 + $0x30] sm:$0xe]
      %v1152 = vld [vmem:[%s137 + $0x3c] sm:$0xe]
      %v1153 = vld [vmem:[%s137 + $0x48] sm:$0xe]
      %v1154 = vld [vmem:[%s137 + $0x54] sm:$0xe]
      %v1155 = vld [vmem:[%s137 + $0x60] sm:$0xe]
      %v1156 = vld [vmem:[%s137 + $0x6c] sm:$0xe]
      %v1157 = vld [vmem:[%s137 + $0x78] sm:$0xe]
      %v1158 = vld [vmem:[%s137 + $0x84] sm:$0xe]
      %v1159 = vld [vmem:[%s137 + $0x90] sm:$0xe]
      %v1160 = vld [vmem:[%s137 + $0x9c] sm:$0xe]
      %v1161 = vld [vmem:[%s137 + $0xa8] sm:$0xe]
      %v1162 = vld [vmem:[%s137 + $0xb4] sm:$0xe]
      %vm1195 = vcmask 1042432
      %vm1196 = vcmask 1046532
      %vm1197 = vmor %vm1195, %vm1196
      %v1198 = vrot.slane %v1147, 5
      %v1199 = vrot.slane %v1198, 4
      %v1200 = vrot.slane %v144, 5
      %v1201 = vsel %vm1197, %v1199, %v1200
      %v1202 = vrot.slane %v1200, 4
      %v1203 = vrot.slane %v177, 5
      %v1204 = vsel %vm1197, %v1202, %v1203
      %v1205 = vrot.slane %v1148, 5
      %v1206 = vrot.slane %v1205, 4
      %v1207 = vrot.slane %v146, 5
      %v1208 = vsel %vm1197, %v1206, %v1207
      %v1209 = vrot.slane %v1207, 4
      %v1210 = vrot.slane %v178, 5
      %v1211 = vsel %vm1197, %v1209, %v1210
      %v1212 = vrot.slane %v1149, 5
      %v1213 = vrot.slane %v1212, 4
      %v1214 = vrot.slane %v148, 5
      %v1215 = vsel %vm1197, %v1213, %v1214
      %v1216 = vrot.slane %v1214, 4
      %v1217 = vrot.slane %v179, 5
      %v1218 = vsel %vm1197, %v1216, %v1217
      %v1219 = vrot.slane %v1150, 5
      %v1220 = vrot.slane %v1219, 4
      %v1221 = vrot.slane %v150, 5
      %v1222 = vsel %vm1197, %v1220, %v1221
      %v1223 = vrot.slane %v1221, 4
      %v1224 = vrot.slane %v180, 5
      %v1225 = vsel %vm1197, %v1223, %v1224
      %v1226 = vrot.slane %v1151, 5
      %v1227 = vrot.slane %v1226, 4
      %v1228 = vrot.slane %v152, 5
      %v1229 = vsel %vm1197, %v1227, %v1228
      %v1230 = vrot.slane %v1228, 4
      %v1231 = vrot.slane %v181, 5
      %v1232 = vsel %vm1197, %v1230, %v1231
      %v1233 = vrot.slane %v1152, 5
      %v1234 = vrot.slane %v1233, 4
      %v1235 = vrot.slane %v154, 5
      %v1236 = vsel %vm1197, %v1234, %v1235
      %v1237 = vrot.slane %v1235, 4
      %v1238 = vrot.slane %v182, 5
      %v1239 = vsel %vm1197, %v1237, %v1238
      %v1240 = vrot.slane %v1153, 5
      %v1241 = vrot.slane %v1240, 4
      %v1242 = vrot.slane %v156, 5
      %v1243 = vsel %vm1197, %v1241, %v1242
      %v1244 = vrot.slane %v1242, 4
      %v1245 = vrot.slane %v183, 5
      %v1246 = vsel %vm1197, %v1244, %v1245
      %v1247 = vrot.slane %v1154, 5
      %v1248 = vrot.slane %v1247, 4
      %v1249 = vrot.slane %v158, 5
      %v1250 = vsel %vm1197, %v1248, %v1249
      %v1251 = vrot.slane %v1249, 4
      %v1252 = vrot.slane %v184, 5
      %v1253 = vsel %vm1197, %v1251, %v1252
      %v1254 = vrot.slane %v1155, 5
      %v1255 = vrot.slane %v1254, 4
      %v1256 = vrot.slane %v160, 5
      %v1257 = vsel %vm1197, %v1255, %v1256
      %v1258 = vrot.slane %v1256, 4
      %v1259 = vrot.slane %v185, 5
      %v1260 = vsel %vm1197, %v1258, %v1259
      %v1261 = vrot.slane %v1156, 5
      %v1262 = vrot.slane %v1261, 4
      %v1263 = vrot.slane %v162, 5
      %v1264 = vsel %vm1197, %v1262, %v1263
      %v1265 = vrot.slane %v1263, 4
      %v1266 = vrot.slane %v186, 5
      %v1267 = vsel %vm1197, %v1265, %v1266
      %v1268 = vrot.slane %v1157, 5
      %v1269 = vrot.slane %v1268, 4
      %v1270 = vrot.slane %v164, 5
      %v1271 = vsel %vm1197, %v1269, %v1270
      %v1272 = vrot.slane %v1270, 4
      %v1273 = vrot.slane %v187, 5
      %v1274 = vsel %vm1197, %v1272, %v1273
      %v1275 = vrot.slane %v1158, 5
      %v1276 = vrot.slane %v1275, 4
      %v1277 = vrot.slane %v166, 5
      %v1278 = vsel %vm1197, %v1276, %v1277
      %v1279 = vrot.slane %v1277, 4
      %v1280 = vrot.slane %v188, 5
      %v1281 = vsel %vm1197, %v1279, %v1280
      %v1282 = vrot.slane %v1159, 5
      %v1283 = vrot.slane %v1282, 4
      %v1284 = vrot.slane %v168, 5
      %v1285 = vsel %vm1197, %v1283, %v1284
      %v1286 = vrot.slane %v1284, 4
      %v1287 = vrot.slane %v189, 5
      %v1288 = vsel %vm1197, %v1286, %v1287
      %v1289 = vrot.slane %v1160, 5
      %v1290 = vrot.slane %v1289, 4
      %v1291 = vrot.slane %v170, 5
      %v1292 = vsel %vm1197, %v1290, %v1291
      %v1293 = vrot.slane %v1291, 4
      %v1294 = vrot.slane %v190, 5
      %v1295 = vsel %vm1197, %v1293, %v1294
      %v1296 = vrot.slane %v1161, 5
      %v1297 = vrot.slane %v1296, 4
      %v1298 = vrot.slane %v172, 5
      %v1299 = vsel %vm1197, %v1297, %v1298
      %v1300 = vrot.slane %v1298, 4
      %v1301 = vrot.slane %v191, 5
      %v1302 = vsel %vm1197, %v1300, %v1301
      %v1303 = vrot.slane %v1162, 5
      %v1304 = vrot.slane %v1303, 4
      %v1305 = vrot.slane %v174, 5
      %v1306 = vsel %vm1197, %v1304, %v1305
      %v1307 = vrot.slane %v1305, 4
      %v1308 = vrot.slane %v192, 5
      %v1309 = vsel %vm1197, %v1307, %v1308
      %s1310 = scalar_lea.vmem %s1, 16
      %v1311 = vld [vmem:[%s1310] sm:$0xf]
      %v1312 = vld [vmem:[%s1310 + $0x4] sm:$0x3]
      %v1313 = vunpack.c.l.b16 %v1201
      %v1314 = vunpack.c.l.b16 %v1204
      %v1315 = vunpack.c.l.b16 %v1208
      %v1316 = vunpack.c.l.b16 %v1211
      %v1317 = vunpack.c.l.b16 %v1215
      %v1318 = vunpack.c.l.b16 %v1218
      %v1319 = vunpack.c.l.b16 %v1222
      %v1320 = vunpack.c.l.b16 %v1225
      %v1321 = vunpack.c.l.b16 %v1229
      %v1322 = vunpack.c.l.b16 %v1232
      %v1323 = vunpack.c.l.b16 %v1236
      %v1324 = vunpack.c.l.b16 %v1239
      %v1325 = vunpack.c.l.b16 %v1243
      %v1326 = vunpack.c.l.b16 %v1246
      %v1327 = vunpack.c.l.b16 %v1250
      %v1328 = vunpack.c.l.b16 %v1253
      %v1329 = vunpack.c.l.b16 %v1257
      %v1330 = vunpack.c.l.b16 %v1260
      %v1331 = vunpack.c.l.b16 %v1264
      %v1332 = vunpack.c.l.b16 %v1267
      %v1333 = vunpack.c.l.b16 %v1271
      %v1334 = vunpack.c.l.b16 %v1274
      %v1335 = vunpack.c.l.b16 %v1278
      %v1336 = vunpack.c.l.b16 %v1281
      %v1337 = vunpack.c.l.b16 %v1285
      %v1338 = vunpack.c.l.b16 %v1288
      %v1339 = vunpack.c.l.b16 %v1292
      %v1340 = vunpack.c.l.b16 %v1295
      %v1341 = vunpack.c.l.b16 %v1299
      %v1342 = vunpack.c.l.b16 %v1302
      %v1343 = vunpack.c.l.b16 %v1306
      %v1344 = vunpack.c.l.b16 %v1309
      %v1345 = vpack.c.b16 %v1314, %v1313
      %v1346 = vpack.c.b16 %v1316, %v1315
      %v1347 = vpack.c.b16 %v1318, %v1317
      %v1348 = vpack.c.b16 %v1320, %v1319
      %v1349 = vpack.c.b16 %v1322, %v1321
      %v1350 = vpack.c.b16 %v1324, %v1323
      %v1351 = vpack.c.b16 %v1326, %v1325
      %v1352 = vpack.c.b16 %v1328, %v1327
      %v1353 = vpack.c.b16 %v1330, %v1329
      %v1354 = vpack.c.b16 %v1332, %v1331
      %v1355 = vpack.c.b16 %v1334, %v1333
      %v1356 = vpack.c.b16 %v1336, %v1335
      %v1357 = vpack.c.b16 %v1338, %v1337
      %v1358 = vpack.c.b16 %v1340, %v1339
      %v1359 = vpack.c.b16 %v1342, %v1341
      %v1360 = vpack.c.b16 %v1344, %v1343
      %v1363 = vunpack.c.l.b16 %v1311
      %v1364 = vunpack.c.l.b16 %v1312
      %v1365 = vpack.c.b16 %v1364, %v1363
      %v1367 = vsel %vm636, %v1345, 0
      %v1370 = vsel %vm636, %v1346, 0
      %v1373 = vsel %vm636, %v1347, 0
      %v1376 = vsel %vm636, %v1348, 0
      %v1379 = vsel %vm636, %v1349, 0
      %v1382 = vsel %vm636, %v1350, 0
      %v1385 = vsel %vm636, %v1351, 0
      %v1388 = vsel %vm636, %v1352, 0
      %v1391 = vsel %vm636, %v1353, 0
      %v1394 = vsel %vm636, %v1354, 0
      %v1397 = vsel %vm636, %v1355, 0
      %v1400 = vsel %vm636, %v1356, 0
      %v1403 = vsel %vm636, %v1357, 0
      %v1406 = vsel %vm636, %v1358, 0
      %v1409 = vsel %vm636, %v1359, 0
      %v1412 = vsel %vm636, %v1360, 0
      %v1415 = vsel %vm685, %v1365, 0
      %1417 = vmatprep.subr.bf16.mxu0 0
      %1418 = vmatpush1.bf16.msra.mxu0 0
      %1419 = vmatprep.subr.bf16.mxu0 0
      %1420 = vmatpush1.bf16.msra.mxu0 0
      %1421 = vmatprep.subr.bf16.mxu0 0
      %1422 = vmatpush1.bf16.msra.mxu0 0
      %1423 = vmatprep.subr.bf16.mxu0 0
      %1424 = vmatpush1.bf16.msra.mxu0 0
      %1425 = vmatprep.subr.bf16.mxu0 0
      %1426 = vmatpush1.bf16.msra.mxu0 0
      %1427 = vmatprep.subr.bf16.mxu0 0
      %1428 = vmatpush1.bf16.msra.mxu0 0
      %1429 = vmatprep.subr.bf16.mxu0 0
      %1430 = vmatpush1.bf16.msra.mxu0 0
      %1431 = vmatprep.subr.bf16.mxu0 0
      %1432 = vmatpush1.bf16.msra.mxu0 %v1415
      %1433 = vmatprep.subr.bf16.mxu0 0
      %1434 = vmatpush2.bf16.msra.mxu0 0
      %1435 = vmatprep.subr.bf16.mxu0 0
      %1436 = vmatpush2.bf16.msra.mxu0 0
      %1437 = vmatprep.subr.bf16.mxu0 0
      %1438 = vmatpush2.bf16.msra.mxu0 0
      %1439 = vmatprep.subr.bf16.mxu0 0
      %1440 = vmatpush2.bf16.msra.mxu0 0
      %1441 = vmatprep.subr.bf16.mxu0 0
      %1442 = vmatpush2.bf16.msra.mxu0 0
      %1443 = vmatprep.subr.bf16.mxu0 0
      %1444 = vmatpush2.bf16.msra.mxu0 0
      %1445 = vmatprep.subr.bf16.mxu0 0
      %1446 = vmatpush2.bf16.msra.mxu0 0
      %1447 = vmatprep.subr.bf16.mxu0 0
      %1448 = vmatpush2.bf16.msra.mxu0 0
      %1449 = vmatprep.mubr.bf16.mxu0 0
      %1450 = vmatmul.mubr.bf16.gmra.mxu0 %v1367
      %v1451 = vpop.f32.mrf.mxu0
      %v1452 = vadd.f32 0.0, %v1451
      %v1453 = vpop.f32.mrf.mxu0
      %v1454 = vpop.f32.mrf.mxu0
      %v1455 = vadd.f32 0.0, %v1454
      %v1456 = vpop.f32.mrf.mxu0
      %1457 = vmatprep.mubr.bf16.mxu0 0
      %1458 = vmatmul.mubr.bf16.gmra.mxu0 %v1370
      %v1459 = vpop.f32.mrf.mxu0
      %v1460 = vadd.f32 0.0, %v1459
      %v1461 = vpop.f32.mrf.mxu0
      %v1462 = vpop.f32.mrf.mxu0
      %v1463 = vadd.f32 0.0, %v1462
      %v1464 = vpop.f32.mrf.mxu0
      %1465 = vmatprep.mubr.bf16.mxu0 0
      %1466 = vmatmul.mubr.bf16.gmra.mxu0 %v1373
      %v1467 = vpop.f32.mrf.mxu0
      %v1468 = vadd.f32 0.0, %v1467
      %v1469 = vpop.f32.mrf.mxu0
      %v1470 = vpop.f32.mrf.mxu0
      %v1471 = vadd.f32 0.0, %v1470
      %v1472 = vpop.f32.mrf.mxu0
      %1473 = vmatprep.mubr.bf16.mxu0 0
      %1474 = vmatmul.mubr.bf16.gmra.mxu0 %v1376
      %v1475 = vpop.f32.mrf.mxu0
      %v1476 = vadd.f32 0.0, %v1475
      %v1477 = vpop.f32.mrf.mxu0
      %v1478 = vpop.f32.mrf.mxu0
      %v1479 = vadd.f32 0.0, %v1478
      %v1480 = vpop.f32.mrf.mxu0
      %1481 = vmatprep.mubr.bf16.mxu0 0
      %1482 = vmatmul.mubr.bf16.gmra.mxu0 %v1379
      %v1483 = vpop.f32.mrf.mxu0
      %v1484 = vadd.f32 0.0, %v1483
      %v1485 = vpop.f32.mrf.mxu0
      %v1486 = vpop.f32.mrf.mxu0
      %v1487 = vadd.f32 0.0, %v1486
      %v1488 = vpop.f32.mrf.mxu0
      %1489 = vmatprep.mubr.bf16.mxu0 0
      %1490 = vmatmul.mubr.bf16.gmra.mxu0 %v1382
      %v1491 = vpop.f32.mrf.mxu0
      %v1492 = vadd.f32 0.0, %v1491
      %v1493 = vpop.f32.mrf.mxu0
      %v1494 = vpop.f32.mrf.mxu0
      %v1495 = vadd.f32 0.0, %v1494
      %v1496 = vpop.f32.mrf.mxu0
      %1497 = vmatprep.mubr.bf16.mxu0 0
      %1498 = vmatmul.mubr.bf16.gmra.mxu0 %v1385
      %v1499 = vpop.f32.mrf.mxu0
      %v1500 = vadd.f32 0.0, %v1499
      %v1501 = vpop.f32.mrf.mxu0
      %v1502 = vpop.f32.mrf.mxu0
      %v1503 = vadd.f32 0.0, %v1502
      %v1504 = vpop.f32.mrf.mxu0
      %1505 = vmatprep.mubr.bf16.mxu0 0
      %1506 = vmatmul.mubr.bf16.gmra.mxu0 %v1388
      %v1507 = vpop.f32.mrf.mxu0
      %v1508 = vadd.f32 0.0, %v1507
      %v1509 = vpop.f32.mrf.mxu0
      %v1510 = vpop.f32.mrf.mxu0
      %v1511 = vadd.f32 0.0, %v1510
      %v1512 = vpop.f32.mrf.mxu0
      %1513 = vmatprep.mubr.bf16.mxu0 0
      %1514 = vmatmul.mubr.bf16.gmra.mxu0 %v1391
      %v1515 = vpop.f32.mrf.mxu0
      %v1516 = vadd.f32 0.0, %v1515
      %v1517 = vpop.f32.mrf.mxu0
      %v1518 = vpop.f32.mrf.mxu0
      %v1519 = vadd.f32 0.0, %v1518
      %v1520 = vpop.f32.mrf.mxu0
      %1521 = vmatprep.mubr.bf16.mxu0 0
      %1522 = vmatmul.mubr.bf16.gmra.mxu0 %v1394
      %v1523 = vpop.f32.mrf.mxu0
      %v1524 = vadd.f32 0.0, %v1523
      %v1525 = vpop.f32.mrf.mxu0
      %v1526 = vpop.f32.mrf.mxu0
      %v1527 = vadd.f32 0.0, %v1526
      %v1528 = vpop.f32.mrf.mxu0
      %1529 = vmatprep.mubr.bf16.mxu0 0
      %1530 = vmatmul.mubr.bf16.gmra.mxu0 %v1397
      %v1531 = vpop.f32.mrf.mxu0
      %v1532 = vadd.f32 0.0, %v1531
      %v1533 = vpop.f32.mrf.mxu0
      %v1534 = vpop.f32.mrf.mxu0
      %v1535 = vadd.f32 0.0, %v1534
      %v1536 = vpop.f32.mrf.mxu0
      %1537 = vmatprep.mubr.bf16.mxu0 0
      %1538 = vmatmul.mubr.bf16.gmra.mxu0 %v1400
      %v1539 = vpop.f32.mrf.mxu0
      %v1540 = vadd.f32 0.0, %v1539
      %v1541 = vpop.f32.mrf.mxu0
      %v1542 = vpop.f32.mrf.mxu0
      %v1543 = vadd.f32 0.0, %v1542
      %v1544 = vpop.f32.mrf.mxu0
      %1545 = vmatprep.mubr.bf16.mxu0 0
      %1546 = vmatmul.mubr.bf16.gmra.mxu0 %v1403
      %v1547 = vpop.f32.mrf.mxu0
      %v1548 = vadd.f32 0.0, %v1547
      %v1549 = vpop.f32.mrf.mxu0
      %v1550 = vpop.f32.mrf.mxu0
      %v1551 = vadd.f32 0.0, %v1550
      %v1552 = vpop.f32.mrf.mxu0
      %1553 = vmatprep.mubr.bf16.mxu0 0
      %1554 = vmatmul.mubr.bf16.gmra.mxu0 %v1406
      %v1555 = vpop.f32.mrf.mxu0
      %v1556 = vadd.f32 0.0, %v1555
      %v1557 = vpop.f32.mrf.mxu0
      %v1558 = vpop.f32.mrf.mxu0
      %v1559 = vadd.f32 0.0, %v1558
      %v1560 = vpop.f32.mrf.mxu0
      %1561 = vmatprep.mubr.bf16.mxu0 0
      %1562 = vmatmul.mubr.bf16.gmra.mxu0 %v1409
      %v1563 = vpop.f32.mrf.mxu0
      %v1564 = vadd.f32 0.0, %v1563
      %v1565 = vpop.f32.mrf.mxu0
      %v1566 = vpop.f32.mrf.mxu0
      %v1567 = vadd.f32 0.0, %v1566
      %v1568 = vpop.f32.mrf.mxu0
      %1569 = vmatprep.mubr.bf16.mxu0 0
      %1570 = vmatmul.mubr.bf16.gmra.mxu0 %v1412
      %v1571 = vpop.f32.mrf.mxu0
      %v1572 = vadd.f32 0.0, %v1571
      %v1573 = vpop.f32.mrf.mxu0
      %v1574 = vpop.f32.mrf.mxu0
      %v1575 = vadd.f32 0.0, %v1574
      %v1576 = vpop.f32.mrf.mxu0
      %1577 = vdwg.mxu0
      %v1578 = vadd.f32 %v1021, %v1452
      %v1579 = vadd.f32 %v1024, %v1455
      %v1580 = vadd.f32 %v1029, %v1460
      %v1581 = vadd.f32 %v1032, %v1463
      %v1582 = vadd.f32 %v1037, %v1468
      %v1583 = vadd.f32 %v1040, %v1471
      %v1584 = vadd.f32 %v1045, %v1476
      %v1585 = vadd.f32 %v1048, %v1479
      %v1586 = vadd.f32 %v1053, %v1484
      %v1587 = vadd.f32 %v1056, %v1487
      %v1588 = vadd.f32 %v1061, %v1492
      %v1589 = vadd.f32 %v1064, %v1495
      %v1590 = vadd.f32 %v1069, %v1500
      %v1591 = vadd.f32 %v1072, %v1503
      %v1592 = vadd.f32 %v1077, %v1508
      %v1593 = vadd.f32 %v1080, %v1511
      %v1594 = vadd.f32 %v1085, %v1516
      %v1595 = vadd.f32 %v1088, %v1519
      %v1596 = vadd.f32 %v1093, %v1524
      %v1597 = vadd.f32 %v1096, %v1527
      %v1598 = vadd.f32 %v1101, %v1532
      %v1599 = vadd.f32 %v1104, %v1535
      %v1600 = vadd.f32 %v1109, %v1540
      %v1601 = vadd.f32 %v1112, %v1543
      %v1602 = vadd.f32 %v1117, %v1548
      %v1603 = vadd.f32 %v1120, %v1551
      %v1604 = vadd.f32 %v1125, %v1556
      %v1605 = vadd.f32 %v1128, %v1559
      %v1606 = vadd.f32 %v1133, %v1564
      %v1607 = vadd.f32 %v1136, %v1567
      %v1608 = vadd.f32 %v1141, %v1572
      %v1609 = vadd.f32 %v1144, %v1575
      %s1610 = scalar_lea.vmem %s137, 12
      %v1611 = vld [vmem:[%s1610] sm:$0xf]
      %v1612 = vld [vmem:[%s1610 + $0x4] sm:$0xf]
      %v1613 = vld [vmem:[%s1610 + $0xc] sm:$0xf]
      %v1614 = vld [vmem:[%s1610 + $0x10] sm:$0xf]
      %v1615 = vld [vmem:[%s1610 + $0x18] sm:$0xf]
      %v1616 = vld [vmem:[%s1610 + $0x1c] sm:$0xf]
      %v1617 = vld [vmem:[%s1610 + $0x24] sm:$0xf]
      %v1618 = vld [vmem:[%s1610 + $0x28] sm:$0xf]
      %v1619 = vld [vmem:[%s1610 + $0x30] sm:$0xf]
      %v1620 = vld [vmem:[%s1610 + $0x34] sm:$0xf]
      %v1621 = vld [vmem:[%s1610 + $0x3c] sm:$0xf]
      %v1622 = vld [vmem:[%s1610 + $0x40] sm:$0xf]
      %v1623 = vld [vmem:[%s1610 + $0x48] sm:$0xf]
      %v1624 = vld [vmem:[%s1610 + $0x4c] sm:$0xf]
      %v1625 = vld [vmem:[%s1610 + $0x54] sm:$0xf]
      %v1626 = vld [vmem:[%s1610 + $0x58] sm:$0xf]
      %v1627 = vld [vmem:[%s1610 + $0x60] sm:$0xf]
      %v1628 = vld [vmem:[%s1610 + $0x64] sm:$0xf]
      %v1629 = vld [vmem:[%s1610 + $0x6c] sm:$0xf]
      %v1630 = vld [vmem:[%s1610 + $0x70] sm:$0xf]
      %v1631 = vld [vmem:[%s1610 + $0x78] sm:$0xf]
      %v1632 = vld [vmem:[%s1610 + $0x7c] sm:$0xf]
      %v1633 = vld [vmem:[%s1610 + $0x84] sm:$0xf]
      %v1634 = vld [vmem:[%s1610 + $0x88] sm:$0xf]
      %v1635 = vld [vmem:[%s1610 + $0x90] sm:$0xf]
      %v1636 = vld [vmem:[%s1610 + $0x94] sm:$0xf]
      %v1637 = vld [vmem:[%s1610 + $0x9c] sm:$0xf]
      %v1638 = vld [vmem:[%s1610 + $0xa0] sm:$0xf]
      %v1639 = vld [vmem:[%s1610 + $0xa8] sm:$0xf]
      %v1640 = vld [vmem:[%s1610 + $0xac] sm:$0xf]
      %v1641 = vld [vmem:[%s1610 + $0xb4] sm:$0xf]
      %v1642 = vld [vmem:[%s1610 + $0xb8] sm:$0xf]
      %s1643 = scalar_lea.vmem %s1, 24
      %v1644 = vld [vmem:[%s1643] sm:$0xf]
      %v1645 = vld [vmem:[%s1643 + $0x4] sm:$0x3]
      %v1678 = vunpack.c.l.b16 %v1611
      %v1679 = vunpack.c.l.b16 %v1612
      %v1680 = vunpack.c.l.b16 %v1613
      %v1681 = vunpack.c.l.b16 %v1614
      %v1682 = vunpack.c.l.b16 %v1615
      %v1683 = vunpack.c.l.b16 %v1616
      %v1684 = vunpack.c.l.b16 %v1617
      %v1685 = vunpack.c.l.b16 %v1618
      %v1686 = vunpack.c.l.b16 %v1619
      %v1687 = vunpack.c.l.b16 %v1620
      %v1688 = vunpack.c.l.b16 %v1621
      %v1689 = vunpack.c.l.b16 %v1622
      %v1690 = vunpack.c.l.b16 %v1623
      %v1691 = vunpack.c.l.b16 %v1624
      %v1692 = vunpack.c.l.b16 %v1625
      %v1693 = vunpack.c.l.b16 %v1626
      %v1694 = vunpack.c.l.b16 %v1627
      %v1695 = vunpack.c.l.b16 %v1628
      %v1696 = vunpack.c.l.b16 %v1629
      %v1697 = vunpack.c.l.b16 %v1630
      %v1698 = vunpack.c.l.b16 %v1631
      %v1699 = vunpack.c.l.b16 %v1632
      %v1700 = vunpack.c.l.b16 %v1633
      %v1701 = vunpack.c.l.b16 %v1634
      %v1702 = vunpack.c.l.b16 %v1635
      %v1703 = vunpack.c.l.b16 %v1636
      %v1704 = vunpack.c.l.b16 %v1637
      %v1705 = vunpack.c.l.b16 %v1638
      %v1706 = vunpack.c.l.b16 %v1639
      %v1707 = vunpack.c.l.b16 %v1640
      %v1708 = vunpack.c.l.b16 %v1641
      %v1709 = vunpack.c.l.b16 %v1642
      %v1710 = vpack.c.b16 %v1679, %v1678
      %v1711 = vpack.c.b16 %v1681, %v1680
      %v1712 = vpack.c.b16 %v1683, %v1682
      %v1713 = vpack.c.b16 %v1685, %v1684
      %v1714 = vpack.c.b16 %v1687, %v1686
      %v1715 = vpack.c.b16 %v1689, %v1688
      %v1716 = vpack.c.b16 %v1691, %v1690
      %v1717 = vpack.c.b16 %v1693, %v1692
      %v1718 = vpack.c.b16 %v1695, %v1694
      %v1719 = vpack.c.b16 %v1697, %v1696
      %v1720 = vpack.c.b16 %v1699, %v1698
      %v1721 = vpack.c.b16 %v1701, %v1700
      %v1722 = vpack.c.b16 %v1703, %v1702
      %v1723 = vpack.c.b16 %v1705, %v1704
      %v1724 = vpack.c.b16 %v1707, %v1706
      %v1725 = vpack.c.b16 %v1709, %v1708
      %v1728 = vunpack.c.l.b16 %v1644
      %v1729 = vunpack.c.l.b16 %v1645
      %v1730 = vpack.c.b16 %v1729, %v1728
      %v1732 = vsel %vm636, %v1710, 0
      %v1735 = vsel %vm636, %v1711, 0
      %v1738 = vsel %vm636, %v1712, 0
      %v1741 = vsel %vm636, %v1713, 0
      %v1744 = vsel %vm636, %v1714, 0
      %v1747 = vsel %vm636, %v1715, 0
      %v1750 = vsel %vm636, %v1716, 0
      %v1753 = vsel %vm636, %v1717, 0
      %v1756 = vsel %vm636, %v1718, 0
      %v1759 = vsel %vm636, %v1719, 0
      %v1762 = vsel %vm636, %v1720, 0
      %v1765 = vsel %vm636, %v1721, 0
      %v1768 = vsel %vm636, %v1722, 0
      %v1771 = vsel %vm636, %v1723, 0
      %v1774 = vsel %vm636, %v1724, 0
      %v1777 = vsel %vm636, %v1725, 0
      %v1780 = vsel %vm685, %v1730, 0
      %1782 = vmatprep.subr.bf16.mxu0 0
      %1783 = vmatpush1.bf16.msra.mxu0 0
      %1784 = vmatprep.subr.bf16.mxu0 0
      %1785 = vmatpush1.bf16.msra.mxu0 0
      %1786 = vmatprep.subr.bf16.mxu0 0
      %1787 = vmatpush1.bf16.msra.mxu0 0
      %1788 = vmatprep.subr.bf16.mxu0 0
      %1789 = vmatpush1.bf16.msra.mxu0 0
      %1790 = vmatprep.subr.bf16.mxu0 0
      %1791 = vmatpush1.bf16.msra.mxu0 0
      %1792 = vmatprep.subr.bf16.mxu0 0
      %1793 = vmatpush1.bf16.msra.mxu0 0
      %1794 = vmatprep.subr.bf16.mxu0 0
      %1795 = vmatpush1.bf16.msra.mxu0 0
      %1796 = vmatprep.subr.bf16.mxu0 0
      %1797 = vmatpush1.bf16.msra.mxu0 %v1780
      %1798 = vmatprep.subr.bf16.mxu0 0
      %1799 = vmatpush2.bf16.msra.mxu0 0
      %1800 = vmatprep.subr.bf16.mxu0 0
      %1801 = vmatpush2.bf16.msra.mxu0 0
      %1802 = vmatprep.subr.bf16.mxu0 0
      %1803 = vmatpush2.bf16.msra.mxu0 0
      %1804 = vmatprep.subr.bf16.mxu0 0
      %1805 = vmatpush2.bf16.msra.mxu0 0
      %1806 = vmatprep.subr.bf16.mxu0 0
      %1807 = vmatpush2.bf16.msra.mxu0 0
      %1808 = vmatprep.subr.bf16.mxu0 0
      %1809 = vmatpush2.bf16.msra.mxu0 0
      %1810 = vmatprep.subr.bf16.mxu0 0
      %1811 = vmatpush2.bf16.msra.mxu0 0
      %1812 = vmatprep.subr.bf16.mxu0 0
      %1813 = vmatpush2.bf16.msra.mxu0 0
      %1814 = vmatprep.mubr.bf16.mxu0 0
      %1815 = vmatmul.mubr.bf16.gmra.mxu0 %v1732
      %v1816 = vpop.f32.mrf.mxu0
      %v1817 = vadd.f32 0.0, %v1816
      %v1818 = vpop.f32.mrf.mxu0
      %v1819 = vpop.f32.mrf.mxu0
      %v1820 = vadd.f32 0.0, %v1819
      %v1821 = vpop.f32.mrf.mxu0
      %1822 = vmatprep.mubr.bf16.mxu0 0
      %1823 = vmatmul.mubr.bf16.gmra.mxu0 %v1735
      %v1824 = vpop.f32.mrf.mxu0
      %v1825 = vadd.f32 0.0, %v1824
      %v1826 = vpop.f32.mrf.mxu0
      %v1827 = vpop.f32.mrf.mxu0
      %v1828 = vadd.f32 0.0, %v1827
      %v1829 = vpop.f32.mrf.mxu0
      %1830 = vmatprep.mubr.bf16.mxu0 0
      %1831 = vmatmul.mubr.bf16.gmra.mxu0 %v1738
      %v1832 = vpop.f32.mrf.mxu0
      %v1833 = vadd.f32 0.0, %v1832
      %v1834 = vpop.f32.mrf.mxu0
      %v1835 = vpop.f32.mrf.mxu0
      %v1836 = vadd.f32 0.0, %v1835
      %v1837 = vpop.f32.mrf.mxu0
      %1838 = vmatprep.mubr.bf16.mxu0 0
      %1839 = vmatmul.mubr.bf16.gmra.mxu0 %v1741
      %v1840 = vpop.f32.mrf.mxu0
      %v1841 = vadd.f32 0.0, %v1840
      %v1842 = vpop.f32.mrf.mxu0
      %v1843 = vpop.f32.mrf.mxu0
      %v1844 = vadd.f32 0.0, %v1843
      %v1845 = vpop.f32.mrf.mxu0
      %1846 = vmatprep.mubr.bf16.mxu0 0
      %1847 = vmatmul.mubr.bf16.gmra.mxu0 %v1744
      %v1848 = vpop.f32.mrf.mxu0
      %v1849 = vadd.f32 0.0, %v1848
      %v1850 = vpop.f32.mrf.mxu0
      %v1851 = vpop.f32.mrf.mxu0
      %v1852 = vadd.f32 0.0, %v1851
      %v1853 = vpop.f32.mrf.mxu0
      %1854 = vmatprep.mubr.bf16.mxu0 0
      %1855 = vmatmul.mubr.bf16.gmra.mxu0 %v1747
      %v1856 = vpop.f32.mrf.mxu0
      %v1857 = vadd.f32 0.0, %v1856
      %v1858 = vpop.f32.mrf.mxu0
      %v1859 = vpop.f32.mrf.mxu0
      %v1860 = vadd.f32 0.0, %v1859
      %v1861 = vpop.f32.mrf.mxu0
      %1862 = vmatprep.mubr.bf16.mxu0 0
      %1863 = vmatmul.mubr.bf16.gmra.mxu0 %v1750
      %v1864 = vpop.f32.mrf.mxu0
      %v1865 = vadd.f32 0.0, %v1864
      %v1866 = vpop.f32.mrf.mxu0
      %v1867 = vpop.f32.mrf.mxu0
      %v1868 = vadd.f32 0.0, %v1867
      %v1869 = vpop.f32.mrf.mxu0
      %1870 = vmatprep.mubr.bf16.mxu0 0
      %1871 = vmatmul.mubr.bf16.gmra.mxu0 %v1753
      %v1872 = vpop.f32.mrf.mxu0
      %v1873 = vadd.f32 0.0, %v1872
      %v1874 = vpop.f32.mrf.mxu0
      %v1875 = vpop.f32.mrf.mxu0
      %v1876 = vadd.f32 0.0, %v1875
      %v1877 = vpop.f32.mrf.mxu0
      %1878 = vmatprep.mubr.bf16.mxu0 0
      %1879 = vmatmul.mubr.bf16.gmra.mxu0 %v1756
      %v1880 = vpop.f32.mrf.mxu0
      %v1881 = vadd.f32 0.0, %v1880
      %v1882 = vpop.f32.mrf.mxu0
      %v1883 = vpop.f32.mrf.mxu0
      %v1884 = vadd.f32 0.0, %v1883
      %v1885 = vpop.f32.mrf.mxu0
      %1886 = vmatprep.mubr.bf16.mxu0 0
      %1887 = vmatmul.mubr.bf16.gmra.mxu0 %v1759
      %v1888 = vpop.f32.mrf.mxu0
      %v1889 = vadd.f32 0.0, %v1888
      %v1890 = vpop.f32.mrf.mxu0
      %v1891 = vpop.f32.mrf.mxu0
      %v1892 = vadd.f32 0.0, %v1891
      %v1893 = vpop.f32.mrf.mxu0
      %1894 = vmatprep.mubr.bf16.mxu0 0
      %1895 = vmatmul.mubr.bf16.gmra.mxu0 %v1762
      %v1896 = vpop.f32.mrf.mxu0
      %v1897 = vadd.f32 0.0, %v1896
      %v1898 = vpop.f32.mrf.mxu0
      %v1899 = vpop.f32.mrf.mxu0
      %v1900 = vadd.f32 0.0, %v1899
      %v1901 = vpop.f32.mrf.mxu0
      %1902 = vmatprep.mubr.bf16.mxu0 0
      %1903 = vmatmul.mubr.bf16.gmra.mxu0 %v1765
      %v1904 = vpop.f32.mrf.mxu0
      %v1905 = vadd.f32 0.0, %v1904
      %v1906 = vpop.f32.mrf.mxu0
      %v1907 = vpop.f32.mrf.mxu0
      %v1908 = vadd.f32 0.0, %v1907
      %v1909 = vpop.f32.mrf.mxu0
      %1910 = vmatprep.mubr.bf16.mxu0 0
      %1911 = vmatmul.mubr.bf16.gmra.mxu0 %v1768
      %v1912 = vpop.f32.mrf.mxu0
      %v1913 = vadd.f32 0.0, %v1912
      %v1914 = vpop.f32.mrf.mxu0
      %v1915 = vpop.f32.mrf.mxu0
      %v1916 = vadd.f32 0.0, %v1915
      %v1917 = vpop.f32.mrf.mxu0
      %1918 = vmatprep.mubr.bf16.mxu0 0
      %1919 = vmatmul.mubr.bf16.gmra.mxu0 %v1771
      %v1920 = vpop.f32.mrf.mxu0
      %v1921 = vadd.f32 0.0, %v1920
      %v1922 = vpop.f32.mrf.mxu0
      %v1923 = vpop.f32.mrf.mxu0
      %v1924 = vadd.f32 0.0, %v1923
      %v1925 = vpop.f32.mrf.mxu0
      %1926 = vmatprep.mubr.bf16.mxu0 0
      %1927 = vmatmul.mubr.bf16.gmra.mxu0 %v1774
      %v1928 = vpop.f32.mrf.mxu0
      %v1929 = vadd.f32 0.0, %v1928
      %v1930 = vpop.f32.mrf.mxu0
      %v1931 = vpop.f32.mrf.mxu0
      %v1932 = vadd.f32 0.0, %v1931
      %v1933 = vpop.f32.mrf.mxu0
      %1934 = vmatprep.mubr.bf16.mxu0 0
      %1935 = vmatmul.mubr.bf16.gmra.mxu0 %v1777
      %v1936 = vpop.f32.mrf.mxu0
      %v1937 = vadd.f32 0.0, %v1936
      %v1938 = vpop.f32.mrf.mxu0
      %v1939 = vpop.f32.mrf.mxu0
      %v1940 = vadd.f32 0.0, %v1939
      %v1941 = vpop.f32.mrf.mxu0
      %1942 = vdwg.mxu0
      %v1943 = vadd.f32 %v1578, %v1817
      %v1944 = vadd.f32 %v1579, %v1820
      %v1945 = vadd.f32 %v1580, %v1825
      %v1946 = vadd.f32 %v1581, %v1828
      %v1947 = vadd.f32 %v1582, %v1833
      %v1948 = vadd.f32 %v1583, %v1836
      %v1949 = vadd.f32 %v1584, %v1841
      %v1950 = vadd.f32 %v1585, %v1844
      %v1951 = vadd.f32 %v1586, %v1849
      %v1952 = vadd.f32 %v1587, %v1852
      %v1953 = vadd.f32 %v1588, %v1857
      %v1954 = vadd.f32 %v1589, %v1860
      %v1955 = vadd.f32 %v1590, %v1865
      %v1956 = vadd.f32 %v1591, %v1868
      %v1957 = vadd.f32 %v1592, %v1873
      %v1958 = vadd.f32 %v1593, %v1876
      %v1959 = vadd.f32 %v1594, %v1881
      %v1960 = vadd.f32 %v1595, %v1884
      %v1961 = vadd.f32 %v1596, %v1889
      %v1962 = vadd.f32 %v1597, %v1892
      %v1963 = vadd.f32 %v1598, %v1897
      %v1964 = vadd.f32 %v1599, %v1900
      %v1965 = vadd.f32 %v1600, %v1905
      %v1966 = vadd.f32 %v1601, %v1908
      %v1967 = vadd.f32 %v1602, %v1913
      %v1968 = vadd.f32 %v1603, %v1916
      %v1969 = vadd.f32 %v1604, %v1921
      %v1970 = vadd.f32 %v1605, %v1924
      %v1971 = vadd.f32 %v1606, %v1929
      %v1972 = vadd.f32 %v1607, %v1932
      %v1973 = vadd.f32 %v1608, %v1937
      %v1974 = vadd.f32 %v1609, %v1940
      %v1975 = vld [vmem:[%s1610] sm:$0xf]
      %v1976 = vld [vmem:[%s1610 + $0x4] sm:$0xf]
      %v1977 = vld [vmem:[%s1610 + $0x8] sm:$0x1]
      %v1978 = vld [vmem:[%s1610 + $0xc] sm:$0xf]
      %v1979 = vld [vmem:[%s1610 + $0x10] sm:$0xf]
      %v1980 = vld [vmem:[%s1610 + $0x14] sm:$0x1]
      %v1981 = vld [vmem:[%s1610 + $0x18] sm:$0xf]
      %v1982 = vld [vmem:[%s1610 + $0x1c] sm:$0xf]
      %v1983 = vld [vmem:[%s1610 + $0x20] sm:$0x1]
      %v1984 = vld [vmem:[%s1610 + $0x24] sm:$0xf]
      %v1985 = vld [vmem:[%s1610 + $0x28] sm:$0xf]
      %v1986 = vld [vmem:[%s1610 + $0x2c] sm:$0x1]
      %v1987 = vld [vmem:[%s1610 + $0x30] sm:$0xf]
      %v1988 = vld [vmem:[%s1610 + $0x34] sm:$0xf]
      %v1989 = vld [vmem:[%s1610 + $0x38] sm:$0x1]
      %v1990 = vld [vmem:[%s1610 + $0x3c] sm:$0xf]
      %v1991 = vld [vmem:[%s1610 + $0x40] sm:$0xf]
      %v1992 = vld [vmem:[%s1610 + $0x44] sm:$0x1]
      %v1993 = vld [vmem:[%s1610 + $0x48] sm:$0xf]
      %v1994 = vld [vmem:[%s1610 + $0x4c] sm:$0xf]
      %v1995 = vld [vmem:[%s1610 + $0x50] sm:$0x1]
      %v1996 = vld [vmem:[%s1610 + $0x54] sm:$0xf]
      %v1997 = vld [vmem:[%s1610 + $0x58] sm:$0xf]
      %v1998 = vld [vmem:[%s1610 + $0x5c] sm:$0x1]
      %v1999 = vld [vmem:[%s1610 + $0x60] sm:$0xf]
      %v2000 = vld [vmem:[%s1610 + $0x64] sm:$0xf]
      %v2001 = vld [vmem:[%s1610 + $0x68] sm:$0x1]
      %v2002 = vld [vmem:[%s1610 + $0x6c] sm:$0xf]
      %v2003 = vld [vmem:[%s1610 + $0x70] sm:$0xf]
      %v2004 = vld [vmem:[%s1610 + $0x74] sm:$0x1]
      %v2005 = vld [vmem:[%s1610 + $0x78] sm:$0xf]
      %v2006 = vld [vmem:[%s1610 + $0x7c] sm:$0xf]
      %v2007 = vld [vmem:[%s1610 + $0x80] sm:$0x1]
      %v2008 = vld [vmem:[%s1610 + $0x84] sm:$0xf]
      %v2009 = vld [vmem:[%s1610 + $0x88] sm:$0xf]
      %v2010 = vld [vmem:[%s1610 + $0x8c] sm:$0x1]
      %v2011 = vld [vmem:[%s1610 + $0x90] sm:$0xf]
      %v2012 = vld [vmem:[%s1610 + $0x94] sm:$0xf]
      %v2013 = vld [vmem:[%s1610 + $0x98] sm:$0x1]
      %v2014 = vld [vmem:[%s1610 + $0x9c] sm:$0xf]
      %v2015 = vld [vmem:[%s1610 + $0xa0] sm:$0xf]
      %v2016 = vld [vmem:[%s1610 + $0xa4] sm:$0x1]
      %v2017 = vld [vmem:[%s1610 + $0xa8] sm:$0xf]
      %v2018 = vld [vmem:[%s1610 + $0xac] sm:$0xf]
      %v2019 = vld [vmem:[%s1610 + $0xb0] sm:$0x1]
      %v2020 = vld [vmem:[%s1610 + $0xb4] sm:$0xf]
      %v2021 = vld [vmem:[%s1610 + $0xb8] sm:$0xf]
      %v2022 = vld [vmem:[%s1610 + $0xbc] sm:$0x1]
      %v2024 = vshrl.u32 %v1975, 16
      %v2026 = vrot.slane %v2024, 4
      %v2027 = vshll.u32 %v1975, 16
      %v2029 = vrot.slane %v2027, 5
      %v2030 = vor.u32 %v2026, %v2029
      %v2031 = vrot.slane %v2030, 4
      %v2033 = vshll.u32 %v1976, 16
      %v2035 = vrot.slane %v2033, 5
      %v2036 = vsel %vm195, %v2031, %v2035
      %v2037 = vshrl.u32 %v1976, 16
      %v2039 = vrot.slane %v2037, 4
      %v2040 = vor.u32 %v2039, %v2035
      %v2041 = vrot.slane %v2040, 4
      %v2043 = vshll.u32 %v1977, 16
      %v2045 = vrot.slane %v2043, 5
      %v2046 = vsel %vm195, %v2041, %v2045
      %v2048 = vshrl.u32 %v1978, 16
      %v2050 = vrot.slane %v2048, 4
      %v2051 = vshll.u32 %v1978, 16
      %v2053 = vrot.slane %v2051, 5
      %v2054 = vor.u32 %v2050, %v2053
      %v2055 = vrot.slane %v2054, 4
      %v2057 = vshll.u32 %v1979, 16
      %v2059 = vrot.slane %v2057, 5
      %v2060 = vsel %vm195, %v2055, %v2059
      %v2061 = vshrl.u32 %v1979, 16
      %v2063 = vrot.slane %v2061, 4
      %v2064 = vor.u32 %v2063, %v2059
      %v2065 = vrot.slane %v2064, 4
      %v2067 = vshll.u32 %v1980, 16
      %v2069 = vrot.slane %v2067, 5
      %v2070 = vsel %vm195, %v2065, %v2069
      %v2072 = vshrl.u32 %v1981, 16
      %v2074 = vrot.slane %v2072, 4
      %v2075 = vshll.u32 %v1981, 16
      %v2077 = vrot.slane %v2075, 5
      %v2078 = vor.u32 %v2074, %v2077
      %v2079 = vrot.slane %v2078, 4
      %v2081 = vshll.u32 %v1982, 16
      %v2083 = vrot.slane %v2081, 5
      %v2084 = vsel %vm195, %v2079, %v2083
      %v2085 = vshrl.u32 %v1982, 16
      %v2087 = vrot.slane %v2085, 4
      %v2088 = vor.u32 %v2087, %v2083
      %v2089 = vrot.slane %v2088, 4
      %v2091 = vshll.u32 %v1983, 16
      %v2093 = vrot.slane %v2091, 5
      %v2094 = vsel %vm195, %v2089, %v2093
      %v2096 = vshrl.u32 %v1984, 16
      %v2098 = vrot.slane %v2096, 4
      %v2099 = vshll.u32 %v1984, 16
      %v2101 = vrot.slane %v2099, 5
      %v2102 = vor.u32 %v2098, %v2101
      %v2103 = vrot.slane %v2102, 4
      %v2105 = vshll.u32 %v1985, 16
      %v2107 = vrot.slane %v2105, 5
      %v2108 = vsel %vm195, %v2103, %v2107
      %v2109 = vshrl.u32 %v1985, 16
      %v2111 = vrot.slane %v2109, 4
      %v2112 = vor.u32 %v2111, %v2107
      %v2113 = vrot.slane %v2112, 4
      %v2115 = vshll.u32 %v1986, 16
      %v2117 = vrot.slane %v2115, 5
      %v2118 = vsel %vm195, %v2113, %v2117
      %v2120 = vshrl.u32 %v1987, 16
      %v2122 = vrot.slane %v2120, 4
      %v2123 = vshll.u32 %v1987, 16
      %v2125 = vrot.slane %v2123, 5
      %v2126 = vor.u32 %v2122, %v2125
      %v2127 = vrot.slane %v2126, 4
      %v2129 = vshll.u32 %v1988, 16
      %v2131 = vrot.slane %v2129, 5
      %v2132 = vsel %vm195, %v2127, %v2131
      %v2133 = vshrl.u32 %v1988, 16
      %v2135 = vrot.slane %v2133, 4
      %v2136 = vor.u32 %v2135, %v2131
      %v2137 = vrot.slane %v2136, 4
      %v2139 = vshll.u32 %v1989, 16
      %v2141 = vrot.slane %v2139, 5
      %v2142 = vsel %vm195, %v2137, %v2141
      %v2144 = vshrl.u32 %v1990, 16
      %v2146 = vrot.slane %v2144, 4
      %v2147 = vshll.u32 %v1990, 16
      %v2149 = vrot.slane %v2147, 5
      %v2150 = vor.u32 %v2146, %v2149
      %v2151 = vrot.slane %v2150, 4
      %v2153 = vshll.u32 %v1991, 16
      %v2155 = vrot.slane %v2153, 5
      %v2156 = vsel %vm195, %v2151, %v2155
      %v2157 = vshrl.u32 %v1991, 16
      %v2159 = vrot.slane %v2157, 4
      %v2160 = vor.u32 %v2159, %v2155
      %v2161 = vrot.slane %v2160, 4
      %v2163 = vshll.u32 %v1992, 16
      %v2165 = vrot.slane %v2163, 5
      %v2166 = vsel %vm195, %v2161, %v2165
      %v2168 = vshrl.u32 %v1993, 16
      %v2170 = vrot.slane %v2168, 4
      %v2171 = vshll.u32 %v1993, 16
      %v2173 = vrot.slane %v2171, 5
      %v2174 = vor.u32 %v2170, %v2173
      %v2175 = vrot.slane %v2174, 4
      %v2177 = vshll.u32 %v1994, 16
      %v2179 = vrot.slane %v2177, 5
      %v2180 = vsel %vm195, %v2175, %v2179
      %v2181 = vshrl.u32 %v1994, 16
      %v2183 = vrot.slane %v2181, 4
      %v2184 = vor.u32 %v2183, %v2179
      %v2185 = vrot.slane %v2184, 4
      %v2187 = vshll.u32 %v1995, 16
      %v2189 = vrot.slane %v2187, 5
      %v2190 = vsel %vm195, %v2185, %v2189
      %v2192 = vshrl.u32 %v1996, 16
      %v2194 = vrot.slane %v2192, 4
      %v2195 = vshll.u32 %v1996, 16
      %v2197 = vrot.slane %v2195, 5
      %v2198 = vor.u32 %v2194, %v2197
      %v2199 = vrot.slane %v2198, 4
      %v2201 = vshll.u32 %v1997, 16
      %v2203 = vrot.slane %v2201, 5
      %v2204 = vsel %vm195, %v2199, %v2203
      %v2205 = vshrl.u32 %v1997, 16
      %v2207 = vrot.slane %v2205, 4
      %v2208 = vor.u32 %v2207, %v2203
      %v2209 = vrot.slane %v2208, 4
      %v2211 = vshll.u32 %v1998, 16
      %v2213 = vrot.slane %v2211, 5
      %v2214 = vsel %vm195, %v2209, %v2213
      %v2216 = vshrl.u32 %v1999, 16
      %v2218 = vrot.slane %v2216, 4
      %v2219 = vshll.u32 %v1999, 16
      %v2221 = vrot.slane %v2219, 5
      %v2222 = vor.u32 %v2218, %v2221
      %v2223 = vrot.slane %v2222, 4
      %v2225 = vshll.u32 %v2000, 16
      %v2227 = vrot.slane %v2225, 5
      %v2228 = vsel %vm195, %v2223, %v2227
      %v2229 = vshrl.u32 %v2000, 16
      %v2231 = vrot.slane %v2229, 4
      %v2232 = vor.u32 %v2231, %v2227
      %v2233 = vrot.slane %v2232, 4
      %v2235 = vshll.u32 %v2001, 16
      %v2237 = vrot.slane %v2235, 5
      %v2238 = vsel %vm195, %v2233, %v2237
      %v2240 = vshrl.u32 %v2002, 16
      %v2242 = vrot.slane %v2240, 4
      %v2243 = vshll.u32 %v2002, 16
      %v2245 = vrot.slane %v2243, 5
      %v2246 = vor.u32 %v2242, %v2245
      %v2247 = vrot.slane %v2246, 4
      %v2249 = vshll.u32 %v2003, 16
      %v2251 = vrot.slane %v2249, 5
      %v2252 = vsel %vm195, %v2247, %v2251
      %v2253 = vshrl.u32 %v2003, 16
      %v2255 = vrot.slane %v2253, 4
      %v2256 = vor.u32 %v2255, %v2251
      %v2257 = vrot.slane %v2256, 4
      %v2259 = vshll.u32 %v2004, 16
      %v2261 = vrot.slane %v2259, 5
      %v2262 = vsel %vm195, %v2257, %v2261
      %v2264 = vshrl.u32 %v2005, 16
      %v2266 = vrot.slane %v2264, 4
      %v2267 = vshll.u32 %v2005, 16
      %v2269 = vrot.slane %v2267, 5
      %v2270 = vor.u32 %v2266, %v2269
      %v2271 = vrot.slane %v2270, 4
      %v2273 = vshll.u32 %v2006, 16
      %v2275 = vrot.slane %v2273, 5
      %v2276 = vsel %vm195, %v2271, %v2275
      %v2277 = vshrl.u32 %v2006, 16
      %v2279 = vrot.slane %v2277, 4
      %v2280 = vor.u32 %v2279, %v2275
      %v2281 = vrot.slane %v2280, 4
      %v2283 = vshll.u32 %v2007, 16
      %v2285 = vrot.slane %v2283, 5
      %v2286 = vsel %vm195, %v2281, %v2285
      %v2288 = vshrl.u32 %v2008, 16
      %v2290 = vrot.slane %v2288, 4
      %v2291 = vshll.u32 %v2008, 16
      %v2293 = vrot.slane %v2291, 5
      %v2294 = vor.u32 %v2290, %v2293
      %v2295 = vrot.slane %v2294, 4
      %v2297 = vshll.u32 %v2009, 16
      %v2299 = vrot.slane %v2297, 5
      %v2300 = vsel %vm195, %v2295, %v2299
      %v2301 = vshrl.u32 %v2009, 16
      %v2303 = vrot.slane %v2301, 4
      %v2304 = vor.u32 %v2303, %v2299
      %v2305 = vrot.slane %v2304, 4
      %v2307 = vshll.u32 %v2010, 16
      %v2309 = vrot.slane %v2307, 5
      %v2310 = vsel %vm195, %v2305, %v2309
      %v2312 = vshrl.u32 %v2011, 16
      %v2314 = vrot.slane %v2312, 4
      %v2315 = vshll.u32 %v2011, 16
      %v2317 = vrot.slane %v2315, 5
      %v2318 = vor.u32 %v2314, %v2317
      %v2319 = vrot.slane %v2318, 4
      %v2321 = vshll.u32 %v2012, 16
      %v2323 = vrot.slane %v2321, 5
      %v2324 = vsel %vm195, %v2319, %v2323
      %v2325 = vshrl.u32 %v2012, 16
      %v2327 = vrot.slane %v2325, 4
      %v2328 = vor.u32 %v2327, %v2323
      %v2329 = vrot.slane %v2328, 4
      %v2331 = vshll.u32 %v2013, 16
      %v2333 = vrot.slane %v2331, 5
      %v2334 = vsel %vm195, %v2329, %v2333
      %v2336 = vshrl.u32 %v2014, 16
      %v2338 = vrot.slane %v2336, 4
      %v2339 = vshll.u32 %v2014, 16
      %v2341 = vrot.slane %v2339, 5
      %v2342 = vor.u32 %v2338, %v2341
      %v2343 = vrot.slane %v2342, 4
      %v2345 = vshll.u32 %v2015, 16
      %v2347 = vrot.slane %v2345, 5
      %v2348 = vsel %vm195, %v2343, %v2347
      %v2349 = vshrl.u32 %v2015, 16
      %v2351 = vrot.slane %v2349, 4
      %v2352 = vor.u32 %v2351, %v2347
      %v2353 = vrot.slane %v2352, 4
      %v2355 = vshll.u32 %v2016, 16
      %v2357 = vrot.slane %v2355, 5
      %v2358 = vsel %vm195, %v2353, %v2357
      %v2360 = vshrl.u32 %v2017, 16
      %v2362 = vrot.slane %v2360, 4
      %v2363 = vshll.u32 %v2017, 16
      %v2365 = vrot.slane %v2363, 5
      %v2366 = vor.u32 %v2362, %v2365
      %v2367 = vrot.slane %v2366, 4
      %v2369 = vshll.u32 %v2018, 16
      %v2371 = vrot.slane %v2369, 5
      %v2372 = vsel %vm195, %v2367, %v2371
      %v2373 = vshrl.u32 %v2018, 16
      %v2375 = vrot.slane %v2373, 4
      %v2376 = vor.u32 %v2375, %v2371
      %v2377 = vrot.slane %v2376, 4
      %v2379 = vshll.u32 %v2019, 16
      %v2381 = vrot.slane %v2379, 5
      %v2382 = vsel %vm195, %v2377, %v2381
      %v2384 = vshrl.u32 %v2020, 16
      %v2386 = vrot.slane %v2384, 4
      %v2387 = vshll.u32 %v2020, 16
      %v2389 = vrot.slane %v2387, 5
      %v2390 = vor.u32 %v2386, %v2389
      %v2391 = vrot.slane %v2390, 4
      %v2393 = vshll.u32 %v2021, 16
      %v2395 = vrot.slane %v2393, 5
      %v2396 = vsel %vm195, %v2391, %v2395
      %v2397 = vshrl.u32 %v2021, 16
      %v2399 = vrot.slane %v2397, 4
      %v2400 = vor.u32 %v2399, %v2395
      %v2401 = vrot.slane %v2400, 4
      %v2403 = vshll.u32 %v2022, 16
      %v2405 = vrot.slane %v2403, 5
      %v2406 = vsel %vm195, %v2401, %v2405
      %s2407 = scalar_lea.vmem %s1, 32
      %v2408 = vld [vmem:[%s2407] sm:$0xf]
      %v2409 = vld [vmem:[%s2407 + $0x4] sm:$0x3]
      %v2410 = vunpack.c.l.b16 %v2036
      %v2411 = vunpack.c.l.b16 %v2046
      %v2412 = vunpack.c.l.b16 %v2060
      %v2413 = vunpack.c.l.b16 %v2070
      %v2414 = vunpack.c.l.b16 %v2084
      %v2415 = vunpack.c.l.b16 %v2094
      %v2416 = vunpack.c.l.b16 %v2108
      %v2417 = vunpack.c.l.b16 %v2118
      %v2418 = vunpack.c.l.b16 %v2132
      %v2419 = vunpack.c.l.b16 %v2142
      %v2420 = vunpack.c.l.b16 %v2156
      %v2421 = vunpack.c.l.b16 %v2166
      %v2422 = vunpack.c.l.b16 %v2180
      %v2423 = vunpack.c.l.b16 %v2190
      %v2424 = vunpack.c.l.b16 %v2204
      %v2425 = vunpack.c.l.b16 %v2214
      %v2426 = vunpack.c.l.b16 %v2228
      %v2427 = vunpack.c.l.b16 %v2238
      %v2428 = vunpack.c.l.b16 %v2252
      %v2429 = vunpack.c.l.b16 %v2262
      %v2430 = vunpack.c.l.b16 %v2276
      %v2431 = vunpack.c.l.b16 %v2286
      %v2432 = vunpack.c.l.b16 %v2300
      %v2433 = vunpack.c.l.b16 %v2310
      %v2434 = vunpack.c.l.b16 %v2324
      %v2435 = vunpack.c.l.b16 %v2334
      %v2436 = vunpack.c.l.b16 %v2348
      %v2437 = vunpack.c.l.b16 %v2358
      %v2438 = vunpack.c.l.b16 %v2372
      %v2439 = vunpack.c.l.b16 %v2382
      %v2440 = vunpack.c.l.b16 %v2396
      %v2441 = vunpack.c.l.b16 %v2406
      %v2442 = vpack.c.b16 %v2411, %v2410
      %v2443 = vpack.c.b16 %v2413, %v2412
      %v2444 = vpack.c.b16 %v2415, %v2414
      %v2445 = vpack.c.b16 %v2417, %v2416
      %v2446 = vpack.c.b16 %v2419, %v2418
      %v2447 = vpack.c.b16 %v2421, %v2420
      %v2448 = vpack.c.b16 %v2423, %v2422
      %v2449 = vpack.c.b16 %v2425, %v2424
      %v2450 = vpack.c.b16 %v2427, %v2426
      %v2451 = vpack.c.b16 %v2429, %v2428
      %v2452 = vpack.c.b16 %v2431, %v2430
      %v2453 = vpack.c.b16 %v2433, %v2432
      %v2454 = vpack.c.b16 %v2435, %v2434
      %v2455 = vpack.c.b16 %v2437, %v2436
      %v2456 = vpack.c.b16 %v2439, %v2438
      %v2457 = vpack.c.b16 %v2441, %v2440
      %v2460 = vunpack.c.l.b16 %v2408
      %v2461 = vunpack.c.l.b16 %v2409
      %v2462 = vpack.c.b16 %v2461, %v2460
      %v2464 = vsel %vm636, %v2442, 0
      %v2467 = vsel %vm636, %v2443, 0
      %v2470 = vsel %vm636, %v2444, 0
      %v2473 = vsel %vm636, %v2445, 0
      %v2476 = vsel %vm636, %v2446, 0
      %v2479 = vsel %vm636, %v2447, 0
      %v2482 = vsel %vm636, %v2448, 0
      %v2485 = vsel %vm636, %v2449, 0
      %v2488 = vsel %vm636, %v2450, 0
      %v2491 = vsel %vm636, %v2451, 0
      %v2494 = vsel %vm636, %v2452, 0
      %v2497 = vsel %vm636, %v2453, 0
      %v2500 = vsel %vm636, %v2454, 0
      %v2503 = vsel %vm636, %v2455, 0
      %v2506 = vsel %vm636, %v2456, 0
      %v2509 = vsel %vm636, %v2457, 0
      %v2512 = vsel %vm685, %v2462, 0
      %2514 = vmatprep.subr.bf16.mxu0 0
      %2515 = vmatpush1.bf16.msra.mxu0 0
      %2516 = vmatprep.subr.bf16.mxu0 0
      %2517 = vmatpush1.bf16.msra.mxu0 0
      %2518 = vmatprep.subr.bf16.mxu0 0
      %2519 = vmatpush1.bf16.msra.mxu0 0
      %2520 = vmatprep.subr.bf16.mxu0 0
      %2521 = vmatpush1.bf16.msra.mxu0 0
      %2522 = vmatprep.subr.bf16.mxu0 0
      %2523 = vmatpush1.bf16.msra.mxu0 0
      %2524 = vmatprep.subr.bf16.mxu0 0
      %2525 = vmatpush1.bf16.msra.mxu0 0
      %2526 = vmatprep.subr.bf16.mxu0 0
      %2527 = vmatpush1.bf16.msra.mxu0 0
      %2528 = vmatprep.subr.bf16.mxu0 0
      %2529 = vmatpush1.bf16.msra.mxu0 %v2512
      %2530 = vmatprep.subr.bf16.mxu0 0
      %2531 = vmatpush2.bf16.msra.mxu0 0
      %2532 = vmatprep.subr.bf16.mxu0 0
      %2533 = vmatpush2.bf16.msra.mxu0 0
      %2534 = vmatprep.subr.bf16.mxu0 0
      %2535 = vmatpush2.bf16.msra.mxu0 0
      %2536 = vmatprep.subr.bf16.mxu0 0
      %2537 = vmatpush2.bf16.msra.mxu0 0
      %2538 = vmatprep.subr.bf16.mxu0 0
      %2539 = vmatpush2.bf16.msra.mxu0 0
      %2540 = vmatprep.subr.bf16.mxu0 0
      %2541 = vmatpush2.bf16.msra.mxu0 0
      %2542 = vmatprep.subr.bf16.mxu0 0
      %2543 = vmatpush2.bf16.msra.mxu0 0
      %2544 = vmatprep.subr.bf16.mxu0 0
      %2545 = vmatpush2.bf16.msra.mxu0 0
      %2546 = vmatprep.mubr.bf16.mxu0 0
      %2547 = vmatmul.mubr.bf16.gmra.mxu0 %v2464
      %v2548 = vpop.f32.mrf.mxu0
      %v2549 = vadd.f32 0.0, %v2548
      %v2550 = vpop.f32.mrf.mxu0
      %v2551 = vpop.f32.mrf.mxu0
      %v2552 = vadd.f32 0.0, %v2551
      %v2553 = vpop.f32.mrf.mxu0
      %2554 = vmatprep.mubr.bf16.mxu0 0
      %2555 = vmatmul.mubr.bf16.gmra.mxu0 %v2467
      %v2556 = vpop.f32.mrf.mxu0
      %v2557 = vadd.f32 0.0, %v2556
      %v2558 = vpop.f32.mrf.mxu0
      %v2559 = vpop.f32.mrf.mxu0
      %v2560 = vadd.f32 0.0, %v2559
      %v2561 = vpop.f32.mrf.mxu0
      %2562 = vmatprep.mubr.bf16.mxu0 0
      %2563 = vmatmul.mubr.bf16.gmra.mxu0 %v2470
      %v2564 = vpop.f32.mrf.mxu0
      %v2565 = vadd.f32 0.0, %v2564
      %v2566 = vpop.f32.mrf.mxu0
      %v2567 = vpop.f32.mrf.mxu0
      %v2568 = vadd.f32 0.0, %v2567
      %v2569 = vpop.f32.mrf.mxu0
      %2570 = vmatprep.mubr.bf16.mxu0 0
      %2571 = vmatmul.mubr.bf16.gmra.mxu0 %v2473
      %v2572 = vpop.f32.mrf.mxu0
      %v2573 = vadd.f32 0.0, %v2572
      %v2574 = vpop.f32.mrf.mxu0
      %v2575 = vpop.f32.mrf.mxu0
      %v2576 = vadd.f32 0.0, %v2575
      %v2577 = vpop.f32.mrf.mxu0
      %2578 = vmatprep.mubr.bf16.mxu0 0
      %2579 = vmatmul.mubr.bf16.gmra.mxu0 %v2476
      %v2580 = vpop.f32.mrf.mxu0
      %v2581 = vadd.f32 0.0, %v2580
      %v2582 = vpop.f32.mrf.mxu0
      %v2583 = vpop.f32.mrf.mxu0
      %v2584 = vadd.f32 0.0, %v2583
      %v2585 = vpop.f32.mrf.mxu0
      %2586 = vmatprep.mubr.bf16.mxu0 0
      %2587 = vmatmul.mubr.bf16.gmra.mxu0 %v2479
      %v2588 = vpop.f32.mrf.mxu0
      %v2589 = vadd.f32 0.0, %v2588
      %v2590 = vpop.f32.mrf.mxu0
      %v2591 = vpop.f32.mrf.mxu0
      %v2592 = vadd.f32 0.0, %v2591
      %v2593 = vpop.f32.mrf.mxu0
      %2594 = vmatprep.mubr.bf16.mxu0 0
      %2595 = vmatmul.mubr.bf16.gmra.mxu0 %v2482
      %v2596 = vpop.f32.mrf.mxu0
      %v2597 = vadd.f32 0.0, %v2596
      %v2598 = vpop.f32.mrf.mxu0
      %v2599 = vpop.f32.mrf.mxu0
      %v2600 = vadd.f32 0.0, %v2599
      %v2601 = vpop.f32.mrf.mxu0
      %2602 = vmatprep.mubr.bf16.mxu0 0
      %2603 = vmatmul.mubr.bf16.gmra.mxu0 %v2485
      %v2604 = vpop.f32.mrf.mxu0
      %v2605 = vadd.f32 0.0, %v2604
      %v2606 = vpop.f32.mrf.mxu0
      %v2607 = vpop.f32.mrf.mxu0
      %v2608 = vadd.f32 0.0, %v2607
      %v2609 = vpop.f32.mrf.mxu0
      %2610 = vmatprep.mubr.bf16.mxu0 0
      %2611 = vmatmul.mubr.bf16.gmra.mxu0 %v2488
      %v2612 = vpop.f32.mrf.mxu0
      %v2613 = vadd.f32 0.0, %v2612
      %v2614 = vpop.f32.mrf.mxu0
      %v2615 = vpop.f32.mrf.mxu0
      %v2616 = vadd.f32 0.0, %v2615
      %v2617 = vpop.f32.mrf.mxu0
      %2618 = vmatprep.mubr.bf16.mxu0 0
      %2619 = vmatmul.mubr.bf16.gmra.mxu0 %v2491
      %v2620 = vpop.f32.mrf.mxu0
      %v2621 = vadd.f32 0.0, %v2620
      %v2622 = vpop.f32.mrf.mxu0
      %v2623 = vpop.f32.mrf.mxu0
      %v2624 = vadd.f32 0.0, %v2623
      %v2625 = vpop.f32.mrf.mxu0
      %2626 = vmatprep.mubr.bf16.mxu0 0
      %2627 = vmatmul.mubr.bf16.gmra.mxu0 %v2494
      %v2628 = vpop.f32.mrf.mxu0
      %v2629 = vadd.f32 0.0, %v2628
      %v2630 = vpop.f32.mrf.mxu0
      %v2631 = vpop.f32.mrf.mxu0
      %v2632 = vadd.f32 0.0, %v2631
      %v2633 = vpop.f32.mrf.mxu0
      %2634 = vmatprep.mubr.bf16.mxu0 0
      %2635 = vmatmul.mubr.bf16.gmra.mxu0 %v2497
      %v2636 = vpop.f32.mrf.mxu0
      %v2637 = vadd.f32 0.0, %v2636
      %v2638 = vpop.f32.mrf.mxu0
      %v2639 = vpop.f32.mrf.mxu0
      %v2640 = vadd.f32 0.0, %v2639
      %v2641 = vpop.f32.mrf.mxu0
      %2642 = vmatprep.mubr.bf16.mxu0 0
      %2643 = vmatmul.mubr.bf16.gmra.mxu0 %v2500
      %v2644 = vpop.f32.mrf.mxu0
      %v2645 = vadd.f32 0.0, %v2644
      %v2646 = vpop.f32.mrf.mxu0
      %v2647 = vpop.f32.mrf.mxu0
      %v2648 = vadd.f32 0.0, %v2647
      %v2649 = vpop.f32.mrf.mxu0
      %2650 = vmatprep.mubr.bf16.mxu0 0
      %2651 = vmatmul.mubr.bf16.gmra.mxu0 %v2503
      %v2652 = vpop.f32.mrf.mxu0
      %v2653 = vadd.f32 0.0, %v2652
      %v2654 = vpop.f32.mrf.mxu0
      %v2655 = vpop.f32.mrf.mxu0
      %v2656 = vadd.f32 0.0, %v2655
      %v2657 = vpop.f32.mrf.mxu0
      %2658 = vmatprep.mubr.bf16.mxu0 0
      %2659 = vmatmul.mubr.bf16.gmra.mxu0 %v2506
      %v2660 = vpop.f32.mrf.mxu0
      %v2661 = vadd.f32 0.0, %v2660
      %v2662 = vpop.f32.mrf.mxu0
      %v2663 = vpop.f32.mrf.mxu0
      %v2664 = vadd.f32 0.0, %v2663
      %v2665 = vpop.f32.mrf.mxu0
      %2666 = vmatprep.mubr.bf16.mxu0 0
      %2667 = vmatmul.mubr.bf16.gmra.mxu0 %v2509
      %v2668 = vpop.f32.mrf.mxu0
      %v2669 = vadd.f32 0.0, %v2668
      %v2670 = vpop.f32.mrf.mxu0
      %v2671 = vpop.f32.mrf.mxu0
      %v2672 = vadd.f32 0.0, %v2671
      %v2673 = vpop.f32.mrf.mxu0
      %2674 = vdwg.mxu0
      %v2675 = vadd.f32 %v1943, %v2549
      %v2676 = vadd.f32 %v1944, %v2552
      %v2677 = vadd.f32 %v1945, %v2557
      %v2678 = vadd.f32 %v1946, %v2560
      %v2679 = vadd.f32 %v1947, %v2565
      %v2680 = vadd.f32 %v1948, %v2568
      %v2681 = vadd.f32 %v1949, %v2573
      %v2682 = vadd.f32 %v1950, %v2576
      %v2683 = vadd.f32 %v1951, %v2581
      %v2684 = vadd.f32 %v1952, %v2584
      %v2685 = vadd.f32 %v1953, %v2589
      %v2686 = vadd.f32 %v1954, %v2592
      %v2687 = vadd.f32 %v1955, %v2597
      %v2688 = vadd.f32 %v1956, %v2600
      %v2689 = vadd.f32 %v1957, %v2605
      %v2690 = vadd.f32 %v1958, %v2608
      %v2691 = vadd.f32 %v1959, %v2613
      %v2692 = vadd.f32 %v1960, %v2616
      %v2693 = vadd.f32 %v1961, %v2621
      %v2694 = vadd.f32 %v1962, %v2624
      %v2695 = vadd.f32 %v1963, %v2629
      %v2696 = vadd.f32 %v1964, %v2632
      %v2697 = vadd.f32 %v1965, %v2637
      %v2698 = vadd.f32 %v1966, %v2640
      %v2699 = vadd.f32 %v1967, %v2645
      %v2700 = vadd.f32 %v1968, %v2648
      %v2701 = vadd.f32 %v1969, %v2653
      %v2702 = vadd.f32 %v1970, %v2656
      %v2703 = vadd.f32 %v1971, %v2661
      %v2704 = vadd.f32 %v1972, %v2664
      %v2705 = vadd.f32 %v1973, %v2669
      %v2706 = vadd.f32 %v1974, %v2672
      %v2707 = vld [vmem:[%s1610] sm:$0xe]
      %v2708 = vld [vmem:[%s1610 + $0xc] sm:$0xe]
      %v2709 = vld [vmem:[%s1610 + $0x18] sm:$0xe]
      %v2710 = vld [vmem:[%s1610 + $0x24] sm:$0xe]
      %v2711 = vld [vmem:[%s1610 + $0x30] sm:$0xe]
      %v2712 = vld [vmem:[%s1610 + $0x3c] sm:$0xe]
      %v2713 = vld [vmem:[%s1610 + $0x48] sm:$0xe]
      %v2714 = vld [vmem:[%s1610 + $0x54] sm:$0xe]
      %v2715 = vld [vmem:[%s1610 + $0x60] sm:$0xe]
      %v2716 = vld [vmem:[%s1610 + $0x6c] sm:$0xe]
      %v2717 = vld [vmem:[%s1610 + $0x78] sm:$0xe]
      %v2718 = vld [vmem:[%s1610 + $0x84] sm:$0xe]
      %v2719 = vld [vmem:[%s1610 + $0x90] sm:$0xe]
      %v2720 = vld [vmem:[%s1610 + $0x9c] sm:$0xe]
      %v2721 = vld [vmem:[%s1610 + $0xa8] sm:$0xe]
      %v2722 = vld [vmem:[%s1610 + $0xb4] sm:$0xe]
      %v2771 = vrot.slane %v2707, 5
      %v2772 = vrot.slane %v2771, 4
      %v2773 = vrot.slane %v1976, 5
      %v2774 = vsel %vm1197, %v2772, %v2773
      %v2775 = vrot.slane %v2773, 4
      %v2776 = vrot.slane %v1977, 5
      %v2777 = vsel %vm1197, %v2775, %v2776
      %v2778 = vrot.slane %v2708, 5
      %v2779 = vrot.slane %v2778, 4
      %v2780 = vrot.slane %v1979, 5
      %v2781 = vsel %vm1197, %v2779, %v2780
      %v2782 = vrot.slane %v2780, 4
      %v2783 = vrot.slane %v1980, 5
      %v2784 = vsel %vm1197, %v2782, %v2783
      %v2785 = vrot.slane %v2709, 5
      %v2786 = vrot.slane %v2785, 4
      %v2787 = vrot.slane %v1982, 5
      %v2788 = vsel %vm1197, %v2786, %v2787
      %v2789 = vrot.slane %v2787, 4
      %v2790 = vrot.slane %v1983, 5
      %v2791 = vsel %vm1197, %v2789, %v2790
      %v2792 = vrot.slane %v2710, 5
      %v2793 = vrot.slane %v2792, 4
      %v2794 = vrot.slane %v1985, 5
      %v2795 = vsel %vm1197, %v2793, %v2794
      %v2796 = vrot.slane %v2794, 4
      %v2797 = vrot.slane %v1986, 5
      %v2798 = vsel %vm1197, %v2796, %v2797
      %v2799 = vrot.slane %v2711, 5
      %v2800 = vrot.slane %v2799, 4
      %v2801 = vrot.slane %v1988, 5
      %v2802 = vsel %vm1197, %v2800, %v2801
      %v2803 = vrot.slane %v2801, 4
      %v2804 = vrot.slane %v1989, 5
      %v2805 = vsel %vm1197, %v2803, %v2804
      %v2806 = vrot.slane %v2712, 5
      %v2807 = vrot.slane %v2806, 4
      %v2808 = vrot.slane %v1991, 5
      %v2809 = vsel %vm1197, %v2807, %v2808
      %v2810 = vrot.slane %v2808, 4
      %v2811 = vrot.slane %v1992, 5
      %v2812 = vsel %vm1197, %v2810, %v2811
      %v2813 = vrot.slane %v2713, 5
      %v2814 = vrot.slane %v2813, 4
      %v2815 = vrot.slane %v1994, 5
      %v2816 = vsel %vm1197, %v2814, %v2815
      %v2817 = vrot.slane %v2815, 4
      %v2818 = vrot.slane %v1995, 5
      %v2819 = vsel %vm1197, %v2817, %v2818
      %v2820 = vrot.slane %v2714, 5
      %v2821 = vrot.slane %v2820, 4
      %v2822 = vrot.slane %v1997, 5
      %v2823 = vsel %vm1197, %v2821, %v2822
      %v2824 = vrot.slane %v2822, 4
      %v2825 = vrot.slane %v1998, 5
      %v2826 = vsel %vm1197, %v2824, %v2825
      %v2827 = vrot.slane %v2715, 5
      %v2828 = vrot.slane %v2827, 4
      %v2829 = vrot.slane %v2000, 5
      %v2830 = vsel %vm1197, %v2828, %v2829
      %v2831 = vrot.slane %v2829, 4
      %v2832 = vrot.slane %v2001, 5
      %v2833 = vsel %vm1197, %v2831, %v2832
      %v2834 = vrot.slane %v2716, 5
      %v2835 = vrot.slane %v2834, 4
      %v2836 = vrot.slane %v2003, 5
      %v2837 = vsel %vm1197, %v2835, %v2836
      %v2838 = vrot.slane %v2836, 4
      %v2839 = vrot.slane %v2004, 5
      %v2840 = vsel %vm1197, %v2838, %v2839
      %v2841 = vrot.slane %v2717, 5
      %v2842 = vrot.slane %v2841, 4
      %v2843 = vrot.slane %v2006, 5
      %v2844 = vsel %vm1197, %v2842, %v2843
      %v2845 = vrot.slane %v2843, 4
      %v2846 = vrot.slane %v2007, 5
      %v2847 = vsel %vm1197, %v2845, %v2846
      %v2848 = vrot.slane %v2718, 5
      %v2849 = vrot.slane %v2848, 4
      %v2850 = vrot.slane %v2009, 5
      %v2851 = vsel %vm1197, %v2849, %v2850
      %v2852 = vrot.slane %v2850, 4
      %v2853 = vrot.slane %v2010, 5
      %v2854 = vsel %vm1197, %v2852, %v2853
      %v2855 = vrot.slane %v2719, 5
      %v2856 = vrot.slane %v2855, 4
      %v2857 = vrot.slane %v2012, 5
      %v2858 = vsel %vm1197, %v2856, %v2857
      %v2859 = vrot.slane %v2857, 4
      %v2860 = vrot.slane %v2013, 5
      %v2861 = vsel %vm1197, %v2859, %v2860
      %v2862 = vrot.slane %v2720, 5
      %v2863 = vrot.slane %v2862, 4
      %v2864 = vrot.slane %v2015, 5
      %v2865 = vsel %vm1197, %v2863, %v2864
      %v2866 = vrot.slane %v2864, 4
      %v2867 = vrot.slane %v2016, 5
      %v2868 = vsel %vm1197, %v2866, %v2867
      %v2869 = vrot.slane %v2721, 5
      %v2870 = vrot.slane %v2869, 4
      %v2871 = vrot.slane %v2018, 5
      %v2872 = vsel %vm1197, %v2870, %v2871
      %v2873 = vrot.slane %v2871, 4
      %v2874 = vrot.slane %v2019, 5
      %v2875 = vsel %vm1197, %v2873, %v2874
      %v2876 = vrot.slane %v2722, 5
      %v2877 = vrot.slane %v2876, 4
      %v2878 = vrot.slane %v2021, 5
      %v2879 = vsel %vm1197, %v2877, %v2878
      %v2880 = vrot.slane %v2878, 4
      %v2881 = vrot.slane %v2022, 5
      %v2882 = vsel %vm1197, %v2880, %v2881
      %s2883 = scalar_lea.vmem %s1, 40
      %v2884 = vld [vmem:[%s2883] sm:$0xf]
      %v2885 = vld [vmem:[%s2883 + $0x4] sm:$0x3]
      %v2886 = vunpack.c.l.b16 %v2774
      %v2887 = vunpack.c.l.b16 %v2777
      %v2888 = vunpack.c.l.b16 %v2781
      %v2889 = vunpack.c.l.b16 %v2784
      %v2890 = vunpack.c.l.b16 %v2788
      %v2891 = vunpack.c.l.b16 %v2791
      %v2892 = vunpack.c.l.b16 %v2795
      %v2893 = vunpack.c.l.b16 %v2798
      %v2894 = vunpack.c.l.b16 %v2802
      %v2895 = vunpack.c.l.b16 %v2805
      %v2896 = vunpack.c.l.b16 %v2809
      %v2897 = vunpack.c.l.b16 %v2812
      %v2898 = vunpack.c.l.b16 %v2816
      %v2899 = vunpack.c.l.b16 %v2819
      %v2900 = vunpack.c.l.b16 %v2823
      %v2901 = vunpack.c.l.b16 %v2826
      %v2902 = vunpack.c.l.b16 %v2830
      %v2903 = vunpack.c.l.b16 %v2833
      %v2904 = vunpack.c.l.b16 %v2837
      %v2905 = vunpack.c.l.b16 %v2840
      %v2906 = vunpack.c.l.b16 %v2844
      %v2907 = vunpack.c.l.b16 %v2847
      %v2908 = vunpack.c.l.b16 %v2851
      %v2909 = vunpack.c.l.b16 %v2854
      %v2910 = vunpack.c.l.b16 %v2858
      %v2911 = vunpack.c.l.b16 %v2861
      %v2912 = vunpack.c.l.b16 %v2865
      %v2913 = vunpack.c.l.b16 %v2868
      %v2914 = vunpack.c.l.b16 %v2872
      %v2915 = vunpack.c.l.b16 %v2875
      %v2916 = vunpack.c.l.b16 %v2879
      %v2917 = vunpack.c.l.b16 %v2882
      %v2918 = vpack.c.b16 %v2887, %v2886
      %v2919 = vpack.c.b16 %v2889, %v2888
      %v2920 = vpack.c.b16 %v2891, %v2890
      %v2921 = vpack.c.b16 %v2893, %v2892
      %v2922 = vpack.c.b16 %v2895, %v2894
      %v2923 = vpack.c.b16 %v2897, %v2896
      %v2924 = vpack.c.b16 %v2899, %v2898
      %v2925 = vpack.c.b16 %v2901, %v2900
      %v2926 = vpack.c.b16 %v2903, %v2902
      %v2927 = vpack.c.b16 %v2905, %v2904
      %v2928 = vpack.c.b16 %v2907, %v2906
      %v2929 = vpack.c.b16 %v2909, %v2908
      %v2930 = vpack.c.b16 %v2911, %v2910
      %v2931 = vpack.c.b16 %v2913, %v2912
      %v2932 = vpack.c.b16 %v2915, %v2914
      %v2933 = vpack.c.b16 %v2917, %v2916
      %v2936 = vunpack.c.l.b16 %v2884
      %v2937 = vunpack.c.l.b16 %v2885
      %v2938 = vpack.c.b16 %v2937, %v2936
      %v2940 = vsel %vm636, %v2918, 0
      %v2943 = vsel %vm636, %v2919, 0
      %v2946 = vsel %vm636, %v2920, 0
      %v2949 = vsel %vm636, %v2921, 0
      %v2952 = vsel %vm636, %v2922, 0
      %v2955 = vsel %vm636, %v2923, 0
      %v2958 = vsel %vm636, %v2924, 0
      %v2961 = vsel %vm636, %v2925, 0
      %v2964 = vsel %vm636, %v2926, 0
      %v2967 = vsel %vm636, %v2927, 0
      %v2970 = vsel %vm636, %v2928, 0
      %v2973 = vsel %vm636, %v2929, 0
      %v2976 = vsel %vm636, %v2930, 0
      %v2979 = vsel %vm636, %v2931, 0
      %v2982 = vsel %vm636, %v2932, 0
      %v2985 = vsel %vm636, %v2933, 0
      %v2988 = vsel %vm685, %v2938, 0
      %2990 = vmatprep.subr.bf16.mxu0 0
      %2991 = vmatpush1.bf16.msra.mxu0 0
      %2992 = vmatprep.subr.bf16.mxu0 0
      %2993 = vmatpush1.bf16.msra.mxu0 0
      %2994 = vmatprep.subr.bf16.mxu0 0
      %2995 = vmatpush1.bf16.msra.mxu0 0
      %2996 = vmatprep.subr.bf16.mxu0 0
      %2997 = vmatpush1.bf16.msra.mxu0 0
      %2998 = vmatprep.subr.bf16.mxu0 0
      %2999 = vmatpush1.bf16.msra.mxu0 0
      %3000 = vmatprep.subr.bf16.mxu0 0
      %3001 = vmatpush1.bf16.msra.mxu0 0
      %3002 = vmatprep.subr.bf16.mxu0 0
      %3003 = vmatpush1.bf16.msra.mxu0 0
      %3004 = vmatprep.subr.bf16.mxu0 0
      %3005 = vmatpush1.bf16.msra.mxu0 %v2988
      %3006 = vmatprep.subr.bf16.mxu0 0
      %3007 = vmatpush2.bf16.msra.mxu0 0
      %3008 = vmatprep.subr.bf16.mxu0 0
      %3009 = vmatpush2.bf16.msra.mxu0 0
      %3010 = vmatprep.subr.bf16.mxu0 0
      %3011 = vmatpush2.bf16.msra.mxu0 0
      %3012 = vmatprep.subr.bf16.mxu0 0
      %3013 = vmatpush2.bf16.msra.mxu0 0
      %3014 = vmatprep.subr.bf16.mxu0 0
      %3015 = vmatpush2.bf16.msra.mxu0 0
      %3016 = vmatprep.subr.bf16.mxu0 0
      %3017 = vmatpush2.bf16.msra.mxu0 0
      %3018 = vmatprep.subr.bf16.mxu0 0
      %3019 = vmatpush2.bf16.msra.mxu0 0
      %3020 = vmatprep.subr.bf16.mxu0 0
      %3021 = vmatpush2.bf16.msra.mxu0 0
      %3022 = vmatprep.mubr.bf16.mxu0 0
      %3023 = vmatmul.mubr.bf16.gmra.mxu0 %v2940
      %v3024 = vpop.f32.mrf.mxu0
      %v3025 = vadd.f32 0.0, %v3024
      %v3026 = vpop.f32.mrf.mxu0
      %v3027 = vpop.f32.mrf.mxu0
      %v3028 = vadd.f32 0.0, %v3027
      %v3029 = vpop.f32.mrf.mxu0
      %3030 = vmatprep.mubr.bf16.mxu0 0
      %3031 = vmatmul.mubr.bf16.gmra.mxu0 %v2943
      %v3032 = vpop.f32.mrf.mxu0
      %v3033 = vadd.f32 0.0, %v3032
      %v3034 = vpop.f32.mrf.mxu0
      %v3035 = vpop.f32.mrf.mxu0
      %v3036 = vadd.f32 0.0, %v3035
      %v3037 = vpop.f32.mrf.mxu0
      %3038 = vmatprep.mubr.bf16.mxu0 0
      %3039 = vmatmul.mubr.bf16.gmra.mxu0 %v2946
      %v3040 = vpop.f32.mrf.mxu0
      %v3041 = vadd.f32 0.0, %v3040
      %v3042 = vpop.f32.mrf.mxu0
      %v3043 = vpop.f32.mrf.mxu0
      %v3044 = vadd.f32 0.0, %v3043
      %v3045 = vpop.f32.mrf.mxu0
      %3046 = vmatprep.mubr.bf16.mxu0 0
      %3047 = vmatmul.mubr.bf16.gmra.mxu0 %v2949
      %v3048 = vpop.f32.mrf.mxu0
      %v3049 = vadd.f32 0.0, %v3048
      %v3050 = vpop.f32.mrf.mxu0
      %v3051 = vpop.f32.mrf.mxu0
      %v3052 = vadd.f32 0.0, %v3051
      %v3053 = vpop.f32.mrf.mxu0
      %3054 = vmatprep.mubr.bf16.mxu0 0
      %3055 = vmatmul.mubr.bf16.gmra.mxu0 %v2952
      %v3056 = vpop.f32.mrf.mxu0
      %v3057 = vadd.f32 0.0, %v3056
      %v3058 = vpop.f32.mrf.mxu0
      %v3059 = vpop.f32.mrf.mxu0
      %v3060 = vadd.f32 0.0, %v3059
      %v3061 = vpop.f32.mrf.mxu0
      %3062 = vmatprep.mubr.bf16.mxu0 0
      %3063 = vmatmul.mubr.bf16.gmra.mxu0 %v2955
      %v3064 = vpop.f32.mrf.mxu0
      %v3065 = vadd.f32 0.0, %v3064
      %v3066 = vpop.f32.mrf.mxu0
      %v3067 = vpop.f32.mrf.mxu0
      %v3068 = vadd.f32 0.0, %v3067
      %v3069 = vpop.f32.mrf.mxu0
      %3070 = vmatprep.mubr.bf16.mxu0 0
      %3071 = vmatmul.mubr.bf16.gmra.mxu0 %v2958
      %v3072 = vpop.f32.mrf.mxu0
      %v3073 = vadd.f32 0.0, %v3072
      %v3074 = vpop.f32.mrf.mxu0
      %v3075 = vpop.f32.mrf.mxu0
      %v3076 = vadd.f32 0.0, %v3075
      %v3077 = vpop.f32.mrf.mxu0
      %3078 = vmatprep.mubr.bf16.mxu0 0
      %3079 = vmatmul.mubr.bf16.gmra.mxu0 %v2961
      %v3080 = vpop.f32.mrf.mxu0
      %v3081 = vadd.f32 0.0, %v3080
      %v3082 = vpop.f32.mrf.mxu0
      %v3083 = vpop.f32.mrf.mxu0
      %v3084 = vadd.f32 0.0, %v3083
      %v3085 = vpop.f32.mrf.mxu0
      %3086 = vmatprep.mubr.bf16.mxu0 0
      %3087 = vmatmul.mubr.bf16.gmra.mxu0 %v2964
      %v3088 = vpop.f32.mrf.mxu0
      %v3089 = vadd.f32 0.0, %v3088
      %v3090 = vpop.f32.mrf.mxu0
      %v3091 = vpop.f32.mrf.mxu0
      %v3092 = vadd.f32 0.0, %v3091
      %v3093 = vpop.f32.mrf.mxu0
      %3094 = vmatprep.mubr.bf16.mxu0 0
      %3095 = vmatmul.mubr.bf16.gmra.mxu0 %v2967
      %v3096 = vpop.f32.mrf.mxu0
      %v3097 = vadd.f32 0.0, %v3096
      %v3098 = vpop.f32.mrf.mxu0
      %v3099 = vpop.f32.mrf.mxu0
      %v3100 = vadd.f32 0.0, %v3099
      %v3101 = vpop.f32.mrf.mxu0
      %3102 = vmatprep.mubr.bf16.mxu0 0
      %3103 = vmatmul.mubr.bf16.gmra.mxu0 %v2970
      %v3104 = vpop.f32.mrf.mxu0
      %v3105 = vadd.f32 0.0, %v3104
      %v3106 = vpop.f32.mrf.mxu0
      %v3107 = vpop.f32.mrf.mxu0
      %v3108 = vadd.f32 0.0, %v3107
      %v3109 = vpop.f32.mrf.mxu0
      %3110 = vmatprep.mubr.bf16.mxu0 0
      %3111 = vmatmul.mubr.bf16.gmra.mxu0 %v2973
      %v3112 = vpop.f32.mrf.mxu0
      %v3113 = vadd.f32 0.0, %v3112
      %v3114 = vpop.f32.mrf.mxu0
      %v3115 = vpop.f32.mrf.mxu0
      %v3116 = vadd.f32 0.0, %v3115
      %v3117 = vpop.f32.mrf.mxu0
      %3118 = vmatprep.mubr.bf16.mxu0 0
      %3119 = vmatmul.mubr.bf16.gmra.mxu0 %v2976
      %v3120 = vpop.f32.mrf.mxu0
      %v3121 = vadd.f32 0.0, %v3120
      %v3122 = vpop.f32.mrf.mxu0
      %v3123 = vpop.f32.mrf.mxu0
      %v3124 = vadd.f32 0.0, %v3123
      %v3125 = vpop.f32.mrf.mxu0
      %3126 = vmatprep.mubr.bf16.mxu0 0
      %3127 = vmatmul.mubr.bf16.gmra.mxu0 %v2979
      %v3128 = vpop.f32.mrf.mxu0
      %v3129 = vadd.f32 0.0, %v3128
      %v3130 = vpop.f32.mrf.mxu0
      %v3131 = vpop.f32.mrf.mxu0
      %v3132 = vadd.f32 0.0, %v3131
      %v3133 = vpop.f32.mrf.mxu0
      %3134 = vmatprep.mubr.bf16.mxu0 0
      %3135 = vmatmul.mubr.bf16.gmra.mxu0 %v2982
      %v3136 = vpop.f32.mrf.mxu0
      %v3137 = vadd.f32 0.0, %v3136
      %v3138 = vpop.f32.mrf.mxu0
      %v3139 = vpop.f32.mrf.mxu0
      %v3140 = vadd.f32 0.0, %v3139
      %v3141 = vpop.f32.mrf.mxu0
      %3142 = vmatprep.mubr.bf16.mxu0 0
      %3143 = vmatmul.mubr.bf16.gmra.mxu0 %v2985
      %v3144 = vpop.f32.mrf.mxu0
      %v3145 = vadd.f32 0.0, %v3144
      %v3146 = vpop.f32.mrf.mxu0
      %v3147 = vpop.f32.mrf.mxu0
      %v3148 = vadd.f32 0.0, %v3147
      %v3149 = vpop.f32.mrf.mxu0
      %3150 = vdwg.mxu0
      %v3151 = vadd.f32 %v2675, %v3025
      %v3152 = vadd.f32 %v2676, %v3028
      %v3153 = vadd.f32 %v2677, %v3033
      %v3154 = vadd.f32 %v2678, %v3036
      %v3155 = vadd.f32 %v2679, %v3041
      %v3156 = vadd.f32 %v2680, %v3044
      %v3157 = vadd.f32 %v2681, %v3049
      %v3158 = vadd.f32 %v2682, %v3052
      %v3159 = vadd.f32 %v2683, %v3057
      %v3160 = vadd.f32 %v2684, %v3060
      %v3161 = vadd.f32 %v2685, %v3065
      %v3162 = vadd.f32 %v2686, %v3068
      %v3163 = vadd.f32 %v2687, %v3073
      %v3164 = vadd.f32 %v2688, %v3076
      %v3165 = vadd.f32 %v2689, %v3081
      %v3166 = vadd.f32 %v2690, %v3084
      %v3167 = vadd.f32 %v2691, %v3089
      %v3168 = vadd.f32 %v2692, %v3092
      %v3169 = vadd.f32 %v2693, %v3097
      %v3170 = vadd.f32 %v2694, %v3100
      %v3171 = vadd.f32 %v2695, %v3105
      %v3172 = vadd.f32 %v2696, %v3108
      %v3173 = vadd.f32 %v2697, %v3113
      %v3174 = vadd.f32 %v2698, %v3116
      %v3175 = vadd.f32 %v2699, %v3121
      %v3176 = vadd.f32 %v2700, %v3124
      %v3177 = vadd.f32 %v2701, %v3129
      %v3178 = vadd.f32 %v2702, %v3132
      %v3179 = vadd.f32 %v2703, %v3137
      %v3180 = vadd.f32 %v2704, %v3140
      %v3181 = vadd.f32 %v2705, %v3145
      %v3182 = vadd.f32 %v2706, %v3148
      %s3183 = scalar_lea.vmem %s137, 24
      %v3184 = vld [vmem:[%s3183] sm:$0xf]
      %v3185 = vld [vmem:[%s3183 + $0x4] sm:$0xf]
      %v3186 = vld [vmem:[%s3183 + $0xc] sm:$0xf]
      %v3187 = vld [vmem:[%s3183 + $0x10] sm:$0xf]
      %v3188 = vld [vmem:[%s3183 + $0x18] sm:$0xf]
      %v3189 = vld [vmem:[%s3183 + $0x1c] sm:$0xf]
      %v3190 = vld [vmem:[%s3183 + $0x24] sm:$0xf]
      %v3191 = vld [vmem:[%s3183 + $0x28] sm:$0xf]
      %v3192 = vld [vmem:[%s3183 + $0x30] sm:$0xf]
      %v3193 = vld [vmem:[%s3183 + $0x34] sm:$0xf]
      %v3194 = vld [vmem:[%s3183 + $0x3c] sm:$0xf]
      %v3195 = vld [vmem:[%s3183 + $0x40] sm:$0xf]
      %v3196 = vld [vmem:[%s3183 + $0x48] sm:$0xf]
      %v3197 = vld [vmem:[%s3183 + $0x4c] sm:$0xf]
      %v3198 = vld [vmem:[%s3183 + $0x54] sm:$0xf]
      %v3199 = vld [vmem:[%s3183 + $0x58] sm:$0xf]
      %v3200 = vld [vmem:[%s3183 + $0x60] sm:$0xf]
      %v3201 = vld [vmem:[%s3183 + $0x64] sm:$0xf]
      %v3202 = vld [vmem:[%s3183 + $0x6c] sm:$0xf]
      %v3203 = vld [vmem:[%s3183 + $0x70] sm:$0xf]
      %v3204 = vld [vmem:[%s3183 + $0x78] sm:$0xf]
      %v3205 = vld [vmem:[%s3183 + $0x7c] sm:$0xf]
      %v3206 = vld [vmem:[%s3183 + $0x84] sm:$0xf]
      %v3207 = vld [vmem:[%s3183 + $0x88] sm:$0xf]
      %v3208 = vld [vmem:[%s3183 + $0x90] sm:$0xf]
      %v3209 = vld [vmem:[%s3183 + $0x94] sm:$0xf]
      %v3210 = vld [vmem:[%s3183 + $0x9c] sm:$0xf]
      %v3211 = vld [vmem:[%s3183 + $0xa0] sm:$0xf]
      %v3212 = vld [vmem:[%s3183 + $0xa8] sm:$0xf]
      %v3213 = vld [vmem:[%s3183 + $0xac] sm:$0xf]
      %v3214 = vld [vmem:[%s3183 + $0xb4] sm:$0xf]
      %v3215 = vld [vmem:[%s3183 + $0xb8] sm:$0xf]
      %s3216 = scalar_lea.vmem %s1, 48
      %v3217 = vld [vmem:[%s3216] sm:$0xf]
      %v3218 = vld [vmem:[%s3216 + $0x4] sm:$0x3]
      %v3251 = vunpack.c.l.b16 %v3184
      %v3252 = vunpack.c.l.b16 %v3185
      %v3253 = vunpack.c.l.b16 %v3186
      %v3254 = vunpack.c.l.b16 %v3187
      %v3255 = vunpack.c.l.b16 %v3188
      %v3256 = vunpack.c.l.b16 %v3189
      %v3257 = vunpack.c.l.b16 %v3190
      %v3258 = vunpack.c.l.b16 %v3191
      %v3259 = vunpack.c.l.b16 %v3192
      %v3260 = vunpack.c.l.b16 %v3193
      %v3261 = vunpack.c.l.b16 %v3194
      %v3262 = vunpack.c.l.b16 %v3195
      %v3263 = vunpack.c.l.b16 %v3196
      %v3264 = vunpack.c.l.b16 %v3197
      %v3265 = vunpack.c.l.b16 %v3198
      %v3266 = vunpack.c.l.b16 %v3199
      %v3267 = vunpack.c.l.b16 %v3200
      %v3268 = vunpack.c.l.b16 %v3201
      %v3269 = vunpack.c.l.b16 %v3202
      %v3270 = vunpack.c.l.b16 %v3203
      %v3271 = vunpack.c.l.b16 %v3204
      %v3272 = vunpack.c.l.b16 %v3205
      %v3273 = vunpack.c.l.b16 %v3206
      %v3274 = vunpack.c.l.b16 %v3207
      %v3275 = vunpack.c.l.b16 %v3208
      %v3276 = vunpack.c.l.b16 %v3209
      %v3277 = vunpack.c.l.b16 %v3210
      %v3278 = vunpack.c.l.b16 %v3211
      %v3279 = vunpack.c.l.b16 %v3212
      %v3280 = vunpack.c.l.b16 %v3213
      %v3281 = vunpack.c.l.b16 %v3214
      %v3282 = vunpack.c.l.b16 %v3215
      %v3283 = vpack.c.b16 %v3252, %v3251
      %v3284 = vpack.c.b16 %v3254, %v3253
      %v3285 = vpack.c.b16 %v3256, %v3255
      %v3286 = vpack.c.b16 %v3258, %v3257
      %v3287 = vpack.c.b16 %v3260, %v3259
      %v3288 = vpack.c.b16 %v3262, %v3261
      %v3289 = vpack.c.b16 %v3264, %v3263
      %v3290 = vpack.c.b16 %v3266, %v3265
      %v3291 = vpack.c.b16 %v3268, %v3267
      %v3292 = vpack.c.b16 %v3270, %v3269
      %v3293 = vpack.c.b16 %v3272, %v3271
      %v3294 = vpack.c.b16 %v3274, %v3273
      %v3295 = vpack.c.b16 %v3276, %v3275
      %v3296 = vpack.c.b16 %v3278, %v3277
      %v3297 = vpack.c.b16 %v3280, %v3279
      %v3298 = vpack.c.b16 %v3282, %v3281
      %v3301 = vunpack.c.l.b16 %v3217
      %v3302 = vunpack.c.l.b16 %v3218
      %v3303 = vpack.c.b16 %v3302, %v3301
      %v3305 = vsel %vm636, %v3283, 0
      %v3308 = vsel %vm636, %v3284, 0
      %v3311 = vsel %vm636, %v3285, 0
      %v3314 = vsel %vm636, %v3286, 0
      %v3317 = vsel %vm636, %v3287, 0
      %v3320 = vsel %vm636, %v3288, 0
      %v3323 = vsel %vm636, %v3289, 0
      %v3326 = vsel %vm636, %v3290, 0
      %v3329 = vsel %vm636, %v3291, 0
      %v3332 = vsel %vm636, %v3292, 0
      %v3335 = vsel %vm636, %v3293, 0
      %v3338 = vsel %vm636, %v3294, 0
      %v3341 = vsel %vm636, %v3295, 0
      %v3344 = vsel %vm636, %v3296, 0
      %v3347 = vsel %vm636, %v3297, 0
      %v3350 = vsel %vm636, %v3298, 0
      %v3353 = vsel %vm685, %v3303, 0
      %3355 = vmatprep.subr.bf16.mxu0 0
      %3356 = vmatpush1.bf16.msra.mxu0 0
      %3357 = vmatprep.subr.bf16.mxu0 0
      %3358 = vmatpush1.bf16.msra.mxu0 0
      %3359 = vmatprep.subr.bf16.mxu0 0
      %3360 = vmatpush1.bf16.msra.mxu0 0
      %3361 = vmatprep.subr.bf16.mxu0 0
      %3362 = vmatpush1.bf16.msra.mxu0 0
      %3363 = vmatprep.subr.bf16.mxu0 0
      %3364 = vmatpush1.bf16.msra.mxu0 0
      %3365 = vmatprep.subr.bf16.mxu0 0
      %3366 = vmatpush1.bf16.msra.mxu0 0
      %3367 = vmatprep.subr.bf16.mxu0 0
      %3368 = vmatpush1.bf16.msra.mxu0 0
      %3369 = vmatprep.subr.bf16.mxu0 0
      %3370 = vmatpush1.bf16.msra.mxu0 %v3353
      %3371 = vmatprep.subr.bf16.mxu0 0
      %3372 = vmatpush2.bf16.msra.mxu0 0
      %3373 = vmatprep.subr.bf16.mxu0 0
      %3374 = vmatpush2.bf16.msra.mxu0 0
      %3375 = vmatprep.subr.bf16.mxu0 0
      %3376 = vmatpush2.bf16.msra.mxu0 0
      %3377 = vmatprep.subr.bf16.mxu0 0
      %3378 = vmatpush2.bf16.msra.mxu0 0
      %3379 = vmatprep.subr.bf16.mxu0 0
      %3380 = vmatpush2.bf16.msra.mxu0 0
      %3381 = vmatprep.subr.bf16.mxu0 0
      %3382 = vmatpush2.bf16.msra.mxu0 0
      %3383 = vmatprep.subr.bf16.mxu0 0
      %3384 = vmatpush2.bf16.msra.mxu0 0
      %3385 = vmatprep.subr.bf16.mxu0 0
      %3386 = vmatpush2.bf16.msra.mxu0 0
      %3387 = vmatprep.mubr.bf16.mxu0 0
      %3388 = vmatmul.mubr.bf16.gmra.mxu0 %v3305
      %v3389 = vpop.f32.mrf.mxu0
      %v3390 = vadd.f32 0.0, %v3389
      %v3391 = vpop.f32.mrf.mxu0
      %v3392 = vpop.f32.mrf.mxu0
      %v3393 = vadd.f32 0.0, %v3392
      %v3394 = vpop.f32.mrf.mxu0
      %3395 = vmatprep.mubr.bf16.mxu0 0
      %3396 = vmatmul.mubr.bf16.gmra.mxu0 %v3308
      %v3397 = vpop.f32.mrf.mxu0
      %v3398 = vadd.f32 0.0, %v3397
      %v3399 = vpop.f32.mrf.mxu0
      %v3400 = vpop.f32.mrf.mxu0
      %v3401 = vadd.f32 0.0, %v3400
      %v3402 = vpop.f32.mrf.mxu0
      %3403 = vmatprep.mubr.bf16.mxu0 0
      %3404 = vmatmul.mubr.bf16.gmra.mxu0 %v3311
      %v3405 = vpop.f32.mrf.mxu0
      %v3406 = vadd.f32 0.0, %v3405
      %v3407 = vpop.f32.mrf.mxu0
      %v3408 = vpop.f32.mrf.mxu0
      %v3409 = vadd.f32 0.0, %v3408
      %v3410 = vpop.f32.mrf.mxu0
      %3411 = vmatprep.mubr.bf16.mxu0 0
      %3412 = vmatmul.mubr.bf16.gmra.mxu0 %v3314
      %v3413 = vpop.f32.mrf.mxu0
      %v3414 = vadd.f32 0.0, %v3413
      %v3415 = vpop.f32.mrf.mxu0
      %v3416 = vpop.f32.mrf.mxu0
      %v3417 = vadd.f32 0.0, %v3416
      %v3418 = vpop.f32.mrf.mxu0
      %3419 = vmatprep.mubr.bf16.mxu0 0
      %3420 = vmatmul.mubr.bf16.gmra.mxu0 %v3317
      %v3421 = vpop.f32.mrf.mxu0
      %v3422 = vadd.f32 0.0, %v3421
      %v3423 = vpop.f32.mrf.mxu0
      %v3424 = vpop.f32.mrf.mxu0
      %v3425 = vadd.f32 0.0, %v3424
      %v3426 = vpop.f32.mrf.mxu0
      %3427 = vmatprep.mubr.bf16.mxu0 0
      %3428 = vmatmul.mubr.bf16.gmra.mxu0 %v3320
      %v3429 = vpop.f32.mrf.mxu0
      %v3430 = vadd.f32 0.0, %v3429
      %v3431 = vpop.f32.mrf.mxu0
      %v3432 = vpop.f32.mrf.mxu0
      %v3433 = vadd.f32 0.0, %v3432
      %v3434 = vpop.f32.mrf.mxu0
      %3435 = vmatprep.mubr.bf16.mxu0 0
      %3436 = vmatmul.mubr.bf16.gmra.mxu0 %v3323
      %v3437 = vpop.f32.mrf.mxu0
      %v3438 = vadd.f32 0.0, %v3437
      %v3439 = vpop.f32.mrf.mxu0
      %v3440 = vpop.f32.mrf.mxu0
      %v3441 = vadd.f32 0.0, %v3440
      %v3442 = vpop.f32.mrf.mxu0
      %3443 = vmatprep.mubr.bf16.mxu0 0
      %3444 = vmatmul.mubr.bf16.gmra.mxu0 %v3326
      %v3445 = vpop.f32.mrf.mxu0
      %v3446 = vadd.f32 0.0, %v3445
      %v3447 = vpop.f32.mrf.mxu0
      %v3448 = vpop.f32.mrf.mxu0
      %v3449 = vadd.f32 0.0, %v3448
      %v3450 = vpop.f32.mrf.mxu0
      %3451 = vmatprep.mubr.bf16.mxu0 0
      %3452 = vmatmul.mubr.bf16.gmra.mxu0 %v3329
      %v3453 = vpop.f32.mrf.mxu0
      %v3454 = vadd.f32 0.0, %v3453
      %v3455 = vpop.f32.mrf.mxu0
      %v3456 = vpop.f32.mrf.mxu0
      %v3457 = vadd.f32 0.0, %v3456
      %v3458 = vpop.f32.mrf.mxu0
      %3459 = vmatprep.mubr.bf16.mxu0 0
      %3460 = vmatmul.mubr.bf16.gmra.mxu0 %v3332
      %v3461 = vpop.f32.mrf.mxu0
      %v3462 = vadd.f32 0.0, %v3461
      %v3463 = vpop.f32.mrf.mxu0
      %v3464 = vpop.f32.mrf.mxu0
      %v3465 = vadd.f32 0.0, %v3464
      %v3466 = vpop.f32.mrf.mxu0
      %3467 = vmatprep.mubr.bf16.mxu0 0
      %3468 = vmatmul.mubr.bf16.gmra.mxu0 %v3335
      %v3469 = vpop.f32.mrf.mxu0
      %v3470 = vadd.f32 0.0, %v3469
      %v3471 = vpop.f32.mrf.mxu0
      %v3472 = vpop.f32.mrf.mxu0
      %v3473 = vadd.f32 0.0, %v3472
      %v3474 = vpop.f32.mrf.mxu0
      %3475 = vmatprep.mubr.bf16.mxu0 0
      %3476 = vmatmul.mubr.bf16.gmra.mxu0 %v3338
      %v3477 = vpop.f32.mrf.mxu0
      %v3478 = vadd.f32 0.0, %v3477
      %v3479 = vpop.f32.mrf.mxu0
      %v3480 = vpop.f32.mrf.mxu0
      %v3481 = vadd.f32 0.0, %v3480
      %v3482 = vpop.f32.mrf.mxu0
      %3483 = vmatprep.mubr.bf16.mxu0 0
      %3484 = vmatmul.mubr.bf16.gmra.mxu0 %v3341
      %v3485 = vpop.f32.mrf.mxu0
      %v3486 = vadd.f32 0.0, %v3485
      %v3487 = vpop.f32.mrf.mxu0
      %v3488 = vpop.f32.mrf.mxu0
      %v3489 = vadd.f32 0.0, %v3488
      %v3490 = vpop.f32.mrf.mxu0
      %3491 = vmatprep.mubr.bf16.mxu0 0
      %3492 = vmatmul.mubr.bf16.gmra.mxu0 %v3344
      %v3493 = vpop.f32.mrf.mxu0
      %v3494 = vadd.f32 0.0, %v3493
      %v3495 = vpop.f32.mrf.mxu0
      %v3496 = vpop.f32.mrf.mxu0
      %v3497 = vadd.f32 0.0, %v3496
      %v3498 = vpop.f32.mrf.mxu0
      %3499 = vmatprep.mubr.bf16.mxu0 0
      %3500 = vmatmul.mubr.bf16.gmra.mxu0 %v3347
      %v3501 = vpop.f32.mrf.mxu0
      %v3502 = vadd.f32 0.0, %v3501
      %v3503 = vpop.f32.mrf.mxu0
      %v3504 = vpop.f32.mrf.mxu0
      %v3505 = vadd.f32 0.0, %v3504
      %v3506 = vpop.f32.mrf.mxu0
      %3507 = vmatprep.mubr.bf16.mxu0 0
      %3508 = vmatmul.mubr.bf16.gmra.mxu0 %v3350
      %v3509 = vpop.f32.mrf.mxu0
      %v3510 = vadd.f32 0.0, %v3509
      %v3511 = vpop.f32.mrf.mxu0
      %v3512 = vpop.f32.mrf.mxu0
      %v3513 = vadd.f32 0.0, %v3512
      %v3514 = vpop.f32.mrf.mxu0
      %3515 = vdwg.mxu0
      %v3516 = vadd.f32 %v3151, %v3390
      %v3517 = vadd.f32 %v3152, %v3393
      %v3518 = vadd.f32 %v3153, %v3398
      %v3519 = vadd.f32 %v3154, %v3401
      %v3520 = vadd.f32 %v3155, %v3406
      %v3521 = vadd.f32 %v3156, %v3409
      %v3522 = vadd.f32 %v3157, %v3414
      %v3523 = vadd.f32 %v3158, %v3417
      %v3524 = vadd.f32 %v3159, %v3422
      %v3525 = vadd.f32 %v3160, %v3425
      %v3526 = vadd.f32 %v3161, %v3430
      %v3527 = vadd.f32 %v3162, %v3433
      %v3528 = vadd.f32 %v3163, %v3438
      %v3529 = vadd.f32 %v3164, %v3441
      %v3530 = vadd.f32 %v3165, %v3446
      %v3531 = vadd.f32 %v3166, %v3449
      %v3532 = vadd.f32 %v3167, %v3454
      %v3533 = vadd.f32 %v3168, %v3457
      %v3534 = vadd.f32 %v3169, %v3462
      %v3535 = vadd.f32 %v3170, %v3465
      %v3536 = vadd.f32 %v3171, %v3470
      %v3537 = vadd.f32 %v3172, %v3473
      %v3538 = vadd.f32 %v3173, %v3478
      %v3539 = vadd.f32 %v3174, %v3481
      %v3540 = vadd.f32 %v3175, %v3486
      %v3541 = vadd.f32 %v3176, %v3489
      %v3542 = vadd.f32 %v3177, %v3494
      %v3543 = vadd.f32 %v3178, %v3497
      %v3544 = vadd.f32 %v3179, %v3502
      %v3545 = vadd.f32 %v3180, %v3505
      %v3546 = vadd.f32 %v3181, %v3510
      %v3547 = vadd.f32 %v3182, %v3513
      %v3548 = vld [vmem:[%s3183] sm:$0xf]
      %v3549 = vld [vmem:[%s3183 + $0x4] sm:$0xf]
      %v3550 = vld [vmem:[%s3183 + $0x8] sm:$0x1]
      %v3551 = vld [vmem:[%s3183 + $0xc] sm:$0xf]
      %v3552 = vld [vmem:[%s3183 + $0x10] sm:$0xf]
      %v3553 = vld [vmem:[%s3183 + $0x14] sm:$0x1]
      %v3554 = vld [vmem:[%s3183 + $0x18] sm:$0xf]
      %v3555 = vld [vmem:[%s3183 + $0x1c] sm:$0xf]
      %v3556 = vld [vmem:[%s3183 + $0x20] sm:$0x1]
      %v3557 = vld [vmem:[%s3183 + $0x24] sm:$0xf]
      %v3558 = vld [vmem:[%s3183 + $0x28] sm:$0xf]
      %v3559 = vld [vmem:[%s3183 + $0x2c] sm:$0x1]
      %v3560 = vld [vmem:[%s3183 + $0x30] sm:$0xf]
      %v3561 = vld [vmem:[%s3183 + $0x34] sm:$0xf]
      %v3562 = vld [vmem:[%s3183 + $0x38] sm:$0x1]
      %v3563 = vld [vmem:[%s3183 + $0x3c] sm:$0xf]
      %v3564 = vld [vmem:[%s3183 + $0x40] sm:$0xf]
      %v3565 = vld [vmem:[%s3183 + $0x44] sm:$0x1]
      %v3566 = vld [vmem:[%s3183 + $0x48] sm:$0xf]
      %v3567 = vld [vmem:[%s3183 + $0x4c] sm:$0xf]
      %v3568 = vld [vmem:[%s3183 + $0x50] sm:$0x1]
      %v3569 = vld [vmem:[%s3183 + $0x54] sm:$0xf]
      %v3570 = vld [vmem:[%s3183 + $0x58] sm:$0xf]
      %v3571 = vld [vmem:[%s3183 + $0x5c] sm:$0x1]
      %v3572 = vld [vmem:[%s3183 + $0x60] sm:$0xf]
      %v3573 = vld [vmem:[%s3183 + $0x64] sm:$0xf]
      %v3574 = vld [vmem:[%s3183 + $0x68] sm:$0x1]
      %v3575 = vld [vmem:[%s3183 + $0x6c] sm:$0xf]
      %v3576 = vld [vmem:[%s3183 + $0x70] sm:$0xf]
      %v3577 = vld [vmem:[%s3183 + $0x74] sm:$0x1]
      %v3578 = vld [vmem:[%s3183 + $0x78] sm:$0xf]
      %v3579 = vld [vmem:[%s3183 + $0x7c] sm:$0xf]
      %v3580 = vld [vmem:[%s3183 + $0x80] sm:$0x1]
      %v3581 = vld [vmem:[%s3183 + $0x84] sm:$0xf]
      %v3582 = vld [vmem:[%s3183 + $0x88] sm:$0xf]
      %v3583 = vld [vmem:[%s3183 + $0x8c] sm:$0x1]
      %v3584 = vld [vmem:[%s3183 + $0x90] sm:$0xf]
      %v3585 = vld [vmem:[%s3183 + $0x94] sm:$0xf]
      %v3586 = vld [vmem:[%s3183 + $0x98] sm:$0x1]
      %v3587 = vld [vmem:[%s3183 + $0x9c] sm:$0xf]
      %v3588 = vld [vmem:[%s3183 + $0xa0] sm:$0xf]
      %v3589 = vld [vmem:[%s3183 + $0xa4] sm:$0x1]
      %v3590 = vld [vmem:[%s3183 + $0xa8] sm:$0xf]
      %v3591 = vld [vmem:[%s3183 + $0xac] sm:$0xf]
      %v3592 = vld [vmem:[%s3183 + $0xb0] sm:$0x1]
      %v3593 = vld [vmem:[%s3183 + $0xb4] sm:$0xf]
      %v3594 = vld [vmem:[%s3183 + $0xb8] sm:$0xf]
      %v3595 = vld [vmem:[%s3183 + $0xbc] sm:$0x1]
      %v3597 = vshrl.u32 %v3548, 16
      %v3599 = vrot.slane %v3597, 4
      %v3600 = vshll.u32 %v3548, 16
      %v3602 = vrot.slane %v3600, 5
      %v3603 = vor.u32 %v3599, %v3602
      %v3604 = vrot.slane %v3603, 4
      %v3606 = vshll.u32 %v3549, 16
      %v3608 = vrot.slane %v3606, 5
      %v3609 = vsel %vm195, %v3604, %v3608
      %v3610 = vshrl.u32 %v3549, 16
      %v3612 = vrot.slane %v3610, 4
      %v3613 = vor.u32 %v3612, %v3608
      %v3614 = vrot.slane %v3613, 4
      %v3616 = vshll.u32 %v3550, 16
      %v3618 = vrot.slane %v3616, 5
      %v3619 = vsel %vm195, %v3614, %v3618
      %v3621 = vshrl.u32 %v3551, 16
      %v3623 = vrot.slane %v3621, 4
      %v3624 = vshll.u32 %v3551, 16
      %v3626 = vrot.slane %v3624, 5
      %v3627 = vor.u32 %v3623, %v3626
      %v3628 = vrot.slane %v3627, 4
      %v3630 = vshll.u32 %v3552, 16
      %v3632 = vrot.slane %v3630, 5
      %v3633 = vsel %vm195, %v3628, %v3632
      %v3634 = vshrl.u32 %v3552, 16
      %v3636 = vrot.slane %v3634, 4
      %v3637 = vor.u32 %v3636, %v3632
      %v3638 = vrot.slane %v3637, 4
      %v3640 = vshll.u32 %v3553, 16
      %v3642 = vrot.slane %v3640, 5
      %v3643 = vsel %vm195, %v3638, %v3642
      %v3645 = vshrl.u32 %v3554, 16
      %v3647 = vrot.slane %v3645, 4
      %v3648 = vshll.u32 %v3554, 16
      %v3650 = vrot.slane %v3648, 5
      %v3651 = vor.u32 %v3647, %v3650
      %v3652 = vrot.slane %v3651, 4
      %v3654 = vshll.u32 %v3555, 16
      %v3656 = vrot.slane %v3654, 5
      %v3657 = vsel %vm195, %v3652, %v3656
      %v3658 = vshrl.u32 %v3555, 16
      %v3660 = vrot.slane %v3658, 4
      %v3661 = vor.u32 %v3660, %v3656
      %v3662 = vrot.slane %v3661, 4
      %v3664 = vshll.u32 %v3556, 16
      %v3666 = vrot.slane %v3664, 5
      %v3667 = vsel %vm195, %v3662, %v3666
      %v3669 = vshrl.u32 %v3557, 16
      %v3671 = vrot.slane %v3669, 4
      %v3672 = vshll.u32 %v3557, 16
      %v3674 = vrot.slane %v3672, 5
      %v3675 = vor.u32 %v3671, %v3674
      %v3676 = vrot.slane %v3675, 4
      %v3678 = vshll.u32 %v3558, 16
      %v3680 = vrot.slane %v3678, 5
      %v3681 = vsel %vm195, %v3676, %v3680
      %v3682 = vshrl.u32 %v3558, 16
      %v3684 = vrot.slane %v3682, 4
      %v3685 = vor.u32 %v3684, %v3680
      %v3686 = vrot.slane %v3685, 4
      %v3688 = vshll.u32 %v3559, 16
      %v3690 = vrot.slane %v3688, 5
      %v3691 = vsel %vm195, %v3686, %v3690
      %v3693 = vshrl.u32 %v3560, 16
      %v3695 = vrot.slane %v3693, 4
      %v3696 = vshll.u32 %v3560, 16
      %v3698 = vrot.slane %v3696, 5
      %v3699 = vor.u32 %v3695, %v3698
      %v3700 = vrot.slane %v3699, 4
      %v3702 = vshll.u32 %v3561, 16
      %v3704 = vrot.slane %v3702, 5
      %v3705 = vsel %vm195, %v3700, %v3704
      %v3706 = vshrl.u32 %v3561, 16
      %v3708 = vrot.slane %v3706, 4
      %v3709 = vor.u32 %v3708, %v3704
      %v3710 = vrot.slane %v3709, 4
      %v3712 = vshll.u32 %v3562, 16
      %v3714 = vrot.slane %v3712, 5
      %v3715 = vsel %vm195, %v3710, %v3714
      %v3717 = vshrl.u32 %v3563, 16
      %v3719 = vrot.slane %v3717, 4
      %v3720 = vshll.u32 %v3563, 16
      %v3722 = vrot.slane %v3720, 5
      %v3723 = vor.u32 %v3719, %v3722
      %v3724 = vrot.slane %v3723, 4
      %v3726 = vshll.u32 %v3564, 16
      %v3728 = vrot.slane %v3726, 5
      %v3729 = vsel %vm195, %v3724, %v3728
      %v3730 = vshrl.u32 %v3564, 16
      %v3732 = vrot.slane %v3730, 4
      %v3733 = vor.u32 %v3732, %v3728
      %v3734 = vrot.slane %v3733, 4
      %v3736 = vshll.u32 %v3565, 16
      %v3738 = vrot.slane %v3736, 5
      %v3739 = vsel %vm195, %v3734, %v3738
      %v3741 = vshrl.u32 %v3566, 16
      %v3743 = vrot.slane %v3741, 4
      %v3744 = vshll.u32 %v3566, 16
      %v3746 = vrot.slane %v3744, 5
      %v3747 = vor.u32 %v3743, %v3746
      %v3748 = vrot.slane %v3747, 4
      %v3750 = vshll.u32 %v3567, 16
      %v3752 = vrot.slane %v3750, 5
      %v3753 = vsel %vm195, %v3748, %v3752
      %v3754 = vshrl.u32 %v3567, 16
      %v3756 = vrot.slane %v3754, 4
      %v3757 = vor.u32 %v3756, %v3752
      %v3758 = vrot.slane %v3757, 4
      %v3760 = vshll.u32 %v3568, 16
      %v3762 = vrot.slane %v3760, 5
      %v3763 = vsel %vm195, %v3758, %v3762
      %v3765 = vshrl.u32 %v3569, 16
      %v3767 = vrot.slane %v3765, 4
      %v3768 = vshll.u32 %v3569, 16
      %v3770 = vrot.slane %v3768, 5
      %v3771 = vor.u32 %v3767, %v3770
      %v3772 = vrot.slane %v3771, 4
      %v3774 = vshll.u32 %v3570, 16
      %v3776 = vrot.slane %v3774, 5
      %v3777 = vsel %vm195, %v3772, %v3776
      %v3778 = vshrl.u32 %v3570, 16
      %v3780 = vrot.slane %v3778, 4
      %v3781 = vor.u32 %v3780, %v3776
      %v3782 = vrot.slane %v3781, 4
      %v3784 = vshll.u32 %v3571, 16
      %v3786 = vrot.slane %v3784, 5
      %v3787 = vsel %vm195, %v3782, %v3786
      %v3789 = vshrl.u32 %v3572, 16
      %v3791 = vrot.slane %v3789, 4
      %v3792 = vshll.u32 %v3572, 16
      %v3794 = vrot.slane %v3792, 5
      %v3795 = vor.u32 %v3791, %v3794
      %v3796 = vrot.slane %v3795, 4
      %v3798 = vshll.u32 %v3573, 16
      %v3800 = vrot.slane %v3798, 5
      %v3801 = vsel %vm195, %v3796, %v3800
      %v3802 = vshrl.u32 %v3573, 16
      %v3804 = vrot.slane %v3802, 4
      %v3805 = vor.u32 %v3804, %v3800
      %v3806 = vrot.slane %v3805, 4
      %v3808 = vshll.u32 %v3574, 16
      %v3810 = vrot.slane %v3808, 5
      %v3811 = vsel %vm195, %v3806, %v3810
      %v3813 = vshrl.u32 %v3575, 16
      %v3815 = vrot.slane %v3813, 4
      %v3816 = vshll.u32 %v3575, 16
      %v3818 = vrot.slane %v3816, 5
      %v3819 = vor.u32 %v3815, %v3818
      %v3820 = vrot.slane %v3819, 4
      %v3822 = vshll.u32 %v3576, 16
      %v3824 = vrot.slane %v3822, 5
      %v3825 = vsel %vm195, %v3820, %v3824
      %v3826 = vshrl.u32 %v3576, 16
      %v3828 = vrot.slane %v3826, 4
      %v3829 = vor.u32 %v3828, %v3824
      %v3830 = vrot.slane %v3829, 4
      %v3832 = vshll.u32 %v3577, 16
      %v3834 = vrot.slane %v3832, 5
      %v3835 = vsel %vm195, %v3830, %v3834
      %v3837 = vshrl.u32 %v3578, 16
      %v3839 = vrot.slane %v3837, 4
      %v3840 = vshll.u32 %v3578, 16
      %v3842 = vrot.slane %v3840, 5
      %v3843 = vor.u32 %v3839, %v3842
      %v3844 = vrot.slane %v3843, 4
      %v3846 = vshll.u32 %v3579, 16
      %v3848 = vrot.slane %v3846, 5
      %v3849 = vsel %vm195, %v3844, %v3848
      %v3850 = vshrl.u32 %v3579, 16
      %v3852 = vrot.slane %v3850, 4
      %v3853 = vor.u32 %v3852, %v3848
      %v3854 = vrot.slane %v3853, 4
      %v3856 = vshll.u32 %v3580, 16
      %v3858 = vrot.slane %v3856, 5
      %v3859 = vsel %vm195, %v3854, %v3858
      %v3861 = vshrl.u32 %v3581, 16
      %v3863 = vrot.slane %v3861, 4
      %v3864 = vshll.u32 %v3581, 16
      %v3866 = vrot.slane %v3864, 5
      %v3867 = vor.u32 %v3863, %v3866
      %v3868 = vrot.slane %v3867, 4
      %v3870 = vshll.u32 %v3582, 16
      %v3872 = vrot.slane %v3870, 5
      %v3873 = vsel %vm195, %v3868, %v3872
      %v3874 = vshrl.u32 %v3582, 16
      %v3876 = vrot.slane %v3874, 4
      %v3877 = vor.u32 %v3876, %v3872
      %v3878 = vrot.slane %v3877, 4
      %v3880 = vshll.u32 %v3583, 16
      %v3882 = vrot.slane %v3880, 5
      %v3883 = vsel %vm195, %v3878, %v3882
      %v3885 = vshrl.u32 %v3584, 16
      %v3887 = vrot.slane %v3885, 4
      %v3888 = vshll.u32 %v3584, 16
      %v3890 = vrot.slane %v3888, 5
      %v3891 = vor.u32 %v3887, %v3890
      %v3892 = vrot.slane %v3891, 4
      %v3894 = vshll.u32 %v3585, 16
      %v3896 = vrot.slane %v3894, 5
      %v3897 = vsel %vm195, %v3892, %v3896
      %v3898 = vshrl.u32 %v3585, 16
      %v3900 = vrot.slane %v3898, 4
      %v3901 = vor.u32 %v3900, %v3896
      %v3902 = vrot.slane %v3901, 4
      %v3904 = vshll.u32 %v3586, 16
      %v3906 = vrot.slane %v3904, 5
      %v3907 = vsel %vm195, %v3902, %v3906
      %v3909 = vshrl.u32 %v3587, 16
      %v3911 = vrot.slane %v3909, 4
      %v3912 = vshll.u32 %v3587, 16
      %v3914 = vrot.slane %v3912, 5
      %v3915 = vor.u32 %v3911, %v3914
      %v3916 = vrot.slane %v3915, 4
      %v3918 = vshll.u32 %v3588, 16
      %v3920 = vrot.slane %v3918, 5
      %v3921 = vsel %vm195, %v3916, %v3920
      %v3922 = vshrl.u32 %v3588, 16
      %v3924 = vrot.slane %v3922, 4
      %v3925 = vor.u32 %v3924, %v3920
      %v3926 = vrot.slane %v3925, 4
      %v3928 = vshll.u32 %v3589, 16
      %v3930 = vrot.slane %v3928, 5
      %v3931 = vsel %vm195, %v3926, %v3930
      %v3933 = vshrl.u32 %v3590, 16
      %v3935 = vrot.slane %v3933, 4
      %v3936 = vshll.u32 %v3590, 16
      %v3938 = vrot.slane %v3936, 5
      %v3939 = vor.u32 %v3935, %v3938
      %v3940 = vrot.slane %v3939, 4
      %v3942 = vshll.u32 %v3591, 16
      %v3944 = vrot.slane %v3942, 5
      %v3945 = vsel %vm195, %v3940, %v3944
      %v3946 = vshrl.u32 %v3591, 16
      %v3948 = vrot.slane %v3946, 4
      %v3949 = vor.u32 %v3948, %v3944
      %v3950 = vrot.slane %v3949, 4
      %v3952 = vshll.u32 %v3592, 16
      %v3954 = vrot.slane %v3952, 5
      %v3955 = vsel %vm195, %v3950, %v3954
      %v3957 = vshrl.u32 %v3593, 16
      %v3959 = vrot.slane %v3957, 4
      %v3960 = vshll.u32 %v3593, 16
      %v3962 = vrot.slane %v3960, 5
      %v3963 = vor.u32 %v3959, %v3962
      %v3964 = vrot.slane %v3963, 4
      %v3966 = vshll.u32 %v3594, 16
      %v3968 = vrot.slane %v3966, 5
      %v3969 = vsel %vm195, %v3964, %v3968
      %v3970 = vshrl.u32 %v3594, 16
      %v3972 = vrot.slane %v3970, 4
      %v3973 = vor.u32 %v3972, %v3968
      %v3974 = vrot.slane %v3973, 4
      %v3976 = vshll.u32 %v3595, 16
      %v3978 = vrot.slane %v3976, 5
      %v3979 = vsel %vm195, %v3974, %v3978
      %s3980 = scalar_lea.vmem %s1, 56
      %v3981 = vld [vmem:[%s3980] sm:$0xf]
      %v3982 = vld [vmem:[%s3980 + $0x4] sm:$0x3]
      %v3983 = vunpack.c.l.b16 %v3609
      %v3984 = vunpack.c.l.b16 %v3619
      %v3985 = vunpack.c.l.b16 %v3633
      %v3986 = vunpack.c.l.b16 %v3643
      %v3987 = vunpack.c.l.b16 %v3657
      %v3988 = vunpack.c.l.b16 %v3667
      %v3989 = vunpack.c.l.b16 %v3681
      %v3990 = vunpack.c.l.b16 %v3691
      %v3991 = vunpack.c.l.b16 %v3705
      %v3992 = vunpack.c.l.b16 %v3715
      %v3993 = vunpack.c.l.b16 %v3729
      %v3994 = vunpack.c.l.b16 %v3739
      %v3995 = vunpack.c.l.b16 %v3753
      %v3996 = vunpack.c.l.b16 %v3763
      %v3997 = vunpack.c.l.b16 %v3777
      %v3998 = vunpack.c.l.b16 %v3787
      %v3999 = vunpack.c.l.b16 %v3801
      %v4000 = vunpack.c.l.b16 %v3811
      %v4001 = vunpack.c.l.b16 %v3825
      %v4002 = vunpack.c.l.b16 %v3835
      %v4003 = vunpack.c.l.b16 %v3849
      %v4004 = vunpack.c.l.b16 %v3859
      %v4005 = vunpack.c.l.b16 %v3873
      %v4006 = vunpack.c.l.b16 %v3883
      %v4007 = vunpack.c.l.b16 %v3897
      %v4008 = vunpack.c.l.b16 %v3907
      %v4009 = vunpack.c.l.b16 %v3921
      %v4010 = vunpack.c.l.b16 %v3931
      %v4011 = vunpack.c.l.b16 %v3945
      %v4012 = vunpack.c.l.b16 %v3955
      %v4013 = vunpack.c.l.b16 %v3969
      %v4014 = vunpack.c.l.b16 %v3979
      %v4015 = vpack.c.b16 %v3984, %v3983
      %v4016 = vpack.c.b16 %v3986, %v3985
      %v4017 = vpack.c.b16 %v3988, %v3987
      %v4018 = vpack.c.b16 %v3990, %v3989
      %v4019 = vpack.c.b16 %v3992, %v3991
      %v4020 = vpack.c.b16 %v3994, %v3993
      %v4021 = vpack.c.b16 %v3996, %v3995
      %v4022 = vpack.c.b16 %v3998, %v3997
      %v4023 = vpack.c.b16 %v4000, %v3999
      %v4024 = vpack.c.b16 %v4002, %v4001
      %v4025 = vpack.c.b16 %v4004, %v4003
      %v4026 = vpack.c.b16 %v4006, %v4005
      %v4027 = vpack.c.b16 %v4008, %v4007
      %v4028 = vpack.c.b16 %v4010, %v4009
      %v4029 = vpack.c.b16 %v4012, %v4011
      %v4030 = vpack.c.b16 %v4014, %v4013
      %v4033 = vunpack.c.l.b16 %v3981
      %v4034 = vunpack.c.l.b16 %v3982
      %v4035 = vpack.c.b16 %v4034, %v4033
      %v4037 = vsel %vm636, %v4015, 0
      %v4040 = vsel %vm636, %v4016, 0
      %v4043 = vsel %vm636, %v4017, 0
      %v4046 = vsel %vm636, %v4018, 0
      %v4049 = vsel %vm636, %v4019, 0
      %v4052 = vsel %vm636, %v4020, 0
      %v4055 = vsel %vm636, %v4021, 0
      %v4058 = vsel %vm636, %v4022, 0
      %v4061 = vsel %vm636, %v4023, 0
      %v4064 = vsel %vm636, %v4024, 0
      %v4067 = vsel %vm636, %v4025, 0
      %v4070 = vsel %vm636, %v4026, 0
      %v4073 = vsel %vm636, %v4027, 0
      %v4076 = vsel %vm636, %v4028, 0
      %v4079 = vsel %vm636, %v4029, 0
      %v4082 = vsel %vm636, %v4030, 0
      %v4085 = vsel %vm685, %v4035, 0
      %4087 = vmatprep.subr.bf16.mxu0 0
      %4088 = vmatpush1.bf16.msra.mxu0 0
      %4089 = vmatprep.subr.bf16.mxu0 0
      %4090 = vmatpush1.bf16.msra.mxu0 0
      %4091 = vmatprep.subr.bf16.mxu0 0
      %4092 = vmatpush1.bf16.msra.mxu0 0
      %4093 = vmatprep.subr.bf16.mxu0 0
      %4094 = vmatpush1.bf16.msra.mxu0 0
      %4095 = vmatprep.subr.bf16.mxu0 0
      %4096 = vmatpush1.bf16.msra.mxu0 0
      %4097 = vmatprep.subr.bf16.mxu0 0
      %4098 = vmatpush1.bf16.msra.mxu0 0
      %4099 = vmatprep.subr.bf16.mxu0 0
      %4100 = vmatpush1.bf16.msra.mxu0 0
      %4101 = vmatprep.subr.bf16.mxu0 0
      %4102 = vmatpush1.bf16.msra.mxu0 %v4085
      %4103 = vmatprep.subr.bf16.mxu0 0
      %4104 = vmatpush2.bf16.msra.mxu0 0
      %4105 = vmatprep.subr.bf16.mxu0 0
      %4106 = vmatpush2.bf16.msra.mxu0 0
      %4107 = vmatprep.subr.bf16.mxu0 0
      %4108 = vmatpush2.bf16.msra.mxu0 0
      %4109 = vmatprep.subr.bf16.mxu0 0
      %4110 = vmatpush2.bf16.msra.mxu0 0
      %4111 = vmatprep.subr.bf16.mxu0 0
      %4112 = vmatpush2.bf16.msra.mxu0 0
      %4113 = vmatprep.subr.bf16.mxu0 0
      %4114 = vmatpush2.bf16.msra.mxu0 0
      %4115 = vmatprep.subr.bf16.mxu0 0
      %4116 = vmatpush2.bf16.msra.mxu0 0
      %4117 = vmatprep.subr.bf16.mxu0 0
      %4118 = vmatpush2.bf16.msra.mxu0 0
      %4119 = vmatprep.mubr.bf16.mxu0 0
      %4120 = vmatmul.mubr.bf16.gmra.mxu0 %v4037
      %v4121 = vpop.f32.mrf.mxu0
      %v4122 = vadd.f32 0.0, %v4121
      %v4123 = vpop.f32.mrf.mxu0
      %v4124 = vpop.f32.mrf.mxu0
      %v4125 = vadd.f32 0.0, %v4124
      %v4126 = vpop.f32.mrf.mxu0
      %4127 = vmatprep.mubr.bf16.mxu0 0
      %4128 = vmatmul.mubr.bf16.gmra.mxu0 %v4040
      %v4129 = vpop.f32.mrf.mxu0
      %v4130 = vadd.f32 0.0, %v4129
      %v4131 = vpop.f32.mrf.mxu0
      %v4132 = vpop.f32.mrf.mxu0
      %v4133 = vadd.f32 0.0, %v4132
      %v4134 = vpop.f32.mrf.mxu0
      %4135 = vmatprep.mubr.bf16.mxu0 0
      %4136 = vmatmul.mubr.bf16.gmra.mxu0 %v4043
      %v4137 = vpop.f32.mrf.mxu0
      %v4138 = vadd.f32 0.0, %v4137
      %v4139 = vpop.f32.mrf.mxu0
      %v4140 = vpop.f32.mrf.mxu0
      %v4141 = vadd.f32 0.0, %v4140
      %v4142 = vpop.f32.mrf.mxu0
      %4143 = vmatprep.mubr.bf16.mxu0 0
      %4144 = vmatmul.mubr.bf16.gmra.mxu0 %v4046
      %v4145 = vpop.f32.mrf.mxu0
      %v4146 = vadd.f32 0.0, %v4145
      %v4147 = vpop.f32.mrf.mxu0
      %v4148 = vpop.f32.mrf.mxu0
      %v4149 = vadd.f32 0.0, %v4148
      %v4150 = vpop.f32.mrf.mxu0
      %4151 = vmatprep.mubr.bf16.mxu0 0
      %4152 = vmatmul.mubr.bf16.gmra.mxu0 %v4049
      %v4153 = vpop.f32.mrf.mxu0
      %v4154 = vadd.f32 0.0, %v4153
      %v4155 = vpop.f32.mrf.mxu0
      %v4156 = vpop.f32.mrf.mxu0
      %v4157 = vadd.f32 0.0, %v4156
      %v4158 = vpop.f32.mrf.mxu0
      %4159 = vmatprep.mubr.bf16.mxu0 0
      %4160 = vmatmul.mubr.bf16.gmra.mxu0 %v4052
      %v4161 = vpop.f32.mrf.mxu0
      %v4162 = vadd.f32 0.0, %v4161
      %v4163 = vpop.f32.mrf.mxu0
      %v4164 = vpop.f32.mrf.mxu0
      %v4165 = vadd.f32 0.0, %v4164
      %v4166 = vpop.f32.mrf.mxu0
      %4167 = vmatprep.mubr.bf16.mxu0 0
      %4168 = vmatmul.mubr.bf16.gmra.mxu0 %v4055
      %v4169 = vpop.f32.mrf.mxu0
      %v4170 = vadd.f32 0.0, %v4169
      %v4171 = vpop.f32.mrf.mxu0
      %v4172 = vpop.f32.mrf.mxu0
      %v4173 = vadd.f32 0.0, %v4172
      %v4174 = vpop.f32.mrf.mxu0
      %4175 = vmatprep.mubr.bf16.mxu0 0
      %4176 = vmatmul.mubr.bf16.gmra.mxu0 %v4058
      %v4177 = vpop.f32.mrf.mxu0
      %v4178 = vadd.f32 0.0, %v4177
      %v4179 = vpop.f32.mrf.mxu0
      %v4180 = vpop.f32.mrf.mxu0
      %v4181 = vadd.f32 0.0, %v4180
      %v4182 = vpop.f32.mrf.mxu0
      %4183 = vmatprep.mubr.bf16.mxu0 0
      %4184 = vmatmul.mubr.bf16.gmra.mxu0 %v4061
      %v4185 = vpop.f32.mrf.mxu0
      %v4186 = vadd.f32 0.0, %v4185
      %v4187 = vpop.f32.mrf.mxu0
      %v4188 = vpop.f32.mrf.mxu0
      %v4189 = vadd.f32 0.0, %v4188
      %v4190 = vpop.f32.mrf.mxu0
      %4191 = vmatprep.mubr.bf16.mxu0 0
      %4192 = vmatmul.mubr.bf16.gmra.mxu0 %v4064
      %v4193 = vpop.f32.mrf.mxu0
      %v4194 = vadd.f32 0.0, %v4193
      %v4195 = vpop.f32.mrf.mxu0
      %v4196 = vpop.f32.mrf.mxu0
      %v4197 = vadd.f32 0.0, %v4196
      %v4198 = vpop.f32.mrf.mxu0
      %4199 = vmatprep.mubr.bf16.mxu0 0
      %4200 = vmatmul.mubr.bf16.gmra.mxu0 %v4067
      %v4201 = vpop.f32.mrf.mxu0
      %v4202 = vadd.f32 0.0, %v4201
      %v4203 = vpop.f32.mrf.mxu0
      %v4204 = vpop.f32.mrf.mxu0
      %v4205 = vadd.f32 0.0, %v4204
      %v4206 = vpop.f32.mrf.mxu0
      %4207 = vmatprep.mubr.bf16.mxu0 0
      %4208 = vmatmul.mubr.bf16.gmra.mxu0 %v4070
      %v4209 = vpop.f32.mrf.mxu0
      %v4210 = vadd.f32 0.0, %v4209
      %v4211 = vpop.f32.mrf.mxu0
      %v4212 = vpop.f32.mrf.mxu0
      %v4213 = vadd.f32 0.0, %v4212
      %v4214 = vpop.f32.mrf.mxu0
      %4215 = vmatprep.mubr.bf16.mxu0 0
      %4216 = vmatmul.mubr.bf16.gmra.mxu0 %v4073
      %v4217 = vpop.f32.mrf.mxu0
      %v4218 = vadd.f32 0.0, %v4217
      %v4219 = vpop.f32.mrf.mxu0
      %v4220 = vpop.f32.mrf.mxu0
      %v4221 = vadd.f32 0.0, %v4220
      %v4222 = vpop.f32.mrf.mxu0
      %4223 = vmatprep.mubr.bf16.mxu0 0
      %4224 = vmatmul.mubr.bf16.gmra.mxu0 %v4076
      %v4225 = vpop.f32.mrf.mxu0
      %v4226 = vadd.f32 0.0, %v4225
      %v4227 = vpop.f32.mrf.mxu0
      %v4228 = vpop.f32.mrf.mxu0
      %v4229 = vadd.f32 0.0, %v4228
      %v4230 = vpop.f32.mrf.mxu0
      %4231 = vmatprep.mubr.bf16.mxu0 0
      %4232 = vmatmul.mubr.bf16.gmra.mxu0 %v4079
      %v4233 = vpop.f32.mrf.mxu0
      %v4234 = vadd.f32 0.0, %v4233
      %v4235 = vpop.f32.mrf.mxu0
      %v4236 = vpop.f32.mrf.mxu0
      %v4237 = vadd.f32 0.0, %v4236
      %v4238 = vpop.f32.mrf.mxu0
      %4239 = vmatprep.mubr.bf16.mxu0 0
      %4240 = vmatmul.mubr.bf16.gmra.mxu0 %v4082
      %v4241 = vpop.f32.mrf.mxu0
      %v4242 = vadd.f32 0.0, %v4241
      %v4243 = vpop.f32.mrf.mxu0
      %v4244 = vpop.f32.mrf.mxu0
      %v4245 = vadd.f32 0.0, %v4244
      %v4246 = vpop.f32.mrf.mxu0
      %4247 = vdwg.mxu0
      %v4248 = vadd.f32 %v3516, %v4122
      %v4249 = vadd.f32 %v3517, %v4125
      %v4250 = vadd.f32 %v3518, %v4130
      %v4251 = vadd.f32 %v3519, %v4133
      %v4252 = vadd.f32 %v3520, %v4138
      %v4253 = vadd.f32 %v3521, %v4141
      %v4254 = vadd.f32 %v3522, %v4146
      %v4255 = vadd.f32 %v3523, %v4149
      %v4256 = vadd.f32 %v3524, %v4154
      %v4257 = vadd.f32 %v3525, %v4157
      %v4258 = vadd.f32 %v3526, %v4162
      %v4259 = vadd.f32 %v3527, %v4165
      %v4260 = vadd.f32 %v3528, %v4170
      %v4261 = vadd.f32 %v3529, %v4173
      %v4262 = vadd.f32 %v3530, %v4178
      %v4263 = vadd.f32 %v3531, %v4181
      %v4264 = vadd.f32 %v3532, %v4186
      %v4265 = vadd.f32 %v3533, %v4189
      %v4266 = vadd.f32 %v3534, %v4194
      %v4267 = vadd.f32 %v3535, %v4197
      %v4268 = vadd.f32 %v3536, %v4202
      %v4269 = vadd.f32 %v3537, %v4205
      %v4270 = vadd.f32 %v3538, %v4210
      %v4271 = vadd.f32 %v3539, %v4213
      %v4272 = vadd.f32 %v3540, %v4218
      %v4273 = vadd.f32 %v3541, %v4221
      %v4274 = vadd.f32 %v3542, %v4226
      %v4275 = vadd.f32 %v3543, %v4229
      %v4276 = vadd.f32 %v3544, %v4234
      %v4277 = vadd.f32 %v3545, %v4237
      %v4278 = vadd.f32 %v3546, %v4242
      %v4279 = vadd.f32 %v3547, %v4245
      %v4280 = vld [vmem:[%s3183] sm:$0xe]
      %v4281 = vld [vmem:[%s3183 + $0xc] sm:$0xe]
      %v4282 = vld [vmem:[%s3183 + $0x18] sm:$0xe]
      %v4283 = vld [vmem:[%s3183 + $0x24] sm:$0xe]
      %v4284 = vld [vmem:[%s3183 + $0x30] sm:$0xe]
      %v4285 = vld [vmem:[%s3183 + $0x3c] sm:$0xe]
      %v4286 = vld [vmem:[%s3183 + $0x48] sm:$0xe]
      %v4287 = vld [vmem:[%s3183 + $0x54] sm:$0xe]
      %v4288 = vld [vmem:[%s3183 + $0x60] sm:$0xe]
      %v4289 = vld [vmem:[%s3183 + $0x6c] sm:$0xe]
      %v4290 = vld [vmem:[%s3183 + $0x78] sm:$0xe]
      %v4291 = vld [vmem:[%s3183 + $0x84] sm:$0xe]
      %v4292 = vld [vmem:[%s3183 + $0x90] sm:$0xe]
      %v4293 = vld [vmem:[%s3183 + $0x9c] sm:$0xe]
      %v4294 = vld [vmem:[%s3183 + $0xa8] sm:$0xe]
      %v4295 = vld [vmem:[%s3183 + $0xb4] sm:$0xe]
      %v4344 = vrot.slane %v4280, 5
      %v4345 = vrot.slane %v4344, 4
      %v4346 = vrot.slane %v3549, 5
      %v4347 = vsel %vm1197, %v4345, %v4346
      %v4348 = vrot.slane %v4346, 4
      %v4349 = vrot.slane %v3550, 5
      %v4350 = vsel %vm1197, %v4348, %v4349
      %v4351 = vrot.slane %v4281, 5
      %v4352 = vrot.slane %v4351, 4
      %v4353 = vrot.slane %v3552, 5
      %v4354 = vsel %vm1197, %v4352, %v4353
      %v4355 = vrot.slane %v4353, 4
      %v4356 = vrot.slane %v3553, 5
      %v4357 = vsel %vm1197, %v4355, %v4356
      %v4358 = vrot.slane %v4282, 5
      %v4359 = vrot.slane %v4358, 4
      %v4360 = vrot.slane %v3555, 5
      %v4361 = vsel %vm1197, %v4359, %v4360
      %v4362 = vrot.slane %v4360, 4
      %v4363 = vrot.slane %v3556, 5
      %v4364 = vsel %vm1197, %v4362, %v4363
      %v4365 = vrot.slane %v4283, 5
      %v4366 = vrot.slane %v4365, 4
      %v4367 = vrot.slane %v3558, 5
      %v4368 = vsel %vm1197, %v4366, %v4367
      %v4369 = vrot.slane %v4367, 4
      %v4370 = vrot.slane %v3559, 5
      %v4371 = vsel %vm1197, %v4369, %v4370
      %v4372 = vrot.slane %v4284, 5
      %v4373 = vrot.slane %v4372, 4
      %v4374 = vrot.slane %v3561, 5
      %v4375 = vsel %vm1197, %v4373, %v4374
      %v4376 = vrot.slane %v4374, 4
      %v4377 = vrot.slane %v3562, 5
      %v4378 = vsel %vm1197, %v4376, %v4377
      %v4379 = vrot.slane %v4285, 5
      %v4380 = vrot.slane %v4379, 4
      %v4381 = vrot.slane %v3564, 5
      %v4382 = vsel %vm1197, %v4380, %v4381
      %v4383 = vrot.slane %v4381, 4
      %v4384 = vrot.slane %v3565, 5
      %v4385 = vsel %vm1197, %v4383, %v4384
      %v4386 = vrot.slane %v4286, 5
      %v4387 = vrot.slane %v4386, 4
      %v4388 = vrot.slane %v3567, 5
      %v4389 = vsel %vm1197, %v4387, %v4388
      %v4390 = vrot.slane %v4388, 4
      %v4391 = vrot.slane %v3568, 5
      %v4392 = vsel %vm1197, %v4390, %v4391
      %v4393 = vrot.slane %v4287, 5
      %v4394 = vrot.slane %v4393, 4
      %v4395 = vrot.slane %v3570, 5
      %v4396 = vsel %vm1197, %v4394, %v4395
      %v4397 = vrot.slane %v4395, 4
      %v4398 = vrot.slane %v3571, 5
      %v4399 = vsel %vm1197, %v4397, %v4398
      %v4400 = vrot.slane %v4288, 5
      %v4401 = vrot.slane %v4400, 4
      %v4402 = vrot.slane %v3573, 5
      %v4403 = vsel %vm1197, %v4401, %v4402
      %v4404 = vrot.slane %v4402, 4
      %v4405 = vrot.slane %v3574, 5
      %v4406 = vsel %vm1197, %v4404, %v4405
      %v4407 = vrot.slane %v4289, 5
      %v4408 = vrot.slane %v4407, 4
      %v4409 = vrot.slane %v3576, 5
      %v4410 = vsel %vm1197, %v4408, %v4409
      %v4411 = vrot.slane %v4409, 4
      %v4412 = vrot.slane %v3577, 5
      %v4413 = vsel %vm1197, %v4411, %v4412
      %v4414 = vrot.slane %v4290, 5
      %v4415 = vrot.slane %v4414, 4
      %v4416 = vrot.slane %v3579, 5
      %v4417 = vsel %vm1197, %v4415, %v4416
      %v4418 = vrot.slane %v4416, 4
      %v4419 = vrot.slane %v3580, 5
      %v4420 = vsel %vm1197, %v4418, %v4419
      %v4421 = vrot.slane %v4291, 5
      %v4422 = vrot.slane %v4421, 4
      %v4423 = vrot.slane %v3582, 5
      %v4424 = vsel %vm1197, %v4422, %v4423
      %v4425 = vrot.slane %v4423, 4
      %v4426 = vrot.slane %v3583, 5
      %v4427 = vsel %vm1197, %v4425, %v4426
      %v4428 = vrot.slane %v4292, 5
      %v4429 = vrot.slane %v4428, 4
      %v4430 = vrot.slane %v3585, 5
      %v4431 = vsel %vm1197, %v4429, %v4430
      %v4432 = vrot.slane %v4430, 4
      %v4433 = vrot.slane %v3586, 5
      %v4434 = vsel %vm1197, %v4432, %v4433
      %v4435 = vrot.slane %v4293, 5
      %v4436 = vrot.slane %v4435, 4
      %v4437 = vrot.slane %v3588, 5
      %v4438 = vsel %vm1197, %v4436, %v4437
      %v4439 = vrot.slane %v4437, 4
      %v4440 = vrot.slane %v3589, 5
      %v4441 = vsel %vm1197, %v4439, %v4440
      %v4442 = vrot.slane %v4294, 5
      %v4443 = vrot.slane %v4442, 4
      %v4444 = vrot.slane %v3591, 5
      %v4445 = vsel %vm1197, %v4443, %v4444
      %v4446 = vrot.slane %v4444, 4
      %v4447 = vrot.slane %v3592, 5
      %v4448 = vsel %vm1197, %v4446, %v4447
      %v4449 = vrot.slane %v4295, 5
      %v4450 = vrot.slane %v4449, 4
      %v4451 = vrot.slane %v3594, 5
      %v4452 = vsel %vm1197, %v4450, %v4451
      %v4453 = vrot.slane %v4451, 4
      %v4454 = vrot.slane %v3595, 5
      %v4455 = vsel %vm1197, %v4453, %v4454
      %s4456 = scalar_lea.vmem %s1, 64
      %v4457 = vld [vmem:[%s4456] sm:$0xf]
      %v4458 = vld [vmem:[%s4456 + $0x4] sm:$0x3]
      %v4459 = vunpack.c.l.b16 %v4347
      %v4460 = vunpack.c.l.b16 %v4350
      %v4461 = vunpack.c.l.b16 %v4354
      %v4462 = vunpack.c.l.b16 %v4357
      %v4463 = vunpack.c.l.b16 %v4361
      %v4464 = vunpack.c.l.b16 %v4364
      %v4465 = vunpack.c.l.b16 %v4368
      %v4466 = vunpack.c.l.b16 %v4371
      %v4467 = vunpack.c.l.b16 %v4375
      %v4468 = vunpack.c.l.b16 %v4378
      %v4469 = vunpack.c.l.b16 %v4382
      %v4470 = vunpack.c.l.b16 %v4385
      %v4471 = vunpack.c.l.b16 %v4389
      %v4472 = vunpack.c.l.b16 %v4392
      %v4473 = vunpack.c.l.b16 %v4396
      %v4474 = vunpack.c.l.b16 %v4399
      %v4475 = vunpack.c.l.b16 %v4403
      %v4476 = vunpack.c.l.b16 %v4406
      %v4477 = vunpack.c.l.b16 %v4410
      %v4478 = vunpack.c.l.b16 %v4413
      %v4479 = vunpack.c.l.b16 %v4417
      %v4480 = vunpack.c.l.b16 %v4420
      %v4481 = vunpack.c.l.b16 %v4424
      %v4482 = vunpack.c.l.b16 %v4427
      %v4483 = vunpack.c.l.b16 %v4431
      %v4484 = vunpack.c.l.b16 %v4434
      %v4485 = vunpack.c.l.b16 %v4438
      %v4486 = vunpack.c.l.b16 %v4441
      %v4487 = vunpack.c.l.b16 %v4445
      %v4488 = vunpack.c.l.b16 %v4448
      %v4489 = vunpack.c.l.b16 %v4452
      %v4490 = vunpack.c.l.b16 %v4455
      %v4491 = vpack.c.b16 %v4460, %v4459
      %v4492 = vpack.c.b16 %v4462, %v4461
      %v4493 = vpack.c.b16 %v4464, %v4463
      %v4494 = vpack.c.b16 %v4466, %v4465
      %v4495 = vpack.c.b16 %v4468, %v4467
      %v4496 = vpack.c.b16 %v4470, %v4469
      %v4497 = vpack.c.b16 %v4472, %v4471
      %v4498 = vpack.c.b16 %v4474, %v4473
      %v4499 = vpack.c.b16 %v4476, %v4475
      %v4500 = vpack.c.b16 %v4478, %v4477
      %v4501 = vpack.c.b16 %v4480, %v4479
      %v4502 = vpack.c.b16 %v4482, %v4481
      %v4503 = vpack.c.b16 %v4484, %v4483
      %v4504 = vpack.c.b16 %v4486, %v4485
      %v4505 = vpack.c.b16 %v4488, %v4487
      %v4506 = vpack.c.b16 %v4490, %v4489
      %v4509 = vunpack.c.l.b16 %v4457
      %v4510 = vunpack.c.l.b16 %v4458
      %v4511 = vpack.c.b16 %v4510, %v4509
      %v4513 = vsel %vm636, %v4491, 0
      %v4516 = vsel %vm636, %v4492, 0
      %v4519 = vsel %vm636, %v4493, 0
      %v4522 = vsel %vm636, %v4494, 0
      %v4525 = vsel %vm636, %v4495, 0
      %v4528 = vsel %vm636, %v4496, 0
      %v4531 = vsel %vm636, %v4497, 0
      %v4534 = vsel %vm636, %v4498, 0
      %v4537 = vsel %vm636, %v4499, 0
      %v4540 = vsel %vm636, %v4500, 0
      %v4543 = vsel %vm636, %v4501, 0
      %v4546 = vsel %vm636, %v4502, 0
      %v4549 = vsel %vm636, %v4503, 0
      %v4552 = vsel %vm636, %v4504, 0
      %v4555 = vsel %vm636, %v4505, 0
      %v4558 = vsel %vm636, %v4506, 0
      %v4561 = vsel %vm685, %v4511, 0
      %4563 = vmatprep.subr.bf16.mxu0 0
      %4564 = vmatpush1.bf16.msra.mxu0 0
      %4565 = vmatprep.subr.bf16.mxu0 0
      %4566 = vmatpush1.bf16.msra.mxu0 0
      %4567 = vmatprep.subr.bf16.mxu0 0
      %4568 = vmatpush1.bf16.msra.mxu0 0
      %4569 = vmatprep.subr.bf16.mxu0 0
      %4570 = vmatpush1.bf16.msra.mxu0 0
      %4571 = vmatprep.subr.bf16.mxu0 0
      %4572 = vmatpush1.bf16.msra.mxu0 0
      %4573 = vmatprep.subr.bf16.mxu0 0
      %4574 = vmatpush1.bf16.msra.mxu0 0
      %4575 = vmatprep.subr.bf16.mxu0 0
      %4576 = vmatpush1.bf16.msra.mxu0 0
      %4577 = vmatprep.subr.bf16.mxu0 0
      %4578 = vmatpush1.bf16.msra.mxu0 %v4561
      %4579 = vmatprep.subr.bf16.mxu0 0
      %4580 = vmatpush2.bf16.msra.mxu0 0
      %4581 = vmatprep.subr.bf16.mxu0 0
      %4582 = vmatpush2.bf16.msra.mxu0 0
      %4583 = vmatprep.subr.bf16.mxu0 0
      %4584 = vmatpush2.bf16.msra.mxu0 0
      %4585 = vmatprep.subr.bf16.mxu0 0
      %4586 = vmatpush2.bf16.msra.mxu0 0
      %4587 = vmatprep.subr.bf16.mxu0 0
      %4588 = vmatpush2.bf16.msra.mxu0 0
      %4589 = vmatprep.subr.bf16.mxu0 0
      %4590 = vmatpush2.bf16.msra.mxu0 0
      %4591 = vmatprep.subr.bf16.mxu0 0
      %4592 = vmatpush2.bf16.msra.mxu0 0
      %4593 = vmatprep.subr.bf16.mxu0 0
      %4594 = vmatpush2.bf16.msra.mxu0 0
      %4595 = vmatprep.mubr.bf16.mxu0 0
      %4596 = vmatmul.mubr.bf16.gmra.mxu0 %v4513
      %v4597 = vpop.f32.mrf.mxu0
      %v4598 = vadd.f32 0.0, %v4597
      %v4599 = vpop.f32.mrf.mxu0
      %v4600 = vpop.f32.mrf.mxu0
      %v4601 = vadd.f32 0.0, %v4600
      %v4602 = vpop.f32.mrf.mxu0
      %4603 = vmatprep.mubr.bf16.mxu0 0
      %4604 = vmatmul.mubr.bf16.gmra.mxu0 %v4516
      %v4605 = vpop.f32.mrf.mxu0
      %v4606 = vadd.f32 0.0, %v4605
      %v4607 = vpop.f32.mrf.mxu0
      %v4608 = vpop.f32.mrf.mxu0
      %v4609 = vadd.f32 0.0, %v4608
      %v4610 = vpop.f32.mrf.mxu0
      %4611 = vmatprep.mubr.bf16.mxu0 0
      %4612 = vmatmul.mubr.bf16.gmra.mxu0 %v4519
      %v4613 = vpop.f32.mrf.mxu0
      %v4614 = vadd.f32 0.0, %v4613
      %v4615 = vpop.f32.mrf.mxu0
      %v4616 = vpop.f32.mrf.mxu0
      %v4617 = vadd.f32 0.0, %v4616
      %v4618 = vpop.f32.mrf.mxu0
      %4619 = vmatprep.mubr.bf16.mxu0 0
      %4620 = vmatmul.mubr.bf16.gmra.mxu0 %v4522
      %v4621 = vpop.f32.mrf.mxu0
      %v4622 = vadd.f32 0.0, %v4621
      %v4623 = vpop.f32.mrf.mxu0
      %v4624 = vpop.f32.mrf.mxu0
      %v4625 = vadd.f32 0.0, %v4624
      %v4626 = vpop.f32.mrf.mxu0
      %4627 = vmatprep.mubr.bf16.mxu0 0
      %4628 = vmatmul.mubr.bf16.gmra.mxu0 %v4525
      %v4629 = vpop.f32.mrf.mxu0
      %v4630 = vadd.f32 0.0, %v4629
      %v4631 = vpop.f32.mrf.mxu0
      %v4632 = vpop.f32.mrf.mxu0
      %v4633 = vadd.f32 0.0, %v4632
      %v4634 = vpop.f32.mrf.mxu0
      %4635 = vmatprep.mubr.bf16.mxu0 0
      %4636 = vmatmul.mubr.bf16.gmra.mxu0 %v4528
      %v4637 = vpop.f32.mrf.mxu0
      %v4638 = vadd.f32 0.0, %v4637
      %v4639 = vpop.f32.mrf.mxu0
      %v4640 = vpop.f32.mrf.mxu0
      %v4641 = vadd.f32 0.0, %v4640
      %v4642 = vpop.f32.mrf.mxu0
      %4643 = vmatprep.mubr.bf16.mxu0 0
      %4644 = vmatmul.mubr.bf16.gmra.mxu0 %v4531
      %v4645 = vpop.f32.mrf.mxu0
      %v4646 = vadd.f32 0.0, %v4645
      %v4647 = vpop.f32.mrf.mxu0
      %v4648 = vpop.f32.mrf.mxu0
      %v4649 = vadd.f32 0.0, %v4648
      %v4650 = vpop.f32.mrf.mxu0
      %4651 = vmatprep.mubr.bf16.mxu0 0
      %4652 = vmatmul.mubr.bf16.gmra.mxu0 %v4534
      %v4653 = vpop.f32.mrf.mxu0
      %v4654 = vadd.f32 0.0, %v4653
      %v4655 = vpop.f32.mrf.mxu0
      %v4656 = vpop.f32.mrf.mxu0
      %v4657 = vadd.f32 0.0, %v4656
      %v4658 = vpop.f32.mrf.mxu0
      %4659 = vmatprep.mubr.bf16.mxu0 0
      %4660 = vmatmul.mubr.bf16.gmra.mxu0 %v4537
      %v4661 = vpop.f32.mrf.mxu0
      %v4662 = vadd.f32 0.0, %v4661
      %v4663 = vpop.f32.mrf.mxu0
      %v4664 = vpop.f32.mrf.mxu0
      %v4665 = vadd.f32 0.0, %v4664
      %v4666 = vpop.f32.mrf.mxu0
      %4667 = vmatprep.mubr.bf16.mxu0 0
      %4668 = vmatmul.mubr.bf16.gmra.mxu0 %v4540
      %v4669 = vpop.f32.mrf.mxu0
      %v4670 = vadd.f32 0.0, %v4669
      %v4671 = vpop.f32.mrf.mxu0
      %v4672 = vpop.f32.mrf.mxu0
      %v4673 = vadd.f32 0.0, %v4672
      %v4674 = vpop.f32.mrf.mxu0
      %4675 = vmatprep.mubr.bf16.mxu0 0
      %4676 = vmatmul.mubr.bf16.gmra.mxu0 %v4543
      %v4677 = vpop.f32.mrf.mxu0
      %v4678 = vadd.f32 0.0, %v4677
      %v4679 = vpop.f32.mrf.mxu0
      %v4680 = vpop.f32.mrf.mxu0
      %v4681 = vadd.f32 0.0, %v4680
      %v4682 = vpop.f32.mrf.mxu0
      %4683 = vmatprep.mubr.bf16.mxu0 0
      %4684 = vmatmul.mubr.bf16.gmra.mxu0 %v4546
      %v4685 = vpop.f32.mrf.mxu0
      %v4686 = vadd.f32 0.0, %v4685
      %v4687 = vpop.f32.mrf.mxu0
      %v4688 = vpop.f32.mrf.mxu0
      %v4689 = vadd.f32 0.0, %v4688
      %v4690 = vpop.f32.mrf.mxu0
      %4691 = vmatprep.mubr.bf16.mxu0 0
      %4692 = vmatmul.mubr.bf16.gmra.mxu0 %v4549
      %v4693 = vpop.f32.mrf.mxu0
      %v4694 = vadd.f32 0.0, %v4693
      %v4695 = vpop.f32.mrf.mxu0
      %v4696 = vpop.f32.mrf.mxu0
      %v4697 = vadd.f32 0.0, %v4696
      %v4698 = vpop.f32.mrf.mxu0
      %4699 = vmatprep.mubr.bf16.mxu0 0
      %4700 = vmatmul.mubr.bf16.gmra.mxu0 %v4552
      %v4701 = vpop.f32.mrf.mxu0
      %v4702 = vadd.f32 0.0, %v4701
      %v4703 = vpop.f32.mrf.mxu0
      %v4704 = vpop.f32.mrf.mxu0
      %v4705 = vadd.f32 0.0, %v4704
      %v4706 = vpop.f32.mrf.mxu0
      %4707 = vmatprep.mubr.bf16.mxu0 0
      %4708 = vmatmul.mubr.bf16.gmra.mxu0 %v4555
      %v4709 = vpop.f32.mrf.mxu0
      %v4710 = vadd.f32 0.0, %v4709
      %v4711 = vpop.f32.mrf.mxu0
      %v4712 = vpop.f32.mrf.mxu0
      %v4713 = vadd.f32 0.0, %v4712
      %v4714 = vpop.f32.mrf.mxu0
      %4715 = vmatprep.mubr.bf16.mxu0 0
      %4716 = vmatmul.mubr.bf16.gmra.mxu0 %v4558
      %v4717 = vpop.f32.mrf.mxu0
      %v4718 = vadd.f32 0.0, %v4717
      %v4719 = vpop.f32.mrf.mxu0
      %v4720 = vpop.f32.mrf.mxu0
      %v4721 = vadd.f32 0.0, %v4720
      %v4722 = vpop.f32.mrf.mxu0
      %4723 = vdwg.mxu0
      %v4724 = vadd.f32 %v4248, %v4598
      %v4725 = vadd.f32 %v4249, %v4601
      %v4726 = vadd.f32 %v4250, %v4606
      %v4727 = vadd.f32 %v4251, %v4609
      %v4728 = vadd.f32 %v4252, %v4614
      %v4729 = vadd.f32 %v4253, %v4617
      %v4730 = vadd.f32 %v4254, %v4622
      %v4731 = vadd.f32 %v4255, %v4625
      %v4732 = vadd.f32 %v4256, %v4630
      %v4733 = vadd.f32 %v4257, %v4633
      %v4734 = vadd.f32 %v4258, %v4638
      %v4735 = vadd.f32 %v4259, %v4641
      %v4736 = vadd.f32 %v4260, %v4646
      %v4737 = vadd.f32 %v4261, %v4649
      %v4738 = vadd.f32 %v4262, %v4654
      %v4739 = vadd.f32 %v4263, %v4657
      %v4740 = vadd.f32 %v4264, %v4662
      %v4741 = vadd.f32 %v4265, %v4665
      %v4742 = vadd.f32 %v4266, %v4670
      %v4743 = vadd.f32 %v4267, %v4673
      %v4744 = vadd.f32 %v4268, %v4678
      %v4745 = vadd.f32 %v4269, %v4681
      %v4746 = vadd.f32 %v4270, %v4686
      %v4747 = vadd.f32 %v4271, %v4689
      %v4748 = vadd.f32 %v4272, %v4694
      %v4749 = vadd.f32 %v4273, %v4697
      %v4750 = vadd.f32 %v4274, %v4702
      %v4751 = vadd.f32 %v4275, %v4705
      %v4752 = vadd.f32 %v4276, %v4710
      %v4753 = vadd.f32 %v4277, %v4713
      %v4754 = vadd.f32 %v4278, %v4718
      %v4755 = vadd.f32 %v4279, %v4721
      %vm4756 = vcmask 261120
      %v4757 = vsel %vm4756, %v4724, 0.0
      %v4758 = vsel %vm4756, %v4725, 0.0
      %v4759 = vadd.f32 %v4757, %v4758
      %v4760 = vsel %vm4756, %v4726, 0.0
      %v4761 = vadd.f32 %v4759, %v4760
      %v4762 = vsel %vm4756, %v4727, 0.0
      %v4763 = vadd.f32 %v4761, %v4762
      %v4764 = vsel %vm4756, %v4728, 0.0
      %v4765 = vadd.f32 %v4763, %v4764
      %v4766 = vsel %vm4756, %v4729, 0.0
      %v4767 = vadd.f32 %v4765, %v4766
      %v4768 = vsel %vm4756, %v4730, 0.0
      %v4769 = vadd.f32 %v4767, %v4768
      %v4770 = vsel %vm4756, %v4731, 0.0
      %v4771 = vadd.f32 %v4769, %v4770
      %v4772 = vsel %vm4756, %v4732, 0.0
      %v4773 = vadd.f32 %v4771, %v4772
      %v4774 = vsel %vm4756, %v4733, 0.0
      %v4775 = vadd.f32 %v4773, %v4774
      %v4776 = vsel %vm4756, %v4734, 0.0
      %v4777 = vadd.f32 %v4775, %v4776
      %v4778 = vsel %vm4756, %v4735, 0.0
      %v4779 = vadd.f32 %v4777, %v4778
      %v4780 = vsel %vm4756, %v4736, 0.0
      %v4781 = vadd.f32 %v4779, %v4780
      %v4782 = vsel %vm4756, %v4737, 0.0
      %v4783 = vadd.f32 %v4781, %v4782
      %v4784 = vsel %vm4756, %v4738, 0.0
      %v4785 = vadd.f32 %v4783, %v4784
      %v4786 = vsel %vm4756, %v4739, 0.0
      %v4787 = vadd.f32 %v4785, %v4786
      %v4788 = vsel %vm4756, %v4740, 0.0
      %v4789 = vadd.f32 %v4787, %v4788
      %v4790 = vsel %vm4756, %v4741, 0.0
      %v4791 = vadd.f32 %v4789, %v4790
      %v4792 = vsel %vm4756, %v4742, 0.0
      %v4793 = vadd.f32 %v4791, %v4792
      %v4794 = vsel %vm4756, %v4743, 0.0
      %v4795 = vadd.f32 %v4793, %v4794
      %v4796 = vsel %vm4756, %v4744, 0.0
      %v4797 = vadd.f32 %v4795, %v4796
      %v4798 = vsel %vm4756, %v4745, 0.0
      %v4799 = vadd.f32 %v4797, %v4798
      %v4800 = vsel %vm4756, %v4746, 0.0
      %v4801 = vadd.f32 %v4799, %v4800
      %v4802 = vsel %vm4756, %v4747, 0.0
      %v4803 = vadd.f32 %v4801, %v4802
      %v4804 = vsel %vm4756, %v4748, 0.0
      %v4805 = vadd.f32 %v4803, %v4804
      %v4806 = vsel %vm4756, %v4749, 0.0
      %v4807 = vadd.f32 %v4805, %v4806
      %v4808 = vsel %vm4756, %v4750, 0.0
      %v4809 = vadd.f32 %v4807, %v4808
      %v4810 = vsel %vm4756, %v4751, 0.0
      %v4811 = vadd.f32 %v4809, %v4810
      %v4812 = vsel %vm4756, %v4752, 0.0
      %v4813 = vadd.f32 %v4811, %v4812
      %v4814 = vsel %vm4756, %v4753, 0.0
      %v4815 = vadd.f32 %v4813, %v4814
      %v4816 = vsel %vm4756, %v4754, 0.0
      %v4817 = vadd.f32 %v4815, %v4816
      %v4818 = vsel %vm4756, %v4755, 0.0
      %v4819 = vadd.f32 %v4817, %v4818
      %v4820 = vrot.slane %v4819, 4
      %v4821 = vadd.f32 %v4819, %v4820
      %v4822 = vrot.slane %v4821, 2
      %v4823 = vadd.f32 %v4821, %v4822
      %v4824 = vrot.slane %v4823, 1
      %v4825 = vadd.f32 %v4823, %v4824
      %vm4826 = vcmask 253952
      %4827 = vst.msk [vmem:[%s141] sm:$0x1] %vm4826, %v4825
      %v4828 = vmul.f32 %v4724, %v4724
      %v4829 = vmul.f32 %v4725, %v4725
      %v4830 = vmul.f32 %v4726, %v4726
      %v4831 = vmul.f32 %v4727, %v4727
      %v4832 = vmul.f32 %v4728, %v4728
      %v4833 = vmul.f32 %v4729, %v4729
      %v4834 = vmul.f32 %v4730, %v4730
      %v4835 = vmul.f32 %v4731, %v4731
      %v4836 = vmul.f32 %v4732, %v4732
      %v4837 = vmul.f32 %v4733, %v4733
      %v4838 = vmul.f32 %v4734, %v4734
      %v4839 = vmul.f32 %v4735, %v4735
      %v4840 = vmul.f32 %v4736, %v4736
      %v4841 = vmul.f32 %v4737, %v4737
      %v4842 = vmul.f32 %v4738, %v4738
      %v4843 = vmul.f32 %v4739, %v4739
      %v4844 = vmul.f32 %v4740, %v4740
      %v4845 = vmul.f32 %v4741, %v4741
      %v4846 = vmul.f32 %v4742, %v4742
      %v4847 = vmul.f32 %v4743, %v4743
      %v4848 = vmul.f32 %v4744, %v4744
      %v4849 = vmul.f32 %v4745, %v4745
      %v4850 = vmul.f32 %v4746, %v4746
      %v4851 = vmul.f32 %v4747, %v4747
      %v4852 = vmul.f32 %v4748, %v4748
      %v4853 = vmul.f32 %v4749, %v4749
      %v4854 = vmul.f32 %v4750, %v4750
      %v4855 = vmul.f32 %v4751, %v4751
      %v4856 = vmul.f32 %v4752, %v4752
      %v4857 = vmul.f32 %v4753, %v4753
      %v4858 = vmul.f32 %v4754, %v4754
      %v4859 = vmul.f32 %v4755, %v4755
      %v4860 = vsel %vm4756, %v4828, 0.0
      %v4861 = vsel %vm4756, %v4829, 0.0
      %v4862 = vadd.f32 %v4860, %v4861
      %v4863 = vsel %vm4756, %v4830, 0.0
      %v4864 = vadd.f32 %v4862, %v4863
      %v4865 = vsel %vm4756, %v4831, 0.0
      %v4866 = vadd.f32 %v4864, %v4865
      %v4867 = vsel %vm4756, %v4832, 0.0
      %v4868 = vadd.f32 %v4866, %v4867
      %v4869 = vsel %vm4756, %v4833, 0.0
      %v4870 = vadd.f32 %v4868, %v4869
      %v4871 = vsel %vm4756, %v4834, 0.0
      %v4872 = vadd.f32 %v4870, %v4871
      %v4873 = vsel %vm4756, %v4835, 0.0
      %v4874 = vadd.f32 %v4872, %v4873
      %v4875 = vsel %vm4756, %v4836, 0.0
      %v4876 = vadd.f32 %v4874, %v4875
      %v4877 = vsel %vm4756, %v4837, 0.0
      %v4878 = vadd.f32 %v4876, %v4877
      %v4879 = vsel %vm4756, %v4838, 0.0
      %v4880 = vadd.f32 %v4878, %v4879
      %v4881 = vsel %vm4756, %v4839, 0.0
      %v4882 = vadd.f32 %v4880, %v4881
      %v4883 = vsel %vm4756, %v4840, 0.0
      %v4884 = vadd.f32 %v4882, %v4883
      %v4885 = vsel %vm4756, %v4841, 0.0
      %v4886 = vadd.f32 %v4884, %v4885
      %v4887 = vsel %vm4756, %v4842, 0.0
      %v4888 = vadd.f32 %v4886, %v4887
      %v4889 = vsel %vm4756, %v4843, 0.0
      %v4890 = vadd.f32 %v4888, %v4889
      %v4891 = vsel %vm4756, %v4844, 0.0
      %v4892 = vadd.f32 %v4890, %v4891
      %v4893 = vsel %vm4756, %v4845, 0.0
      %v4894 = vadd.f32 %v4892, %v4893
      %v4895 = vsel %vm4756, %v4846, 0.0
      %v4896 = vadd.f32 %v4894, %v4895
      %v4897 = vsel %vm4756, %v4847, 0.0
      %v4898 = vadd.f32 %v4896, %v4897
      %v4899 = vsel %vm4756, %v4848, 0.0
      %v4900 = vadd.f32 %v4898, %v4899
      %v4901 = vsel %vm4756, %v4849, 0.0
      %v4902 = vadd.f32 %v4900, %v4901
      %v4903 = vsel %vm4756, %v4850, 0.0
      %v4904 = vadd.f32 %v4902, %v4903
      %v4905 = vsel %vm4756, %v4851, 0.0
      %v4906 = vadd.f32 %v4904, %v4905
      %v4907 = vsel %vm4756, %v4852, 0.0
      %v4908 = vadd.f32 %v4906, %v4907
      %v4909 = vsel %vm4756, %v4853, 0.0
      %v4910 = vadd.f32 %v4908, %v4909
      %v4911 = vsel %vm4756, %v4854, 0.0
      %v4912 = vadd.f32 %v4910, %v4911
      %v4913 = vsel %vm4756, %v4855, 0.0
      %v4914 = vadd.f32 %v4912, %v4913
      %v4915 = vsel %vm4756, %v4856, 0.0
      %v4916 = vadd.f32 %v4914, %v4915
      %v4917 = vsel %vm4756, %v4857, 0.0
      %v4918 = vadd.f32 %v4916, %v4917
      %v4919 = vsel %vm4756, %v4858, 0.0
      %v4920 = vadd.f32 %v4918, %v4919
      %v4921 = vsel %vm4756, %v4859, 0.0
      %v4922 = vadd.f32 %v4920, %v4921
      %v4923 = vrot.slane %v4922, 4
      %v4924 = vadd.f32 %v4922, %v4923
      %v4925 = vrot.slane %v4924, 2
      %v4926 = vadd.f32 %v4924, %v4925
      %v4927 = vrot.slane %v4926, 1
      %v4928 = vadd.f32 %v4926, %v4927
      %4929 = vst.msk [vmem:[%s141 + $0x1] sm:$0x1] %vm4826, %v4928
      %p4930 = scmp.lt.s32.totalorder %s13, 1
      %s4931 = scalar_select %p4930, %s13, 1
      %s4932 = smul.addr %s4931, 2
      %s4933 = scalar_lea.vmem %s2, %s4932
      // Predicated region
      $region29: #{convgate_forward.2} parent=27 // pred_check
        %p4934 = pneg %p78
      $region30: #{convgate_forward.2} parent=27 // pred_check_branch
        %4936 = sbr.rel (%p4934) target = $region32
      $region31: #{convgate_forward.2} parent=27 // pred_region
        _
      $region32: #{convgate_forward.2} parent=27 // pred_fallthru
        _
    $region28: #{convgate_forward.2} parent=5 // pred_fallthru
      _
    %p4937 = scmp.le.s32.totalorder 2, %s8
    // Predicated region
    $region33: #{convgate_forward.2} parent=5 // pred_check
      %p4938 = pneg %p4937
    $region34: #{convgate_forward.2} parent=5 // pred_check_branch
      %4940 = sbr.rel (%p4938) target = $region36
    $region35: #{convgate_forward.2} parent=5 // pred_region
      %s4941 = ssub.s32 %s8, 2
      // Predicated region
      $region37: #{convgate_forward.2} parent=35 // pred_check
        %p4942 = pneg %p84
      $region38: #{convgate_forward.2} parent=35 // pred_check_branch
        %4944 = sbr.rel (%p4942) target = $region40
      $region39: #{convgate_forward.2} parent=35 // pred_region
        %p4945 = scmp.lt.s32.totalorder %s14, 1
        %s4946 = scalar_select %p4945, %s14, 1
        %s4947 = smul.addr %s4946, 2
        %s4948 = scalar_lea.vmem %s2, %s4947
      $region40: #{convgate_forward.2} parent=35 // pred_fallthru
        _
    $region36: #{convgate_forward.2} parent=5 // pred_fallthru
      _
  $region6: #{convgate_forward.2} parent=0 // loop_footer
    %s12 = sadd.s32 1, %s8
  $region7: #{convgate_forward.2} parent=0 // loop_footer_branch
    %7 = sbr.rel target = $region3
  $region8: #{convgate_forward.2} parent=0 // loop_exit
    _

// kernel: convgate_forward.3
$region0: #{convgate_forward.3}
  #allocation0 [shape = 'u32[]', space=smem, size = 0x4, offset = 0x4, fixed_abs, tag = 'smem constant byte address 0x4 - core index']
  #allocation1 [shape = 'u32[144,128]{1,0:T(1,128)}', space=vmem, size = 0x12000, scoped, tag = 'internal scratch']
  %s0 = inlined_call_operand.vmem [shape: bf16[2,18,18,12], index: 0, kind: input, shape index: {}]
  %s1 = inlined_call_operand.vmem [shape: bf16[9,12,32], index: 1, kind: input, shape index: {}]
  %s2 = inlined_call_operand.vmem [shape: f32[1,32], index: 2, kind: input, shape index: {}]
  %s3 = inlined_call_operand.vmem [shape: f32[1,32], index: 3, kind: input, shape index: {}]
  %s4 = inlined_call_operand.hbm [shape: f32[2,256,32], index: 4, kind: output, shape index: {}]
  %s5 = sld [smem:[#allocation0]]
  $region49: #{convgate_forward.3} parent=0
    _
  %s7 = ssub.s32 1, %s5
  %s8 = scalar_select 0, %s7, %s5
  $region1: #{convgate_forward.3} parent=0
    #allocation2 [shape = 'u8[262144]{0}', space=vmem, size = 0x40000, scoped, tag = 'output window, operand 0']
    #allocation3 [shape = 's32[2]{0}', space=sflag, size = 0x8, scoped, tag = 'scoped memory for convgate_forward.3']
    %9 = vsyncpa [#allocation3], 0
    %s10 = scalar_lea.sflag [#allocation3], 1
    %11 = vsyncpa %s10, 0
    loop: start=0, step=1, limit=4
    $region2: #{convgate_forward.3} parent=1 // loop_pre_header
      _
    $region3: #{convgate_forward.3} parent=1 // loop_header
      %s13 = sphi 0, %s17
      %p14 = scmp.ge.s32.totalorder %s13, 4
      %s23 = sphi 0, %s25
      %s26 = sphi 0, %s23
      %s27 = sphi 0, %s26
      %s43 = sphi 0, %s27
      %s47 = sphi 0, %s47
      %s49 = sphi 0, %s47
      %s50 = sphi 0, %s49
      %s64 = sphi 0, %s50
      %s68 = sphi 0, %s68
      %s70 = sphi 0, %s68
      %s71 = sphi 0, %s70
      %s85 = sphi 0, %s71
      %s89 = sphi 0, %s89
      %s91 = sphi 0, %s89
      %s92 = sphi 0, %s91
      %s106 = sphi 0, %s92
      %s112 = sphi 0, %s114
      %s115 = sphi 0, %s112
      %s116 = sphi 0, %s115
      %s132 = sphi 0, %s116
    $region4: #{convgate_forward.3} parent=1 // loop_header_branch
      %16 = sbr.rel (%p14) target = $region8
    $region5: #{convgate_forward.3} parent=1 // loop_body
      %s18 = ssub.s32 %s13, 1
      %s19 = ssub.s32 %s13, 2
      %s20 = sadd.s32 %s13, 1
      %s21 = ssub.s32 %s13, %s20
      %p22 = scmp.eq.s32.totalorder %s21, 0
      %s24 = sadd.s32 %s23, 1
      %s25 = scalar_select %p22, %s23, %s24
      %p28 = pneg %p22
      %p29 = scmp.eq.s32.totalorder %s13, 1
      %p30 = por %p28, %p29
      %p31 = scmp.ne.s32.totalorder %s23, %s26
      %p32 = scmp.eq.s32.totalorder %s13, 0
      %p33 = por %p31, %p32
      %p34 = scmp.ne.s32.totalorder %s23, %s26
      %p35 = scmp.eq.s32.totalorder %s18, 1
      %p36 = por %p34, %p35
      %p37 = scmp.ne.s32.totalorder %s26, %s27
      %p38 = scmp.eq.s32.totalorder %s18, 0
      %p39 = por %p37, %p38
      %p40 = scmp.ne.s32.totalorder %s26, %s27
      %p41 = scmp.eq.s32.totalorder %s19, 1
      %p42 = por %p40, %p41
      %p44 = scmp.ne.s32.totalorder %s27, %s43
      %p45 = scmp.eq.s32.totalorder %s19, 0
      %p46 = por %p44, %p45
      %s48 = sadd.s32 %s47, 1
      %p51 = scmp.eq.s32.totalorder %s13, 1
      %p52 = scmp.ne.s32.totalorder %s47, %s49
      %p53 = scmp.eq.s32.totalorder %s13, 0
      %p54 = por %p52, %p53
      %p55 = scmp.ne.s32.totalorder %s47, %s49
      %p56 = scmp.eq.s32.totalorder %s18, 1
      %p57 = por %p55, %p56
      %p58 = scmp.ne.s32.totalorder %s49, %s50
      %p59 = scmp.eq.s32.totalorder %s18, 0
      %p60 = por %p58, %p59
      %p61 = scmp.ne.s32.totalorder %s49, %s50
      %p62 = scmp.eq.s32.totalorder %s19, 1
      %p63 = por %p61, %p62
      %p65 = scmp.ne.s32.totalorder %s50, %s64
      %p66 = scmp.eq.s32.totalorder %s19, 0
      %p67 = por %p65, %p66
      %s69 = sadd.s32 %s68, 1
      %p72 = scmp.eq.s32.totalorder %s13, 1
      %p73 = scmp.ne.s32.totalorder %s68, %s70
      %p74 = scmp.eq.s32.totalorder %s13, 0
      %p75 = por %p73, %p74
      %p76 = scmp.ne.s32.totalorder %s68, %s70
      %p77 = scmp.eq.s32.totalorder %s18, 1
      %p78 = por %p76, %p77
      %p79 = scmp.ne.s32.totalorder %s70, %s71
      %p80 = scmp.eq.s32.totalorder %s18, 0
      %p81 = por %p79, %p80
      %p82 = scmp.ne.s32.totalorder %s70, %s71
      %p83 = scmp.eq.s32.totalorder %s19, 1
      %p84 = por %p82, %p83
      %p86 = scmp.ne.s32.totalorder %s71, %s85
      %p87 = scmp.eq.s32.totalorder %s19, 0
      %p88 = por %p86, %p87
      %s90 = sadd.s32 %s89, 1
      %p93 = scmp.eq.s32.totalorder %s13, 1
      %p94 = scmp.ne.s32.totalorder %s89, %s91
      %p95 = scmp.eq.s32.totalorder %s13, 0
      %p96 = por %p94, %p95
      %p97 = scmp.ne.s32.totalorder %s89, %s91
      %p98 = scmp.eq.s32.totalorder %s18, 1
      %p99 = por %p97, %p98
      %p100 = scmp.ne.s32.totalorder %s91, %s92
      %p101 = scmp.eq.s32.totalorder %s18, 0
      %p102 = por %p100, %p101
      %p103 = scmp.ne.s32.totalorder %s91, %s92
      %p104 = scmp.eq.s32.totalorder %s19, 1
      %p105 = por %p103, %p104
      %p107 = scmp.ne.s32.totalorder %s92, %s106
      %p108 = scmp.eq.s32.totalorder %s19, 0
      %p109 = por %p107, %p108
      %s110 = ssub.s32 %s13, %s20
      %p111 = scmp.eq.s32.totalorder %s110, 0
      %s113 = sadd.s32 %s112, 1
      %s114 = scalar_select %p111, %s112, %s113
      %p117 = pneg %p111
      %p118 = scmp.eq.s32.totalorder %s13, 1
      %p119 = por %p117, %p118
      %p120 = scmp.ne.s32.totalorder %s112, %s115
      %p121 = scmp.eq.s32.totalorder %s13, 0
      %p122 = por %p120, %p121
      %p123 = scmp.ne.s32.totalorder %s112, %s115
      %p124 = scmp.eq.s32.totalorder %s18, 1
      %p125 = por %p123, %p124
      %p126 = scmp.ne.s32.totalorder %s115, %s116
      %p127 = scmp.eq.s32.totalorder %s18, 0
      %p128 = por %p126, %p127
      %p129 = scmp.ne.s32.totalorder %s115, %s116
      %p130 = scmp.eq.s32.totalorder %s19, 1
      %p131 = por %p129, %p130
      %p133 = scmp.ne.s32.totalorder %s116, %s132
      %p134 = scmp.eq.s32.totalorder %s19, 0
      %p135 = por %p133, %p134
      %p136 = scmp.le.s32.totalorder 1, %s13
      %p137 = scmp.lt.s32.totalorder %s13, 3
      %p138 = pnand %p136, %p137
      %p139 = pneg %p138
      // Predicated region
      $region9: #{convgate_forward.3} parent=5 // pred_check
        _
      $region10: #{convgate_forward.3} parent=5 // pred_check_branch
        %141 = sbr.rel (%p138) target = $region12
      $region11: #{convgate_forward.3} parent=5 // pred_region
        %s142 = ssub.s32 %s13, 1
        // Predicated region
        $region13: #{convgate_forward.3} parent=11 // pred_check
          %p143 = pneg %p60
        $region14: #{convgate_forward.3} parent=11 // pred_check_branch
          %145 = sbr.rel (%p143) target = $region16
        $region15: #{convgate_forward.3} parent=11 // pred_region
          _
        $region16: #{convgate_forward.3} parent=11 // pred_fallthru
          _
        // Predicated region
        $region17: #{convgate_forward.3} parent=11 // pred_check
          %p146 = pneg %p81
        $region18: #{convgate_forward.3} parent=11 // pred_check_branch
          %148 = sbr.rel (%p146) target = $region20
        $region19: #{convgate_forward.3} parent=11 // pred_region
          _
        $region20: #{convgate_forward.3} parent=11 // pred_fallthru
          _
        // Predicated region
        $region21: #{convgate_forward.3} parent=11 // pred_check
          %p149 = pneg %p102
        $region22: #{convgate_forward.3} parent=11 // pred_check_branch
          %151 = sbr.rel (%p149) target = $region24
        $region23: #{convgate_forward.3} parent=11 // pred_region
          _
        $region24: #{convgate_forward.3} parent=11 // pred_fallthru
          _
      $region12: #{convgate_forward.3} parent=5 // pred_fallthru
        _
      %p152 = scmp.lt.s32.totalorder %s13, 2
      // Predicated region
      $region25: #{convgate_forward.3} parent=5 // pred_check
        %p153 = pneg %p152
      $region26: #{convgate_forward.3} parent=5 // pred_check_branch
        %155 = sbr.rel (%p153) target = $region28
      $region27: #{convgate_forward.3} parent=5 // pred_region
        // Predicated region
        $region29: #{convgate_forward.3} parent=27 // pred_check
          %p156 = pneg %p33
        $region30: #{convgate_forward.3} parent=27 // pred_check_branch
          %158 = sbr.rel (%p156) target = $region32
        $region31: #{convgate_forward.3} parent=27 // pred_region
          %p159 = scmp.lt.s32.totalorder %s13, 1
          %s160 = scalar_select %p159, %s13, 1
          %s161 = smul.addr %s160, 54
          %s162 = smul.addr %s161, 4
          %s163 = scalar_lea.vmem %s0, %s162
        $region32: #{convgate_forward.3} parent=27 // pred_fallthru
          _
      $region28: #{convgate_forward.3} parent=5 // pred_fallthru
        _
      %p164 = scmp.le.s32.totalorder 1, %s13
      %p165 = scmp.lt.s32.totalorder %s13, 3
      %p166 = pnand %p164, %p165
      %p167 = pneg %p166
      // Predicated region
      $region33: #{convgate_forward.3} parent=5 // pred_check
        _
      $region34: #{convgate_forward.3} parent=5 // pred_check_branch
        %169 = sbr.rel (%p166) target = $region36
      $region35: #{convgate_forward.3} parent=5 // pred_region
        %s170 = ssub.s32 %s13, 1
        %p171 = scmp.lt.s32.totalorder %s18, 1
        %s172 = scalar_select %p171, %s18, 1
        %s173 = smul.addr %s172, 54
        %s174 = smul.addr %s173, 4
        %s175 = scalar_lea.vmem %s0, %s174
        %p176 = pneg %p39
        %p177 = pneg %p36
        %p178 = pneg %p60
        %p179 = pneg %p57
        %p180 = pneg %p81
        %p181 = pneg %p78
        %p182 = pneg %p102
        %p183 = pneg %p99
        %p184 = pneg %p128
        %p185 = pneg %p125
        %s186 = sand.u32 %s115, 1
        %s187 = scalar_lea.sflag [#allocation3], %s186
        %s188 = sand.u32 %s115, 1
        %s189 = smul.addr %s188, 256
        %s190 = scalar_lea.vmem [#allocation2], %s189
        %p191 = scmp.lt.s32.totalorder %s18, 1
        %s192 = scalar_select %p191, %s18, 1
        %s193 = smul.addr %s192, 54
        %s194 = smul.addr %s193, 4
        %s195 = scalar_lea.vmem %s0, %s194
        %v197 = vld [vmem:[%s195] sm:$0xf]
        %v198 = vld [vmem:[%s195 + $0x4] sm:$0xf]
        %v199 = vld [vmem:[%s195 + $0xc] sm:$0xf]
        %v200 = vld [vmem:[%s195 + $0x10] sm:$0xf]
        %v201 = vld [vmem:[%s195 + $0x18] sm:$0xf]
        %v202 = vld [vmem:[%s195 + $0x1c] sm:$0xf]
        %v203 = vld [vmem:[%s195 + $0x24] sm:$0xf]
        %v204 = vld [vmem:[%s195 + $0x28] sm:$0xf]
        %v205 = vld [vmem:[%s195 + $0x30] sm:$0xf]
        %v206 = vld [vmem:[%s195 + $0x34] sm:$0xf]
        %v207 = vld [vmem:[%s195 + $0x3c] sm:$0xf]
        %v208 = vld [vmem:[%s195 + $0x40] sm:$0xf]
        %v209 = vld [vmem:[%s195 + $0x48] sm:$0xf]
        %v210 = vld [vmem:[%s195 + $0x4c] sm:$0xf]
        %v211 = vld [vmem:[%s195 + $0x54] sm:$0xf]
        %v212 = vld [vmem:[%s195 + $0x58] sm:$0xf]
        %v213 = vld [vmem:[%s195 + $0x60] sm:$0xf]
        %v214 = vld [vmem:[%s195 + $0x64] sm:$0xf]
        %v215 = vld [vmem:[%s195 + $0x6c] sm:$0xf]
        %v216 = vld [vmem:[%s195 + $0x70] sm:$0xf]
        %v217 = vld [vmem:[%s195 + $0x78] sm:$0xf]
        %v218 = vld [vmem:[%s195 + $0x7c] sm:$0xf]
        %v219 = vld [vmem:[%s195 + $0x84] sm:$0xf]
        %v220 = vld [vmem:[%s195 + $0x88] sm:$0xf]
        %v221 = vld [vmem:[%s195 + $0x90] sm:$0xf]
        %v222 = vld [vmem:[%s195 + $0x94] sm:$0xf]
        %v223 = vld [vmem:[%s195 + $0x9c] sm:$0xf]
        %v224 = vld [vmem:[%s195 + $0xa0] sm:$0xf]
        %v225 = vld [vmem:[%s195 + $0xa8] sm:$0xf]
        %v226 = vld [vmem:[%s195 + $0xac] sm:$0xf]
        %v227 = vld [vmem:[%s195 + $0xb4] sm:$0xf]
        %v228 = vld [vmem:[%s195 + $0xb8] sm:$0xf]
        %v229 = vld [vmem:[%s1] sm:$0xf]
        %v230 = vld [vmem:[%s1 + $0x4] sm:$0x3]
        %v231 = vld [vmem:[%s195 + $0x8] sm:$0x1]
        %v232 = vld [vmem:[%s195 + $0x14] sm:$0x1]
        %v233 = vld [vmem:[%s195 + $0x20] sm:$0x1]
        %v234 = vld [vmem:[%s195 + $0x2c] sm:$0x1]
        %v235 = vld [vmem:[%s195 + $0x38] sm:$0x1]
        %v236 = vld [vmem:[%s195 + $0x44] sm:$0x1]
        %v237 = vld [vmem:[%s195 + $0x50] sm:$0x1]
        %v238 = vld [vmem:[%s195 + $0x5c] sm:$0x1]
        %v239 = vld [vmem:[%s195 + $0x68] sm:$0x1]
        %v240 = vld [vmem:[%s195 + $0x74] sm:$0x1]
        %v241 = vld [vmem:[%s195 + $0x80] sm:$0x1]
        %v242 = vld [vmem:[%s195 + $0x8c] sm:$0x1]
        %v243 = vld [vmem:[%s195 + $0x98] sm:$0x1]
        %v244 = vld [vmem:[%s195 + $0xa4] sm:$0x1]
        %v245 = vld [vmem:[%s195 + $0xb0] sm:$0x1]
        %v246 = vld [vmem:[%s195 + $0xbc] sm:$0x1]
        %vm247 = vsmask.f32 3328
        %vm248 = vsmask.f32 7440
        %vm249 = vmor %vm247, %vm248
        %v251 = vshrl.u32 %v197, 16
        %v253 = vrot.slane %v251, 4
        %v254 = vshll.u32 %v197, 16
        %v256 = vrot.slane %v254, 5
        %v257 = vor.u32 %v253, %v256
        %v258 = vrot.slane %v257, 4
        %v260 = vshll.u32 %v198, 16
        %v262 = vrot.slane %v260, 5
        %v263 = vsel %vm249, %v258, %v262
        %v264 = vshrl.u32 %v198, 16
        %v266 = vrot.slane %v264, 4
        %v267 = vor.u32 %v266, %v262
        %v268 = vrot.slane %v267, 4
        %v270 = vshll.u32 %v231, 16
        %v272 = vrot.slane %v270, 5
        %v273 = vsel %vm249, %v268, %v272
        %v275 = vshrl.u32 %v199, 16
        %v277 = vrot.slane %v275, 4
        %v278 = vshll.u32 %v199, 16
        %v280 = vrot.slane %v278, 5
        %v281 = vor.u32 %v277, %v280
        %v282 = vrot.slane %v281, 4
        %v284 = vshll.u32 %v200, 16
        %v286 = vrot.slane %v284, 5
        %v287 = vsel %vm249, %v282, %v286
        %v288 = vshrl.u32 %v200, 16
        %v290 = vrot.slane %v288, 4
        %v291 = vor.u32 %v290, %v286
        %v292 = vrot.slane %v291, 4
        %v294 = vshll.u32 %v232, 16
        %v296 = vrot.slane %v294, 5
        %v297 = vsel %vm249, %v292, %v296
        %v299 = vshrl.u32 %v201, 16
        %v301 = vrot.slane %v299, 4
        %v302 = vshll.u32 %v201, 16
        %v304 = vrot.slane %v302, 5
        %v305 = vor.u32 %v301, %v304
        %v306 = vrot.slane %v305, 4
        %v308 = vshll.u32 %v202, 16
        %v310 = vrot.slane %v308, 5
        %v311 = vsel %vm249, %v306, %v310
        %v312 = vshrl.u32 %v202, 16
        %v314 = vrot.slane %v312, 4
        %v315 = vor.u32 %v314, %v310
        %v316 = vrot.slane %v315, 4
        %v318 = vshll.u32 %v233, 16
        %v320 = vrot.slane %v318, 5
        %v321 = vsel %vm249, %v316, %v320
        %v323 = vshrl.u32 %v203, 16
        %v325 = vrot.slane %v323, 4
        %v326 = vshll.u32 %v203, 16
        %v328 = vrot.slane %v326, 5
        %v329 = vor.u32 %v325, %v328
        %v330 = vrot.slane %v329, 4
        %v332 = vshll.u32 %v204, 16
        %v334 = vrot.slane %v332, 5
        %v335 = vsel %vm249, %v330, %v334
        %v336 = vshrl.u32 %v204, 16
        %v338 = vrot.slane %v336, 4
        %v339 = vor.u32 %v338, %v334
        %v340 = vrot.slane %v339, 4
        %v342 = vshll.u32 %v234, 16
        %v344 = vrot.slane %v342, 5
        %v345 = vsel %vm249, %v340, %v344
        %v347 = vshrl.u32 %v205, 16
        %v349 = vrot.slane %v347, 4
        %v350 = vshll.u32 %v205, 16
        %v352 = vrot.slane %v350, 5
        %v353 = vor.u32 %v349, %v352
        %v354 = vrot.slane %v353, 4
        %v356 = vshll.u32 %v206, 16
        %v358 = vrot.slane %v356, 5
        %v359 = vsel %vm249, %v354, %v358
        %v360 = vshrl.u32 %v206, 16
        %v362 = vrot.slane %v360, 4
        %v363 = vor.u32 %v362, %v358
        %v364 = vrot.slane %v363, 4
        %v366 = vshll.u32 %v235, 16
        %v368 = vrot.slane %v366, 5
        %v369 = vsel %vm249, %v364, %v368
        %v371 = vshrl.u32 %v207, 16
        %v373 = vrot.slane %v371, 4
        %v374 = vshll.u32 %v207, 16
        %v376 = vrot.slane %v374, 5
        %v377 = vor.u32 %v373, %v376
        %v378 = vrot.slane %v377, 4
        %v380 = vshll.u32 %v208, 16
        %v382 = vrot.slane %v380, 5
        %v383 = vsel %vm249, %v378, %v382
        %v384 = vshrl.u32 %v208, 16
        %v386 = vrot.slane %v384, 4
        %v387 = vor.u32 %v386, %v382
        %v388 = vrot.slane %v387, 4
        %v390 = vshll.u32 %v236, 16
        %v392 = vrot.slane %v390, 5
        %v393 = vsel %vm249, %v388, %v392
        %v395 = vshrl.u32 %v209, 16
        %v397 = vrot.slane %v395, 4
        %v398 = vshll.u32 %v209, 16
        %v400 = vrot.slane %v398, 5
        %v401 = vor.u32 %v397, %v400
        %v402 = vrot.slane %v401, 4
        %v404 = vshll.u32 %v210, 16
        %v406 = vrot.slane %v404, 5
        %v407 = vsel %vm249, %v402, %v406
        %v408 = vshrl.u32 %v210, 16
        %v410 = vrot.slane %v408, 4
        %v411 = vor.u32 %v410, %v406
        %v412 = vrot.slane %v411, 4
        %v414 = vshll.u32 %v237, 16
        %v416 = vrot.slane %v414, 5
        %v417 = vsel %vm249, %v412, %v416
        %v419 = vshrl.u32 %v211, 16
        %v421 = vrot.slane %v419, 4
        %v422 = vshll.u32 %v211, 16
        %v424 = vrot.slane %v422, 5
        %v425 = vor.u32 %v421, %v424
        %v426 = vrot.slane %v425, 4
        %v428 = vshll.u32 %v212, 16
        %v430 = vrot.slane %v428, 5
        %v431 = vsel %vm249, %v426, %v430
        %v432 = vshrl.u32 %v212, 16
        %v434 = vrot.slane %v432, 4
        %v435 = vor.u32 %v434, %v430
        %v436 = vrot.slane %v435, 4
        %v438 = vshll.u32 %v238, 16
        %v440 = vrot.slane %v438, 5
        %v441 = vsel %vm249, %v436, %v440
        %v443 = vshrl.u32 %v213, 16
        %v445 = vrot.slane %v443, 4
        %v446 = vshll.u32 %v213, 16
        %v448 = vrot.slane %v446, 5
        %v449 = vor.u32 %v445, %v448
        %v450 = vrot.slane %v449, 4
        %v452 = vshll.u32 %v214, 16
        %v454 = vrot.slane %v452, 5
        %v455 = vsel %vm249, %v450, %v454
        %v456 = vshrl.u32 %v214, 16
        %v458 = vrot.slane %v456, 4
        %v459 = vor.u32 %v458, %v454
        %v460 = vrot.slane %v459, 4
        %v462 = vshll.u32 %v239, 16
        %v464 = vrot.slane %v462, 5
        %v465 = vsel %vm249, %v460, %v464
        %v467 = vshrl.u32 %v215, 16
        %v469 = vrot.slane %v467, 4
        %v470 = vshll.u32 %v215, 16
        %v472 = vrot.slane %v470, 5
        %v473 = vor.u32 %v469, %v472
        %v474 = vrot.slane %v473, 4
        %v476 = vshll.u32 %v216, 16
        %v478 = vrot.slane %v476, 5
        %v479 = vsel %vm249, %v474, %v478
        %v480 = vshrl.u32 %v216, 16
        %v482 = vrot.slane %v480, 4
        %v483 = vor.u32 %v482, %v478
        %v484 = vrot.slane %v483, 4
        %v486 = vshll.u32 %v240, 16
        %v488 = vrot.slane %v486, 5
        %v489 = vsel %vm249, %v484, %v488
        %v491 = vshrl.u32 %v217, 16
        %v493 = vrot.slane %v491, 4
        %v494 = vshll.u32 %v217, 16
        %v496 = vrot.slane %v494, 5
        %v497 = vor.u32 %v493, %v496
        %v498 = vrot.slane %v497, 4
        %v500 = vshll.u32 %v218, 16
        %v502 = vrot.slane %v500, 5
        %v503 = vsel %vm249, %v498, %v502
        %v504 = vshrl.u32 %v218, 16
        %v506 = vrot.slane %v504, 4
        %v507 = vor.u32 %v506, %v502
        %v508 = vrot.slane %v507, 4
        %v510 = vshll.u32 %v241, 16
        %v512 = vrot.slane %v510, 5
        %v513 = vsel %vm249, %v508, %v512
        %v515 = vshrl.u32 %v219, 16
        %v517 = vrot.slane %v515, 4
        %v518 = vshll.u32 %v219, 16
        %v520 = vrot.slane %v518, 5
        %v521 = vor.u32 %v517, %v520
        %v522 = vrot.slane %v521, 4
        %v524 = vshll.u32 %v220, 16
        %v526 = vrot.slane %v524, 5
        %v527 = vsel %vm249, %v522, %v526
        %v528 = vshrl.u32 %v220, 16
        %v530 = vrot.slane %v528, 4
        %v531 = vor.u32 %v530, %v526
        %v532 = vrot.slane %v531, 4
        %v534 = vshll.u32 %v242, 16
        %v536 = vrot.slane %v534, 5
        %v537 = vsel %vm249, %v532, %v536
        %v539 = vshrl.u32 %v221, 16
        %v541 = vrot.slane %v539, 4
        %v542 = vshll.u32 %v221, 16
        %v544 = vrot.slane %v542, 5
        %v545 = vor.u32 %v541, %v544
        %v546 = vrot.slane %v545, 4
        %v548 = vshll.u32 %v222, 16
        %v550 = vrot.slane %v548, 5
        %v551 = vsel %vm249, %v546, %v550
        %v552 = vshrl.u32 %v222, 16
        %v554 = vrot.slane %v552, 4
        %v555 = vor.u32 %v554, %v550
        %v556 = vrot.slane %v555, 4
        %v558 = vshll.u32 %v243, 16
        %v560 = vrot.slane %v558, 5
        %v561 = vsel %vm249, %v556, %v560
        %v563 = vshrl.u32 %v223, 16
        %v565 = vrot.slane %v563, 4
        %v566 = vshll.u32 %v223, 16
        %v568 = vrot.slane %v566, 5
        %v569 = vor.u32 %v565, %v568
        %v570 = vrot.slane %v569, 4
        %v572 = vshll.u32 %v224, 16
        %v574 = vrot.slane %v572, 5
        %v575 = vsel %vm249, %v570, %v574
        %v576 = vshrl.u32 %v224, 16
        %v578 = vrot.slane %v576, 4
        %v579 = vor.u32 %v578, %v574
        %v580 = vrot.slane %v579, 4
        %v582 = vshll.u32 %v244, 16
        %v584 = vrot.slane %v582, 5
        %v585 = vsel %vm249, %v580, %v584
        %v587 = vshrl.u32 %v225, 16
        %v589 = vrot.slane %v587, 4
        %v590 = vshll.u32 %v225, 16
        %v592 = vrot.slane %v590, 5
        %v593 = vor.u32 %v589, %v592
        %v594 = vrot.slane %v593, 4
        %v596 = vshll.u32 %v226, 16
        %v598 = vrot.slane %v596, 5
        %v599 = vsel %vm249, %v594, %v598
        %v600 = vshrl.u32 %v226, 16
        %v602 = vrot.slane %v600, 4
        %v603 = vor.u32 %v602, %v598
        %v604 = vrot.slane %v603, 4
        %v606 = vshll.u32 %v245, 16
        %v608 = vrot.slane %v606, 5
        %v609 = vsel %vm249, %v604, %v608
        %v611 = vshrl.u32 %v227, 16
        %v613 = vrot.slane %v611, 4
        %v614 = vshll.u32 %v227, 16
        %v616 = vrot.slane %v614, 5
        %v617 = vor.u32 %v613, %v616
        %v618 = vrot.slane %v617, 4
        %v620 = vshll.u32 %v228, 16
        %v622 = vrot.slane %v620, 5
        %v623 = vsel %vm249, %v618, %v622
        %v624 = vshrl.u32 %v228, 16
        %v626 = vrot.slane %v624, 4
        %v627 = vor.u32 %v626, %v622
        %v628 = vrot.slane %v627, 4
        %v630 = vshll.u32 %v246, 16
        %v632 = vrot.slane %v630, 5
        %v633 = vsel %vm249, %v628, %v632
        %s634 = scalar_lea.vmem %s1, 8
        %v635 = vld [vmem:[%s634] sm:$0xf]
        %v636 = vld [vmem:[%s634 + $0x4] sm:$0x3]
        %v637 = vunpack.c.l.b16 %v263
        %v638 = vunpack.c.l.b16 %v273
        %v639 = vunpack.c.l.b16 %v287
        %v640 = vunpack.c.l.b16 %v297
        %v641 = vunpack.c.l.b16 %v311
        %v642 = vunpack.c.l.b16 %v321
        %v643 = vunpack.c.l.b16 %v335
        %v644 = vunpack.c.l.b16 %v345
        %v645 = vunpack.c.l.b16 %v359
        %v646 = vunpack.c.l.b16 %v369
        %v647 = vunpack.c.l.b16 %v383
        %v648 = vunpack.c.l.b16 %v393
        %v649 = vunpack.c.l.b16 %v407
        %v650 = vunpack.c.l.b16 %v417
        %v651 = vunpack.c.l.b16 %v431
        %v652 = vunpack.c.l.b16 %v441
        %v653 = vunpack.c.l.b16 %v455
        %v654 = vunpack.c.l.b16 %v465
        %v655 = vunpack.c.l.b16 %v479
        %v656 = vunpack.c.l.b16 %v489
        %v657 = vunpack.c.l.b16 %v503
        %v658 = vunpack.c.l.b16 %v513
        %v659 = vunpack.c.l.b16 %v527
        %v660 = vunpack.c.l.b16 %v537
        %v661 = vunpack.c.l.b16 %v551
        %v662 = vunpack.c.l.b16 %v561
        %v663 = vunpack.c.l.b16 %v575
        %v664 = vunpack.c.l.b16 %v585
        %v665 = vunpack.c.l.b16 %v599
        %v666 = vunpack.c.l.b16 %v609
        %v667 = vunpack.c.l.b16 %v623
        %v668 = vunpack.c.l.b16 %v633
        %v669 = vpack.c.b16 %v638, %v637
        %v670 = vpack.c.b16 %v640, %v639
        %v671 = vpack.c.b16 %v642, %v641
        %v672 = vpack.c.b16 %v644, %v643
        %v673 = vpack.c.b16 %v646, %v645
        %v674 = vpack.c.b16 %v648, %v647
        %v675 = vpack.c.b16 %v650, %v649
        %v676 = vpack.c.b16 %v652, %v651
        %v677 = vpack.c.b16 %v654, %v653
        %v678 = vpack.c.b16 %v656, %v655
        %v679 = vpack.c.b16 %v658, %v657
        %v680 = vpack.c.b16 %v660, %v659
        %v681 = vpack.c.b16 %v662, %v661
        %v682 = vpack.c.b16 %v664, %v663
        %v683 = vpack.c.b16 %v666, %v665
        %v684 = vpack.c.b16 %v668, %v667
        %v687 = vunpack.c.l.b16 %v635
        %v688 = vunpack.c.l.b16 %v636
        %v689 = vpack.c.b16 %v688, %v687
        %vm690 = vcmask 97280
        %v692 = vsel %vm690, %v669, 0
        %v695 = vsel %vm690, %v670, 0
        %v698 = vsel %vm690, %v671, 0
        %v701 = vsel %vm690, %v672, 0
        %v704 = vsel %vm690, %v673, 0
        %v707 = vsel %vm690, %v674, 0
        %v710 = vsel %vm690, %v675, 0
        %v713 = vsel %vm690, %v676, 0
        %v716 = vsel %vm690, %v677, 0
        %v719 = vsel %vm690, %v678, 0
        %v722 = vsel %vm690, %v679, 0
        %v725 = vsel %vm690, %v680, 0
        %v728 = vsel %vm690, %v681, 0
        %v731 = vsel %vm690, %v682, 0
        %v734 = vsel %vm690, %v683, 0
        %v737 = vsel %vm690, %v684, 0
        %vm739 = vcmask 1045504
        %v741 = vsel %vm739, %v689, 0
        %743 = vmatprep.subr.bf16.mxu0 0
        %744 = vmatpush1.bf16.msra.mxu0 0
        %745 = vmatprep.subr.bf16.mxu0 0
        %746 = vmatpush1.bf16.msra.mxu0 0
        %747 = vmatprep.subr.bf16.mxu0 0
        %748 = vmatpush1.bf16.msra.mxu0 0
        %749 = vmatprep.subr.bf16.mxu0 0
        %750 = vmatpush1.bf16.msra.mxu0 0
        %751 = vmatprep.subr.bf16.mxu0 0
        %752 = vmatpush1.bf16.msra.mxu0 0
        %753 = vmatprep.subr.bf16.mxu0 0
        %754 = vmatpush1.bf16.msra.mxu0 0
        %755 = vmatprep.subr.bf16.mxu0 0
        %756 = vmatpush1.bf16.msra.mxu0 0
        %757 = vmatprep.subr.bf16.mxu0 0
        %758 = vmatpush1.bf16.msra.mxu0 %v741
        %759 = vmatprep.subr.bf16.mxu0 0
        %760 = vmatpush2.bf16.msra.mxu0 0
        %761 = vmatprep.subr.bf16.mxu0 0
        %762 = vmatpush2.bf16.msra.mxu0 0
        %763 = vmatprep.subr.bf16.mxu0 0
        %764 = vmatpush2.bf16.msra.mxu0 0
        %765 = vmatprep.subr.bf16.mxu0 0
        %766 = vmatpush2.bf16.msra.mxu0 0
        %767 = vmatprep.subr.bf16.mxu0 0
        %768 = vmatpush2.bf16.msra.mxu0 0
        %769 = vmatprep.subr.bf16.mxu0 0
        %770 = vmatpush2.bf16.msra.mxu0 0
        %771 = vmatprep.subr.bf16.mxu0 0
        %772 = vmatpush2.bf16.msra.mxu0 0
        %773 = vmatprep.subr.bf16.mxu0 0
        %774 = vmatpush2.bf16.msra.mxu0 0
        %775 = vmatprep.mubr.bf16.mxu0 0
        %776 = vmatmul.mubr.bf16.gmra.mxu0 %v692
        %v777 = vpop.f32.mrf.mxu0
        %v778 = vadd.f32 0.0, %v777
        %v779 = vpop.f32.mrf.mxu0
        %v780 = vpop.f32.mrf.mxu0
        %v781 = vadd.f32 0.0, %v780
        %v782 = vpop.f32.mrf.mxu0
        %783 = vmatprep.mubr.bf16.mxu0 0
        %784 = vmatmul.mubr.bf16.gmra.mxu0 %v695
        %v785 = vpop.f32.mrf.mxu0
        %v786 = vadd.f32 0.0, %v785
        %v787 = vpop.f32.mrf.mxu0
        %v788 = vpop.f32.mrf.mxu0
        %v789 = vadd.f32 0.0, %v788
        %v790 = vpop.f32.mrf.mxu0
        %791 = vmatprep.mubr.bf16.mxu0 0
        %792 = vmatmul.mubr.bf16.gmra.mxu0 %v698
        %v793 = vpop.f32.mrf.mxu0
        %v794 = vadd.f32 0.0, %v793
        %v795 = vpop.f32.mrf.mxu0
        %v796 = vpop.f32.mrf.mxu0
        %v797 = vadd.f32 0.0, %v796
        %v798 = vpop.f32.mrf.mxu0
        %799 = vmatprep.mubr.bf16.mxu0 0
        %800 = vmatmul.mubr.bf16.gmra.mxu0 %v701
        %v801 = vpop.f32.mrf.mxu0
        %v802 = vadd.f32 0.0, %v801
        %v803 = vpop.f32.mrf.mxu0
        %v804 = vpop.f32.mrf.mxu0
        %v805 = vadd.f32 0.0, %v804
        %v806 = vpop.f32.mrf.mxu0
        %807 = vmatprep.mubr.bf16.mxu0 0
        %808 = vmatmul.mubr.bf16.gmra.mxu0 %v704
        %v809 = vpop.f32.mrf.mxu0
        %v810 = vadd.f32 0.0, %v809
        %v811 = vpop.f32.mrf.mxu0
        %v812 = vpop.f32.mrf.mxu0
        %v813 = vadd.f32 0.0, %v812
        %v814 = vpop.f32.mrf.mxu0
        %815 = vmatprep.mubr.bf16.mxu0 0
        %816 = vmatmul.mubr.bf16.gmra.mxu0 %v707
        %v817 = vpop.f32.mrf.mxu0
        %v818 = vadd.f32 0.0, %v817
        %v819 = vpop.f32.mrf.mxu0
        %v820 = vpop.f32.mrf.mxu0
        %v821 = vadd.f32 0.0, %v820
        %v822 = vpop.f32.mrf.mxu0
        %823 = vmatprep.mubr.bf16.mxu0 0
        %824 = vmatmul.mubr.bf16.gmra.mxu0 %v710
        %v825 = vpop.f32.mrf.mxu0
        %v826 = vadd.f32 0.0, %v825
        %v827 = vpop.f32.mrf.mxu0
        %v828 = vpop.f32.mrf.mxu0
        %v829 = vadd.f32 0.0, %v828
        %v830 = vpop.f32.mrf.mxu0
        %831 = vmatprep.mubr.bf16.mxu0 0
        %832 = vmatmul.mubr.bf16.gmra.mxu0 %v713
        %v833 = vpop.f32.mrf.mxu0
        %v834 = vadd.f32 0.0, %v833
        %v835 = vpop.f32.mrf.mxu0
        %v836 = vpop.f32.mrf.mxu0
        %v837 = vadd.f32 0.0, %v836
        %v838 = vpop.f32.mrf.mxu0
        %839 = vmatprep.mubr.bf16.mxu0 0
        %840 = vmatmul.mubr.bf16.gmra.mxu0 %v716
        %v841 = vpop.f32.mrf.mxu0
        %v842 = vadd.f32 0.0, %v841
        %v843 = vpop.f32.mrf.mxu0
        %v844 = vpop.f32.mrf.mxu0
        %v845 = vadd.f32 0.0, %v844
        %v846 = vpop.f32.mrf.mxu0
        %847 = vmatprep.mubr.bf16.mxu0 0
        %848 = vmatmul.mubr.bf16.gmra.mxu0 %v719
        %v849 = vpop.f32.mrf.mxu0
        %v850 = vadd.f32 0.0, %v849
        %v851 = vpop.f32.mrf.mxu0
        %v852 = vpop.f32.mrf.mxu0
        %v853 = vadd.f32 0.0, %v852
        %v854 = vpop.f32.mrf.mxu0
        %855 = vmatprep.mubr.bf16.mxu0 0
        %856 = vmatmul.mubr.bf16.gmra.mxu0 %v722
        %v857 = vpop.f32.mrf.mxu0
        %v858 = vadd.f32 0.0, %v857
        %v859 = vpop.f32.mrf.mxu0
        %v860 = vpop.f32.mrf.mxu0
        %v861 = vadd.f32 0.0, %v860
        %v862 = vpop.f32.mrf.mxu0
        %863 = vmatprep.mubr.bf16.mxu0 0
        %864 = vmatmul.mubr.bf16.gmra.mxu0 %v725
        %v865 = vpop.f32.mrf.mxu0
        %v866 = vadd.f32 0.0, %v865
        %v867 = vpop.f32.mrf.mxu0
        %v868 = vpop.f32.mrf.mxu0
        %v869 = vadd.f32 0.0, %v868
        %v870 = vpop.f32.mrf.mxu0
        %871 = vmatprep.mubr.bf16.mxu0 0
        %872 = vmatmul.mubr.bf16.gmra.mxu0 %v728
        %v873 = vpop.f32.mrf.mxu0
        %v874 = vadd.f32 0.0, %v873
        %v875 = vpop.f32.mrf.mxu0
        %v876 = vpop.f32.mrf.mxu0
        %v877 = vadd.f32 0.0, %v876
        %v878 = vpop.f32.mrf.mxu0
        %879 = vmatprep.mubr.bf16.mxu0 0
        %880 = vmatmul.mubr.bf16.gmra.mxu0 %v731
        %v881 = vpop.f32.mrf.mxu0
        %v882 = vadd.f32 0.0, %v881
        %v883 = vpop.f32.mrf.mxu0
        %v884 = vpop.f32.mrf.mxu0
        %v885 = vadd.f32 0.0, %v884
        %v886 = vpop.f32.mrf.mxu0
        %887 = vmatprep.mubr.bf16.mxu0 0
        %888 = vmatmul.mubr.bf16.gmra.mxu0 %v734
        %v889 = vpop.f32.mrf.mxu0
        %v890 = vadd.f32 0.0, %v889
        %v891 = vpop.f32.mrf.mxu0
        %v892 = vpop.f32.mrf.mxu0
        %v893 = vadd.f32 0.0, %v892
        %v894 = vpop.f32.mrf.mxu0
        %895 = vmatprep.mubr.bf16.mxu0 0
        %896 = vmatmul.mubr.bf16.gmra.mxu0 %v737
        %v897 = vpop.f32.mrf.mxu0
        %v898 = vadd.f32 0.0, %v897
        %v899 = vpop.f32.mrf.mxu0
        %v900 = vpop.f32.mrf.mxu0
        %v901 = vadd.f32 0.0, %v900
        %v902 = vpop.f32.mrf.mxu0
        %903 = vdwg.mxu0
        %v936 = vunpack.c.l.b16 %v197
        %v937 = vunpack.c.l.b16 %v198
        %v938 = vunpack.c.l.b16 %v199
        %v939 = vunpack.c.l.b16 %v200
        %v940 = vunpack.c.l.b16 %v201
        %v941 = vunpack.c.l.b16 %v202
        %v942 = vunpack.c.l.b16 %v203
        %v943 = vunpack.c.l.b16 %v204
        %v944 = vunpack.c.l.b16 %v205
        %v945 = vunpack.c.l.b16 %v206
        %v946 = vunpack.c.l.b16 %v207
        %v947 = vunpack.c.l.b16 %v208
        %v948 = vunpack.c.l.b16 %v209
        %v949 = vunpack.c.l.b16 %v210
        %v950 = vunpack.c.l.b16 %v211
        %v951 = vunpack.c.l.b16 %v212
        %v952 = vunpack.c.l.b16 %v213
        %v953 = vunpack.c.l.b16 %v214
        %v954 = vunpack.c.l.b16 %v215
        %v955 = vunpack.c.l.b16 %v216
        %v956 = vunpack.c.l.b16 %v217
        %v957 = vunpack.c.l.b16 %v218
        %v958 = vunpack.c.l.b16 %v219
        %v959 = vunpack.c.l.b16 %v220
        %v960 = vunpack.c.l.b16 %v221
        %v961 = vunpack.c.l.b16 %v222
        %v962 = vunpack.c.l.b16 %v223
        %v963 = vunpack.c.l.b16 %v224
        %v964 = vunpack.c.l.b16 %v225
        %v965 = vunpack.c.l.b16 %v226
        %v966 = vunpack.c.l.b16 %v227
        %v967 = vunpack.c.l.b16 %v228
        %v968 = vpack.c.b16 %v937, %v936
        %v969 = vpack.c.b16 %v939, %v938
        %v970 = vpack.c.b16 %v941, %v940
        %v971 = vpack.c.b16 %v943, %v942
        %v972 = vpack.c.b16 %v945, %v944
        %v973 = vpack.c.b16 %v947, %v946
        %v974 = vpack.c.b16 %v949, %v948
        %v975 = vpack.c.b16 %v951, %v950
        %v976 = vpack.c.b16 %v953, %v952
        %v977 = vpack.c.b16 %v955, %v954
        %v978 = vpack.c.b16 %v957, %v956
        %v979 = vpack.c.b16 %v959, %v958
        %v980 = vpack.c.b16 %v961, %v960
        %v981 = vpack.c.b16 %v963, %v962
        %v982 = vpack.c.b16 %v965, %v964
        %v983 = vpack.c.b16 %v967, %v966
        %v986 = vunpack.c.l.b16 %v229
        %v987 = vunpack.c.l.b16 %v230
        %v988 = vpack.c.b16 %v987, %v986
        %v990 = vsel %vm690, %v968, 0
        %v993 = vsel %vm690, %v969, 0
        %v996 = vsel %vm690, %v970, 0
        %v999 = vsel %vm690, %v971, 0
        %v1002 = vsel %vm690, %v972, 0
        %v1005 = vsel %vm690, %v973, 0
        %v1008 = vsel %vm690, %v974, 0
        %v1011 = vsel %vm690, %v975, 0
        %v1014 = vsel %vm690, %v976, 0
        %v1017 = vsel %vm690, %v977, 0
        %v1020 = vsel %vm690, %v978, 0
        %v1023 = vsel %vm690, %v979, 0
        %v1026 = vsel %vm690, %v980, 0
        %v1029 = vsel %vm690, %v981, 0
        %v1032 = vsel %vm690, %v982, 0
        %v1035 = vsel %vm690, %v983, 0
        %v1038 = vsel %vm739, %v988, 0
        %1040 = vmatprep.subr.bf16.mxu0 0
        %1041 = vmatpush1.bf16.msra.mxu0 0
        %1042 = vmatprep.subr.bf16.mxu0 0
        %1043 = vmatpush1.bf16.msra.mxu0 0
        %1044 = vmatprep.subr.bf16.mxu0 0
        %1045 = vmatpush1.bf16.msra.mxu0 0
        %1046 = vmatprep.subr.bf16.mxu0 0
        %1047 = vmatpush1.bf16.msra.mxu0 0
        %1048 = vmatprep.subr.bf16.mxu0 0
        %1049 = vmatpush1.bf16.msra.mxu0 0
        %1050 = vmatprep.subr.bf16.mxu0 0
        %1051 = vmatpush1.bf16.msra.mxu0 0
        %1052 = vmatprep.subr.bf16.mxu0 0
        %1053 = vmatpush1.bf16.msra.mxu0 0
        %1054 = vmatprep.subr.bf16.mxu0 0
        %1055 = vmatpush1.bf16.msra.mxu0 %v1038
        %1056 = vmatprep.subr.bf16.mxu0 0
        %1057 = vmatpush2.bf16.msra.mxu0 0
        %1058 = vmatprep.subr.bf16.mxu0 0
        %1059 = vmatpush2.bf16.msra.mxu0 0
        %1060 = vmatprep.subr.bf16.mxu0 0
        %1061 = vmatpush2.bf16.msra.mxu0 0
        %1062 = vmatprep.subr.bf16.mxu0 0
        %1063 = vmatpush2.bf16.msra.mxu0 0
        %1064 = vmatprep.subr.bf16.mxu0 0
        %1065 = vmatpush2.bf16.msra.mxu0 0
        %1066 = vmatprep.subr.bf16.mxu0 0
        %1067 = vmatpush2.bf16.msra.mxu0 0
        %1068 = vmatprep.subr.bf16.mxu0 0
        %1069 = vmatpush2.bf16.msra.mxu0 0
        %1070 = vmatprep.subr.bf16.mxu0 0
        %1071 = vmatpush2.bf16.msra.mxu0 0
        %1072 = vmatprep.mubr.bf16.mxu0 0
        %1073 = vmatmul.mubr.bf16.gmra.mxu0 %v990
        %v1074 = vpop.f32.mrf.mxu0
        %v1075 = vadd.f32 %v778, %v1074
        %v1076 = vpop.f32.mrf.mxu0
        %v1077 = vpop.f32.mrf.mxu0
        %v1078 = vadd.f32 %v781, %v1077
        %v1079 = vpop.f32.mrf.mxu0
        %1080 = vmatprep.mubr.bf16.mxu0 0
        %1081 = vmatmul.mubr.bf16.gmra.mxu0 %v993
        %v1082 = vpop.f32.mrf.mxu0
        %v1083 = vadd.f32 %v786, %v1082
        %v1084 = vpop.f32.mrf.mxu0
        %v1085 = vpop.f32.mrf.mxu0
        %v1086 = vadd.f32 %v789, %v1085
        %v1087 = vpop.f32.mrf.mxu0
        %1088 = vmatprep.mubr.bf16.mxu0 0
        %1089 = vmatmul.mubr.bf16.gmra.mxu0 %v996
        %v1090 = vpop.f32.mrf.mxu0
        %v1091 = vadd.f32 %v794, %v1090
        %v1092 = vpop.f32.mrf.mxu0
        %v1093 = vpop.f32.mrf.mxu0
        %v1094 = vadd.f32 %v797, %v1093
        %v1095 = vpop.f32.mrf.mxu0
        %1096 = vmatprep.mubr.bf16.mxu0 0
        %1097 = vmatmul.mubr.bf16.gmra.mxu0 %v999
        %v1098 = vpop.f32.mrf.mxu0
        %v1099 = vadd.f32 %v802, %v1098
        %v1100 = vpop.f32.mrf.mxu0
        %v1101 = vpop.f32.mrf.mxu0
        %v1102 = vadd.f32 %v805, %v1101
        %v1103 = vpop.f32.mrf.mxu0
        %1104 = vmatprep.mubr.bf16.mxu0 0
        %1105 = vmatmul.mubr.bf16.gmra.mxu0 %v1002
        %v1106 = vpop.f32.mrf.mxu0
        %v1107 = vadd.f32 %v810, %v1106
        %v1108 = vpop.f32.mrf.mxu0
        %v1109 = vpop.f32.mrf.mxu0
        %v1110 = vadd.f32 %v813, %v1109
        %v1111 = vpop.f32.mrf.mxu0
        %1112 = vmatprep.mubr.bf16.mxu0 0
        %1113 = vmatmul.mubr.bf16.gmra.mxu0 %v1005
        %v1114 = vpop.f32.mrf.mxu0
        %v1115 = vadd.f32 %v818, %v1114
        %v1116 = vpop.f32.mrf.mxu0
        %v1117 = vpop.f32.mrf.mxu0
        %v1118 = vadd.f32 %v821, %v1117
        %v1119 = vpop.f32.mrf.mxu0
        %1120 = vmatprep.mubr.bf16.mxu0 0
        %1121 = vmatmul.mubr.bf16.gmra.mxu0 %v1008
        %v1122 = vpop.f32.mrf.mxu0
        %v1123 = vadd.f32 %v826, %v1122
        %v1124 = vpop.f32.mrf.mxu0
        %v1125 = vpop.f32.mrf.mxu0
        %v1126 = vadd.f32 %v829, %v1125
        %v1127 = vpop.f32.mrf.mxu0
        %1128 = vmatprep.mubr.bf16.mxu0 0
        %1129 = vmatmul.mubr.bf16.gmra.mxu0 %v1011
        %v1130 = vpop.f32.mrf.mxu0
        %v1131 = vadd.f32 %v834, %v1130
        %v1132 = vpop.f32.mrf.mxu0
        %v1133 = vpop.f32.mrf.mxu0
        %v1134 = vadd.f32 %v837, %v1133
        %v1135 = vpop.f32.mrf.mxu0
        %1136 = vmatprep.mubr.bf16.mxu0 0
        %1137 = vmatmul.mubr.bf16.gmra.mxu0 %v1014
        %v1138 = vpop.f32.mrf.mxu0
        %v1139 = vadd.f32 %v842, %v1138
        %v1140 = vpop.f32.mrf.mxu0
        %v1141 = vpop.f32.mrf.mxu0
        %v1142 = vadd.f32 %v845, %v1141
        %v1143 = vpop.f32.mrf.mxu0
        %1144 = vmatprep.mubr.bf16.mxu0 0
        %1145 = vmatmul.mubr.bf16.gmra.mxu0 %v1017
        %v1146 = vpop.f32.mrf.mxu0
        %v1147 = vadd.f32 %v850, %v1146
        %v1148 = vpop.f32.mrf.mxu0
        %v1149 = vpop.f32.mrf.mxu0
        %v1150 = vadd.f32 %v853, %v1149
        %v1151 = vpop.f32.mrf.mxu0
        %1152 = vmatprep.mubr.bf16.mxu0 0
        %1153 = vmatmul.mubr.bf16.gmra.mxu0 %v1020
        %v1154 = vpop.f32.mrf.mxu0
        %v1155 = vadd.f32 %v858, %v1154
        %v1156 = vpop.f32.mrf.mxu0
        %v1157 = vpop.f32.mrf.mxu0
        %v1158 = vadd.f32 %v861, %v1157
        %v1159 = vpop.f32.mrf.mxu0
        %1160 = vmatprep.mubr.bf16.mxu0 0
        %1161 = vmatmul.mubr.bf16.gmra.mxu0 %v1023
        %v1162 = vpop.f32.mrf.mxu0
        %v1163 = vadd.f32 %v866, %v1162
        %v1164 = vpop.f32.mrf.mxu0
        %v1165 = vpop.f32.mrf.mxu0
        %v1166 = vadd.f32 %v869, %v1165
        %v1167 = vpop.f32.mrf.mxu0
        %1168 = vmatprep.mubr.bf16.mxu0 0
        %1169 = vmatmul.mubr.bf16.gmra.mxu0 %v1026
        %v1170 = vpop.f32.mrf.mxu0
        %v1171 = vadd.f32 %v874, %v1170
        %v1172 = vpop.f32.mrf.mxu0
        %v1173 = vpop.f32.mrf.mxu0
        %v1174 = vadd.f32 %v877, %v1173
        %v1175 = vpop.f32.mrf.mxu0
        %1176 = vmatprep.mubr.bf16.mxu0 0
        %1177 = vmatmul.mubr.bf16.gmra.mxu0 %v1029
        %v1178 = vpop.f32.mrf.mxu0
        %v1179 = vadd.f32 %v882, %v1178
        %v1180 = vpop.f32.mrf.mxu0
        %v1181 = vpop.f32.mrf.mxu0
        %v1182 = vadd.f32 %v885, %v1181
        %v1183 = vpop.f32.mrf.mxu0
        %1184 = vmatprep.mubr.bf16.mxu0 0
        %1185 = vmatmul.mubr.bf16.gmra.mxu0 %v1032
        %v1186 = vpop.f32.mrf.mxu0
        %v1187 = vadd.f32 %v890, %v1186
        %v1188 = vpop.f32.mrf.mxu0
        %v1189 = vpop.f32.mrf.mxu0
        %v1190 = vadd.f32 %v893, %v1189
        %v1191 = vpop.f32.mrf.mxu0
        %1192 = vmatprep.mubr.bf16.mxu0 0
        %1193 = vmatmul.mubr.bf16.gmra.mxu0 %v1035
        %v1194 = vpop.f32.mrf.mxu0
        %v1195 = vadd.f32 %v898, %v1194
        %v1196 = vpop.f32.mrf.mxu0
        %v1197 = vpop.f32.mrf.mxu0
        %v1198 = vadd.f32 %v901, %v1197
        %v1199 = vpop.f32.mrf.mxu0
        %1200 = vdwg.mxu0
        %v1201 = vld [vmem:[%s195] sm:$0xe]
        %v1202 = vld [vmem:[%s195 + $0xc] sm:$0xe]
        %v1203 = vld [vmem:[%s195 + $0x18] sm:$0xe]
        %v1204 = vld [vmem:[%s195 + $0x24] sm:$0xe]
        %v1205 = vld [vmem:[%s195 + $0x30] sm:$0xe]
        %v1206 = vld [vmem:[%s195 + $0x3c] sm:$0xe]
        %v1207 = vld [vmem:[%s195 + $0x48] sm:$0xe]
        %v1208 = vld [vmem:[%s195 + $0x54] sm:$0xe]
        %v1209 = vld [vmem:[%s195 + $0x60] sm:$0xe]
        %v1210 = vld [vmem:[%s195 + $0x6c] sm:$0xe]
        %v1211 = vld [vmem:[%s195 + $0x78] sm:$0xe]
        %v1212 = vld [vmem:[%s195 + $0x84] sm:$0xe]
        %v1213 = vld [vmem:[%s195 + $0x90] sm:$0xe]
        %v1214 = vld [vmem:[%s195 + $0x9c] sm:$0xe]
        %v1215 = vld [vmem:[%s195 + $0xa8] sm:$0xe]
        %v1216 = vld [vmem:[%s195 + $0xb4] sm:$0xe]
        %vm1249 = vcmask 1042432
        %vm1250 = vcmask 1046532
        %vm1251 = vmor %vm1249, %vm1250
        %v1252 = vrot.slane %v1201, 5
        %v1253 = vrot.slane %v1252, 4
        %v1254 = vrot.slane %v198, 5
        %v1255 = vsel %vm1251, %v1253, %v1254
        %v1256 = vrot.slane %v1254, 4
        %v1257 = vrot.slane %v231, 5
        %v1258 = vsel %vm1251, %v1256, %v1257
        %v1259 = vrot.slane %v1202, 5
        %v1260 = vrot.slane %v1259, 4
        %v1261 = vrot.slane %v200, 5
        %v1262 = vsel %vm1251, %v1260, %v1261
        %v1263 = vrot.slane %v1261, 4
        %v1264 = vrot.slane %v232, 5
        %v1265 = vsel %vm1251, %v1263, %v1264
        %v1266 = vrot.slane %v1203, 5
        %v1267 = vrot.slane %v1266, 4
        %v1268 = vrot.slane %v202, 5
        %v1269 = vsel %vm1251, %v1267, %v1268
        %v1270 = vrot.slane %v1268, 4
        %v1271 = vrot.slane %v233, 5
        %v1272 = vsel %vm1251, %v1270, %v1271
        %v1273 = vrot.slane %v1204, 5
        %v1274 = vrot.slane %v1273, 4
        %v1275 = vrot.slane %v204, 5
        %v1276 = vsel %vm1251, %v1274, %v1275
        %v1277 = vrot.slane %v1275, 4
        %v1278 = vrot.slane %v234, 5
        %v1279 = vsel %vm1251, %v1277, %v1278
        %v1280 = vrot.slane %v1205, 5
        %v1281 = vrot.slane %v1280, 4
        %v1282 = vrot.slane %v206, 5
        %v1283 = vsel %vm1251, %v1281, %v1282
        %v1284 = vrot.slane %v1282, 4
        %v1285 = vrot.slane %v235, 5
        %v1286 = vsel %vm1251, %v1284, %v1285
        %v1287 = vrot.slane %v1206, 5
        %v1288 = vrot.slane %v1287, 4
        %v1289 = vrot.slane %v208, 5
        %v1290 = vsel %vm1251, %v1288, %v1289
        %v1291 = vrot.slane %v1289, 4
        %v1292 = vrot.slane %v236, 5
        %v1293 = vsel %vm1251, %v1291, %v1292
        %v1294 = vrot.slane %v1207, 5
        %v1295 = vrot.slane %v1294, 4
        %v1296 = vrot.slane %v210, 5
        %v1297 = vsel %vm1251, %v1295, %v1296
        %v1298 = vrot.slane %v1296, 4
        %v1299 = vrot.slane %v237, 5
        %v1300 = vsel %vm1251, %v1298, %v1299
        %v1301 = vrot.slane %v1208, 5
        %v1302 = vrot.slane %v1301, 4
        %v1303 = vrot.slane %v212, 5
        %v1304 = vsel %vm1251, %v1302, %v1303
        %v1305 = vrot.slane %v1303, 4
        %v1306 = vrot.slane %v238, 5
        %v1307 = vsel %vm1251, %v1305, %v1306
        %v1308 = vrot.slane %v1209, 5
        %v1309 = vrot.slane %v1308, 4
        %v1310 = vrot.slane %v214, 5
        %v1311 = vsel %vm1251, %v1309, %v1310
        %v1312 = vrot.slane %v1310, 4
        %v1313 = vrot.slane %v239, 5
        %v1314 = vsel %vm1251, %v1312, %v1313
        %v1315 = vrot.slane %v1210, 5
        %v1316 = vrot.slane %v1315, 4
        %v1317 = vrot.slane %v216, 5
        %v1318 = vsel %vm1251, %v1316, %v1317
        %v1319 = vrot.slane %v1317, 4
        %v1320 = vrot.slane %v240, 5
        %v1321 = vsel %vm1251, %v1319, %v1320
        %v1322 = vrot.slane %v1211, 5
        %v1323 = vrot.slane %v1322, 4
        %v1324 = vrot.slane %v218, 5
        %v1325 = vsel %vm1251, %v1323, %v1324
        %v1326 = vrot.slane %v1324, 4
        %v1327 = vrot.slane %v241, 5
        %v1328 = vsel %vm1251, %v1326, %v1327
        %v1329 = vrot.slane %v1212, 5
        %v1330 = vrot.slane %v1329, 4
        %v1331 = vrot.slane %v220, 5
        %v1332 = vsel %vm1251, %v1330, %v1331
        %v1333 = vrot.slane %v1331, 4
        %v1334 = vrot.slane %v242, 5
        %v1335 = vsel %vm1251, %v1333, %v1334
        %v1336 = vrot.slane %v1213, 5
        %v1337 = vrot.slane %v1336, 4
        %v1338 = vrot.slane %v222, 5
        %v1339 = vsel %vm1251, %v1337, %v1338
        %v1340 = vrot.slane %v1338, 4
        %v1341 = vrot.slane %v243, 5
        %v1342 = vsel %vm1251, %v1340, %v1341
        %v1343 = vrot.slane %v1214, 5
        %v1344 = vrot.slane %v1343, 4
        %v1345 = vrot.slane %v224, 5
        %v1346 = vsel %vm1251, %v1344, %v1345
        %v1347 = vrot.slane %v1345, 4
        %v1348 = vrot.slane %v244, 5
        %v1349 = vsel %vm1251, %v1347, %v1348
        %v1350 = vrot.slane %v1215, 5
        %v1351 = vrot.slane %v1350, 4
        %v1352 = vrot.slane %v226, 5
        %v1353 = vsel %vm1251, %v1351, %v1352
        %v1354 = vrot.slane %v1352, 4
        %v1355 = vrot.slane %v245, 5
        %v1356 = vsel %vm1251, %v1354, %v1355
        %v1357 = vrot.slane %v1216, 5
        %v1358 = vrot.slane %v1357, 4
        %v1359 = vrot.slane %v228, 5
        %v1360 = vsel %vm1251, %v1358, %v1359
        %v1361 = vrot.slane %v1359, 4
        %v1362 = vrot.slane %v246, 5
        %v1363 = vsel %vm1251, %v1361, %v1362
        %s1364 = scalar_lea.vmem %s1, 16
        %v1365 = vld [vmem:[%s1364] sm:$0xf]
        %v1366 = vld [vmem:[%s1364 + $0x4] sm:$0x3]
        %v1367 = vunpack.c.l.b16 %v1255
        %v1368 = vunpack.c.l.b16 %v1258
        %v1369 = vunpack.c.l.b16 %v1262
        %v1370 = vunpack.c.l.b16 %v1265
        %v1371 = vunpack.c.l.b16 %v1269
        %v1372 = vunpack.c.l.b16 %v1272
        %v1373 = vunpack.c.l.b16 %v1276
        %v1374 = vunpack.c.l.b16 %v1279
        %v1375 = vunpack.c.l.b16 %v1283
        %v1376 = vunpack.c.l.b16 %v1286
        %v1377 = vunpack.c.l.b16 %v1290
        %v1378 = vunpack.c.l.b16 %v1293
        %v1379 = vunpack.c.l.b16 %v1297
        %v1380 = vunpack.c.l.b16 %v1300
        %v1381 = vunpack.c.l.b16 %v1304
        %v1382 = vunpack.c.l.b16 %v1307
        %v1383 = vunpack.c.l.b16 %v1311
        %v1384 = vunpack.c.l.b16 %v1314
        %v1385 = vunpack.c.l.b16 %v1318
        %v1386 = vunpack.c.l.b16 %v1321
        %v1387 = vunpack.c.l.b16 %v1325
        %v1388 = vunpack.c.l.b16 %v1328
        %v1389 = vunpack.c.l.b16 %v1332
        %v1390 = vunpack.c.l.b16 %v1335
        %v1391 = vunpack.c.l.b16 %v1339
        %v1392 = vunpack.c.l.b16 %v1342
        %v1393 = vunpack.c.l.b16 %v1346
        %v1394 = vunpack.c.l.b16 %v1349
        %v1395 = vunpack.c.l.b16 %v1353
        %v1396 = vunpack.c.l.b16 %v1356
        %v1397 = vunpack.c.l.b16 %v1360
        %v1398 = vunpack.c.l.b16 %v1363
        %v1399 = vpack.c.b16 %v1368, %v1367
        %v1400 = vpack.c.b16 %v1370, %v1369
        %v1401 = vpack.c.b16 %v1372, %v1371
        %v1402 = vpack.c.b16 %v1374, %v1373
        %v1403 = vpack.c.b16 %v1376, %v1375
        %v1404 = vpack.c.b16 %v1378, %v1377
        %v1405 = vpack.c.b16 %v1380, %v1379
        %v1406 = vpack.c.b16 %v1382, %v1381
        %v1407 = vpack.c.b16 %v1384, %v1383
        %v1408 = vpack.c.b16 %v1386, %v1385
        %v1409 = vpack.c.b16 %v1388, %v1387
        %v1410 = vpack.c.b16 %v1390, %v1389
        %v1411 = vpack.c.b16 %v1392, %v1391
        %v1412 = vpack.c.b16 %v1394, %v1393
        %v1413 = vpack.c.b16 %v1396, %v1395
        %v1414 = vpack.c.b16 %v1398, %v1397
        %v1417 = vunpack.c.l.b16 %v1365
        %v1418 = vunpack.c.l.b16 %v1366
        %v1419 = vpack.c.b16 %v1418, %v1417
        %v1421 = vsel %vm690, %v1399, 0
        %v1424 = vsel %vm690, %v1400, 0
        %v1427 = vsel %vm690, %v1401, 0
        %v1430 = vsel %vm690, %v1402, 0
        %v1433 = vsel %vm690, %v1403, 0
        %v1436 = vsel %vm690, %v1404, 0
        %v1439 = vsel %vm690, %v1405, 0
        %v1442 = vsel %vm690, %v1406, 0
        %v1445 = vsel %vm690, %v1407, 0
        %v1448 = vsel %vm690, %v1408, 0
        %v1451 = vsel %vm690, %v1409, 0
        %v1454 = vsel %vm690, %v1410, 0
        %v1457 = vsel %vm690, %v1411, 0
        %v1460 = vsel %vm690, %v1412, 0
        %v1463 = vsel %vm690, %v1413, 0
        %v1466 = vsel %vm690, %v1414, 0
        %v1469 = vsel %vm739, %v1419, 0
        %1471 = vmatprep.subr.bf16.mxu0 0
        %1472 = vmatpush1.bf16.msra.mxu0 0
        %1473 = vmatprep.subr.bf16.mxu0 0
        %1474 = vmatpush1.bf16.msra.mxu0 0
        %1475 = vmatprep.subr.bf16.mxu0 0
        %1476 = vmatpush1.bf16.msra.mxu0 0
        %1477 = vmatprep.subr.bf16.mxu0 0
        %1478 = vmatpush1.bf16.msra.mxu0 0
        %1479 = vmatprep.subr.bf16.mxu0 0
        %1480 = vmatpush1.bf16.msra.mxu0 0
        %1481 = vmatprep.subr.bf16.mxu0 0
        %1482 = vmatpush1.bf16.msra.mxu0 0
        %1483 = vmatprep.subr.bf16.mxu0 0
        %1484 = vmatpush1.bf16.msra.mxu0 0
        %1485 = vmatprep.subr.bf16.mxu0 0
        %1486 = vmatpush1.bf16.msra.mxu0 %v1469
        %1487 = vmatprep.subr.bf16.mxu0 0
        %1488 = vmatpush2.bf16.msra.mxu0 0
        %1489 = vmatprep.subr.bf16.mxu0 0
        %1490 = vmatpush2.bf16.msra.mxu0 0
        %1491 = vmatprep.subr.bf16.mxu0 0
        %1492 = vmatpush2.bf16.msra.mxu0 0
        %1493 = vmatprep.subr.bf16.mxu0 0
        %1494 = vmatpush2.bf16.msra.mxu0 0
        %1495 = vmatprep.subr.bf16.mxu0 0
        %1496 = vmatpush2.bf16.msra.mxu0 0
        %1497 = vmatprep.subr.bf16.mxu0 0
        %1498 = vmatpush2.bf16.msra.mxu0 0
        %1499 = vmatprep.subr.bf16.mxu0 0
        %1500 = vmatpush2.bf16.msra.mxu0 0
        %1501 = vmatprep.subr.bf16.mxu0 0
        %1502 = vmatpush2.bf16.msra.mxu0 0
        %1503 = vmatprep.mubr.bf16.mxu0 0
        %1504 = vmatmul.mubr.bf16.gmra.mxu0 %v1421
        %v1505 = vpop.f32.mrf.mxu0
        %v1506 = vadd.f32 0.0, %v1505
        %v1507 = vpop.f32.mrf.mxu0
        %v1508 = vpop.f32.mrf.mxu0
        %v1509 = vadd.f32 0.0, %v1508
        %v1510 = vpop.f32.mrf.mxu0
        %1511 = vmatprep.mubr.bf16.mxu0 0
        %1512 = vmatmul.mubr.bf16.gmra.mxu0 %v1424
        %v1513 = vpop.f32.mrf.mxu0
        %v1514 = vadd.f32 0.0, %v1513
        %v1515 = vpop.f32.mrf.mxu0
        %v1516 = vpop.f32.mrf.mxu0
        %v1517 = vadd.f32 0.0, %v1516
        %v1518 = vpop.f32.mrf.mxu0
        %1519 = vmatprep.mubr.bf16.mxu0 0
        %1520 = vmatmul.mubr.bf16.gmra.mxu0 %v1427
        %v1521 = vpop.f32.mrf.mxu0
        %v1522 = vadd.f32 0.0, %v1521
        %v1523 = vpop.f32.mrf.mxu0
        %v1524 = vpop.f32.mrf.mxu0
        %v1525 = vadd.f32 0.0, %v1524
        %v1526 = vpop.f32.mrf.mxu0
        %1527 = vmatprep.mubr.bf16.mxu0 0
        %1528 = vmatmul.mubr.bf16.gmra.mxu0 %v1430
        %v1529 = vpop.f32.mrf.mxu0
        %v1530 = vadd.f32 0.0, %v1529
        %v1531 = vpop.f32.mrf.mxu0
        %v1532 = vpop.f32.mrf.mxu0
        %v1533 = vadd.f32 0.0, %v1532
        %v1534 = vpop.f32.mrf.mxu0
        %1535 = vmatprep.mubr.bf16.mxu0 0
        %1536 = vmatmul.mubr.bf16.gmra.mxu0 %v1433
        %v1537 = vpop.f32.mrf.mxu0
        %v1538 = vadd.f32 0.0, %v1537
        %v1539 = vpop.f32.mrf.mxu0
        %v1540 = vpop.f32.mrf.mxu0
        %v1541 = vadd.f32 0.0, %v1540
        %v1542 = vpop.f32.mrf.mxu0
        %1543 = vmatprep.mubr.bf16.mxu0 0
        %1544 = vmatmul.mubr.bf16.gmra.mxu0 %v1436
        %v1545 = vpop.f32.mrf.mxu0
        %v1546 = vadd.f32 0.0, %v1545
        %v1547 = vpop.f32.mrf.mxu0
        %v1548 = vpop.f32.mrf.mxu0
        %v1549 = vadd.f32 0.0, %v1548
        %v1550 = vpop.f32.mrf.mxu0
        %1551 = vmatprep.mubr.bf16.mxu0 0
        %1552 = vmatmul.mubr.bf16.gmra.mxu0 %v1439
        %v1553 = vpop.f32.mrf.mxu0
        %v1554 = vadd.f32 0.0, %v1553
        %v1555 = vpop.f32.mrf.mxu0
        %v1556 = vpop.f32.mrf.mxu0
        %v1557 = vadd.f32 0.0, %v1556
        %v1558 = vpop.f32.mrf.mxu0
        %1559 = vmatprep.mubr.bf16.mxu0 0
        %1560 = vmatmul.mubr.bf16.gmra.mxu0 %v1442
        %v1561 = vpop.f32.mrf.mxu0
        %v1562 = vadd.f32 0.0, %v1561
        %v1563 = vpop.f32.mrf.mxu0
        %v1564 = vpop.f32.mrf.mxu0
        %v1565 = vadd.f32 0.0, %v1564
        %v1566 = vpop.f32.mrf.mxu0
        %1567 = vmatprep.mubr.bf16.mxu0 0
        %1568 = vmatmul.mubr.bf16.gmra.mxu0 %v1445
        %v1569 = vpop.f32.mrf.mxu0
        %v1570 = vadd.f32 0.0, %v1569
        %v1571 = vpop.f32.mrf.mxu0
        %v1572 = vpop.f32.mrf.mxu0
        %v1573 = vadd.f32 0.0, %v1572
        %v1574 = vpop.f32.mrf.mxu0
        %1575 = vmatprep.mubr.bf16.mxu0 0
        %1576 = vmatmul.mubr.bf16.gmra.mxu0 %v1448
        %v1577 = vpop.f32.mrf.mxu0
        %v1578 = vadd.f32 0.0, %v1577
        %v1579 = vpop.f32.mrf.mxu0
        %v1580 = vpop.f32.mrf.mxu0
        %v1581 = vadd.f32 0.0, %v1580
        %v1582 = vpop.f32.mrf.mxu0
        %1583 = vmatprep.mubr.bf16.mxu0 0
        %1584 = vmatmul.mubr.bf16.gmra.mxu0 %v1451
        %v1585 = vpop.f32.mrf.mxu0
        %v1586 = vadd.f32 0.0, %v1585
        %v1587 = vpop.f32.mrf.mxu0
        %v1588 = vpop.f32.mrf.mxu0
        %v1589 = vadd.f32 0.0, %v1588
        %v1590 = vpop.f32.mrf.mxu0
        %1591 = vmatprep.mubr.bf16.mxu0 0
        %1592 = vmatmul.mubr.bf16.gmra.mxu0 %v1454
        %v1593 = vpop.f32.mrf.mxu0
        %v1594 = vadd.f32 0.0, %v1593
        %v1595 = vpop.f32.mrf.mxu0
        %v1596 = vpop.f32.mrf.mxu0
        %v1597 = vadd.f32 0.0, %v1596
        %v1598 = vpop.f32.mrf.mxu0
        %1599 = vmatprep.mubr.bf16.mxu0 0
        %1600 = vmatmul.mubr.bf16.gmra.mxu0 %v1457
        %v1601 = vpop.f32.mrf.mxu0
        %v1602 = vadd.f32 0.0, %v1601
        %v1603 = vpop.f32.mrf.mxu0
        %v1604 = vpop.f32.mrf.mxu0
        %v1605 = vadd.f32 0.0, %v1604
        %v1606 = vpop.f32.mrf.mxu0
        %1607 = vmatprep.mubr.bf16.mxu0 0
        %1608 = vmatmul.mubr.bf16.gmra.mxu0 %v1460
        %v1609 = vpop.f32.mrf.mxu0
        %v1610 = vadd.f32 0.0, %v1609
        %v1611 = vpop.f32.mrf.mxu0
        %v1612 = vpop.f32.mrf.mxu0
        %v1613 = vadd.f32 0.0, %v1612
        %v1614 = vpop.f32.mrf.mxu0
        %1615 = vmatprep.mubr.bf16.mxu0 0
        %1616 = vmatmul.mubr.bf16.gmra.mxu0 %v1463
        %v1617 = vpop.f32.mrf.mxu0
        %v1618 = vadd.f32 0.0, %v1617
        %v1619 = vpop.f32.mrf.mxu0
        %v1620 = vpop.f32.mrf.mxu0
        %v1621 = vadd.f32 0.0, %v1620
        %v1622 = vpop.f32.mrf.mxu0
        %1623 = vmatprep.mubr.bf16.mxu0 0
        %1624 = vmatmul.mubr.bf16.gmra.mxu0 %v1466
        %v1625 = vpop.f32.mrf.mxu0
        %v1626 = vadd.f32 0.0, %v1625
        %v1627 = vpop.f32.mrf.mxu0
        %v1628 = vpop.f32.mrf.mxu0
        %v1629 = vadd.f32 0.0, %v1628
        %v1630 = vpop.f32.mrf.mxu0
        %1631 = vdwg.mxu0
        %v1632 = vadd.f32 %v1075, %v1506
        %v1633 = vadd.f32 %v1078, %v1509
        %v1634 = vadd.f32 %v1083, %v1514
        %v1635 = vadd.f32 %v1086, %v1517
        %v1636 = vadd.f32 %v1091, %v1522
        %v1637 = vadd.f32 %v1094, %v1525
        %v1638 = vadd.f32 %v1099, %v1530
        %v1639 = vadd.f32 %v1102, %v1533
        %v1640 = vadd.f32 %v1107, %v1538
        %v1641 = vadd.f32 %v1110, %v1541
        %v1642 = vadd.f32 %v1115, %v1546
        %v1643 = vadd.f32 %v1118, %v1549
        %v1644 = vadd.f32 %v1123, %v1554
        %v1645 = vadd.f32 %v1126, %v1557
        %v1646 = vadd.f32 %v1131, %v1562
        %v1647 = vadd.f32 %v1134, %v1565
        %v1648 = vadd.f32 %v1139, %v1570
        %v1649 = vadd.f32 %v1142, %v1573
        %v1650 = vadd.f32 %v1147, %v1578
        %v1651 = vadd.f32 %v1150, %v1581
        %v1652 = vadd.f32 %v1155, %v1586
        %v1653 = vadd.f32 %v1158, %v1589
        %v1654 = vadd.f32 %v1163, %v1594
        %v1655 = vadd.f32 %v1166, %v1597
        %v1656 = vadd.f32 %v1171, %v1602
        %v1657 = vadd.f32 %v1174, %v1605
        %v1658 = vadd.f32 %v1179, %v1610
        %v1659 = vadd.f32 %v1182, %v1613
        %v1660 = vadd.f32 %v1187, %v1618
        %v1661 = vadd.f32 %v1190, %v1621
        %v1662 = vadd.f32 %v1195, %v1626
        %v1663 = vadd.f32 %v1198, %v1629
        %s1664 = scalar_lea.vmem %s195, 12
        %v1665 = vld [vmem:[%s1664] sm:$0xf]
        %v1666 = vld [vmem:[%s1664 + $0x4] sm:$0xf]
        %v1667 = vld [vmem:[%s1664 + $0xc] sm:$0xf]
        %v1668 = vld [vmem:[%s1664 + $0x10] sm:$0xf]
        %v1669 = vld [vmem:[%s1664 + $0x18] sm:$0xf]
        %v1670 = vld [vmem:[%s1664 + $0x1c] sm:$0xf]
        %v1671 = vld [vmem:[%s1664 + $0x24] sm:$0xf]
        %v1672 = vld [vmem:[%s1664 + $0x28] sm:$0xf]
        %v1673 = vld [vmem:[%s1664 + $0x30] sm:$0xf]
        %v1674 = vld [vmem:[%s1664 + $0x34] sm:$0xf]
        %v1675 = vld [vmem:[%s1664 + $0x3c] sm:$0xf]
        %v1676 = vld [vmem:[%s1664 + $0x40] sm:$0xf]
        %v1677 = vld [vmem:[%s1664 + $0x48] sm:$0xf]
        %v1678 = vld [vmem:[%s1664 + $0x4c] sm:$0xf]
        %v1679 = vld [vmem:[%s1664 + $0x54] sm:$0xf]
        %v1680 = vld [vmem:[%s1664 + $0x58] sm:$0xf]
        %v1681 = vld [vmem:[%s1664 + $0x60] sm:$0xf]
        %v1682 = vld [vmem:[%s1664 + $0x64] sm:$0xf]
        %v1683 = vld [vmem:[%s1664 + $0x6c] sm:$0xf]
        %v1684 = vld [vmem:[%s1664 + $0x70] sm:$0xf]
        %v1685 = vld [vmem:[%s1664 + $0x78] sm:$0xf]
        %v1686 = vld [vmem:[%s1664 + $0x7c] sm:$0xf]
        %v1687 = vld [vmem:[%s1664 + $0x84] sm:$0xf]
        %v1688 = vld [vmem:[%s1664 + $0x88] sm:$0xf]
        %v1689 = vld [vmem:[%s1664 + $0x90] sm:$0xf]
        %v1690 = vld [vmem:[%s1664 + $0x94] sm:$0xf]
        %v1691 = vld [vmem:[%s1664 + $0x9c] sm:$0xf]
        %v1692 = vld [vmem:[%s1664 + $0xa0] sm:$0xf]
        %v1693 = vld [vmem:[%s1664 + $0xa8] sm:$0xf]
        %v1694 = vld [vmem:[%s1664 + $0xac] sm:$0xf]
        %v1695 = vld [vmem:[%s1664 + $0xb4] sm:$0xf]
        %v1696 = vld [vmem:[%s1664 + $0xb8] sm:$0xf]
        %s1697 = scalar_lea.vmem %s1, 24
        %v1698 = vld [vmem:[%s1697] sm:$0xf]
        %v1699 = vld [vmem:[%s1697 + $0x4] sm:$0x3]
        %v1732 = vunpack.c.l.b16 %v1665
        %v1733 = vunpack.c.l.b16 %v1666
        %v1734 = vunpack.c.l.b16 %v1667
        %v1735 = vunpack.c.l.b16 %v1668
        %v1736 = vunpack.c.l.b16 %v1669
        %v1737 = vunpack.c.l.b16 %v1670
        %v1738 = vunpack.c.l.b16 %v1671
        %v1739 = vunpack.c.l.b16 %v1672
        %v1740 = vunpack.c.l.b16 %v1673
        %v1741 = vunpack.c.l.b16 %v1674
        %v1742 = vunpack.c.l.b16 %v1675
        %v1743 = vunpack.c.l.b16 %v1676
        %v1744 = vunpack.c.l.b16 %v1677
        %v1745 = vunpack.c.l.b16 %v1678
        %v1746 = vunpack.c.l.b16 %v1679
        %v1747 = vunpack.c.l.b16 %v1680
        %v1748 = vunpack.c.l.b16 %v1681
        %v1749 = vunpack.c.l.b16 %v1682
        %v1750 = vunpack.c.l.b16 %v1683
        %v1751 = vunpack.c.l.b16 %v1684
        %v1752 = vunpack.c.l.b16 %v1685
        %v1753 = vunpack.c.l.b16 %v1686
        %v1754 = vunpack.c.l.b16 %v1687
        %v1755 = vunpack.c.l.b16 %v1688
        %v1756 = vunpack.c.l.b16 %v1689
        %v1757 = vunpack.c.l.b16 %v1690
        %v1758 = vunpack.c.l.b16 %v1691
        %v1759 = vunpack.c.l.b16 %v1692
        %v1760 = vunpack.c.l.b16 %v1693
        %v1761 = vunpack.c.l.b16 %v1694
        %v1762 = vunpack.c.l.b16 %v1695
        %v1763 = vunpack.c.l.b16 %v1696
        %v1764 = vpack.c.b16 %v1733, %v1732
        %v1765 = vpack.c.b16 %v1735, %v1734
        %v1766 = vpack.c.b16 %v1737, %v1736
        %v1767 = vpack.c.b16 %v1739, %v1738
        %v1768 = vpack.c.b16 %v1741, %v1740
        %v1769 = vpack.c.b16 %v1743, %v1742
        %v1770 = vpack.c.b16 %v1745, %v1744
        %v1771 = vpack.c.b16 %v1747, %v1746
        %v1772 = vpack.c.b16 %v1749, %v1748
        %v1773 = vpack.c.b16 %v1751, %v1750
        %v1774 = vpack.c.b16 %v1753, %v1752
        %v1775 = vpack.c.b16 %v1755, %v1754
        %v1776 = vpack.c.b16 %v1757, %v1756
        %v1777 = vpack.c.b16 %v1759, %v1758
        %v1778 = vpack.c.b16 %v1761, %v1760
        %v1779 = vpack.c.b16 %v1763, %v1762
        %v1782 = vunpack.c.l.b16 %v1698
        %v1783 = vunpack.c.l.b16 %v1699
        %v1784 = vpack.c.b16 %v1783, %v1782
        %v1786 = vsel %vm690, %v1764, 0
        %v1789 = vsel %vm690, %v1765, 0
        %v1792 = vsel %vm690, %v1766, 0
        %v1795 = vsel %vm690, %v1767, 0
        %v1798 = vsel %vm690, %v1768, 0
        %v1801 = vsel %vm690, %v1769, 0
        %v1804 = vsel %vm690, %v1770, 0
        %v1807 = vsel %vm690, %v1771, 0
        %v1810 = vsel %vm690, %v1772, 0
        %v1813 = vsel %vm690, %v1773, 0
        %v1816 = vsel %vm690, %v1774, 0
        %v1819 = vsel %vm690, %v1775, 0
        %v1822 = vsel %vm690, %v1776, 0
        %v1825 = vsel %vm690, %v1777, 0
        %v1828 = vsel %vm690, %v1778, 0
        %v1831 = vsel %vm690, %v1779, 0
        %v1834 = vsel %vm739, %v1784, 0
        %1836 = vmatprep.subr.bf16.mxu0 0
        %1837 = vmatpush1.bf16.msra.mxu0 0
        %1838 = vmatprep.subr.bf16.mxu0 0
        %1839 = vmatpush1.bf16.msra.mxu0 0
        %1840 = vmatprep.subr.bf16.mxu0 0
        %1841 = vmatpush1.bf16.msra.mxu0 0
        %1842 = vmatprep.subr.bf16.mxu0 0
        %1843 = vmatpush1.bf16.msra.mxu0 0
        %1844 = vmatprep.subr.bf16.mxu0 0
        %1845 = vmatpush1.bf16.msra.mxu0 0
        %1846 = vmatprep.subr.bf16.mxu0 0
        %1847 = vmatpush1.bf16.msra.mxu0 0
        %1848 = vmatprep.subr.bf16.mxu0 0
        %1849 = vmatpush1.bf16.msra.mxu0 0
        %1850 = vmatprep.subr.bf16.mxu0 0
        %1851 = vmatpush1.bf16.msra.mxu0 %v1834
        %1852 = vmatprep.subr.bf16.mxu0 0
        %1853 = vmatpush2.bf16.msra.mxu0 0
        %1854 = vmatprep.subr.bf16.mxu0 0
        %1855 = vmatpush2.bf16.msra.mxu0 0
        %1856 = vmatprep.subr.bf16.mxu0 0
        %1857 = vmatpush2.bf16.msra.mxu0 0
        %1858 = vmatprep.subr.bf16.mxu0 0
        %1859 = vmatpush2.bf16.msra.mxu0 0
        %1860 = vmatprep.subr.bf16.mxu0 0
        %1861 = vmatpush2.bf16.msra.mxu0 0
        %1862 = vmatprep.subr.bf16.mxu0 0
        %1863 = vmatpush2.bf16.msra.mxu0 0
        %1864 = vmatprep.subr.bf16.mxu0 0
        %1865 = vmatpush2.bf16.msra.mxu0 0
        %1866 = vmatprep.subr.bf16.mxu0 0
        %1867 = vmatpush2.bf16.msra.mxu0 0
        %1868 = vmatprep.mubr.bf16.mxu0 0
        %1869 = vmatmul.mubr.bf16.gmra.mxu0 %v1786
        %v1870 = vpop.f32.mrf.mxu0
        %v1871 = vadd.f32 0.0, %v1870
        %v1872 = vpop.f32.mrf.mxu0
        %v1873 = vpop.f32.mrf.mxu0
        %v1874 = vadd.f32 0.0, %v1873
        %v1875 = vpop.f32.mrf.mxu0
        %1876 = vmatprep.mubr.bf16.mxu0 0
        %1877 = vmatmul.mubr.bf16.gmra.mxu0 %v1789
        %v1878 = vpop.f32.mrf.mxu0
        %v1879 = vadd.f32 0.0, %v1878
        %v1880 = vpop.f32.mrf.mxu0
        %v1881 = vpop.f32.mrf.mxu0
        %v1882 = vadd.f32 0.0, %v1881
        %v1883 = vpop.f32.mrf.mxu0
        %1884 = vmatprep.mubr.bf16.mxu0 0
        %1885 = vmatmul.mubr.bf16.gmra.mxu0 %v1792
        %v1886 = vpop.f32.mrf.mxu0
        %v1887 = vadd.f32 0.0, %v1886
        %v1888 = vpop.f32.mrf.mxu0
        %v1889 = vpop.f32.mrf.mxu0
        %v1890 = vadd.f32 0.0, %v1889
        %v1891 = vpop.f32.mrf.mxu0
        %1892 = vmatprep.mubr.bf16.mxu0 0
        %1893 = vmatmul.mubr.bf16.gmra.mxu0 %v1795
        %v1894 = vpop.f32.mrf.mxu0
        %v1895 = vadd.f32 0.0, %v1894
        %v1896 = vpop.f32.mrf.mxu0
        %v1897 = vpop.f32.mrf.mxu0
        %v1898 = vadd.f32 0.0, %v1897
        %v1899 = vpop.f32.mrf.mxu0
        %1900 = vmatprep.mubr.bf16.mxu0 0
        %1901 = vmatmul.mubr.bf16.gmra.mxu0 %v1798
        %v1902 = vpop.f32.mrf.mxu0
        %v1903 = vadd.f32 0.0, %v1902
        %v1904 = vpop.f32.mrf.mxu0
        %v1905 = vpop.f32.mrf.mxu0
        %v1906 = vadd.f32 0.0, %v1905
        %v1907 = vpop.f32.mrf.mxu0
        %1908 = vmatprep.mubr.bf16.mxu0 0
        %1909 = vmatmul.mubr.bf16.gmra.mxu0 %v1801
        %v1910 = vpop.f32.mrf.mxu0
        %v1911 = vadd.f32 0.0, %v1910
        %v1912 = vpop.f32.mrf.mxu0
        %v1913 = vpop.f32.mrf.mxu0
        %v1914 = vadd.f32 0.0, %v1913
        %v1915 = vpop.f32.mrf.mxu0
        %1916 = vmatprep.mubr.bf16.mxu0 0
        %1917 = vmatmul.mubr.bf16.gmra.mxu0 %v1804
        %v1918 = vpop.f32.mrf.mxu0
        %v1919 = vadd.f32 0.0, %v1918
        %v1920 = vpop.f32.mrf.mxu0
        %v1921 = vpop.f32.mrf.mxu0
        %v1922 = vadd.f32 0.0, %v1921
        %v1923 = vpop.f32.mrf.mxu0
        %1924 = vmatprep.mubr.bf16.mxu0 0
        %1925 = vmatmul.mubr.bf16.gmra.mxu0 %v1807
        %v1926 = vpop.f32.mrf.mxu0
        %v1927 = vadd.f32 0.0, %v1926
        %v1928 = vpop.f32.mrf.mxu0
        %v1929 = vpop.f32.mrf.mxu0
        %v1930 = vadd.f32 0.0, %v1929
        %v1931 = vpop.f32.mrf.mxu0
        %1932 = vmatprep.mubr.bf16.mxu0 0
        %1933 = vmatmul.mubr.bf16.gmra.mxu0 %v1810
        %v1934 = vpop.f32.mrf.mxu0
        %v1935 = vadd.f32 0.0, %v1934
        %v1936 = vpop.f32.mrf.mxu0
        %v1937 = vpop.f32.mrf.mxu0
        %v1938 = vadd.f32 0.0, %v1937
        %v1939 = vpop.f32.mrf.mxu0
        %1940 = vmatprep.mubr.bf16.mxu0 0
        %1941 = vmatmul.mubr.bf16.gmra.mxu0 %v1813
        %v1942 = vpop.f32.mrf.mxu0
        %v1943 = vadd.f32 0.0, %v1942
        %v1944 = vpop.f32.mrf.mxu0
        %v1945 = vpop.f32.mrf.mxu0
        %v1946 = vadd.f32 0.0, %v1945
        %v1947 = vpop.f32.mrf.mxu0
        %1948 = vmatprep.mubr.bf16.mxu0 0
        %1949 = vmatmul.mubr.bf16.gmra.mxu0 %v1816
        %v1950 = vpop.f32.mrf.mxu0
        %v1951 = vadd.f32 0.0, %v1950
        %v1952 = vpop.f32.mrf.mxu0
        %v1953 = vpop.f32.mrf.mxu0
        %v1954 = vadd.f32 0.0, %v1953
        %v1955 = vpop.f32.mrf.mxu0
        %1956 = vmatprep.mubr.bf16.mxu0 0
        %1957 = vmatmul.mubr.bf16.gmra.mxu0 %v1819
        %v1958 = vpop.f32.mrf.mxu0
        %v1959 = vadd.f32 0.0, %v1958
        %v1960 = vpop.f32.mrf.mxu0
        %v1961 = vpop.f32.mrf.mxu0
        %v1962 = vadd.f32 0.0, %v1961
        %v1963 = vpop.f32.mrf.mxu0
        %1964 = vmatprep.mubr.bf16.mxu0 0
        %1965 = vmatmul.mubr.bf16.gmra.mxu0 %v1822
        %v1966 = vpop.f32.mrf.mxu0
        %v1967 = vadd.f32 0.0, %v1966
        %v1968 = vpop.f32.mrf.mxu0
        %v1969 = vpop.f32.mrf.mxu0
        %v1970 = vadd.f32 0.0, %v1969
        %v1971 = vpop.f32.mrf.mxu0
        %1972 = vmatprep.mubr.bf16.mxu0 0
        %1973 = vmatmul.mubr.bf16.gmra.mxu0 %v1825
        %v1974 = vpop.f32.mrf.mxu0
        %v1975 = vadd.f32 0.0, %v1974
        %v1976 = vpop.f32.mrf.mxu0
        %v1977 = vpop.f32.mrf.mxu0
        %v1978 = vadd.f32 0.0, %v1977
        %v1979 = vpop.f32.mrf.mxu0
        %1980 = vmatprep.mubr.bf16.mxu0 0
        %1981 = vmatmul.mubr.bf16.gmra.mxu0 %v1828
        %v1982 = vpop.f32.mrf.mxu0
        %v1983 = vadd.f32 0.0, %v1982
        %v1984 = vpop.f32.mrf.mxu0
        %v1985 = vpop.f32.mrf.mxu0
        %v1986 = vadd.f32 0.0, %v1985
        %v1987 = vpop.f32.mrf.mxu0
        %1988 = vmatprep.mubr.bf16.mxu0 0
        %1989 = vmatmul.mubr.bf16.gmra.mxu0 %v1831
        %v1990 = vpop.f32.mrf.mxu0
        %v1991 = vadd.f32 0.0, %v1990
        %v1992 = vpop.f32.mrf.mxu0
        %v1993 = vpop.f32.mrf.mxu0
        %v1994 = vadd.f32 0.0, %v1993
        %v1995 = vpop.f32.mrf.mxu0
        %1996 = vdwg.mxu0
        %v1997 = vadd.f32 %v1632, %v1871
        %v1998 = vadd.f32 %v1633, %v1874
        %v1999 = vadd.f32 %v1634, %v1879
        %v2000 = vadd.f32 %v1635, %v1882
        %v2001 = vadd.f32 %v1636, %v1887
        %v2002 = vadd.f32 %v1637, %v1890
        %v2003 = vadd.f32 %v1638, %v1895
        %v2004 = vadd.f32 %v1639, %v1898
        %v2005 = vadd.f32 %v1640, %v1903
        %v2006 = vadd.f32 %v1641, %v1906
        %v2007 = vadd.f32 %v1642, %v1911
        %v2008 = vadd.f32 %v1643, %v1914
        %v2009 = vadd.f32 %v1644, %v1919
        %v2010 = vadd.f32 %v1645, %v1922
        %v2011 = vadd.f32 %v1646, %v1927
        %v2012 = vadd.f32 %v1647, %v1930
        %v2013 = vadd.f32 %v1648, %v1935
        %v2014 = vadd.f32 %v1649, %v1938
        %v2015 = vadd.f32 %v1650, %v1943
        %v2016 = vadd.f32 %v1651, %v1946
        %v2017 = vadd.f32 %v1652, %v1951
        %v2018 = vadd.f32 %v1653, %v1954
        %v2019 = vadd.f32 %v1654, %v1959
        %v2020 = vadd.f32 %v1655, %v1962
        %v2021 = vadd.f32 %v1656, %v1967
        %v2022 = vadd.f32 %v1657, %v1970
        %v2023 = vadd.f32 %v1658, %v1975
        %v2024 = vadd.f32 %v1659, %v1978
        %v2025 = vadd.f32 %v1660, %v1983
        %v2026 = vadd.f32 %v1661, %v1986
        %v2027 = vadd.f32 %v1662, %v1991
        %v2028 = vadd.f32 %v1663, %v1994
        %v2029 = vld [vmem:[%s1664] sm:$0xf]
        %v2030 = vld [vmem:[%s1664 + $0x4] sm:$0xf]
        %v2031 = vld [vmem:[%s1664 + $0x8] sm:$0x1]
        %v2032 = vld [vmem:[%s1664 + $0xc] sm:$0xf]
        %v2033 = vld [vmem:[%s1664 + $0x10] sm:$0xf]
        %v2034 = vld [vmem:[%s1664 + $0x14] sm:$0x1]
        %v2035 = vld [vmem:[%s1664 + $0x18] sm:$0xf]
        %v2036 = vld [vmem:[%s1664 + $0x1c] sm:$0xf]
        %v2037 = vld [vmem:[%s1664 + $0x20] sm:$0x1]
        %v2038 = vld [vmem:[%s1664 + $0x24] sm:$0xf]
        %v2039 = vld [vmem:[%s1664 + $0x28] sm:$0xf]
        %v2040 = vld [vmem:[%s1664 + $0x2c] sm:$0x1]
        %v2041 = vld [vmem:[%s1664 + $0x30] sm:$0xf]
        %v2042 = vld [vmem:[%s1664 + $0x34] sm:$0xf]
        %v2043 = vld [vmem:[%s1664 + $0x38] sm:$0x1]
        %v2044 = vld [vmem:[%s1664 + $0x3c] sm:$0xf]
        %v2045 = vld [vmem:[%s1664 + $0x40] sm:$0xf]
        %v2046 = vld [vmem:[%s1664 + $0x44] sm:$0x1]
        %v2047 = vld [vmem:[%s1664 + $0x48] sm:$0xf]
        %v2048 = vld [vmem:[%s1664 + $0x4c] sm:$0xf]
        %v2049 = vld [vmem:[%s1664 + $0x50] sm:$0x1]
        %v2050 = vld [vmem:[%s1664 + $0x54] sm:$0xf]
        %v2051 = vld [vmem:[%s1664 + $0x58] sm:$0xf]
        %v2052 = vld [vmem:[%s1664 + $0x5c] sm:$0x1]
        %v2053 = vld [vmem:[%s1664 + $0x60] sm:$0xf]
        %v2054 = vld [vmem:[%s1664 + $0x64] sm:$0xf]
        %v2055 = vld [vmem:[%s1664 + $0x68] sm:$0x1]
        %v2056 = vld [vmem:[%s1664 + $0x6c] sm:$0xf]
        %v2057 = vld [vmem:[%s1664 + $0x70] sm:$0xf]
        %v2058 = vld [vmem:[%s1664 + $0x74] sm:$0x1]
        %v2059 = vld [vmem:[%s1664 + $0x78] sm:$0xf]
        %v2060 = vld [vmem:[%s1664 + $0x7c] sm:$0xf]
        %v2061 = vld [vmem:[%s1664 + $0x80] sm:$0x1]
        %v2062 = vld [vmem:[%s1664 + $0x84] sm:$0xf]
        %v2063 = vld [vmem:[%s1664 + $0x88] sm:$0xf]
        %v2064 = vld [vmem:[%s1664 + $0x8c] sm:$0x1]
        %v2065 = vld [vmem:[%s1664 + $0x90] sm:$0xf]
        %v2066 = vld [vmem:[%s1664 + $0x94] sm:$0xf]
        %v2067 = vld [vmem:[%s1664 + $0x98] sm:$0x1]
        %v2068 = vld [vmem:[%s1664 + $0x9c] sm:$0xf]
        %v2069 = vld [vmem:[%s1664 + $0xa0] sm:$0xf]
        %v2070 = vld [vmem:[%s1664 + $0xa4] sm:$0x1]
        %v2071 = vld [vmem:[%s1664 + $0xa8] sm:$0xf]
        %v2072 = vld [vmem:[%s1664 + $0xac] sm:$0xf]
        %v2073 = vld [vmem:[%s1664 + $0xb0] sm:$0x1]
        %v2074 = vld [vmem:[%s1664 + $0xb4] sm:$0xf]
        %v2075 = vld [vmem:[%s1664 + $0xb8] sm:$0xf]
        %v2076 = vld [vmem:[%s1664 + $0xbc] sm:$0x1]
        %v2078 = vshrl.u32 %v2029, 16
        %v2080 = vrot.slane %v2078, 4
        %v2081 = vshll.u32 %v2029, 16
        %v2083 = vrot.slane %v2081, 5
        %v2084 = vor.u32 %v2080, %v2083
        %v2085 = vrot.slane %v2084, 4
        %v2087 = vshll.u32 %v2030, 16
        %v2089 = vrot.slane %v2087, 5
        %v2090 = vsel %vm249, %v2085, %v2089
        %v2091 = vshrl.u32 %v2030, 16
        %v2093 = vrot.slane %v2091, 4
        %v2094 = vor.u32 %v2093, %v2089
        %v2095 = vrot.slane %v2094, 4
        %v2097 = vshll.u32 %v2031, 16
        %v2099 = vrot.slane %v2097, 5
        %v2100 = vsel %vm249, %v2095, %v2099
        %v2102 = vshrl.u32 %v2032, 16
        %v2104 = vrot.slane %v2102, 4
        %v2105 = vshll.u32 %v2032, 16
        %v2107 = vrot.slane %v2105, 5
        %v2108 = vor.u32 %v2104, %v2107
        %v2109 = vrot.slane %v2108, 4
        %v2111 = vshll.u32 %v2033, 16
        %v2113 = vrot.slane %v2111, 5
        %v2114 = vsel %vm249, %v2109, %v2113
        %v2115 = vshrl.u32 %v2033, 16
        %v2117 = vrot.slane %v2115, 4
        %v2118 = vor.u32 %v2117, %v2113
        %v2119 = vrot.slane %v2118, 4
        %v2121 = vshll.u32 %v2034, 16
        %v2123 = vrot.slane %v2121, 5
        %v2124 = vsel %vm249, %v2119, %v2123
        %v2126 = vshrl.u32 %v2035, 16
        %v2128 = vrot.slane %v2126, 4
        %v2129 = vshll.u32 %v2035, 16
        %v2131 = vrot.slane %v2129, 5
        %v2132 = vor.u32 %v2128, %v2131
        %v2133 = vrot.slane %v2132, 4
        %v2135 = vshll.u32 %v2036, 16
        %v2137 = vrot.slane %v2135, 5
        %v2138 = vsel %vm249, %v2133, %v2137
        %v2139 = vshrl.u32 %v2036, 16
        %v2141 = vrot.slane %v2139, 4
        %v2142 = vor.u32 %v2141, %v2137
        %v2143 = vrot.slane %v2142, 4
        %v2145 = vshll.u32 %v2037, 16
        %v2147 = vrot.slane %v2145, 5
        %v2148 = vsel %vm249, %v2143, %v2147
        %v2150 = vshrl.u32 %v2038, 16
        %v2152 = vrot.slane %v2150, 4
        %v2153 = vshll.u32 %v2038, 16
        %v2155 = vrot.slane %v2153, 5
        %v2156 = vor.u32 %v2152, %v2155
        %v2157 = vrot.slane %v2156, 4
        %v2159 = vshll.u32 %v2039, 16
        %v2161 = vrot.slane %v2159, 5
        %v2162 = vsel %vm249, %v2157, %v2161
        %v2163 = vshrl.u32 %v2039, 16
        %v2165 = vrot.slane %v2163, 4
        %v2166 = vor.u32 %v2165, %v2161
        %v2167 = vrot.slane %v2166, 4
        %v2169 = vshll.u32 %v2040, 16
        %v2171 = vrot.slane %v2169, 5
        %v2172 = vsel %vm249, %v2167, %v2171
        %v2174 = vshrl.u32 %v2041, 16
        %v2176 = vrot.slane %v2174, 4
        %v2177 = vshll.u32 %v2041, 16
        %v2179 = vrot.slane %v2177, 5
        %v2180 = vor.u32 %v2176, %v2179
        %v2181 = vrot.slane %v2180, 4
        %v2183 = vshll.u32 %v2042, 16
        %v2185 = vrot.slane %v2183, 5
        %v2186 = vsel %vm249, %v2181, %v2185
        %v2187 = vshrl.u32 %v2042, 16
        %v2189 = vrot.slane %v2187, 4
        %v2190 = vor.u32 %v2189, %v2185
        %v2191 = vrot.slane %v2190, 4
        %v2193 = vshll.u32 %v2043, 16
        %v2195 = vrot.slane %v2193, 5
        %v2196 = vsel %vm249, %v2191, %v2195
        %v2198 = vshrl.u32 %v2044, 16
        %v2200 = vrot.slane %v2198, 4
        %v2201 = vshll.u32 %v2044, 16
        %v2203 = vrot.slane %v2201, 5
        %v2204 = vor.u32 %v2200, %v2203
        %v2205 = vrot.slane %v2204, 4
        %v2207 = vshll.u32 %v2045, 16
        %v2209 = vrot.slane %v2207, 5
        %v2210 = vsel %vm249, %v2205, %v2209
        %v2211 = vshrl.u32 %v2045, 16
        %v2213 = vrot.slane %v2211, 4
        %v2214 = vor.u32 %v2213, %v2209
        %v2215 = vrot.slane %v2214, 4
        %v2217 = vshll.u32 %v2046, 16
        %v2219 = vrot.slane %v2217, 5
        %v2220 = vsel %vm249, %v2215, %v2219
        %v2222 = vshrl.u32 %v2047, 16
        %v2224 = vrot.slane %v2222, 4
        %v2225 = vshll.u32 %v2047, 16
        %v2227 = vrot.slane %v2225, 5
        %v2228 = vor.u32 %v2224, %v2227
        %v2229 = vrot.slane %v2228, 4
        %v2231 = vshll.u32 %v2048, 16
        %v2233 = vrot.slane %v2231, 5
        %v2234 = vsel %vm249, %v2229, %v2233
        %v2235 = vshrl.u32 %v2048, 16
        %v2237 = vrot.slane %v2235, 4
        %v2238 = vor.u32 %v2237, %v2233
        %v2239 = vrot.slane %v2238, 4
        %v2241 = vshll.u32 %v2049, 16
        %v2243 = vrot.slane %v2241, 5
        %v2244 = vsel %vm249, %v2239, %v2243
        %v2246 = vshrl.u32 %v2050, 16
        %v2248 = vrot.slane %v2246, 4
        %v2249 = vshll.u32 %v2050, 16
        %v2251 = vrot.slane %v2249, 5
        %v2252 = vor.u32 %v2248, %v2251
        %v2253 = vrot.slane %v2252, 4
        %v2255 = vshll.u32 %v2051, 16
        %v2257 = vrot.slane %v2255, 5
        %v2258 = vsel %vm249, %v2253, %v2257
        %v2259 = vshrl.u32 %v2051, 16
        %v2261 = vrot.slane %v2259, 4
        %v2262 = vor.u32 %v2261, %v2257
        %v2263 = vrot.slane %v2262, 4
        %v2265 = vshll.u32 %v2052, 16
        %v2267 = vrot.slane %v2265, 5
        %v2268 = vsel %vm249, %v2263, %v2267
        %v2270 = vshrl.u32 %v2053, 16
        %v2272 = vrot.slane %v2270, 4
        %v2273 = vshll.u32 %v2053, 16
        %v2275 = vrot.slane %v2273, 5
        %v2276 = vor.u32 %v2272, %v2275
        %v2277 = vrot.slane %v2276, 4
        %v2279 = vshll.u32 %v2054, 16
        %v2281 = vrot.slane %v2279, 5
        %v2282 = vsel %vm249, %v2277, %v2281
        %v2283 = vshrl.u32 %v2054, 16
        %v2285 = vrot.slane %v2283, 4
        %v2286 = vor.u32 %v2285, %v2281
        %v2287 = vrot.slane %v2286, 4
        %v2289 = vshll.u32 %v2055, 16
        %v2291 = vrot.slane %v2289, 5
        %v2292 = vsel %vm249, %v2287, %v2291
        %v2294 = vshrl.u32 %v2056, 16
        %v2296 = vrot.slane %v2294, 4
        %v2297 = vshll.u32 %v2056, 16
        %v2299 = vrot.slane %v2297, 5
        %v2300 = vor.u32 %v2296, %v2299
        %v2301 = vrot.slane %v2300, 4
        %v2303 = vshll.u32 %v2057, 16
        %v2305 = vrot.slane %v2303, 5
        %v2306 = vsel %vm249, %v2301, %v2305
        %v2307 = vshrl.u32 %v2057, 16
        %v2309 = vrot.slane %v2307, 4
        %v2310 = vor.u32 %v2309, %v2305
        %v2311 = vrot.slane %v2310, 4
        %v2313 = vshll.u32 %v2058, 16
        %v2315 = vrot.slane %v2313, 5
        %v2316 = vsel %vm249, %v2311, %v2315
        %v2318 = vshrl.u32 %v2059, 16
        %v2320 = vrot.slane %v2318, 4
        %v2321 = vshll.u32 %v2059, 16
        %v2323 = vrot.slane %v2321, 5
        %v2324 = vor.u32 %v2320, %v2323
        %v2325 = vrot.slane %v2324, 4
        %v2327 = vshll.u32 %v2060, 16
        %v2329 = vrot.slane %v2327, 5
        %v2330 = vsel %vm249, %v2325, %v2329
        %v2331 = vshrl.u32 %v2060, 16
        %v2333 = vrot.slane %v2331, 4
        %v2334 = vor.u32 %v2333, %v2329
        %v2335 = vrot.slane %v2334, 4
        %v2337 = vshll.u32 %v2061, 16
        %v2339 = vrot.slane %v2337, 5
        %v2340 = vsel %vm249, %v2335, %v2339
        %v2342 = vshrl.u32 %v2062, 16
        %v2344 = vrot.slane %v2342, 4
        %v2345 = vshll.u32 %v2062, 16
        %v2347 = vrot.slane %v2345, 5
        %v2348 = vor.u32 %v2344, %v2347
        %v2349 = vrot.slane %v2348, 4
        %v2351 = vshll.u32 %v2063, 16
        %v2353 = vrot.slane %v2351, 5
        %v2354 = vsel %vm249, %v2349, %v2353
        %v2355 = vshrl.u32 %v2063, 16
        %v2357 = vrot.slane %v2355, 4
        %v2358 = vor.u32 %v2357, %v2353
        %v2359 = vrot.slane %v2358, 4
        %v2361 = vshll.u32 %v2064, 16
        %v2363 = vrot.slane %v2361, 5
        %v2364 = vsel %vm249, %v2359, %v2363
        %v2366 = vshrl.u32 %v2065, 16
        %v2368 = vrot.slane %v2366, 4
        %v2369 = vshll.u32 %v2065, 16
        %v2371 = vrot.slane %v2369, 5
        %v2372 = vor.u32 %v2368, %v2371
        %v2373 = vrot.slane %v2372, 4
        %v2375 = vshll.u32 %v2066, 16
        %v2377 = vrot.slane %v2375, 5
        %v2378 = vsel %vm249, %v2373, %v2377
        %v2379 = vshrl.u32 %v2066, 16
        %v2381 = vrot.slane %v2379, 4
        %v2382 = vor.u32 %v2381, %v2377
        %v2383 = vrot.slane %v2382, 4
        %v2385 = vshll.u32 %v2067, 16
        %v2387 = vrot.slane %v2385, 5
        %v2388 = vsel %vm249, %v2383, %v2387
        %v2390 = vshrl.u32 %v2068, 16
        %v2392 = vrot.slane %v2390, 4
        %v2393 = vshll.u32 %v2068, 16
        %v2395 = vrot.slane %v2393, 5
        %v2396 = vor.u32 %v2392, %v2395
        %v2397 = vrot.slane %v2396, 4
        %v2399 = vshll.u32 %v2069, 16
        %v2401 = vrot.slane %v2399, 5
        %v2402 = vsel %vm249, %v2397, %v2401
        %v2403 = vshrl.u32 %v2069, 16
        %v2405 = vrot.slane %v2403, 4
        %v2406 = vor.u32 %v2405, %v2401
        %v2407 = vrot.slane %v2406, 4
        %v2409 = vshll.u32 %v2070, 16
        %v2411 = vrot.slane %v2409, 5
        %v2412 = vsel %vm249, %v2407, %v2411
        %v2414 = vshrl.u32 %v2071, 16
        %v2416 = vrot.slane %v2414, 4
        %v2417 = vshll.u32 %v2071, 16
        %v2419 = vrot.slane %v2417, 5
        %v2420 = vor.u32 %v2416, %v2419
        %v2421 = vrot.slane %v2420, 4
        %v2423 = vshll.u32 %v2072, 16
        %v2425 = vrot.slane %v2423, 5
        %v2426 = vsel %vm249, %v2421, %v2425
        %v2427 = vshrl.u32 %v2072, 16
        %v2429 = vrot.slane %v2427, 4
        %v2430 = vor.u32 %v2429, %v2425
        %v2431 = vrot.slane %v2430, 4
        %v2433 = vshll.u32 %v2073, 16
        %v2435 = vrot.slane %v2433, 5
        %v2436 = vsel %vm249, %v2431, %v2435
        %v2438 = vshrl.u32 %v2074, 16
        %v2440 = vrot.slane %v2438, 4
        %v2441 = vshll.u32 %v2074, 16
        %v2443 = vrot.slane %v2441, 5
        %v2444 = vor.u32 %v2440, %v2443
        %v2445 = vrot.slane %v2444, 4
        %v2447 = vshll.u32 %v2075, 16
        %v2449 = vrot.slane %v2447, 5
        %v2450 = vsel %vm249, %v2445, %v2449
        %v2451 = vshrl.u32 %v2075, 16
        %v2453 = vrot.slane %v2451, 4
        %v2454 = vor.u32 %v2453, %v2449
        %v2455 = vrot.slane %v2454, 4
        %v2457 = vshll.u32 %v2076, 16
        %v2459 = vrot.slane %v2457, 5
        %v2460 = vsel %vm249, %v2455, %v2459
        %s2461 = scalar_lea.vmem %s1, 32
        %v2462 = vld [vmem:[%s2461] sm:$0xf]
        %v2463 = vld [vmem:[%s2461 + $0x4] sm:$0x3]
        %v2464 = vunpack.c.l.b16 %v2090
        %v2465 = vunpack.c.l.b16 %v2100
        %v2466 = vunpack.c.l.b16 %v2114
        %v2467 = vunpack.c.l.b16 %v2124
        %v2468 = vunpack.c.l.b16 %v2138
        %v2469 = vunpack.c.l.b16 %v2148
        %v2470 = vunpack.c.l.b16 %v2162
        %v2471 = vunpack.c.l.b16 %v2172
        %v2472 = vunpack.c.l.b16 %v2186
        %v2473 = vunpack.c.l.b16 %v2196
        %v2474 = vunpack.c.l.b16 %v2210
        %v2475 = vunpack.c.l.b16 %v2220
        %v2476 = vunpack.c.l.b16 %v2234
        %v2477 = vunpack.c.l.b16 %v2244
        %v2478 = vunpack.c.l.b16 %v2258
        %v2479 = vunpack.c.l.b16 %v2268
        %v2480 = vunpack.c.l.b16 %v2282
        %v2481 = vunpack.c.l.b16 %v2292
        %v2482 = vunpack.c.l.b16 %v2306
        %v2483 = vunpack.c.l.b16 %v2316
        %v2484 = vunpack.c.l.b16 %v2330
        %v2485 = vunpack.c.l.b16 %v2340
        %v2486 = vunpack.c.l.b16 %v2354
        %v2487 = vunpack.c.l.b16 %v2364
        %v2488 = vunpack.c.l.b16 %v2378
        %v2489 = vunpack.c.l.b16 %v2388
        %v2490 = vunpack.c.l.b16 %v2402
        %v2491 = vunpack.c.l.b16 %v2412
        %v2492 = vunpack.c.l.b16 %v2426
        %v2493 = vunpack.c.l.b16 %v2436
        %v2494 = vunpack.c.l.b16 %v2450
        %v2495 = vunpack.c.l.b16 %v2460
        %v2496 = vpack.c.b16 %v2465, %v2464
        %v2497 = vpack.c.b16 %v2467, %v2466
        %v2498 = vpack.c.b16 %v2469, %v2468
        %v2499 = vpack.c.b16 %v2471, %v2470
        %v2500 = vpack.c.b16 %v2473, %v2472
        %v2501 = vpack.c.b16 %v2475, %v2474
        %v2502 = vpack.c.b16 %v2477, %v2476
        %v2503 = vpack.c.b16 %v2479, %v2478
        %v2504 = vpack.c.b16 %v2481, %v2480
        %v2505 = vpack.c.b16 %v2483, %v2482
        %v2506 = vpack.c.b16 %v2485, %v2484
        %v2507 = vpack.c.b16 %v2487, %v2486
        %v2508 = vpack.c.b16 %v2489, %v2488
        %v2509 = vpack.c.b16 %v2491, %v2490
        %v2510 = vpack.c.b16 %v2493, %v2492
        %v2511 = vpack.c.b16 %v2495, %v2494
        %v2514 = vunpack.c.l.b16 %v2462
        %v2515 = vunpack.c.l.b16 %v2463
        %v2516 = vpack.c.b16 %v2515, %v2514
        %v2518 = vsel %vm690, %v2496, 0
        %v2521 = vsel %vm690, %v2497, 0
        %v2524 = vsel %vm690, %v2498, 0
        %v2527 = vsel %vm690, %v2499, 0
        %v2530 = vsel %vm690, %v2500, 0
        %v2533 = vsel %vm690, %v2501, 0
        %v2536 = vsel %vm690, %v2502, 0
        %v2539 = vsel %vm690, %v2503, 0
        %v2542 = vsel %vm690, %v2504, 0
        %v2545 = vsel %vm690, %v2505, 0
        %v2548 = vsel %vm690, %v2506, 0
        %v2551 = vsel %vm690, %v2507, 0
        %v2554 = vsel %vm690, %v2508, 0
        %v2557 = vsel %vm690, %v2509, 0
        %v2560 = vsel %vm690, %v2510, 0
        %v2563 = vsel %vm690, %v2511, 0
        %v2566 = vsel %vm739, %v2516, 0
        %2568 = vmatprep.subr.bf16.mxu0 0
        %2569 = vmatpush1.bf16.msra.mxu0 0
        %2570 = vmatprep.subr.bf16.mxu0 0
        %2571 = vmatpush1.bf16.msra.mxu0 0
        %2572 = vmatprep.subr.bf16.mxu0 0
        %2573 = vmatpush1.bf16.msra.mxu0 0
        %2574 = vmatprep.subr.bf16.mxu0 0
        %2575 = vmatpush1.bf16.msra.mxu0 0
        %2576 = vmatprep.subr.bf16.mxu0 0
        %2577 = vmatpush1.bf16.msra.mxu0 0
        %2578 = vmatprep.subr.bf16.mxu0 0
        %2579 = vmatpush1.bf16.msra.mxu0 0
        %2580 = vmatprep.subr.bf16.mxu0 0
        %2581 = vmatpush1.bf16.msra.mxu0 0
        %2582 = vmatprep.subr.bf16.mxu0 0
        %2583 = vmatpush1.bf16.msra.mxu0 %v2566
        %2584 = vmatprep.subr.bf16.mxu0 0
        %2585 = vmatpush2.bf16.msra.mxu0 0
        %2586 = vmatprep.subr.bf16.mxu0 0
        %2587 = vmatpush2.bf16.msra.mxu0 0
        %2588 = vmatprep.subr.bf16.mxu0 0
        %2589 = vmatpush2.bf16.msra.mxu0 0
        %2590 = vmatprep.subr.bf16.mxu0 0
        %2591 = vmatpush2.bf16.msra.mxu0 0
        %2592 = vmatprep.subr.bf16.mxu0 0
        %2593 = vmatpush2.bf16.msra.mxu0 0
        %2594 = vmatprep.subr.bf16.mxu0 0
        %2595 = vmatpush2.bf16.msra.mxu0 0
        %2596 = vmatprep.subr.bf16.mxu0 0
        %2597 = vmatpush2.bf16.msra.mxu0 0
        %2598 = vmatprep.subr.bf16.mxu0 0
        %2599 = vmatpush2.bf16.msra.mxu0 0
        %2600 = vmatprep.mubr.bf16.mxu0 0
        %2601 = vmatmul.mubr.bf16.gmra.mxu0 %v2518
        %v2602 = vpop.f32.mrf.mxu0
        %v2603 = vadd.f32 0.0, %v2602
        %v2604 = vpop.f32.mrf.mxu0
        %v2605 = vpop.f32.mrf.mxu0
        %v2606 = vadd.f32 0.0, %v2605
        %v2607 = vpop.f32.mrf.mxu0
        %2608 = vmatprep.mubr.bf16.mxu0 0
        %2609 = vmatmul.mubr.bf16.gmra.mxu0 %v2521
        %v2610 = vpop.f32.mrf.mxu0
        %v2611 = vadd.f32 0.0, %v2610
        %v2612 = vpop.f32.mrf.mxu0
        %v2613 = vpop.f32.mrf.mxu0
        %v2614 = vadd.f32 0.0, %v2613
        %v2615 = vpop.f32.mrf.mxu0
        %2616 = vmatprep.mubr.bf16.mxu0 0
        %2617 = vmatmul.mubr.bf16.gmra.mxu0 %v2524
        %v2618 = vpop.f32.mrf.mxu0
        %v2619 = vadd.f32 0.0, %v2618
        %v2620 = vpop.f32.mrf.mxu0
        %v2621 = vpop.f32.mrf.mxu0
        %v2622 = vadd.f32 0.0, %v2621
        %v2623 = vpop.f32.mrf.mxu0
        %2624 = vmatprep.mubr.bf16.mxu0 0
        %2625 = vmatmul.mubr.bf16.gmra.mxu0 %v2527
        %v2626 = vpop.f32.mrf.mxu0
        %v2627 = vadd.f32 0.0, %v2626
        %v2628 = vpop.f32.mrf.mxu0
        %v2629 = vpop.f32.mrf.mxu0
        %v2630 = vadd.f32 0.0, %v2629
        %v2631 = vpop.f32.mrf.mxu0
        %2632 = vmatprep.mubr.bf16.mxu0 0
        %2633 = vmatmul.mubr.bf16.gmra.mxu0 %v2530
        %v2634 = vpop.f32.mrf.mxu0
        %v2635 = vadd.f32 0.0, %v2634
        %v2636 = vpop.f32.mrf.mxu0
        %v2637 = vpop.f32.mrf.mxu0
        %v2638 = vadd.f32 0.0, %v2637
        %v2639 = vpop.f32.mrf.mxu0
        %2640 = vmatprep.mubr.bf16.mxu0 0
        %2641 = vmatmul.mubr.bf16.gmra.mxu0 %v2533
        %v2642 = vpop.f32.mrf.mxu0
        %v2643 = vadd.f32 0.0, %v2642
        %v2644 = vpop.f32.mrf.mxu0
        %v2645 = vpop.f32.mrf.mxu0
        %v2646 = vadd.f32 0.0, %v2645
        %v2647 = vpop.f32.mrf.mxu0
        %2648 = vmatprep.mubr.bf16.mxu0 0
        %2649 = vmatmul.mubr.bf16.gmra.mxu0 %v2536
        %v2650 = vpop.f32.mrf.mxu0
        %v2651 = vadd.f32 0.0, %v2650
        %v2652 = vpop.f32.mrf.mxu0
        %v2653 = vpop.f32.mrf.mxu0
        %v2654 = vadd.f32 0.0, %v2653
        %v2655 = vpop.f32.mrf.mxu0
        %2656 = vmatprep.mubr.bf16.mxu0 0
        %2657 = vmatmul.mubr.bf16.gmra.mxu0 %v2539
        %v2658 = vpop.f32.mrf.mxu0
        %v2659 = vadd.f32 0.0, %v2658
        %v2660 = vpop.f32.mrf.mxu0
        %v2661 = vpop.f32.mrf.mxu0
        %v2662 = vadd.f32 0.0, %v2661
        %v2663 = vpop.f32.mrf.mxu0
        %2664 = vmatprep.mubr.bf16.mxu0 0
        %2665 = vmatmul.mubr.bf16.gmra.mxu0 %v2542
        %v2666 = vpop.f32.mrf.mxu0
        %v2667 = vadd.f32 0.0, %v2666
        %v2668 = vpop.f32.mrf.mxu0
        %v2669 = vpop.f32.mrf.mxu0
        %v2670 = vadd.f32 0.0, %v2669
        %v2671 = vpop.f32.mrf.mxu0
        %2672 = vmatprep.mubr.bf16.mxu0 0
        %2673 = vmatmul.mubr.bf16.gmra.mxu0 %v2545
        %v2674 = vpop.f32.mrf.mxu0
        %v2675 = vadd.f32 0.0, %v2674
        %v2676 = vpop.f32.mrf.mxu0
        %v2677 = vpop.f32.mrf.mxu0
        %v2678 = vadd.f32 0.0, %v2677
        %v2679 = vpop.f32.mrf.mxu0
        %2680 = vmatprep.mubr.bf16.mxu0 0
        %2681 = vmatmul.mubr.bf16.gmra.mxu0 %v2548
        %v2682 = vpop.f32.mrf.mxu0
        %v2683 = vadd.f32 0.0, %v2682
        %v2684 = vpop.f32.mrf.mxu0
        %v2685 = vpop.f32.mrf.mxu0
        %v2686 = vadd.f32 0.0, %v2685
        %v2687 = vpop.f32.mrf.mxu0
        %2688 = vmatprep.mubr.bf16.mxu0 0
        %2689 = vmatmul.mubr.bf16.gmra.mxu0 %v2551
        %v2690 = vpop.f32.mrf.mxu0
        %v2691 = vadd.f32 0.0, %v2690
        %v2692 = vpop.f32.mrf.mxu0
        %v2693 = vpop.f32.mrf.mxu0
        %v2694 = vadd.f32 0.0, %v2693
        %v2695 = vpop.f32.mrf.mxu0
        %2696 = vmatprep.mubr.bf16.mxu0 0
        %2697 = vmatmul.mubr.bf16.gmra.mxu0 %v2554
        %v2698 = vpop.f32.mrf.mxu0
        %v2699 = vadd.f32 0.0, %v2698
        %v2700 = vpop.f32.mrf.mxu0
        %v2701 = vpop.f32.mrf.mxu0
        %v2702 = vadd.f32 0.0, %v2701
        %v2703 = vpop.f32.mrf.mxu0
        %2704 = vmatprep.mubr.bf16.mxu0 0
        %2705 = vmatmul.mubr.bf16.gmra.mxu0 %v2557
        %v2706 = vpop.f32.mrf.mxu0
        %v2707 = vadd.f32 0.0, %v2706
        %v2708 = vpop.f32.mrf.mxu0
        %v2709 = vpop.f32.mrf.mxu0
        %v2710 = vadd.f32 0.0, %v2709
        %v2711 = vpop.f32.mrf.mxu0
        %2712 = vmatprep.mubr.bf16.mxu0 0
        %2713 = vmatmul.mubr.bf16.gmra.mxu0 %v2560
        %v2714 = vpop.f32.mrf.mxu0
        %v2715 = vadd.f32 0.0, %v2714
        %v2716 = vpop.f32.mrf.mxu0
        %v2717 = vpop.f32.mrf.mxu0
        %v2718 = vadd.f32 0.0, %v2717
        %v2719 = vpop.f32.mrf.mxu0
        %2720 = vmatprep.mubr.bf16.mxu0 0
        %2721 = vmatmul.mubr.bf16.gmra.mxu0 %v2563
        %v2722 = vpop.f32.mrf.mxu0
        %v2723 = vadd.f32 0.0, %v2722
        %v2724 = vpop.f32.mrf.mxu0
        %v2725 = vpop.f32.mrf.mxu0
        %v2726 = vadd.f32 0.0, %v2725
        %v2727 = vpop.f32.mrf.mxu0
        %2728 = vdwg.mxu0
        %v2729 = vadd.f32 %v1997, %v2603
        %v2730 = vadd.f32 %v1998, %v2606
        %v2731 = vadd.f32 %v1999, %v2611
        %v2732 = vadd.f32 %v2000, %v2614
        %v2733 = vadd.f32 %v2001, %v2619
        %v2734 = vadd.f32 %v2002, %v2622
        %v2735 = vadd.f32 %v2003, %v2627
        %v2736 = vadd.f32 %v2004, %v2630
        %v2737 = vadd.f32 %v2005, %v2635
        %v2738 = vadd.f32 %v2006, %v2638
        %v2739 = vadd.f32 %v2007, %v2643
        %v2740 = vadd.f32 %v2008, %v2646
        %v2741 = vadd.f32 %v2009, %v2651
        %v2742 = vadd.f32 %v2010, %v2654
        %v2743 = vadd.f32 %v2011, %v2659
        %v2744 = vadd.f32 %v2012, %v2662
        %v2745 = vadd.f32 %v2013, %v2667
        %v2746 = vadd.f32 %v2014, %v2670
        %v2747 = vadd.f32 %v2015, %v2675
        %v2748 = vadd.f32 %v2016, %v2678
        %v2749 = vadd.f32 %v2017, %v2683
        %v2750 = vadd.f32 %v2018, %v2686
        %v2751 = vadd.f32 %v2019, %v2691
        %v2752 = vadd.f32 %v2020, %v2694
        %v2753 = vadd.f32 %v2021, %v2699
        %v2754 = vadd.f32 %v2022, %v2702
        %v2755 = vadd.f32 %v2023, %v2707
        %v2756 = vadd.f32 %v2024, %v2710
        %v2757 = vadd.f32 %v2025, %v2715
        %v2758 = vadd.f32 %v2026, %v2718
        %v2759 = vadd.f32 %v2027, %v2723
        %v2760 = vadd.f32 %v2028, %v2726
        %v2761 = vld [vmem:[%s1664] sm:$0xe]
        %v2762 = vld [vmem:[%s1664 + $0xc] sm:$0xe]
        %v2763 = vld [vmem:[%s1664 + $0x18] sm:$0xe]
        %v2764 = vld [vmem:[%s1664 + $0x24] sm:$0xe]
        %v2765 = vld [vmem:[%s1664 + $0x30] sm:$0xe]
        %v2766 = vld [vmem:[%s1664 + $0x3c] sm:$0xe]
        %v2767 = vld [vmem:[%s1664 + $0x48] sm:$0xe]
        %v2768 = vld [vmem:[%s1664 + $0x54] sm:$0xe]
        %v2769 = vld [vmem:[%s1664 + $0x60] sm:$0xe]
        %v2770 = vld [vmem:[%s1664 + $0x6c] sm:$0xe]
        %v2771 = vld [vmem:[%s1664 + $0x78] sm:$0xe]
        %v2772 = vld [vmem:[%s1664 + $0x84] sm:$0xe]
        %v2773 = vld [vmem:[%s1664 + $0x90] sm:$0xe]
        %v2774 = vld [vmem:[%s1664 + $0x9c] sm:$0xe]
        %v2775 = vld [vmem:[%s1664 + $0xa8] sm:$0xe]
        %v2776 = vld [vmem:[%s1664 + $0xb4] sm:$0xe]
        %v2825 = vrot.slane %v2761, 5
        %v2826 = vrot.slane %v2825, 4
        %v2827 = vrot.slane %v2030, 5
        %v2828 = vsel %vm1251, %v2826, %v2827
        %v2829 = vrot.slane %v2827, 4
        %v2830 = vrot.slane %v2031, 5
        %v2831 = vsel %vm1251, %v2829, %v2830
        %v2832 = vrot.slane %v2762, 5
        %v2833 = vrot.slane %v2832, 4
        %v2834 = vrot.slane %v2033, 5
        %v2835 = vsel %vm1251, %v2833, %v2834
        %v2836 = vrot.slane %v2834, 4
        %v2837 = vrot.slane %v2034, 5
        %v2838 = vsel %vm1251, %v2836, %v2837
        %v2839 = vrot.slane %v2763, 5
        %v2840 = vrot.slane %v2839, 4
        %v2841 = vrot.slane %v2036, 5
        %v2842 = vsel %vm1251, %v2840, %v2841
        %v2843 = vrot.slane %v2841, 4
        %v2844 = vrot.slane %v2037, 5
        %v2845 = vsel %vm1251, %v2843, %v2844
        %v2846 = vrot.slane %v2764, 5
        %v2847 = vrot.slane %v2846, 4
        %v2848 = vrot.slane %v2039, 5
        %v2849 = vsel %vm1251, %v2847, %v2848
        %v2850 = vrot.slane %v2848, 4
        %v2851 = vrot.slane %v2040, 5
        %v2852 = vsel %vm1251, %v2850, %v2851
        %v2853 = vrot.slane %v2765, 5
        %v2854 = vrot.slane %v2853, 4
        %v2855 = vrot.slane %v2042, 5
        %v2856 = vsel %vm1251, %v2854, %v2855
        %v2857 = vrot.slane %v2855, 4
        %v2858 = vrot.slane %v2043, 5
        %v2859 = vsel %vm1251, %v2857, %v2858
        %v2860 = vrot.slane %v2766, 5
        %v2861 = vrot.slane %v2860, 4
        %v2862 = vrot.slane %v2045, 5
        %v2863 = vsel %vm1251, %v2861, %v2862
        %v2864 = vrot.slane %v2862, 4
        %v2865 = vrot.slane %v2046, 5
        %v2866 = vsel %vm1251, %v2864, %v2865
        %v2867 = vrot.slane %v2767, 5
        %v2868 = vrot.slane %v2867, 4
        %v2869 = vrot.slane %v2048, 5
        %v2870 = vsel %vm1251, %v2868, %v2869
        %v2871 = vrot.slane %v2869, 4
        %v2872 = vrot.slane %v2049, 5
        %v2873 = vsel %vm1251, %v2871, %v2872
        %v2874 = vrot.slane %v2768, 5
        %v2875 = vrot.slane %v2874, 4
        %v2876 = vrot.slane %v2051, 5
        %v2877 = vsel %vm1251, %v2875, %v2876
        %v2878 = vrot.slane %v2876, 4
        %v2879 = vrot.slane %v2052, 5
        %v2880 = vsel %vm1251, %v2878, %v2879
        %v2881 = vrot.slane %v2769, 5
        %v2882 = vrot.slane %v2881, 4
        %v2883 = vrot.slane %v2054, 5
        %v2884 = vsel %vm1251, %v2882, %v2883
        %v2885 = vrot.slane %v2883, 4
        %v2886 = vrot.slane %v2055, 5
        %v2887 = vsel %vm1251, %v2885, %v2886
        %v2888 = vrot.slane %v2770, 5
        %v2889 = vrot.slane %v2888, 4
        %v2890 = vrot.slane %v2057, 5
        %v2891 = vsel %vm1251, %v2889, %v2890
        %v2892 = vrot.slane %v2890, 4
        %v2893 = vrot.slane %v2058, 5
        %v2894 = vsel %vm1251, %v2892, %v2893
        %v2895 = vrot.slane %v2771, 5
        %v2896 = vrot.slane %v2895, 4
        %v2897 = vrot.slane %v2060, 5
        %v2898 = vsel %vm1251, %v2896, %v2897
        %v2899 = vrot.slane %v2897, 4
        %v2900 = vrot.slane %v2061, 5
        %v2901 = vsel %vm1251, %v2899, %v2900
        %v2902 = vrot.slane %v2772, 5
        %v2903 = vrot.slane %v2902, 4
        %v2904 = vrot.slane %v2063, 5
        %v2905 = vsel %vm1251, %v2903, %v2904
        %v2906 = vrot.slane %v2904, 4
        %v2907 = vrot.slane %v2064, 5
        %v2908 = vsel %vm1251, %v2906, %v2907
        %v2909 = vrot.slane %v2773, 5
        %v2910 = vrot.slane %v2909, 4
        %v2911 = vrot.slane %v2066, 5
        %v2912 = vsel %vm1251, %v2910, %v2911
        %v2913 = vrot.slane %v2911, 4
        %v2914 = vrot.slane %v2067, 5
        %v2915 = vsel %vm1251, %v2913, %v2914
        %v2916 = vrot.slane %v2774, 5
        %v2917 = vrot.slane %v2916, 4
        %v2918 = vrot.slane %v2069, 5
        %v2919 = vsel %vm1251, %v2917, %v2918
        %v2920 = vrot.slane %v2918, 4
        %v2921 = vrot.slane %v2070, 5
        %v2922 = vsel %vm1251, %v2920, %v2921
        %v2923 = vrot.slane %v2775, 5
        %v2924 = vrot.slane %v2923, 4
        %v2925 = vrot.slane %v2072, 5
        %v2926 = vsel %vm1251, %v2924, %v2925
        %v2927 = vrot.slane %v2925, 4
        %v2928 = vrot.slane %v2073, 5
        %v2929 = vsel %vm1251, %v2927, %v2928
        %v2930 = vrot.slane %v2776, 5
        %v2931 = vrot.slane %v2930, 4
        %v2932 = vrot.slane %v2075, 5
        %v2933 = vsel %vm1251, %v2931, %v2932
        %v2934 = vrot.slane %v2932, 4
        %v2935 = vrot.slane %v2076, 5
        %v2936 = vsel %vm1251, %v2934, %v2935
        %s2937 = scalar_lea.vmem %s1, 40
        %v2938 = vld [vmem:[%s2937] sm:$0xf]
        %v2939 = vld [vmem:[%s2937 + $0x4] sm:$0x3]
        %v2940 = vunpack.c.l.b16 %v2828
        %v2941 = vunpack.c.l.b16 %v2831
        %v2942 = vunpack.c.l.b16 %v2835
        %v2943 = vunpack.c.l.b16 %v2838
        %v2944 = vunpack.c.l.b16 %v2842
        %v2945 = vunpack.c.l.b16 %v2845
        %v2946 = vunpack.c.l.b16 %v2849
        %v2947 = vunpack.c.l.b16 %v2852
        %v2948 = vunpack.c.l.b16 %v2856
        %v2949 = vunpack.c.l.b16 %v2859
        %v2950 = vunpack.c.l.b16 %v2863
        %v2951 = vunpack.c.l.b16 %v2866
        %v2952 = vunpack.c.l.b16 %v2870
        %v2953 = vunpack.c.l.b16 %v2873
        %v2954 = vunpack.c.l.b16 %v2877
        %v2955 = vunpack.c.l.b16 %v2880
        %v2956 = vunpack.c.l.b16 %v2884
        %v2957 = vunpack.c.l.b16 %v2887
        %v2958 = vunpack.c.l.b16 %v2891
        %v2959 = vunpack.c.l.b16 %v2894
        %v2960 = vunpack.c.l.b16 %v2898
        %v2961 = vunpack.c.l.b16 %v2901
        %v2962 = vunpack.c.l.b16 %v2905
        %v2963 = vunpack.c.l.b16 %v2908
        %v2964 = vunpack.c.l.b16 %v2912
        %v2965 = vunpack.c.l.b16 %v2915
        %v2966 = vunpack.c.l.b16 %v2919
        %v2967 = vunpack.c.l.b16 %v2922
        %v2968 = vunpack.c.l.b16 %v2926
        %v2969 = vunpack.c.l.b16 %v2929
        %v2970 = vunpack.c.l.b16 %v2933
        %v2971 = vunpack.c.l.b16 %v2936
        %v2972 = vpack.c.b16 %v2941, %v2940
        %v2973 = vpack.c.b16 %v2943, %v2942
        %v2974 = vpack.c.b16 %v2945, %v2944
        %v2975 = vpack.c.b16 %v2947, %v2946
        %v2976 = vpack.c.b16 %v2949, %v2948
        %v2977 = vpack.c.b16 %v2951, %v2950
        %v2978 = vpack.c.b16 %v2953, %v2952
        %v2979 = vpack.c.b16 %v2955, %v2954
        %v2980 = vpack.c.b16 %v2957, %v2956
        %v2981 = vpack.c.b16 %v2959, %v2958
        %v2982 = vpack.c.b16 %v2961, %v2960
        %v2983 = vpack.c.b16 %v2963, %v2962
        %v2984 = vpack.c.b16 %v2965, %v2964
        %v2985 = vpack.c.b16 %v2967, %v2966
        %v2986 = vpack.c.b16 %v2969, %v2968
        %v2987 = vpack.c.b16 %v2971, %v2970
        %v2990 = vunpack.c.l.b16 %v2938
        %v2991 = vunpack.c.l.b16 %v2939
        %v2992 = vpack.c.b16 %v2991, %v2990
        %v2994 = vsel %vm690, %v2972, 0
        %v2997 = vsel %vm690, %v2973, 0
        %v3000 = vsel %vm690, %v2974, 0
        %v3003 = vsel %vm690, %v2975, 0
        %v3006 = vsel %vm690, %v2976, 0
        %v3009 = vsel %vm690, %v2977, 0
        %v3012 = vsel %vm690, %v2978, 0
        %v3015 = vsel %vm690, %v2979, 0
        %v3018 = vsel %vm690, %v2980, 0
        %v3021 = vsel %vm690, %v2981, 0
        %v3024 = vsel %vm690, %v2982, 0
        %v3027 = vsel %vm690, %v2983, 0
        %v3030 = vsel %vm690, %v2984, 0
        %v3033 = vsel %vm690, %v2985, 0
        %v3036 = vsel %vm690, %v2986, 0
        %v3039 = vsel %vm690, %v2987, 0
        %v3042 = vsel %vm739, %v2992, 0
        %3044 = vmatprep.subr.bf16.mxu0 0
        %3045 = vmatpush1.bf16.msra.mxu0 0
        %3046 = vmatprep.subr.bf16.mxu0 0
        %3047 = vmatpush1.bf16.msra.mxu0 0
        %3048 = vmatprep.subr.bf16.mxu0 0
        %3049 = vmatpush1.bf16.msra.mxu0 0
        %3050 = vmatprep.subr.bf16.mxu0 0
        %3051 = vmatpush1.bf16.msra.mxu0 0
        %3052 = vmatprep.subr.bf16.mxu0 0
        %3053 = vmatpush1.bf16.msra.mxu0 0
        %3054 = vmatprep.subr.bf16.mxu0 0
        %3055 = vmatpush1.bf16.msra.mxu0 0
        %3056 = vmatprep.subr.bf16.mxu0 0
        %3057 = vmatpush1.bf16.msra.mxu0 0
        %3058 = vmatprep.subr.bf16.mxu0 0
        %3059 = vmatpush1.bf16.msra.mxu0 %v3042
        %3060 = vmatprep.subr.bf16.mxu0 0
        %3061 = vmatpush2.bf16.msra.mxu0 0
        %3062 = vmatprep.subr.bf16.mxu0 0
        %3063 = vmatpush2.bf16.msra.mxu0 0
        %3064 = vmatprep.subr.bf16.mxu0 0
        %3065 = vmatpush2.bf16.msra.mxu0 0
        %3066 = vmatprep.subr.bf16.mxu0 0
        %3067 = vmatpush2.bf16.msra.mxu0 0
        %3068 = vmatprep.subr.bf16.mxu0 0
        %3069 = vmatpush2.bf16.msra.mxu0 0
        %3070 = vmatprep.subr.bf16.mxu0 0
        %3071 = vmatpush2.bf16.msra.mxu0 0
        %3072 = vmatprep.subr.bf16.mxu0 0
        %3073 = vmatpush2.bf16.msra.mxu0 0
        %3074 = vmatprep.subr.bf16.mxu0 0
        %3075 = vmatpush2.bf16.msra.mxu0 0
        %3076 = vmatprep.mubr.bf16.mxu0 0
        %3077 = vmatmul.mubr.bf16.gmra.mxu0 %v2994
        %v3078 = vpop.f32.mrf.mxu0
        %v3079 = vadd.f32 0.0, %v3078
        %v3080 = vpop.f32.mrf.mxu0
        %v3081 = vpop.f32.mrf.mxu0
        %v3082 = vadd.f32 0.0, %v3081
        %v3083 = vpop.f32.mrf.mxu0
        %3084 = vmatprep.mubr.bf16.mxu0 0
        %3085 = vmatmul.mubr.bf16.gmra.mxu0 %v2997
        %v3086 = vpop.f32.mrf.mxu0
        %v3087 = vadd.f32 0.0, %v3086
        %v3088 = vpop.f32.mrf.mxu0
        %v3089 = vpop.f32.mrf.mxu0
        %v3090 = vadd.f32 0.0, %v3089
        %v3091 = vpop.f32.mrf.mxu0
        %3092 = vmatprep.mubr.bf16.mxu0 0
        %3093 = vmatmul.mubr.bf16.gmra.mxu0 %v3000
        %v3094 = vpop.f32.mrf.mxu0
        %v3095 = vadd.f32 0.0, %v3094
        %v3096 = vpop.f32.mrf.mxu0
        %v3097 = vpop.f32.mrf.mxu0
        %v3098 = vadd.f32 0.0, %v3097
        %v3099 = vpop.f32.mrf.mxu0
        %3100 = vmatprep.mubr.bf16.mxu0 0
        %3101 = vmatmul.mubr.bf16.gmra.mxu0 %v3003
        %v3102 = vpop.f32.mrf.mxu0
        %v3103 = vadd.f32 0.0, %v3102
        %v3104 = vpop.f32.mrf.mxu0
        %v3105 = vpop.f32.mrf.mxu0
        %v3106 = vadd.f32 0.0, %v3105
        %v3107 = vpop.f32.mrf.mxu0
        %3108 = vmatprep.mubr.bf16.mxu0 0
        %3109 = vmatmul.mubr.bf16.gmra.mxu0 %v3006
        %v3110 = vpop.f32.mrf.mxu0
        %v3111 = vadd.f32 0.0, %v3110
        %v3112 = vpop.f32.mrf.mxu0
        %v3113 = vpop.f32.mrf.mxu0
        %v3114 = vadd.f32 0.0, %v3113
        %v3115 = vpop.f32.mrf.mxu0
        %3116 = vmatprep.mubr.bf16.mxu0 0
        %3117 = vmatmul.mubr.bf16.gmra.mxu0 %v3009
        %v3118 = vpop.f32.mrf.mxu0
        %v3119 = vadd.f32 0.0, %v3118
        %v3120 = vpop.f32.mrf.mxu0
        %v3121 = vpop.f32.mrf.mxu0
        %v3122 = vadd.f32 0.0, %v3121
        %v3123 = vpop.f32.mrf.mxu0
        %3124 = vmatprep.mubr.bf16.mxu0 0
        %3125 = vmatmul.mubr.bf16.gmra.mxu0 %v3012
        %v3126 = vpop.f32.mrf.mxu0
        %v3127 = vadd.f32 0.0, %v3126
        %v3128 = vpop.f32.mrf.mxu0
        %v3129 = vpop.f32.mrf.mxu0
        %v3130 = vadd.f32 0.0, %v3129
        %v3131 = vpop.f32.mrf.mxu0
        %3132 = vmatprep.mubr.bf16.mxu0 0
        %3133 = vmatmul.mubr.bf16.gmra.mxu0 %v3015
        %v3134 = vpop.f32.mrf.mxu0
        %v3135 = vadd.f32 0.0, %v3134
        %v3136 = vpop.f32.mrf.mxu0
        %v3137 = vpop.f32.mrf.mxu0
        %v3138 = vadd.f32 0.0, %v3137
        %v3139 = vpop.f32.mrf.mxu0
        %3140 = vmatprep.mubr.bf16.mxu0 0
        %3141 = vmatmul.mubr.bf16.gmra.mxu0 %v3018
        %v3142 = vpop.f32.mrf.mxu0
        %v3143 = vadd.f32 0.0, %v3142
        %v3144 = vpop.f32.mrf.mxu0
        %v3145 = vpop.f32.mrf.mxu0
        %v3146 = vadd.f32 0.0, %v3145
        %v3147 = vpop.f32.mrf.mxu0
        %3148 = vmatprep.mubr.bf16.mxu0 0
        %3149 = vmatmul.mubr.bf16.gmra.mxu0 %v3021
        %v3150 = vpop.f32.mrf.mxu0
        %v3151 = vadd.f32 0.0, %v3150
        %v3152 = vpop.f32.mrf.mxu0
        %v3153 = vpop.f32.mrf.mxu0
        %v3154 = vadd.f32 0.0, %v3153
        %v3155 = vpop.f32.mrf.mxu0
        %3156 = vmatprep.mubr.bf16.mxu0 0
        %3157 = vmatmul.mubr.bf16.gmra.mxu0 %v3024
        %v3158 = vpop.f32.mrf.mxu0
        %v3159 = vadd.f32 0.0, %v3158
        %v3160 = vpop.f32.mrf.mxu0
        %v3161 = vpop.f32.mrf.mxu0
        %v3162 = vadd.f32 0.0, %v3161
        %v3163 = vpop.f32.mrf.mxu0
        %3164 = vmatprep.mubr.bf16.mxu0 0
        %3165 = vmatmul.mubr.bf16.gmra.mxu0 %v3027
        %v3166 = vpop.f32.mrf.mxu0
        %v3167 = vadd.f32 0.0, %v3166
        %v3168 = vpop.f32.mrf.mxu0
        %v3169 = vpop.f32.mrf.mxu0
        %v3170 = vadd.f32 0.0, %v3169
        %v3171 = vpop.f32.mrf.mxu0
        %3172 = vmatprep.mubr.bf16.mxu0 0
        %3173 = vmatmul.mubr.bf16.gmra.mxu0 %v3030
        %v3174 = vpop.f32.mrf.mxu0
        %v3175 = vadd.f32 0.0, %v3174
        %v3176 = vpop.f32.mrf.mxu0
        %v3177 = vpop.f32.mrf.mxu0
        %v3178 = vadd.f32 0.0, %v3177
        %v3179 = vpop.f32.mrf.mxu0
        %3180 = vmatprep.mubr.bf16.mxu0 0
        %3181 = vmatmul.mubr.bf16.gmra.mxu0 %v3033
        %v3182 = vpop.f32.mrf.mxu0
        %v3183 = vadd.f32 0.0, %v3182
        %v3184 = vpop.f32.mrf.mxu0
        %v3185 = vpop.f32.mrf.mxu0
        %v3186 = vadd.f32 0.0, %v3185
        %v3187 = vpop.f32.mrf.mxu0
        %3188 = vmatprep.mubr.bf16.mxu0 0
        %3189 = vmatmul.mubr.bf16.gmra.mxu0 %v3036
        %v3190 = vpop.f32.mrf.mxu0
        %v3191 = vadd.f32 0.0, %v3190
        %v3192 = vpop.f32.mrf.mxu0
        %v3193 = vpop.f32.mrf.mxu0
        %v3194 = vadd.f32 0.0, %v3193
        %v3195 = vpop.f32.mrf.mxu0
        %3196 = vmatprep.mubr.bf16.mxu0 0
        %3197 = vmatmul.mubr.bf16.gmra.mxu0 %v3039
        %v3198 = vpop.f32.mrf.mxu0
        %v3199 = vadd.f32 0.0, %v3198
        %v3200 = vpop.f32.mrf.mxu0
        %v3201 = vpop.f32.mrf.mxu0
        %v3202 = vadd.f32 0.0, %v3201
        %v3203 = vpop.f32.mrf.mxu0
        %3204 = vdwg.mxu0
        %v3205 = vadd.f32 %v2729, %v3079
        %v3206 = vadd.f32 %v2730, %v3082
        %v3207 = vadd.f32 %v2731, %v3087
        %v3208 = vadd.f32 %v2732, %v3090
        %v3209 = vadd.f32 %v2733, %v3095
        %v3210 = vadd.f32 %v2734, %v3098
        %v3211 = vadd.f32 %v2735, %v3103
        %v3212 = vadd.f32 %v2736, %v3106
        %v3213 = vadd.f32 %v2737, %v3111
        %v3214 = vadd.f32 %v2738, %v3114
        %v3215 = vadd.f32 %v2739, %v3119
        %v3216 = vadd.f32 %v2740, %v3122
        %v3217 = vadd.f32 %v2741, %v3127
        %v3218 = vadd.f32 %v2742, %v3130
        %v3219 = vadd.f32 %v2743, %v3135
        %v3220 = vadd.f32 %v2744, %v3138
        %v3221 = vadd.f32 %v2745, %v3143
        %v3222 = vadd.f32 %v2746, %v3146
        %v3223 = vadd.f32 %v2747, %v3151
        %v3224 = vadd.f32 %v2748, %v3154
        %v3225 = vadd.f32 %v2749, %v3159
        %v3226 = vadd.f32 %v2750, %v3162
        %v3227 = vadd.f32 %v2751, %v3167
        %v3228 = vadd.f32 %v2752, %v3170
        %v3229 = vadd.f32 %v2753, %v3175
        %v3230 = vadd.f32 %v2754, %v3178
        %v3231 = vadd.f32 %v2755, %v3183
        %v3232 = vadd.f32 %v2756, %v3186
        %v3233 = vadd.f32 %v2757, %v3191
        %v3234 = vadd.f32 %v2758, %v3194
        %v3235 = vadd.f32 %v2759, %v3199
        %v3236 = vadd.f32 %v2760, %v3202
        %s3237 = scalar_lea.vmem %s195, 24
        %v3238 = vld [vmem:[%s3237] sm:$0xf]
        %v3239 = vld [vmem:[%s3237 + $0x4] sm:$0xf]
        %v3240 = vld [vmem:[%s3237 + $0xc] sm:$0xf]
        %v3241 = vld [vmem:[%s3237 + $0x10] sm:$0xf]
        %v3242 = vld [vmem:[%s3237 + $0x18] sm:$0xf]
        %v3243 = vld [vmem:[%s3237 + $0x1c] sm:$0xf]
        %v3244 = vld [vmem:[%s3237 + $0x24] sm:$0xf]
        %v3245 = vld [vmem:[%s3237 + $0x28] sm:$0xf]
        %v3246 = vld [vmem:[%s3237 + $0x30] sm:$0xf]
        %v3247 = vld [vmem:[%s3237 + $0x34] sm:$0xf]
        %v3248 = vld [vmem:[%s3237 + $0x3c] sm:$0xf]
        %v3249 = vld [vmem:[%s3237 + $0x40] sm:$0xf]
        %v3250 = vld [vmem:[%s3237 + $0x48] sm:$0xf]
        %v3251 = vld [vmem:[%s3237 + $0x4c] sm:$0xf]
        %v3252 = vld [vmem:[%s3237 + $0x54] sm:$0xf]
        %v3253 = vld [vmem:[%s3237 + $0x58] sm:$0xf]
        %v3254 = vld [vmem:[%s3237 + $0x60] sm:$0xf]
        %v3255 = vld [vmem:[%s3237 + $0x64] sm:$0xf]
        %v3256 = vld [vmem:[%s3237 + $0x6c] sm:$0xf]
        %v3257 = vld [vmem:[%s3237 + $0x70] sm:$0xf]
        %v3258 = vld [vmem:[%s3237 + $0x78] sm:$0xf]
        %v3259 = vld [vmem:[%s3237 + $0x7c] sm:$0xf]
        %v3260 = vld [vmem:[%s3237 + $0x84] sm:$0xf]
        %v3261 = vld [vmem:[%s3237 + $0x88] sm:$0xf]
        %v3262 = vld [vmem:[%s3237 + $0x90] sm:$0xf]
        %v3263 = vld [vmem:[%s3237 + $0x94] sm:$0xf]
        %v3264 = vld [vmem:[%s3237 + $0x9c] sm:$0xf]
        %v3265 = vld [vmem:[%s3237 + $0xa0] sm:$0xf]
        %v3266 = vld [vmem:[%s3237 + $0xa8] sm:$0xf]
        %v3267 = vld [vmem:[%s3237 + $0xac] sm:$0xf]
        %v3268 = vld [vmem:[%s3237 + $0xb4] sm:$0xf]
        %v3269 = vld [vmem:[%s3237 + $0xb8] sm:$0xf]
        %s3270 = scalar_lea.vmem %s1, 48
        %v3271 = vld [vmem:[%s3270] sm:$0xf]
        %v3272 = vld [vmem:[%s3270 + $0x4] sm:$0x3]
        %v3305 = vunpack.c.l.b16 %v3238
        %v3306 = vunpack.c.l.b16 %v3239
        %v3307 = vunpack.c.l.b16 %v3240
        %v3308 = vunpack.c.l.b16 %v3241
        %v3309 = vunpack.c.l.b16 %v3242
        %v3310 = vunpack.c.l.b16 %v3243
        %v3311 = vunpack.c.l.b16 %v3244
        %v3312 = vunpack.c.l.b16 %v3245
        %v3313 = vunpack.c.l.b16 %v3246
        %v3314 = vunpack.c.l.b16 %v3247
        %v3315 = vunpack.c.l.b16 %v3248
        %v3316 = vunpack.c.l.b16 %v3249
        %v3317 = vunpack.c.l.b16 %v3250
        %v3318 = vunpack.c.l.b16 %v3251
        %v3319 = vunpack.c.l.b16 %v3252
        %v3320 = vunpack.c.l.b16 %v3253
        %v3321 = vunpack.c.l.b16 %v3254
        %v3322 = vunpack.c.l.b16 %v3255
        %v3323 = vunpack.c.l.b16 %v3256
        %v3324 = vunpack.c.l.b16 %v3257
        %v3325 = vunpack.c.l.b16 %v3258
        %v3326 = vunpack.c.l.b16 %v3259
        %v3327 = vunpack.c.l.b16 %v3260
        %v3328 = vunpack.c.l.b16 %v3261
        %v3329 = vunpack.c.l.b16 %v3262
        %v3330 = vunpack.c.l.b16 %v3263
        %v3331 = vunpack.c.l.b16 %v3264
        %v3332 = vunpack.c.l.b16 %v3265
        %v3333 = vunpack.c.l.b16 %v3266
        %v3334 = vunpack.c.l.b16 %v3267
        %v3335 = vunpack.c.l.b16 %v3268
        %v3336 = vunpack.c.l.b16 %v3269
        %v3337 = vpack.c.b16 %v3306, %v3305
        %v3338 = vpack.c.b16 %v3308, %v3307
        %v3339 = vpack.c.b16 %v3310, %v3309
        %v3340 = vpack.c.b16 %v3312, %v3311
        %v3341 = vpack.c.b16 %v3314, %v3313
        %v3342 = vpack.c.b16 %v3316, %v3315
        %v3343 = vpack.c.b16 %v3318, %v3317
        %v3344 = vpack.c.b16 %v3320, %v3319
        %v3345 = vpack.c.b16 %v3322, %v3321
        %v3346 = vpack.c.b16 %v3324, %v3323
        %v3347 = vpack.c.b16 %v3326, %v3325
        %v3348 = vpack.c.b16 %v3328, %v3327
        %v3349 = vpack.c.b16 %v3330, %v3329
        %v3350 = vpack.c.b16 %v3332, %v3331
        %v3351 = vpack.c.b16 %v3334, %v3333
        %v3352 = vpack.c.b16 %v3336, %v3335
        %v3355 = vunpack.c.l.b16 %v3271
        %v3356 = vunpack.c.l.b16 %v3272
        %v3357 = vpack.c.b16 %v3356, %v3355
        %v3359 = vsel %vm690, %v3337, 0
        %v3362 = vsel %vm690, %v3338, 0
        %v3365 = vsel %vm690, %v3339, 0
        %v3368 = vsel %vm690, %v3340, 0
        %v3371 = vsel %vm690, %v3341, 0
        %v3374 = vsel %vm690, %v3342, 0
        %v3377 = vsel %vm690, %v3343, 0
        %v3380 = vsel %vm690, %v3344, 0
        %v3383 = vsel %vm690, %v3345, 0
        %v3386 = vsel %vm690, %v3346, 0
        %v3389 = vsel %vm690, %v3347, 0
        %v3392 = vsel %vm690, %v3348, 0
        %v3395 = vsel %vm690, %v3349, 0
        %v3398 = vsel %vm690, %v3350, 0
        %v3401 = vsel %vm690, %v3351, 0
        %v3404 = vsel %vm690, %v3352, 0
        %v3407 = vsel %vm739, %v3357, 0
        %3409 = vmatprep.subr.bf16.mxu0 0
        %3410 = vmatpush1.bf16.msra.mxu0 0
        %3411 = vmatprep.subr.bf16.mxu0 0
        %3412 = vmatpush1.bf16.msra.mxu0 0
        %3413 = vmatprep.subr.bf16.mxu0 0
        %3414 = vmatpush1.bf16.msra.mxu0 0
        %3415 = vmatprep.subr.bf16.mxu0 0
        %3416 = vmatpush1.bf16.msra.mxu0 0
        %3417 = vmatprep.subr.bf16.mxu0 0
        %3418 = vmatpush1.bf16.msra.mxu0 0
        %3419 = vmatprep.subr.bf16.mxu0 0
        %3420 = vmatpush1.bf16.msra.mxu0 0
        %3421 = vmatprep.subr.bf16.mxu0 0
        %3422 = vmatpush1.bf16.msra.mxu0 0
        %3423 = vmatprep.subr.bf16.mxu0 0
        %3424 = vmatpush1.bf16.msra.mxu0 %v3407
        %3425 = vmatprep.subr.bf16.mxu0 0
        %3426 = vmatpush2.bf16.msra.mxu0 0
        %3427 = vmatprep.subr.bf16.mxu0 0
        %3428 = vmatpush2.bf16.msra.mxu0 0
        %3429 = vmatprep.subr.bf16.mxu0 0
        %3430 = vmatpush2.bf16.msra.mxu0 0
        %3431 = vmatprep.subr.bf16.mxu0 0
        %3432 = vmatpush2.bf16.msra.mxu0 0
        %3433 = vmatprep.subr.bf16.mxu0 0
        %3434 = vmatpush2.bf16.msra.mxu0 0
        %3435 = vmatprep.subr.bf16.mxu0 0
        %3436 = vmatpush2.bf16.msra.mxu0 0
        %3437 = vmatprep.subr.bf16.mxu0 0
        %3438 = vmatpush2.bf16.msra.mxu0 0
        %3439 = vmatprep.subr.bf16.mxu0 0
        %3440 = vmatpush2.bf16.msra.mxu0 0
        %3441 = vmatprep.mubr.bf16.mxu0 0
        %3442 = vmatmul.mubr.bf16.gmra.mxu0 %v3359
        %v3443 = vpop.f32.mrf.mxu0
        %v3444 = vadd.f32 0.0, %v3443
        %v3445 = vpop.f32.mrf.mxu0
        %v3446 = vpop.f32.mrf.mxu0
        %v3447 = vadd.f32 0.0, %v3446
        %v3448 = vpop.f32.mrf.mxu0
        %3449 = vmatprep.mubr.bf16.mxu0 0
        %3450 = vmatmul.mubr.bf16.gmra.mxu0 %v3362
        %v3451 = vpop.f32.mrf.mxu0
        %v3452 = vadd.f32 0.0, %v3451
        %v3453 = vpop.f32.mrf.mxu0
        %v3454 = vpop.f32.mrf.mxu0
        %v3455 = vadd.f32 0.0, %v3454
        %v3456 = vpop.f32.mrf.mxu0
        %3457 = vmatprep.mubr.bf16.mxu0 0
        %3458 = vmatmul.mubr.bf16.gmra.mxu0 %v3365
        %v3459 = vpop.f32.mrf.mxu0
        %v3460 = vadd.f32 0.0, %v3459
        %v3461 = vpop.f32.mrf.mxu0
        %v3462 = vpop.f32.mrf.mxu0
        %v3463 = vadd.f32 0.0, %v3462
        %v3464 = vpop.f32.mrf.mxu0
        %3465 = vmatprep.mubr.bf16.mxu0 0
        %3466 = vmatmul.mubr.bf16.gmra.mxu0 %v3368
        %v3467 = vpop.f32.mrf.mxu0
        %v3468 = vadd.f32 0.0, %v3467
        %v3469 = vpop.f32.mrf.mxu0
        %v3470 = vpop.f32.mrf.mxu0
        %v3471 = vadd.f32 0.0, %v3470
        %v3472 = vpop.f32.mrf.mxu0
        %3473 = vmatprep.mubr.bf16.mxu0 0
        %3474 = vmatmul.mubr.bf16.gmra.mxu0 %v3371
        %v3475 = vpop.f32.mrf.mxu0
        %v3476 = vadd.f32 0.0, %v3475
        %v3477 = vpop.f32.mrf.mxu0
        %v3478 = vpop.f32.mrf.mxu0
        %v3479 = vadd.f32 0.0, %v3478
        %v3480 = vpop.f32.mrf.mxu0
        %3481 = vmatprep.mubr.bf16.mxu0 0
        %3482 = vmatmul.mubr.bf16.gmra.mxu0 %v3374
        %v3483 = vpop.f32.mrf.mxu0
        %v3484 = vadd.f32 0.0, %v3483
        %v3485 = vpop.f32.mrf.mxu0
        %v3486 = vpop.f32.mrf.mxu0
        %v3487 = vadd.f32 0.0, %v3486
        %v3488 = vpop.f32.mrf.mxu0
        %3489 = vmatprep.mubr.bf16.mxu0 0
        %3490 = vmatmul.mubr.bf16.gmra.mxu0 %v3377
        %v3491 = vpop.f32.mrf.mxu0
        %v3492 = vadd.f32 0.0, %v3491
        %v3493 = vpop.f32.mrf.mxu0
        %v3494 = vpop.f32.mrf.mxu0
        %v3495 = vadd.f32 0.0, %v3494
        %v3496 = vpop.f32.mrf.mxu0
        %3497 = vmatprep.mubr.bf16.mxu0 0
        %3498 = vmatmul.mubr.bf16.gmra.mxu0 %v3380
        %v3499 = vpop.f32.mrf.mxu0
        %v3500 = vadd.f32 0.0, %v3499
        %v3501 = vpop.f32.mrf.mxu0
        %v3502 = vpop.f32.mrf.mxu0
        %v3503 = vadd.f32 0.0, %v3502
        %v3504 = vpop.f32.mrf.mxu0
        %3505 = vmatprep.mubr.bf16.mxu0 0
        %3506 = vmatmul.mubr.bf16.gmra.mxu0 %v3383
        %v3507 = vpop.f32.mrf.mxu0
        %v3508 = vadd.f32 0.0, %v3507
        %v3509 = vpop.f32.mrf.mxu0
        %v3510 = vpop.f32.mrf.mxu0
        %v3511 = vadd.f32 0.0, %v3510
        %v3512 = vpop.f32.mrf.mxu0
        %3513 = vmatprep.mubr.bf16.mxu0 0
        %3514 = vmatmul.mubr.bf16.gmra.mxu0 %v3386
        %v3515 = vpop.f32.mrf.mxu0
        %v3516 = vadd.f32 0.0, %v3515
        %v3517 = vpop.f32.mrf.mxu0
        %v3518 = vpop.f32.mrf.mxu0
        %v3519 = vadd.f32 0.0, %v3518
        %v3520 = vpop.f32.mrf.mxu0
        %3521 = vmatprep.mubr.bf16.mxu0 0
        %3522 = vmatmul.mubr.bf16.gmra.mxu0 %v3389
        %v3523 = vpop.f32.mrf.mxu0
        %v3524 = vadd.f32 0.0, %v3523
        %v3525 = vpop.f32.mrf.mxu0
        %v3526 = vpop.f32.mrf.mxu0
        %v3527 = vadd.f32 0.0, %v3526
        %v3528 = vpop.f32.mrf.mxu0
        %3529 = vmatprep.mubr.bf16.mxu0 0
        %3530 = vmatmul.mubr.bf16.gmra.mxu0 %v3392
        %v3531 = vpop.f32.mrf.mxu0
        %v3532 = vadd.f32 0.0, %v3531
        %v3533 = vpop.f32.mrf.mxu0
        %v3534 = vpop.f32.mrf.mxu0
        %v3535 = vadd.f32 0.0, %v3534
        %v3536 = vpop.f32.mrf.mxu0
        %3537 = vmatprep.mubr.bf16.mxu0 0
        %3538 = vmatmul.mubr.bf16.gmra.mxu0 %v3395
        %v3539 = vpop.f32.mrf.mxu0
        %v3540 = vadd.f32 0.0, %v3539
        %v3541 = vpop.f32.mrf.mxu0
        %v3542 = vpop.f32.mrf.mxu0
        %v3543 = vadd.f32 0.0, %v3542
        %v3544 = vpop.f32.mrf.mxu0
        %3545 = vmatprep.mubr.bf16.mxu0 0
        %3546 = vmatmul.mubr.bf16.gmra.mxu0 %v3398
        %v3547 = vpop.f32.mrf.mxu0
        %v3548 = vadd.f32 0.0, %v3547
        %v3549 = vpop.f32.mrf.mxu0
        %v3550 = vpop.f32.mrf.mxu0
        %v3551 = vadd.f32 0.0, %v3550
        %v3552 = vpop.f32.mrf.mxu0
        %3553 = vmatprep.mubr.bf16.mxu0 0
        %3554 = vmatmul.mubr.bf16.gmra.mxu0 %v3401
        %v3555 = vpop.f32.mrf.mxu0
        %v3556 = vadd.f32 0.0, %v3555
        %v3557 = vpop.f32.mrf.mxu0
        %v3558 = vpop.f32.mrf.mxu0
        %v3559 = vadd.f32 0.0, %v3558
        %v3560 = vpop.f32.mrf.mxu0
        %3561 = vmatprep.mubr.bf16.mxu0 0
        %3562 = vmatmul.mubr.bf16.gmra.mxu0 %v3404
        %v3563 = vpop.f32.mrf.mxu0
        %v3564 = vadd.f32 0.0, %v3563
        %v3565 = vpop.f32.mrf.mxu0
        %v3566 = vpop.f32.mrf.mxu0
        %v3567 = vadd.f32 0.0, %v3566
        %v3568 = vpop.f32.mrf.mxu0
        %3569 = vdwg.mxu0
        %v3570 = vadd.f32 %v3205, %v3444
        %v3571 = vadd.f32 %v3206, %v3447
        %v3572 = vadd.f32 %v3207, %v3452
        %v3573 = vadd.f32 %v3208, %v3455
        %v3574 = vadd.f32 %v3209, %v3460
        %v3575 = vadd.f32 %v3210, %v3463
        %v3576 = vadd.f32 %v3211, %v3468
        %v3577 = vadd.f32 %v3212, %v3471
        %v3578 = vadd.f32 %v3213, %v3476
        %v3579 = vadd.f32 %v3214, %v3479
        %v3580 = vadd.f32 %v3215, %v3484
        %v3581 = vadd.f32 %v3216, %v3487
        %v3582 = vadd.f32 %v3217, %v3492
        %v3583 = vadd.f32 %v3218, %v3495
        %v3584 = vadd.f32 %v3219, %v3500
        %v3585 = vadd.f32 %v3220, %v3503
        %v3586 = vadd.f32 %v3221, %v3508
        %v3587 = vadd.f32 %v3222, %v3511
        %v3588 = vadd.f32 %v3223, %v3516
        %v3589 = vadd.f32 %v3224, %v3519
        %v3590 = vadd.f32 %v3225, %v3524
        %v3591 = vadd.f32 %v3226, %v3527
        %v3592 = vadd.f32 %v3227, %v3532
        %v3593 = vadd.f32 %v3228, %v3535
        %v3594 = vadd.f32 %v3229, %v3540
        %v3595 = vadd.f32 %v3230, %v3543
        %v3596 = vadd.f32 %v3231, %v3548
        %v3597 = vadd.f32 %v3232, %v3551
        %v3598 = vadd.f32 %v3233, %v3556
        %v3599 = vadd.f32 %v3234, %v3559
        %v3600 = vadd.f32 %v3235, %v3564
        %v3601 = vadd.f32 %v3236, %v3567
        %v3602 = vld [vmem:[%s3237] sm:$0xf]
        %v3603 = vld [vmem:[%s3237 + $0x4] sm:$0xf]
        %v3604 = vld [vmem:[%s3237 + $0x8] sm:$0x1]
        %v3605 = vld [vmem:[%s3237 + $0xc] sm:$0xf]
        %v3606 = vld [vmem:[%s3237 + $0x10] sm:$0xf]
        %v3607 = vld [vmem:[%s3237 + $0x14] sm:$0x1]
        %v3608 = vld [vmem:[%s3237 + $0x18] sm:$0xf]
        %v3609 = vld [vmem:[%s3237 + $0x1c] sm:$0xf]
        %v3610 = vld [vmem:[%s3237 + $0x20] sm:$0x1]
        %v3611 = vld [vmem:[%s3237 + $0x24] sm:$0xf]
        %v3612 = vld [vmem:[%s3237 + $0x28] sm:$0xf]
        %v3613 = vld [vmem:[%s3237 + $0x2c] sm:$0x1]
        %v3614 = vld [vmem:[%s3237 + $0x30] sm:$0xf]
        %v3615 = vld [vmem:[%s3237 + $0x34] sm:$0xf]
        %v3616 = vld [vmem:[%s3237 + $0x38] sm:$0x1]
        %v3617 = vld [vmem:[%s3237 + $0x3c] sm:$0xf]
        %v3618 = vld [vmem:[%s3237 + $0x40] sm:$0xf]
        %v3619 = vld [vmem:[%s3237 + $0x44] sm:$0x1]
        %v3620 = vld [vmem:[%s3237 + $0x48] sm:$0xf]
        %v3621 = vld [vmem:[%s3237 + $0x4c] sm:$0xf]
        %v3622 = vld [vmem:[%s3237 + $0x50] sm:$0x1]
        %v3623 = vld [vmem:[%s3237 + $0x54] sm:$0xf]
        %v3624 = vld [vmem:[%s3237 + $0x58] sm:$0xf]
        %v3625 = vld [vmem:[%s3237 + $0x5c] sm:$0x1]
        %v3626 = vld [vmem:[%s3237 + $0x60] sm:$0xf]
        %v3627 = vld [vmem:[%s3237 + $0x64] sm:$0xf]
        %v3628 = vld [vmem:[%s3237 + $0x68] sm:$0x1]
        %v3629 = vld [vmem:[%s3237 + $0x6c] sm:$0xf]
        %v3630 = vld [vmem:[%s3237 + $0x70] sm:$0xf]
        %v3631 = vld [vmem:[%s3237 + $0x74] sm:$0x1]
        %v3632 = vld [vmem:[%s3237 + $0x78] sm:$0xf]
        %v3633 = vld [vmem:[%s3237 + $0x7c] sm:$0xf]
        %v3634 = vld [vmem:[%s3237 + $0x80] sm:$0x1]
        %v3635 = vld [vmem:[%s3237 + $0x84] sm:$0xf]
        %v3636 = vld [vmem:[%s3237 + $0x88] sm:$0xf]
        %v3637 = vld [vmem:[%s3237 + $0x8c] sm:$0x1]
        %v3638 = vld [vmem:[%s3237 + $0x90] sm:$0xf]
        %v3639 = vld [vmem:[%s3237 + $0x94] sm:$0xf]
        %v3640 = vld [vmem:[%s3237 + $0x98] sm:$0x1]
        %v3641 = vld [vmem:[%s3237 + $0x9c] sm:$0xf]
        %v3642 = vld [vmem:[%s3237 + $0xa0] sm:$0xf]
        %v3643 = vld [vmem:[%s3237 + $0xa4] sm:$0x1]
        %v3644 = vld [vmem:[%s3237 + $0xa8] sm:$0xf]
        %v3645 = vld [vmem:[%s3237 + $0xac] sm:$0xf]
        %v3646 = vld [vmem:[%s3237 + $0xb0] sm:$0x1]
        %v3647 = vld [vmem:[%s3237 + $0xb4] sm:$0xf]
        %v3648 = vld [vmem:[%s3237 + $0xb8] sm:$0xf]
        %v3649 = vld [vmem:[%s3237 + $0xbc] sm:$0x1]
        %v3651 = vshrl.u32 %v3602, 16
        %v3653 = vrot.slane %v3651, 4
        %v3654 = vshll.u32 %v3602, 16
        %v3656 = vrot.slane %v3654, 5
        %v3657 = vor.u32 %v3653, %v3656
        %v3658 = vrot.slane %v3657, 4
        %v3660 = vshll.u32 %v3603, 16
        %v3662 = vrot.slane %v3660, 5
        %v3663 = vsel %vm249, %v3658, %v3662
        %v3664 = vshrl.u32 %v3603, 16
        %v3666 = vrot.slane %v3664, 4
        %v3667 = vor.u32 %v3666, %v3662
        %v3668 = vrot.slane %v3667, 4
        %v3670 = vshll.u32 %v3604, 16
        %v3672 = vrot.slane %v3670, 5
        %v3673 = vsel %vm249, %v3668, %v3672
        %v3675 = vshrl.u32 %v3605, 16
        %v3677 = vrot.slane %v3675, 4
        %v3678 = vshll.u32 %v3605, 16
        %v3680 = vrot.slane %v3678, 5
        %v3681 = vor.u32 %v3677, %v3680
        %v3682 = vrot.slane %v3681, 4
        %v3684 = vshll.u32 %v3606, 16
        %v3686 = vrot.slane %v3684, 5
        %v3687 = vsel %vm249, %v3682, %v3686
        %v3688 = vshrl.u32 %v3606, 16
        %v3690 = vrot.slane %v3688, 4
        %v3691 = vor.u32 %v3690, %v3686
        %v3692 = vrot.slane %v3691, 4
        %v3694 = vshll.u32 %v3607, 16
        %v3696 = vrot.slane %v3694, 5
        %v3697 = vsel %vm249, %v3692, %v3696
        %v3699 = vshrl.u32 %v3608, 16
        %v3701 = vrot.slane %v3699, 4
        %v3702 = vshll.u32 %v3608, 16
        %v3704 = vrot.slane %v3702, 5
        %v3705 = vor.u32 %v3701, %v3704
        %v3706 = vrot.slane %v3705, 4
        %v3708 = vshll.u32 %v3609, 16
        %v3710 = vrot.slane %v3708, 5
        %v3711 = vsel %vm249, %v3706, %v3710
        %v3712 = vshrl.u32 %v3609, 16
        %v3714 = vrot.slane %v3712, 4
        %v3715 = vor.u32 %v3714, %v3710
        %v3716 = vrot.slane %v3715, 4
        %v3718 = vshll.u32 %v3610, 16
        %v3720 = vrot.slane %v3718, 5
        %v3721 = vsel %vm249, %v3716, %v3720
        %v3723 = vshrl.u32 %v3611, 16
        %v3725 = vrot.slane %v3723, 4
        %v3726 = vshll.u32 %v3611, 16
        %v3728 = vrot.slane %v3726, 5
        %v3729 = vor.u32 %v3725, %v3728
        %v3730 = vrot.slane %v3729, 4
        %v3732 = vshll.u32 %v3612, 16
        %v3734 = vrot.slane %v3732, 5
        %v3735 = vsel %vm249, %v3730, %v3734
        %v3736 = vshrl.u32 %v3612, 16
        %v3738 = vrot.slane %v3736, 4
        %v3739 = vor.u32 %v3738, %v3734
        %v3740 = vrot.slane %v3739, 4
        %v3742 = vshll.u32 %v3613, 16
        %v3744 = vrot.slane %v3742, 5
        %v3745 = vsel %vm249, %v3740, %v3744
        %v3747 = vshrl.u32 %v3614, 16
        %v3749 = vrot.slane %v3747, 4
        %v3750 = vshll.u32 %v3614, 16
        %v3752 = vrot.slane %v3750, 5
        %v3753 = vor.u32 %v3749, %v3752
        %v3754 = vrot.slane %v3753, 4
        %v3756 = vshll.u32 %v3615, 16
        %v3758 = vrot.slane %v3756, 5
        %v3759 = vsel %vm249, %v3754, %v3758
        %v3760 = vshrl.u32 %v3615, 16
        %v3762 = vrot.slane %v3760, 4
        %v3763 = vor.u32 %v3762, %v3758
        %v3764 = vrot.slane %v3763, 4
        %v3766 = vshll.u32 %v3616, 16
        %v3768 = vrot.slane %v3766, 5
        %v3769 = vsel %vm249, %v3764, %v3768
        %v3771 = vshrl.u32 %v3617, 16
        %v3773 = vrot.slane %v3771, 4
        %v3774 = vshll.u32 %v3617, 16
        %v3776 = vrot.slane %v3774, 5
        %v3777 = vor.u32 %v3773, %v3776
        %v3778 = vrot.slane %v3777, 4
        %v3780 = vshll.u32 %v3618, 16
        %v3782 = vrot.slane %v3780, 5
        %v3783 = vsel %vm249, %v3778, %v3782
        %v3784 = vshrl.u32 %v3618, 16
        %v3786 = vrot.slane %v3784, 4
        %v3787 = vor.u32 %v3786, %v3782
        %v3788 = vrot.slane %v3787, 4
        %v3790 = vshll.u32 %v3619, 16
        %v3792 = vrot.slane %v3790, 5
        %v3793 = vsel %vm249, %v3788, %v3792
        %v3795 = vshrl.u32 %v3620, 16
        %v3797 = vrot.slane %v3795, 4
        %v3798 = vshll.u32 %v3620, 16
        %v3800 = vrot.slane %v3798, 5
        %v3801 = vor.u32 %v3797, %v3800
        %v3802 = vrot.slane %v3801, 4
        %v3804 = vshll.u32 %v3621, 16
        %v3806 = vrot.slane %v3804, 5
        %v3807 = vsel %vm249, %v3802, %v3806
        %v3808 = vshrl.u32 %v3621, 16
        %v3810 = vrot.slane %v3808, 4
        %v3811 = vor.u32 %v3810, %v3806
        %v3812 = vrot.slane %v3811, 4
        %v3814 = vshll.u32 %v3622, 16
        %v3816 = vrot.slane %v3814, 5
        %v3817 = vsel %vm249, %v3812, %v3816
        %v3819 = vshrl.u32 %v3623, 16
        %v3821 = vrot.slane %v3819, 4
        %v3822 = vshll.u32 %v3623, 16
        %v3824 = vrot.slane %v3822, 5
        %v3825 = vor.u32 %v3821, %v3824
        %v3826 = vrot.slane %v3825, 4
        %v3828 = vshll.u32 %v3624, 16
        %v3830 = vrot.slane %v3828, 5
        %v3831 = vsel %vm249, %v3826, %v3830
        %v3832 = vshrl.u32 %v3624, 16
        %v3834 = vrot.slane %v3832, 4
        %v3835 = vor.u32 %v3834, %v3830
        %v3836 = vrot.slane %v3835, 4
        %v3838 = vshll.u32 %v3625, 16
        %v3840 = vrot.slane %v3838, 5
        %v3841 = vsel %vm249, %v3836, %v3840
        %v3843 = vshrl.u32 %v3626, 16
        %v3845 = vrot.slane %v3843, 4
        %v3846 = vshll.u32 %v3626, 16
        %v3848 = vrot.slane %v3846, 5
        %v3849 = vor.u32 %v3845, %v3848
        %v3850 = vrot.slane %v3849, 4
        %v3852 = vshll.u32 %v3627, 16
        %v3854 = vrot.slane %v3852, 5
        %v3855 = vsel %vm249, %v3850, %v3854
        %v3856 = vshrl.u32 %v3627, 16
        %v3858 = vrot.slane %v3856, 4
        %v3859 = vor.u32 %v3858, %v3854
        %v3860 = vrot.slane %v3859, 4
        %v3862 = vshll.u32 %v3628, 16
        %v3864 = vrot.slane %v3862, 5
        %v3865 = vsel %vm249, %v3860, %v3864
        %v3867 = vshrl.u32 %v3629, 16
        %v3869 = vrot.slane %v3867, 4
        %v3870 = vshll.u32 %v3629, 16
        %v3872 = vrot.slane %v3870, 5
        %v3873 = vor.u32 %v3869, %v3872
        %v3874 = vrot.slane %v3873, 4
        %v3876 = vshll.u32 %v3630, 16
        %v3878 = vrot.slane %v3876, 5
        %v3879 = vsel %vm249, %v3874, %v3878
        %v3880 = vshrl.u32 %v3630, 16
        %v3882 = vrot.slane %v3880, 4
        %v3883 = vor.u32 %v3882, %v3878
        %v3884 = vrot.slane %v3883, 4
        %v3886 = vshll.u32 %v3631, 16
        %v3888 = vrot.slane %v3886, 5
        %v3889 = vsel %vm249, %v3884, %v3888
        %v3891 = vshrl.u32 %v3632, 16
        %v3893 = vrot.slane %v3891, 4
        %v3894 = vshll.u32 %v3632, 16
        %v3896 = vrot.slane %v3894, 5
        %v3897 = vor.u32 %v3893, %v3896
        %v3898 = vrot.slane %v3897, 4
        %v3900 = vshll.u32 %v3633, 16
        %v3902 = vrot.slane %v3900, 5
        %v3903 = vsel %vm249, %v3898, %v3902
        %v3904 = vshrl.u32 %v3633, 16
        %v3906 = vrot.slane %v3904, 4
        %v3907 = vor.u32 %v3906, %v3902
        %v3908 = vrot.slane %v3907, 4
        %v3910 = vshll.u32 %v3634, 16
        %v3912 = vrot.slane %v3910, 5
        %v3913 = vsel %vm249, %v3908, %v3912
        %v3915 = vshrl.u32 %v3635, 16
        %v3917 = vrot.slane %v3915, 4
        %v3918 = vshll.u32 %v3635, 16
        %v3920 = vrot.slane %v3918, 5
        %v3921 = vor.u32 %v3917, %v3920
        %v3922 = vrot.slane %v3921, 4
        %v3924 = vshll.u32 %v3636, 16
        %v3926 = vrot.slane %v3924, 5
        %v3927 = vsel %vm249, %v3922, %v3926
        %v3928 = vshrl.u32 %v3636, 16
        %v3930 = vrot.slane %v3928, 4
        %v3931 = vor.u32 %v3930, %v3926
        %v3932 = vrot.slane %v3931, 4
        %v3934 = vshll.u32 %v3637, 16
        %v3936 = vrot.slane %v3934, 5
        %v3937 = vsel %vm249, %v3932, %v3936
        %v3939 = vshrl.u32 %v3638, 16
        %v3941 = vrot.slane %v3939, 4
        %v3942 = vshll.u32 %v3638, 16
        %v3944 = vrot.slane %v3942, 5
        %v3945 = vor.u32 %v3941, %v3944
        %v3946 = vrot.slane %v3945, 4
        %v3948 = vshll.u32 %v3639, 16
        %v3950 = vrot.slane %v3948, 5
        %v3951 = vsel %vm249, %v3946, %v3950
        %v3952 = vshrl.u32 %v3639, 16
        %v3954 = vrot.slane %v3952, 4
        %v3955 = vor.u32 %v3954, %v3950
        %v3956 = vrot.slane %v3955, 4
        %v3958 = vshll.u32 %v3640, 16
        %v3960 = vrot.slane %v3958, 5
        %v3961 = vsel %vm249, %v3956, %v3960
        %v3963 = vshrl.u32 %v3641, 16
        %v3965 = vrot.slane %v3963, 4
        %v3966 = vshll.u32 %v3641, 16
        %v3968 = vrot.slane %v3966, 5
        %v3969 = vor.u32 %v3965, %v3968
        %v3970 = vrot.slane %v3969, 4
        %v3972 = vshll.u32 %v3642, 16
        %v3974 = vrot.slane %v3972, 5
        %v3975 = vsel %vm249, %v3970, %v3974
        %v3976 = vshrl.u32 %v3642, 16
        %v3978 = vrot.slane %v3976, 4
        %v3979 = vor.u32 %v3978, %v3974
        %v3980 = vrot.slane %v3979, 4
        %v3982 = vshll.u32 %v3643, 16
        %v3984 = vrot.slane %v3982, 5
        %v3985 = vsel %vm249, %v3980, %v3984
        %v3987 = vshrl.u32 %v3644, 16
        %v3989 = vrot.slane %v3987, 4
        %v3990 = vshll.u32 %v3644, 16
        %v3992 = vrot.slane %v3990, 5
        %v3993 = vor.u32 %v3989, %v3992
        %v3994 = vrot.slane %v3993, 4
        %v3996 = vshll.u32 %v3645, 16
        %v3998 = vrot.slane %v3996, 5
        %v3999 = vsel %vm249, %v3994, %v3998
        %v4000 = vshrl.u32 %v3645, 16
        %v4002 = vrot.slane %v4000, 4
        %v4003 = vor.u32 %v4002, %v3998
        %v4004 = vrot.slane %v4003, 4
        %v4006 = vshll.u32 %v3646, 16
        %v4008 = vrot.slane %v4006, 5
        %v4009 = vsel %vm249, %v4004, %v4008
        %v4011 = vshrl.u32 %v3647, 16
        %v4013 = vrot.slane %v4011, 4
        %v4014 = vshll.u32 %v3647, 16
        %v4016 = vrot.slane %v4014, 5
        %v4017 = vor.u32 %v4013, %v4016
        %v4018 = vrot.slane %v4017, 4
        %v4020 = vshll.u32 %v3648, 16
        %v4022 = vrot.slane %v4020, 5
        %v4023 = vsel %vm249, %v4018, %v4022
        %v4024 = vshrl.u32 %v3648, 16
        %v4026 = vrot.slane %v4024, 4
        %v4027 = vor.u32 %v4026, %v4022
        %v4028 = vrot.slane %v4027, 4
        %v4030 = vshll.u32 %v3649, 16
        %v4032 = vrot.slane %v4030, 5
        %v4033 = vsel %vm249, %v4028, %v4032
        %s4034 = scalar_lea.vmem %s1, 56
        %v4035 = vld [vmem:[%s4034] sm:$0xf]
        %v4036 = vld [vmem:[%s4034 + $0x4] sm:$0x3]
        %v4037 = vunpack.c.l.b16 %v3663
        %v4038 = vunpack.c.l.b16 %v3673
        %v4039 = vunpack.c.l.b16 %v3687
        %v4040 = vunpack.c.l.b16 %v3697
        %v4041 = vunpack.c.l.b16 %v3711
        %v4042 = vunpack.c.l.b16 %v3721
        %v4043 = vunpack.c.l.b16 %v3735
        %v4044 = vunpack.c.l.b16 %v3745
        %v4045 = vunpack.c.l.b16 %v3759
        %v4046 = vunpack.c.l.b16 %v3769
        %v4047 = vunpack.c.l.b16 %v3783
        %v4048 = vunpack.c.l.b16 %v3793
        %v4049 = vunpack.c.l.b16 %v3807
        %v4050 = vunpack.c.l.b16 %v3817
        %v4051 = vunpack.c.l.b16 %v3831
        %v4052 = vunpack.c.l.b16 %v3841
        %v4053 = vunpack.c.l.b16 %v3855
        %v4054 = vunpack.c.l.b16 %v3865
        %v4055 = vunpack.c.l.b16 %v3879
        %v4056 = vunpack.c.l.b16 %v3889
        %v4057 = vunpack.c.l.b16 %v3903
        %v4058 = vunpack.c.l.b16 %v3913
        %v4059 = vunpack.c.l.b16 %v3927
        %v4060 = vunpack.c.l.b16 %v3937
        %v4061 = vunpack.c.l.b16 %v3951
        %v4062 = vunpack.c.l.b16 %v3961
        %v4063 = vunpack.c.l.b16 %v3975
        %v4064 = vunpack.c.l.b16 %v3985
        %v4065 = vunpack.c.l.b16 %v3999
        %v4066 = vunpack.c.l.b16 %v4009
        %v4067 = vunpack.c.l.b16 %v4023
        %v4068 = vunpack.c.l.b16 %v4033
        %v4069 = vpack.c.b16 %v4038, %v4037
        %v4070 = vpack.c.b16 %v4040, %v4039
        %v4071 = vpack.c.b16 %v4042, %v4041
        %v4072 = vpack.c.b16 %v4044, %v4043
        %v4073 = vpack.c.b16 %v4046, %v4045
        %v4074 = vpack.c.b16 %v4048, %v4047
        %v4075 = vpack.c.b16 %v4050, %v4049
        %v4076 = vpack.c.b16 %v4052, %v4051
        %v4077 = vpack.c.b16 %v4054, %v4053
        %v4078 = vpack.c.b16 %v4056, %v4055
        %v4079 = vpack.c.b16 %v4058, %v4057
        %v4080 = vpack.c.b16 %v4060, %v4059
        %v4081 = vpack.c.b16 %v4062, %v4061
        %v4082 = vpack.c.b16 %v4064, %v4063
        %v4083 = vpack.c.b16 %v4066, %v4065
        %v4084 = vpack.c.b16 %v4068, %v4067
        %v4087 = vunpack.c.l.b16 %v4035
        %v4088 = vunpack.c.l.b16 %v4036
        %v4089 = vpack.c.b16 %v4088, %v4087
        %v4091 = vsel %vm690, %v4069, 0
        %v4094 = vsel %vm690, %v4070, 0
        %v4097 = vsel %vm690, %v4071, 0
        %v4100 = vsel %vm690, %v4072, 0
        %v4103 = vsel %vm690, %v4073, 0
        %v4106 = vsel %vm690, %v4074, 0
        %v4109 = vsel %vm690, %v4075, 0
        %v4112 = vsel %vm690, %v4076, 0
        %v4115 = vsel %vm690, %v4077, 0
        %v4118 = vsel %vm690, %v4078, 0
        %v4121 = vsel %vm690, %v4079, 0
        %v4124 = vsel %vm690, %v4080, 0
        %v4127 = vsel %vm690, %v4081, 0
        %v4130 = vsel %vm690, %v4082, 0
        %v4133 = vsel %vm690, %v4083, 0
        %v4136 = vsel %vm690, %v4084, 0
        %v4139 = vsel %vm739, %v4089, 0
        %4141 = vmatprep.subr.bf16.mxu0 0
        %4142 = vmatpush1.bf16.msra.mxu0 0
        %4143 = vmatprep.subr.bf16.mxu0 0
        %4144 = vmatpush1.bf16.msra.mxu0 0
        %4145 = vmatprep.subr.bf16.mxu0 0
        %4146 = vmatpush1.bf16.msra.mxu0 0
        %4147 = vmatprep.subr.bf16.mxu0 0
        %4148 = vmatpush1.bf16.msra.mxu0 0
        %4149 = vmatprep.subr.bf16.mxu0 0
        %4150 = vmatpush1.bf16.msra.mxu0 0
        %4151 = vmatprep.subr.bf16.mxu0 0
        %4152 = vmatpush1.bf16.msra.mxu0 0
        %4153 = vmatprep.subr.bf16.mxu0 0
        %4154 = vmatpush1.bf16.msra.mxu0 0
        %4155 = vmatprep.subr.bf16.mxu0 0
        %4156 = vmatpush1.bf16.msra.mxu0 %v4139
        %4157 = vmatprep.subr.bf16.mxu0 0
        %4158 = vmatpush2.bf16.msra.mxu0 0
        %4159 = vmatprep.subr.bf16.mxu0 0
        %4160 = vmatpush2.bf16.msra.mxu0 0
        %4161 = vmatprep.subr.bf16.mxu0 0
        %4162 = vmatpush2.bf16.msra.mxu0 0
        %4163 = vmatprep.subr.bf16.mxu0 0
        %4164 = vmatpush2.bf16.msra.mxu0 0
        %4165 = vmatprep.subr.bf16.mxu0 0
        %4166 = vmatpush2.bf16.msra.mxu0 0
        %4167 = vmatprep.subr.bf16.mxu0 0
        %4168 = vmatpush2.bf16.msra.mxu0 0
        %4169 = vmatprep.subr.bf16.mxu0 0
        %4170 = vmatpush2.bf16.msra.mxu0 0
        %4171 = vmatprep.subr.bf16.mxu0 0
        %4172 = vmatpush2.bf16.msra.mxu0 0
        %4173 = vmatprep.mubr.bf16.mxu0 0
        %4174 = vmatmul.mubr.bf16.gmra.mxu0 %v4091
        %v4175 = vpop.f32.mrf.mxu0
        %v4176 = vadd.f32 0.0, %v4175
        %v4177 = vpop.f32.mrf.mxu0
        %v4178 = vpop.f32.mrf.mxu0
        %v4179 = vadd.f32 0.0, %v4178
        %v4180 = vpop.f32.mrf.mxu0
        %4181 = vmatprep.mubr.bf16.mxu0 0
        %4182 = vmatmul.mubr.bf16.gmra.mxu0 %v4094
        %v4183 = vpop.f32.mrf.mxu0
        %v4184 = vadd.f32 0.0, %v4183
        %v4185 = vpop.f32.mrf.mxu0
        %v4186 = vpop.f32.mrf.mxu0
        %v4187 = vadd.f32 0.0, %v4186
        %v4188 = vpop.f32.mrf.mxu0
        %4189 = vmatprep.mubr.bf16.mxu0 0
        %4190 = vmatmul.mubr.bf16.gmra.mxu0 %v4097
        %v4191 = vpop.f32.mrf.mxu0
        %v4192 = vadd.f32 0.0, %v4191
        %v4193 = vpop.f32.mrf.mxu0
        %v4194 = vpop.f32.mrf.mxu0
        %v4195 = vadd.f32 0.0, %v4194
        %v4196 = vpop.f32.mrf.mxu0
        %4197 = vmatprep.mubr.bf16.mxu0 0
        %4198 = vmatmul.mubr.bf16.gmra.mxu0 %v4100
        %v4199 = vpop.f32.mrf.mxu0
        %v4200 = vadd.f32 0.0, %v4199
        %v4201 = vpop.f32.mrf.mxu0
        %v4202 = vpop.f32.mrf.mxu0
        %v4203 = vadd.f32 0.0, %v4202
        %v4204 = vpop.f32.mrf.mxu0
        %4205 = vmatprep.mubr.bf16.mxu0 0
        %4206 = vmatmul.mubr.bf16.gmra.mxu0 %v4103
        %v4207 = vpop.f32.mrf.mxu0
        %v4208 = vadd.f32 0.0, %v4207
        %v4209 = vpop.f32.mrf.mxu0
        %v4210 = vpop.f32.mrf.mxu0
        %v4211 = vadd.f32 0.0, %v4210
        %v4212 = vpop.f32.mrf.mxu0
        %4213 = vmatprep.mubr.bf16.mxu0 0
        %4214 = vmatmul.mubr.bf16.gmra.mxu0 %v4106
        %v4215 = vpop.f32.mrf.mxu0
        %v4216 = vadd.f32 0.0, %v4215
        %v4217 = vpop.f32.mrf.mxu0
        %v4218 = vpop.f32.mrf.mxu0
        %v4219 = vadd.f32 0.0, %v4218
        %v4220 = vpop.f32.mrf.mxu0
        %4221 = vmatprep.mubr.bf16.mxu0 0
        %4222 = vmatmul.mubr.bf16.gmra.mxu0 %v4109
        %v4223 = vpop.f32.mrf.mxu0
        %v4224 = vadd.f32 0.0, %v4223
        %v4225 = vpop.f32.mrf.mxu0
        %v4226 = vpop.f32.mrf.mxu0
        %v4227 = vadd.f32 0.0, %v4226
        %v4228 = vpop.f32.mrf.mxu0
        %4229 = vmatprep.mubr.bf16.mxu0 0
        %4230 = vmatmul.mubr.bf16.gmra.mxu0 %v4112
        %v4231 = vpop.f32.mrf.mxu0
        %v4232 = vadd.f32 0.0, %v4231
        %v4233 = vpop.f32.mrf.mxu0
        %v4234 = vpop.f32.mrf.mxu0
        %v4235 = vadd.f32 0.0, %v4234
        %v4236 = vpop.f32.mrf.mxu0
        %4237 = vmatprep.mubr.bf16.mxu0 0
        %4238 = vmatmul.mubr.bf16.gmra.mxu0 %v4115
        %v4239 = vpop.f32.mrf.mxu0
        %v4240 = vadd.f32 0.0, %v4239
        %v4241 = vpop.f32.mrf.mxu0
        %v4242 = vpop.f32.mrf.mxu0
        %v4243 = vadd.f32 0.0, %v4242
        %v4244 = vpop.f32.mrf.mxu0
        %4245 = vmatprep.mubr.bf16.mxu0 0
        %4246 = vmatmul.mubr.bf16.gmra.mxu0 %v4118
        %v4247 = vpop.f32.mrf.mxu0
        %v4248 = vadd.f32 0.0, %v4247
        %v4249 = vpop.f32.mrf.mxu0
        %v4250 = vpop.f32.mrf.mxu0
        %v4251 = vadd.f32 0.0, %v4250
        %v4252 = vpop.f32.mrf.mxu0
        %4253 = vmatprep.mubr.bf16.mxu0 0
        %4254 = vmatmul.mubr.bf16.gmra.mxu0 %v4121
        %v4255 = vpop.f32.mrf.mxu0
        %v4256 = vadd.f32 0.0, %v4255
        %v4257 = vpop.f32.mrf.mxu0
        %v4258 = vpop.f32.mrf.mxu0
        %v4259 = vadd.f32 0.0, %v4258
        %v4260 = vpop.f32.mrf.mxu0
        %4261 = vmatprep.mubr.bf16.mxu0 0
        %4262 = vmatmul.mubr.bf16.gmra.mxu0 %v4124
        %v4263 = vpop.f32.mrf.mxu0
        %v4264 = vadd.f32 0.0, %v4263
        %v4265 = vpop.f32.mrf.mxu0
        %v4266 = vpop.f32.mrf.mxu0
        %v4267 = vadd.f32 0.0, %v4266
        %v4268 = vpop.f32.mrf.mxu0
        %4269 = vmatprep.mubr.bf16.mxu0 0
        %4270 = vmatmul.mubr.bf16.gmra.mxu0 %v4127
        %v4271 = vpop.f32.mrf.mxu0
        %v4272 = vadd.f32 0.0, %v4271
        %v4273 = vpop.f32.mrf.mxu0
        %v4274 = vpop.f32.mrf.mxu0
        %v4275 = vadd.f32 0.0, %v4274
        %v4276 = vpop.f32.mrf.mxu0
        %4277 = vmatprep.mubr.bf16.mxu0 0
        %4278 = vmatmul.mubr.bf16.gmra.mxu0 %v4130
        %v4279 = vpop.f32.mrf.mxu0
        %v4280 = vadd.f32 0.0, %v4279
        %v4281 = vpop.f32.mrf.mxu0
        %v4282 = vpop.f32.mrf.mxu0
        %v4283 = vadd.f32 0.0, %v4282
        %v4284 = vpop.f32.mrf.mxu0
        %4285 = vmatprep.mubr.bf16.mxu0 0
        %4286 = vmatmul.mubr.bf16.gmra.mxu0 %v4133
        %v4287 = vpop.f32.mrf.mxu0
        %v4288 = vadd.f32 0.0, %v4287
        %v4289 = vpop.f32.mrf.mxu0
        %v4290 = vpop.f32.mrf.mxu0
        %v4291 = vadd.f32 0.0, %v4290
        %v4292 = vpop.f32.mrf.mxu0
        %4293 = vmatprep.mubr.bf16.mxu0 0
        %4294 = vmatmul.mubr.bf16.gmra.mxu0 %v4136
        %v4295 = vpop.f32.mrf.mxu0
        %v4296 = vadd.f32 0.0, %v4295
        %v4297 = vpop.f32.mrf.mxu0
        %v4298 = vpop.f32.mrf.mxu0
        %v4299 = vadd.f32 0.0, %v4298
        %v4300 = vpop.f32.mrf.mxu0
        %4301 = vdwg.mxu0
        %v4302 = vadd.f32 %v3570, %v4176
        %v4303 = vadd.f32 %v3571, %v4179
        %v4304 = vadd.f32 %v3572, %v4184
        %v4305 = vadd.f32 %v3573, %v4187
        %v4306 = vadd.f32 %v3574, %v4192
        %v4307 = vadd.f32 %v3575, %v4195
        %v4308 = vadd.f32 %v3576, %v4200
        %v4309 = vadd.f32 %v3577, %v4203
        %v4310 = vadd.f32 %v3578, %v4208
        %v4311 = vadd.f32 %v3579, %v4211
        %v4312 = vadd.f32 %v3580, %v4216
        %v4313 = vadd.f32 %v3581, %v4219
        %v4314 = vadd.f32 %v3582, %v4224
        %v4315 = vadd.f32 %v3583, %v4227
        %v4316 = vadd.f32 %v3584, %v4232
        %v4317 = vadd.f32 %v3585, %v4235
        %v4318 = vadd.f32 %v3586, %v4240
        %v4319 = vadd.f32 %v3587, %v4243
        %v4320 = vadd.f32 %v3588, %v4248
        %v4321 = vadd.f32 %v3589, %v4251
        %v4322 = vadd.f32 %v3590, %v4256
        %v4323 = vadd.f32 %v3591, %v4259
        %v4324 = vadd.f32 %v3592, %v4264
        %v4325 = vadd.f32 %v3593, %v4267
        %v4326 = vadd.f32 %v3594, %v4272
        %v4327 = vadd.f32 %v3595, %v4275
        %v4328 = vadd.f32 %v3596, %v4280
        %v4329 = vadd.f32 %v3597, %v4283
        %v4330 = vadd.f32 %v3598, %v4288
        %v4331 = vadd.f32 %v3599, %v4291
        %v4332 = vadd.f32 %v3600, %v4296
        %v4333 = vadd.f32 %v3601, %v4299
        %v4334 = vld [vmem:[%s3237] sm:$0xe]
        %v4335 = vld [vmem:[%s3237 + $0xc] sm:$0xe]
        %v4336 = vld [vmem:[%s3237 + $0x18] sm:$0xe]
        %v4337 = vld [vmem:[%s3237 + $0x24] sm:$0xe]
        %v4338 = vld [vmem:[%s3237 + $0x30] sm:$0xe]
        %v4339 = vld [vmem:[%s3237 + $0x3c] sm:$0xe]
        %v4340 = vld [vmem:[%s3237 + $0x48] sm:$0xe]
        %v4341 = vld [vmem:[%s3237 + $0x54] sm:$0xe]
        %v4342 = vld [vmem:[%s3237 + $0x60] sm:$0xe]
        %v4343 = vld [vmem:[%s3237 + $0x6c] sm:$0xe]
        %v4344 = vld [vmem:[%s3237 + $0x78] sm:$0xe]
        %v4345 = vld [vmem:[%s3237 + $0x84] sm:$0xe]
        %v4346 = vld [vmem:[%s3237 + $0x90] sm:$0xe]
        %v4347 = vld [vmem:[%s3237 + $0x9c] sm:$0xe]
        %v4348 = vld [vmem:[%s3237 + $0xa8] sm:$0xe]
        %v4349 = vld [vmem:[%s3237 + $0xb4] sm:$0xe]
        %v4398 = vrot.slane %v4334, 5
        %v4399 = vrot.slane %v4398, 4
        %v4400 = vrot.slane %v3603, 5
        %v4401 = vsel %vm1251, %v4399, %v4400
        %v4402 = vrot.slane %v4400, 4
        %v4403 = vrot.slane %v3604, 5
        %v4404 = vsel %vm1251, %v4402, %v4403
        %v4405 = vrot.slane %v4335, 5
        %v4406 = vrot.slane %v4405, 4
        %v4407 = vrot.slane %v3606, 5
        %v4408 = vsel %vm1251, %v4406, %v4407
        %v4409 = vrot.slane %v4407, 4
        %v4410 = vrot.slane %v3607, 5
        %v4411 = vsel %vm1251, %v4409, %v4410
        %v4412 = vrot.slane %v4336, 5
        %v4413 = vrot.slane %v4412, 4
        %v4414 = vrot.slane %v3609, 5
        %v4415 = vsel %vm1251, %v4413, %v4414
        %v4416 = vrot.slane %v4414, 4
        %v4417 = vrot.slane %v3610, 5
        %v4418 = vsel %vm1251, %v4416, %v4417
        %v4419 = vrot.slane %v4337, 5
        %v4420 = vrot.slane %v4419, 4
        %v4421 = vrot.slane %v3612, 5
        %v4422 = vsel %vm1251, %v4420, %v4421
        %v4423 = vrot.slane %v4421, 4
        %v4424 = vrot.slane %v3613, 5
        %v4425 = vsel %vm1251, %v4423, %v4424
        %v4426 = vrot.slane %v4338, 5
        %v4427 = vrot.slane %v4426, 4
        %v4428 = vrot.slane %v3615, 5
        %v4429 = vsel %vm1251, %v4427, %v4428
        %v4430 = vrot.slane %v4428, 4
        %v4431 = vrot.slane %v3616, 5
        %v4432 = vsel %vm1251, %v4430, %v4431
        %v4433 = vrot.slane %v4339, 5
        %v4434 = vrot.slane %v4433, 4
        %v4435 = vrot.slane %v3618, 5
        %v4436 = vsel %vm1251, %v4434, %v4435
        %v4437 = vrot.slane %v4435, 4
        %v4438 = vrot.slane %v3619, 5
        %v4439 = vsel %vm1251, %v4437, %v4438
        %v4440 = vrot.slane %v4340, 5
        %v4441 = vrot.slane %v4440, 4
        %v4442 = vrot.slane %v3621, 5
        %v4443 = vsel %vm1251, %v4441, %v4442
        %v4444 = vrot.slane %v4442, 4
        %v4445 = vrot.slane %v3622, 5
        %v4446 = vsel %vm1251, %v4444, %v4445
        %v4447 = vrot.slane %v4341, 5
        %v4448 = vrot.slane %v4447, 4
        %v4449 = vrot.slane %v3624, 5
        %v4450 = vsel %vm1251, %v4448, %v4449
        %v4451 = vrot.slane %v4449, 4
        %v4452 = vrot.slane %v3625, 5
        %v4453 = vsel %vm1251, %v4451, %v4452
        %v4454 = vrot.slane %v4342, 5
        %v4455 = vrot.slane %v4454, 4
        %v4456 = vrot.slane %v3627, 5
        %v4457 = vsel %vm1251, %v4455, %v4456
        %v4458 = vrot.slane %v4456, 4
        %v4459 = vrot.slane %v3628, 5
        %v4460 = vsel %vm1251, %v4458, %v4459
        %v4461 = vrot.slane %v4343, 5
        %v4462 = vrot.slane %v4461, 4
        %v4463 = vrot.slane %v3630, 5
        %v4464 = vsel %vm1251, %v4462, %v4463
        %v4465 = vrot.slane %v4463, 4
        %v4466 = vrot.slane %v3631, 5
        %v4467 = vsel %vm1251, %v4465, %v4466
        %v4468 = vrot.slane %v4344, 5
        %v4469 = vrot.slane %v4468, 4
        %v4470 = vrot.slane %v3633, 5
        %v4471 = vsel %vm1251, %v4469, %v4470
        %v4472 = vrot.slane %v4470, 4
        %v4473 = vrot.slane %v3634, 5
        %v4474 = vsel %vm1251, %v4472, %v4473
        %v4475 = vrot.slane %v4345, 5
        %v4476 = vrot.slane %v4475, 4
        %v4477 = vrot.slane %v3636, 5
        %v4478 = vsel %vm1251, %v4476, %v4477
        %v4479 = vrot.slane %v4477, 4
        %v4480 = vrot.slane %v3637, 5
        %v4481 = vsel %vm1251, %v4479, %v4480
        %v4482 = vrot.slane %v4346, 5
        %v4483 = vrot.slane %v4482, 4
        %v4484 = vrot.slane %v3639, 5
        %v4485 = vsel %vm1251, %v4483, %v4484
        %v4486 = vrot.slane %v4484, 4
        %v4487 = vrot.slane %v3640, 5
        %v4488 = vsel %vm1251, %v4486, %v4487
        %v4489 = vrot.slane %v4347, 5
        %v4490 = vrot.slane %v4489, 4
        %v4491 = vrot.slane %v3642, 5
        %v4492 = vsel %vm1251, %v4490, %v4491
        %v4493 = vrot.slane %v4491, 4
        %v4494 = vrot.slane %v3643, 5
        %v4495 = vsel %vm1251, %v4493, %v4494
        %v4496 = vrot.slane %v4348, 5
        %v4497 = vrot.slane %v4496, 4
        %v4498 = vrot.slane %v3645, 5
        %v4499 = vsel %vm1251, %v4497, %v4498
        %v4500 = vrot.slane %v4498, 4
        %v4501 = vrot.slane %v3646, 5
        %v4502 = vsel %vm1251, %v4500, %v4501
        %v4503 = vrot.slane %v4349, 5
        %v4504 = vrot.slane %v4503, 4
        %v4505 = vrot.slane %v3648, 5
        %v4506 = vsel %vm1251, %v4504, %v4505
        %v4507 = vrot.slane %v4505, 4
        %v4508 = vrot.slane %v3649, 5
        %v4509 = vsel %vm1251, %v4507, %v4508
        %s4510 = scalar_lea.vmem %s1, 64
        %v4511 = vld [vmem:[%s4510] sm:$0xf]
        %v4512 = vld [vmem:[%s4510 + $0x4] sm:$0x3]
        %v4513 = vunpack.c.l.b16 %v4401
        %v4514 = vunpack.c.l.b16 %v4404
        %v4515 = vunpack.c.l.b16 %v4408
        %v4516 = vunpack.c.l.b16 %v4411
        %v4517 = vunpack.c.l.b16 %v4415
        %v4518 = vunpack.c.l.b16 %v4418
        %v4519 = vunpack.c.l.b16 %v4422
        %v4520 = vunpack.c.l.b16 %v4425
        %v4521 = vunpack.c.l.b16 %v4429
        %v4522 = vunpack.c.l.b16 %v4432
        %v4523 = vunpack.c.l.b16 %v4436
        %v4524 = vunpack.c.l.b16 %v4439
        %v4525 = vunpack.c.l.b16 %v4443
        %v4526 = vunpack.c.l.b16 %v4446
        %v4527 = vunpack.c.l.b16 %v4450
        %v4528 = vunpack.c.l.b16 %v4453
        %v4529 = vunpack.c.l.b16 %v4457
        %v4530 = vunpack.c.l.b16 %v4460
        %v4531 = vunpack.c.l.b16 %v4464
        %v4532 = vunpack.c.l.b16 %v4467
        %v4533 = vunpack.c.l.b16 %v4471
        %v4534 = vunpack.c.l.b16 %v4474
        %v4535 = vunpack.c.l.b16 %v4478
        %v4536 = vunpack.c.l.b16 %v4481
        %v4537 = vunpack.c.l.b16 %v4485
        %v4538 = vunpack.c.l.b16 %v4488
        %v4539 = vunpack.c.l.b16 %v4492
        %v4540 = vunpack.c.l.b16 %v4495
        %v4541 = vunpack.c.l.b16 %v4499
        %v4542 = vunpack.c.l.b16 %v4502
        %v4543 = vunpack.c.l.b16 %v4506
        %v4544 = vunpack.c.l.b16 %v4509
        %v4545 = vpack.c.b16 %v4514, %v4513
        %v4546 = vpack.c.b16 %v4516, %v4515
        %v4547 = vpack.c.b16 %v4518, %v4517
        %v4548 = vpack.c.b16 %v4520, %v4519
        %v4549 = vpack.c.b16 %v4522, %v4521
        %v4550 = vpack.c.b16 %v4524, %v4523
        %v4551 = vpack.c.b16 %v4526, %v4525
        %v4552 = vpack.c.b16 %v4528, %v4527
        %v4553 = vpack.c.b16 %v4530, %v4529
        %v4554 = vpack.c.b16 %v4532, %v4531
        %v4555 = vpack.c.b16 %v4534, %v4533
        %v4556 = vpack.c.b16 %v4536, %v4535
        %v4557 = vpack.c.b16 %v4538, %v4537
        %v4558 = vpack.c.b16 %v4540, %v4539
        %v4559 = vpack.c.b16 %v4542, %v4541
        %v4560 = vpack.c.b16 %v4544, %v4543
        %v4563 = vunpack.c.l.b16 %v4511
        %v4564 = vunpack.c.l.b16 %v4512
        %v4565 = vpack.c.b16 %v4564, %v4563
        %v4567 = vsel %vm690, %v4545, 0
        %v4570 = vsel %vm690, %v4546, 0
        %v4573 = vsel %vm690, %v4547, 0
        %v4576 = vsel %vm690, %v4548, 0
        %v4579 = vsel %vm690, %v4549, 0
        %v4582 = vsel %vm690, %v4550, 0
        %v4585 = vsel %vm690, %v4551, 0
        %v4588 = vsel %vm690, %v4552, 0
        %v4591 = vsel %vm690, %v4553, 0
        %v4594 = vsel %vm690, %v4554, 0
        %v4597 = vsel %vm690, %v4555, 0
        %v4600 = vsel %vm690, %v4556, 0
        %v4603 = vsel %vm690, %v4557, 0
        %v4606 = vsel %vm690, %v4558, 0
        %v4609 = vsel %vm690, %v4559, 0
        %v4612 = vsel %vm690, %v4560, 0
        %v4615 = vsel %vm739, %v4565, 0
        %4617 = vmatprep.subr.bf16.mxu0 0
        %4618 = vmatpush1.bf16.msra.mxu0 0
        %4619 = vmatprep.subr.bf16.mxu0 0
        %4620 = vmatpush1.bf16.msra.mxu0 0
        %4621 = vmatprep.subr.bf16.mxu0 0
        %4622 = vmatpush1.bf16.msra.mxu0 0
        %4623 = vmatprep.subr.bf16.mxu0 0
        %4624 = vmatpush1.bf16.msra.mxu0 0
        %4625 = vmatprep.subr.bf16.mxu0 0
        %4626 = vmatpush1.bf16.msra.mxu0 0
        %4627 = vmatprep.subr.bf16.mxu0 0
        %4628 = vmatpush1.bf16.msra.mxu0 0
        %4629 = vmatprep.subr.bf16.mxu0 0
        %4630 = vmatpush1.bf16.msra.mxu0 0
        %4631 = vmatprep.subr.bf16.mxu0 0
        %4632 = vmatpush1.bf16.msra.mxu0 %v4615
        %4633 = vmatprep.subr.bf16.mxu0 0
        %4634 = vmatpush2.bf16.msra.mxu0 0
        %4635 = vmatprep.subr.bf16.mxu0 0
        %4636 = vmatpush2.bf16.msra.mxu0 0
        %4637 = vmatprep.subr.bf16.mxu0 0
        %4638 = vmatpush2.bf16.msra.mxu0 0
        %4639 = vmatprep.subr.bf16.mxu0 0
        %4640 = vmatpush2.bf16.msra.mxu0 0
        %4641 = vmatprep.subr.bf16.mxu0 0
        %4642 = vmatpush2.bf16.msra.mxu0 0
        %4643 = vmatprep.subr.bf16.mxu0 0
        %4644 = vmatpush2.bf16.msra.mxu0 0
        %4645 = vmatprep.subr.bf16.mxu0 0
        %4646 = vmatpush2.bf16.msra.mxu0 0
        %4647 = vmatprep.subr.bf16.mxu0 0
        %4648 = vmatpush2.bf16.msra.mxu0 0
        %4649 = vmatprep.mubr.bf16.mxu0 0
        %4650 = vmatmul.mubr.bf16.gmra.mxu0 %v4567
        %v4651 = vpop.f32.mrf.mxu0
        %v4652 = vadd.f32 0.0, %v4651
        %v4653 = vpop.f32.mrf.mxu0
        %v4654 = vpop.f32.mrf.mxu0
        %v4655 = vadd.f32 0.0, %v4654
        %v4656 = vpop.f32.mrf.mxu0
        %4657 = vmatprep.mubr.bf16.mxu0 0
        %4658 = vmatmul.mubr.bf16.gmra.mxu0 %v4570
        %v4659 = vpop.f32.mrf.mxu0
        %v4660 = vadd.f32 0.0, %v4659
        %v4661 = vpop.f32.mrf.mxu0
        %v4662 = vpop.f32.mrf.mxu0
        %v4663 = vadd.f32 0.0, %v4662
        %v4664 = vpop.f32.mrf.mxu0
        %4665 = vmatprep.mubr.bf16.mxu0 0
        %4666 = vmatmul.mubr.bf16.gmra.mxu0 %v4573
        %v4667 = vpop.f32.mrf.mxu0
        %v4668 = vadd.f32 0.0, %v4667
        %v4669 = vpop.f32.mrf.mxu0
        %v4670 = vpop.f32.mrf.mxu0
        %v4671 = vadd.f32 0.0, %v4670
        %v4672 = vpop.f32.mrf.mxu0
        %4673 = vmatprep.mubr.bf16.mxu0 0
        %4674 = vmatmul.mubr.bf16.gmra.mxu0 %v4576
        %v4675 = vpop.f32.mrf.mxu0
        %v4676 = vadd.f32 0.0, %v4675
        %v4677 = vpop.f32.mrf.mxu0
        %v4678 = vpop.f32.mrf.mxu0
        %v4679 = vadd.f32 0.0, %v4678
        %v4680 = vpop.f32.mrf.mxu0
        %4681 = vmatprep.mubr.bf16.mxu0 0
        %4682 = vmatmul.mubr.bf16.gmra.mxu0 %v4579
        %v4683 = vpop.f32.mrf.mxu0
        %v4684 = vadd.f32 0.0, %v4683
        %v4685 = vpop.f32.mrf.mxu0
        %v4686 = vpop.f32.mrf.mxu0
        %v4687 = vadd.f32 0.0, %v4686
        %v4688 = vpop.f32.mrf.mxu0
        %4689 = vmatprep.mubr.bf16.mxu0 0
        %4690 = vmatmul.mubr.bf16.gmra.mxu0 %v4582
        %v4691 = vpop.f32.mrf.mxu0
        %v4692 = vadd.f32 0.0, %v4691
        %v4693 = vpop.f32.mrf.mxu0
        %v4694 = vpop.f32.mrf.mxu0
        %v4695 = vadd.f32 0.0, %v4694
        %v4696 = vpop.f32.mrf.mxu0
        %4697 = vmatprep.mubr.bf16.mxu0 0
        %4698 = vmatmul.mubr.bf16.gmra.mxu0 %v4585
        %v4699 = vpop.f32.mrf.mxu0
        %v4700 = vadd.f32 0.0, %v4699
        %v4701 = vpop.f32.mrf.mxu0
        %v4702 = vpop.f32.mrf.mxu0
        %v4703 = vadd.f32 0.0, %v4702
        %v4704 = vpop.f32.mrf.mxu0
        %4705 = vmatprep.mubr.bf16.mxu0 0
        %4706 = vmatmul.mubr.bf16.gmra.mxu0 %v4588
        %v4707 = vpop.f32.mrf.mxu0
        %v4708 = vadd.f32 0.0, %v4707
        %v4709 = vpop.f32.mrf.mxu0
        %v4710 = vpop.f32.mrf.mxu0
        %v4711 = vadd.f32 0.0, %v4710
        %v4712 = vpop.f32.mrf.mxu0
        %4713 = vmatprep.mubr.bf16.mxu0 0
        %4714 = vmatmul.mubr.bf16.gmra.mxu0 %v4591
        %v4715 = vpop.f32.mrf.mxu0
        %v4716 = vadd.f32 0.0, %v4715
        %v4717 = vpop.f32.mrf.mxu0
        %v4718 = vpop.f32.mrf.mxu0
        %v4719 = vadd.f32 0.0, %v4718
        %v4720 = vpop.f32.mrf.mxu0
        %4721 = vmatprep.mubr.bf16.mxu0 0
        %4722 = vmatmul.mubr.bf16.gmra.mxu0 %v4594
        %v4723 = vpop.f32.mrf.mxu0
        %v4724 = vadd.f32 0.0, %v4723
        %v4725 = vpop.f32.mrf.mxu0
        %v4726 = vpop.f32.mrf.mxu0
        %v4727 = vadd.f32 0.0, %v4726
        %v4728 = vpop.f32.mrf.mxu0
        %4729 = vmatprep.mubr.bf16.mxu0 0
        %4730 = vmatmul.mubr.bf16.gmra.mxu0 %v4597
        %v4731 = vpop.f32.mrf.mxu0
        %v4732 = vadd.f32 0.0, %v4731
        %v4733 = vpop.f32.mrf.mxu0
        %v4734 = vpop.f32.mrf.mxu0
        %v4735 = vadd.f32 0.0, %v4734
        %v4736 = vpop.f32.mrf.mxu0
        %4737 = vmatprep.mubr.bf16.mxu0 0
        %4738 = vmatmul.mubr.bf16.gmra.mxu0 %v4600
        %v4739 = vpop.f32.mrf.mxu0
        %v4740 = vadd.f32 0.0, %v4739
        %v4741 = vpop.f32.mrf.mxu0
        %v4742 = vpop.f32.mrf.mxu0
        %v4743 = vadd.f32 0.0, %v4742
        %v4744 = vpop.f32.mrf.mxu0
        %4745 = vmatprep.mubr.bf16.mxu0 0
        %4746 = vmatmul.mubr.bf16.gmra.mxu0 %v4603
        %v4747 = vpop.f32.mrf.mxu0
        %v4748 = vadd.f32 0.0, %v4747
        %v4749 = vpop.f32.mrf.mxu0
        %v4750 = vpop.f32.mrf.mxu0
        %v4751 = vadd.f32 0.0, %v4750
        %v4752 = vpop.f32.mrf.mxu0
        %4753 = vmatprep.mubr.bf16.mxu0 0
        %4754 = vmatmul.mubr.bf16.gmra.mxu0 %v4606
        %v4755 = vpop.f32.mrf.mxu0
        %v4756 = vadd.f32 0.0, %v4755
        %v4757 = vpop.f32.mrf.mxu0
        %v4758 = vpop.f32.mrf.mxu0
        %v4759 = vadd.f32 0.0, %v4758
        %v4760 = vpop.f32.mrf.mxu0
        %4761 = vmatprep.mubr.bf16.mxu0 0
        %4762 = vmatmul.mubr.bf16.gmra.mxu0 %v4609
        %v4763 = vpop.f32.mrf.mxu0
        %v4764 = vadd.f32 0.0, %v4763
        %v4765 = vpop.f32.mrf.mxu0
        %v4766 = vpop.f32.mrf.mxu0
        %v4767 = vadd.f32 0.0, %v4766
        %v4768 = vpop.f32.mrf.mxu0
        %4769 = vmatprep.mubr.bf16.mxu0 0
        %4770 = vmatmul.mubr.bf16.gmra.mxu0 %v4612
        %v4771 = vpop.f32.mrf.mxu0
        %v4772 = vadd.f32 0.0, %v4771
        %v4773 = vpop.f32.mrf.mxu0
        %v4774 = vpop.f32.mrf.mxu0
        %v4775 = vadd.f32 0.0, %v4774
        %v4776 = vpop.f32.mrf.mxu0
        %4777 = vdwg.mxu0
        %v4778 = vadd.f32 %v4302, %v4652
        %v4779 = vadd.f32 %v4303, %v4655
        %v4780 = vadd.f32 %v4304, %v4660
        %v4781 = vadd.f32 %v4305, %v4663
        %v4782 = vadd.f32 %v4306, %v4668
        %v4783 = vadd.f32 %v4307, %v4671
        %v4784 = vadd.f32 %v4308, %v4676
        %v4785 = vadd.f32 %v4309, %v4679
        %v4786 = vadd.f32 %v4310, %v4684
        %v4787 = vadd.f32 %v4311, %v4687
        %v4788 = vadd.f32 %v4312, %v4692
        %v4789 = vadd.f32 %v4313, %v4695
        %v4790 = vadd.f32 %v4314, %v4700
        %v4791 = vadd.f32 %v4315, %v4703
        %v4792 = vadd.f32 %v4316, %v4708
        %v4793 = vadd.f32 %v4317, %v4711
        %v4794 = vadd.f32 %v4318, %v4716
        %v4795 = vadd.f32 %v4319, %v4719
        %v4796 = vadd.f32 %v4320, %v4724
        %v4797 = vadd.f32 %v4321, %v4727
        %v4798 = vadd.f32 %v4322, %v4732
        %v4799 = vadd.f32 %v4323, %v4735
        %v4800 = vadd.f32 %v4324, %v4740
        %v4801 = vadd.f32 %v4325, %v4743
        %v4802 = vadd.f32 %v4326, %v4748
        %v4803 = vadd.f32 %v4327, %v4751
        %v4804 = vadd.f32 %v4328, %v4756
        %v4805 = vadd.f32 %v4329, %v4759
        %v4806 = vadd.f32 %v4330, %v4764
        %v4807 = vadd.f32 %v4331, %v4767
        %v4808 = vadd.f32 %v4332, %v4772
        %v4809 = vadd.f32 %v4333, %v4775
        %v4810 = vld [vmem:[%s2] sm:$0x1]
        %v4812 = vlaneseq
        %v4813 = vshrl.u32 %v4812, 7
        %v4814 = vsub.s32 0, %v4813
        %v4815 = vrot.slane %v4810, %v4814
        %v4817 = vmul.f32 %v4778, %v4815
        %v4818 = vmul.f32 %v4779, %v4815
        %v4819 = vmul.f32 %v4780, %v4815
        %v4820 = vmul.f32 %v4781, %v4815
        %v4821 = vmul.f32 %v4782, %v4815
        %v4822 = vmul.f32 %v4783, %v4815
        %v4823 = vmul.f32 %v4784, %v4815
        %v4824 = vmul.f32 %v4785, %v4815
        %v4825 = vmul.f32 %v4786, %v4815
        %v4826 = vmul.f32 %v4787, %v4815
        %v4827 = vmul.f32 %v4788, %v4815
        %v4828 = vmul.f32 %v4789, %v4815
        %v4829 = vmul.f32 %v4790, %v4815
        %v4830 = vmul.f32 %v4791, %v4815
        %v4831 = vmul.f32 %v4792, %v4815
        %v4832 = vmul.f32 %v4793, %v4815
        %v4833 = vmul.f32 %v4794, %v4815
        %v4834 = vmul.f32 %v4795, %v4815
        %v4835 = vmul.f32 %v4796, %v4815
        %v4836 = vmul.f32 %v4797, %v4815
        %v4837 = vmul.f32 %v4798, %v4815
        %v4838 = vmul.f32 %v4799, %v4815
        %v4839 = vmul.f32 %v4800, %v4815
        %v4840 = vmul.f32 %v4801, %v4815
        %v4841 = vmul.f32 %v4802, %v4815
        %v4842 = vmul.f32 %v4803, %v4815
        %v4843 = vmul.f32 %v4804, %v4815
        %v4844 = vmul.f32 %v4805, %v4815
        %v4845 = vmul.f32 %v4806, %v4815
        %v4846 = vmul.f32 %v4807, %v4815
        %v4847 = vmul.f32 %v4808, %v4815
        %v4848 = vmul.f32 %v4809, %v4815
        %v4849 = vld [vmem:[%s3] sm:$0x1]
        %v4851 = vlaneseq
        %v4852 = vshrl.u32 %v4851, 7
        %v4853 = vsub.s32 0, %v4852
        %v4854 = vrot.slane %v4849, %v4853
        %v4856 = vadd.f32 %v4817, %v4854
        %v4857 = vadd.f32 %v4818, %v4854
        %v4858 = vadd.f32 %v4819, %v4854
        %v4859 = vadd.f32 %v4820, %v4854
        %v4860 = vadd.f32 %v4821, %v4854
        %v4861 = vadd.f32 %v4822, %v4854
        %v4862 = vadd.f32 %v4823, %v4854
        %v4863 = vadd.f32 %v4824, %v4854
        %v4864 = vadd.f32 %v4825, %v4854
        %v4865 = vadd.f32 %v4826, %v4854
        %v4866 = vadd.f32 %v4827, %v4854
        %v4867 = vadd.f32 %v4828, %v4854
        %v4868 = vadd.f32 %v4829, %v4854
        %v4869 = vadd.f32 %v4830, %v4854
        %v4870 = vadd.f32 %v4831, %v4854
        %v4871 = vadd.f32 %v4832, %v4854
        %v4872 = vadd.f32 %v4833, %v4854
        %v4873 = vadd.f32 %v4834, %v4854
        %v4874 = vadd.f32 %v4835, %v4854
        %v4875 = vadd.f32 %v4836, %v4854
        %v4876 = vadd.f32 %v4837, %v4854
        %v4877 = vadd.f32 %v4838, %v4854
        %v4878 = vadd.f32 %v4839, %v4854
        %v4879 = vadd.f32 %v4840, %v4854
        %v4880 = vadd.f32 %v4841, %v4854
        %v4881 = vadd.f32 %v4842, %v4854
        %v4882 = vadd.f32 %v4843, %v4854
        %v4883 = vadd.f32 %v4844, %v4854
        %v4884 = vadd.f32 %v4845, %v4854
        %v4885 = vadd.f32 %v4846, %v4854
        %v4886 = vadd.f32 %v4847, %v4854
        %v4887 = vadd.f32 %v4848, %v4854
        %vm4888 = vcmask 261120
        %4889 = vst.msk [vmem:[%s190] sm:$0xff] %vm4888, %v4856
        %4890 = vst.msk [vmem:[%s190 + $0x8] sm:$0xff] %vm4888, %v4857
        %4891 = vst.msk [vmem:[%s190 + $0x10] sm:$0xff] %vm4888, %v4858
        %4892 = vst.msk [vmem:[%s190 + $0x18] sm:$0xff] %vm4888, %v4859
        %4893 = vst.msk [vmem:[%s190 + $0x20] sm:$0xff] %vm4888, %v4860
        %4894 = vst.msk [vmem:[%s190 + $0x28] sm:$0xff] %vm4888, %v4861
        %4895 = vst.msk [vmem:[%s190 + $0x30] sm:$0xff] %vm4888, %v4862
        %4896 = vst.msk [vmem:[%s190 + $0x38] sm:$0xff] %vm4888, %v4863
        %4897 = vst.msk [vmem:[%s190 + $0x40] sm:$0xff] %vm4888, %v4864
        %4898 = vst.msk [vmem:[%s190 + $0x48] sm:$0xff] %vm4888, %v4865
        %4899 = vst.msk [vmem:[%s190 + $0x50] sm:$0xff] %vm4888, %v4866
        %4900 = vst.msk [vmem:[%s190 + $0x58] sm:$0xff] %vm4888, %v4867
        %4901 = vst.msk [vmem:[%s190 + $0x60] sm:$0xff] %vm4888, %v4868
        %4902 = vst.msk [vmem:[%s190 + $0x68] sm:$0xff] %vm4888, %v4869
        %4903 = vst.msk [vmem:[%s190 + $0x70] sm:$0xff] %vm4888, %v4870
        %4904 = vst.msk [vmem:[%s190 + $0x78] sm:$0xff] %vm4888, %v4871
        %4905 = vst.msk [vmem:[%s190 + $0x80] sm:$0xff] %vm4888, %v4872
        %4906 = vst.msk [vmem:[%s190 + $0x88] sm:$0xff] %vm4888, %v4873
        %4907 = vst.msk [vmem:[%s190 + $0x90] sm:$0xff] %vm4888, %v4874
        %4908 = vst.msk [vmem:[%s190 + $0x98] sm:$0xff] %vm4888, %v4875
        %4909 = vst.msk [vmem:[%s190 + $0xa0] sm:$0xff] %vm4888, %v4876
        %4910 = vst.msk [vmem:[%s190 + $0xa8] sm:$0xff] %vm4888, %v4877
        %4911 = vst.msk [vmem:[%s190 + $0xb0] sm:$0xff] %vm4888, %v4878
        %4912 = vst.msk [vmem:[%s190 + $0xb8] sm:$0xff] %vm4888, %v4879
        %4913 = vst.msk [vmem:[%s190 + $0xc0] sm:$0xff] %vm4888, %v4880
        %4914 = vst.msk [vmem:[%s190 + $0xc8] sm:$0xff] %vm4888, %v4881
        %4915 = vst.msk [vmem:[%s190 + $0xd0] sm:$0xff] %vm4888, %v4882
        %4916 = vst.msk [vmem:[%s190 + $0xd8] sm:$0xff] %vm4888, %v4883
        %4917 = vst.msk [vmem:[%s190 + $0xe0] sm:$0xff] %vm4888, %v4884
        %4918 = vst.msk [vmem:[%s190 + $0xe8] sm:$0xff] %vm4888, %v4885
        %4919 = vst.msk [vmem:[%s190 + $0xf0] sm:$0xff] %vm4888, %v4886
        %4920 = vst.msk [vmem:[%s190 + $0xf8] sm:$0xff] %vm4888, %v4887
        %s4921 = sand.u32 %s115, 1
        %s4922 = scalar_lea.sflag [#allocation3], %s4921
        %s4923 = sand.u32 %s115, 1
        %s4924 = smul.addr %s4923, 256
        %s4925 = scalar_lea.vmem [#allocation2], %s4924
        // Predicated region
        $region37: #{convgate_forward.3} parent=35 // pred_check
          %p4926 = pneg %p125
        $region38: #{convgate_forward.3} parent=35 // pred_check_branch
          %4928 = sbr.rel (%p4926) target = $region40
        $region39: #{convgate_forward.3} parent=35 // pred_region
          %s4930 = ssub.s32 4096, 4096
          %4931 = vsyncadd %s4922, %s4930
          %s4932 = smul.addr %s18, 32
          %s4933 = smul.addr %s4932, 128
          %s4934 = scalar_lea.hbm %s4, %s4933
          %s4935 = sshll.u32 %s4925, 4
          %s4936 = int_to_ptr.vmem [resolvable:$true] %s4935
          %4941 = dma.vmem_to_hbm [thread:$0]  %s4936, 4096, %s4934, %s4922, 128, 128, 8
        $region40: #{convgate_forward.3} parent=35 // pred_fallthru
          _
      $region36: #{convgate_forward.3} parent=5 // pred_fallthru
        _
      %p4942 = scmp.le.s32.totalorder 2, %s13
      // Predicated region
      $region41: #{convgate_forward.3} parent=5 // pred_check
        %p4943 = pneg %p4942
      $region42: #{convgate_forward.3} parent=5 // pred_check_branch
        %4945 = sbr.rel (%p4943) target = $region44
      $region43: #{convgate_forward.3} parent=5 // pred_region
        %s4946 = ssub.s32 %s13, 2
        // Predicated region
        $region45: #{convgate_forward.3} parent=43 // pred_check
          %p4947 = pneg %p131
        $region46: #{convgate_forward.3} parent=43 // pred_check_branch
          %4949 = sbr.rel (%p4947) target = $region48
        $region47: #{convgate_forward.3} parent=43 // pred_region
          %s4950 = sand.u32 %s116, 1
          %s4951 = scalar_lea.sflag [#allocation3], %s4950
          %s4952 = sand.u32 %s116, 1
          %s4953 = smul.addr %s4952, 256
          %s4954 = scalar_lea.vmem [#allocation2], %s4953
          %4955 = dma.done %s4951, 4096
        $region48: #{convgate_forward.3} parent=43 // pred_fallthru
          _
      $region44: #{convgate_forward.3} parent=5 // pred_fallthru
        _
    $region6: #{convgate_forward.3} parent=1 // loop_footer
      %s17 = sadd.s32 1, %s13
    $region7: #{convgate_forward.3} parent=1 // loop_footer_branch
      %12 = sbr.rel target = $region3
    $region8: #{convgate_forward.3} parent=1 // loop_exit
      _
    %4956 = vsyncpa [#allocation3], 1
    %s4957 = scalar_lea.sflag [#allocation3], 1
    %4958 = vsyncpa %s4957, 1

</llo_original>
